<compile_context>
chip_gen: v7x
topology: tpu7x:2x2x1
jax: 0.10.0
libtpu: 0.0.40
codegen_flags: <defaults>
</compile_context>

<pallas_src>
import math
import numpy as np
import jax
import jax.numpy as jnp
from jax.experimental import pallas as pl
from jax.experimental.pallas import tpu as pltpu

# ----------------------------- static config -----------------------------
B = 2
C = 1                  # len(inst_list) == 1, mono, non-complex
F0 = 16                # int(f_size/2 + 1), f_size = 30
T = 32                 # number of time frames (seq_len)
D_MODEL = 256
D_FF = 512
NUM_HEADS = 4
HEAD_DIM = D_MODEL // NUM_HEADS
N_LAYERS = 2
OUT_SIZE = 128         # len(inst_list) * 128
SR = 22050
HOP_LENGTH = 512
PE_BPM_LEN = 1
MAX_LEN = 5000
BPM_MIN = 60.0
BPM_MAX = 240.0
LN_EPS = 1e-5
INST = "vocals"
BT = B * T


# ----------------------------- helpers -----------------------------
def _layer_norm(x, g, b):
    mu = jnp.mean(x, axis=-1, keepdims=True)
    xc = x - mu
    var = jnp.mean(xc * xc, axis=-1, keepdims=True)
    return xc * jax.lax.rsqrt(var + LN_EPS) * g + b


def make_pe_weight(max_len, d_model):
    # weight[pos-1, i-1]: w = pos / 10000**((2*i//2)/d) = pos / 10000**(i/d);
    # sin(w) if i even else cos(w); pos, i start at 1 (matches the PyTorch source).
    pos = np.arange(1, max_len + 1, dtype=np.float64)[:, None]
    i = np.arange(1, d_model + 1, dtype=np.int64)[None, :]
    w = pos / (10000.0 ** (((2 * i) // 2) / float(d_model)))
    return np.where(i % 2 == 0, np.sin(w), np.cos(w)).astype(np.float32)


PE_TABLE = jnp.asarray(make_pe_weight(MAX_LEN, D_MODEL))   # (5000, 256), device const


# ----------------------------- fused Pallas kernel -----------------------------
def fused_kernel(x0_ref, pe_ref, bpm_ref,
                 w_exp_ref, b_exp_ref,
                 wqkv_ref, bqkv_ref, wo_ref, bo_ref,
                 ln1g_ref, ln1b_ref,
                 w1_ref, b1_ref, w2_ref, b2_ref,
                 ln2g_ref, ln2b_ref,
                 wp_ref, bp_ref,
                 w1x_ref, w1b_ref, b1m_ref,
                 w2m_ref, b2m_ref,
                 emb_ref):
    # ---- expand Linear + BPM positional encoding, batch folded: (B*T, D) ----
    x = (jnp.dot(x0_ref[...], w_exp_ref[...], preferred_element_type=jnp.float32)
         + b_exp_ref[...] + pe_ref[...])                               # (BT, D) f32

    scale = 1.0 / math.sqrt(HEAD_DIM)
    for l in range(N_LAYERS):                                          # static unroll
        # fused QKV projection on the whole (B*T, D) slab, bf16 MXU / f32 acc
        qkv = (jnp.dot(x.astype(jnp.bfloat16), wqkv_ref[l],
                       preferred_element_type=jnp.float32) + bqkv_ref[l])  # (BT, 3D)
        qkv3 = qkv.reshape(B, T, 3 * D_MODEL)                          # free (lead split)

        attn = jnp.zeros((BT, D_MODEL), jnp.float32)
        for h in range(NUM_HEADS):                                     # static head loop
            o = h * HEAD_DIM
            qh = qkv3[:, :, o:o + HEAD_DIM]
            kh = qkv3[:, :, D_MODEL + o:D_MODEL + o + HEAD_DIM]
            vh = qkv3[:, :, 2 * D_MODEL + o:2 * D_MODEL + o + HEAD_DIM]
            s = jnp.einsum('bqd,bkd->bqk',
                           qh.astype(jnp.bfloat16), kh.astype(jnp.bfloat16),
                           preferred_element_type=jnp.float32) * scale     # (B,T,T)
            s = s - jnp.max(s, axis=-1, keepdims=True)
            p = jnp.exp(s)
            p = p * pl.reciprocal(jnp.sum(p, axis=-1, keepdims=True), approx=True)
            ctx = jnp.einsum('bqk,bkd->bqd',
                             p.astype(jnp.bfloat16), vh.astype(jnp.bfloat16),
                             preferred_element_type=jnp.float32)            # (B,T,Dh)
            # accumulate output projection per head -> no lane-axis concat
            attn = attn + jnp.dot(ctx.reshape(BT, HEAD_DIM).astype(jnp.bfloat16),
                                  wo_ref[l * NUM_HEADS + h],
                                  preferred_element_type=jnp.float32)
        attn = attn + bo_ref[l]
        # TODO(synk): MHA / FFN dropout (p=0.1) are modeled as identity (eval mode).
        h1 = _layer_norm(attn + x, ln1g_ref[l], ln1b_ref[l])           # f32 elementwise
        ff = jnp.maximum(jnp.dot(h1.astype(jnp.bfloat16), w1_ref[l],
                                 preferred_element_type=jnp.float32) + b1_ref[l], 0.0)
        ff = jnp.dot(ff.astype(jnp.bfloat16), w2_ref[l],
                     preferred_element_type=jnp.float32) + b2_ref[l]
        x = _layer_norm(ff + h1, ln2g_ref[l], ln2b_ref[l])

    # ---- SelfAttentionPooling: softmax over T of Linear(D, 1), per batch ----
    scores = (jnp.dot(x, wp_ref[...], preferred_element_type=jnp.float32)
              + bp_ref[...]).reshape(B, T, 1)
    scores = scores - jnp.max(scores, axis=1, keepdims=True)
    p = jnp.exp(scores)
    att = p * pl.reciprocal(jnp.sum(p, axis=1, keepdims=True), approx=True)   # (B,T,1)
    utter = jnp.sum(x.reshape(B, T, D_MODEL) * att, axis=1)                   # (B,D)

    # ---- MLP with add_bpm: bpm column folded as a rank-1 update of layer 1 ----
    bpm_n = (bpm_ref[...] - BPM_MIN) * (1.0 / (BPM_MAX - BPM_MIN))            # (B,1)
    hmlp = (jnp.dot(utter.astype(jnp.bfloat16), w1x_ref[...],
                    preferred_element_type=jnp.float32)
            + bpm_n * w1b_ref[...] + b1m_ref[...])                            # (B, 2*OUT)
    hmlp = jnp.maximum(hmlp, 0.0)
    emb_ref[...] = (jnp.dot(hmlp.astype(jnp.bfloat16), w2m_ref[...],
                            preferred_element_type=jnp.float32) + b2m_ref[...])


def fused_forward(x0, pe, bpm, p):
    # No grid: every operand is a single full block resident in VMEM
    # (weights ~2.4 MB bf16 + tiny activations -> fits all generations incl. v7x).
    return pl.pallas_call(
        fused_kernel,
        out_shape=jax.ShapeDtypeStruct((B, OUT_SIZE), jnp.float32),
    )(x0, pe, bpm,
      p["w_exp"], p["b_exp"],
      p["wqkv"], p["bqkv"], p["wo"], p["bo"],
      p["ln1g"], p["ln1b"],
      p["w1"], p["b1"], p["w2"], p["b2"],
      p["ln2g"], p["ln2b"],
      p["wp"], p["bp"],
      p["w1x"], p["w1b"], p["b1m"],
      p["w2m"], p["b2m"])


# ----------------------------- parameters -----------------------------
def init_params(key):
    ks = iter(jax.random.split(key, 16))
    L = N_LAYERS

    def lin(fan_in, shape, dtype=jnp.bfloat16):
        w = jax.random.normal(next(ks), shape, jnp.float32) / np.sqrt(fan_in)
        return w.astype(dtype)

    return {
        # expand Linear(16, 256) (small K: keep f32)
        "w_exp": lin(F0, (F0, D_MODEL), jnp.float32),
        "b_exp": 0.01 * jax.random.normal(next(ks), (1, D_MODEL), jnp.float32),
        # per-layer weights stacked on a leading layer axis (bf16 matmul operands)
        "wqkv": lin(D_MODEL, (L, D_MODEL, 3 * D_MODEL)),
        "bqkv": jnp.zeros((L, 1, 3 * D_MODEL), jnp.float32),
        "wo":   lin(D_MODEL, (L * NUM_HEADS, HEAD_DIM, D_MODEL)),   # Wo pre-split per head
        "bo":   jnp.zeros((L, 1, D_MODEL), jnp.float32),
        "ln1g": jnp.ones((L, 1, D_MODEL), jnp.float32),
        "ln1b": jnp.zeros((L, 1, D_MODEL), jnp.float32),
        "w1":   lin(D_MODEL, (L, D_MODEL, D_FF)),
        "b1":   jnp.zeros((L, 1, D_FF), jnp.float32),
        "w2":   lin(D_FF, (L, D_FF, D_MODEL)),
        "b2":   jnp.zeros((L, 1, D_MODEL), jnp.float32),
        "ln2g": jnp.ones((L, 1, D_MODEL), jnp.float32),
        "ln2b": jnp.zeros((L, 1, D_MODEL), jnp.float32),
        # SelfAttentionPooling Linear(D, 1) (tiny: keep f32)
        "wp":   lin(D_MODEL, (D_MODEL, 1), jnp.float32),
        "bp":   jnp.zeros((1, 1), jnp.float32),
        # MLP: layer-1 weight split into x part (D cols) and the bpm column
        "w1x":  lin(D_MODEL + 1, (D_MODEL, 2 * OUT_SIZE)),
        "w1b":  lin(D_MODEL + 1, (1, 2 * OUT_SIZE), jnp.float32),
        "b1m":  jnp.zeros((1, 2 * OUT_SIZE), jnp.float32),
        "w2m":  lin(2 * OUT_SIZE, (2 * OUT_SIZE, OUT_SIZE)),
        "b2m":  jnp.zeros((1, OUT_SIZE), jnp.float32),
    }


# ----------------------------- forward -----------------------------
def transformer_with_bpm_forward(inp, bpm, params):
    # inp: (B, C, F0, T) float32 (PyTorch NCHW convention), bpm: (B, 1)
    bpm = bpm.astype(jnp.float32)
    # glue (device-side): (B, C, F0, T) -> (B*T, C*F0) rows (C == 1)
    x0 = jnp.transpose(inp[:, 0], (0, 2, 1)).reshape(BT, F0)
    # BPM-based positional encoding, built on device (no host sync):
    # row t of batch b is PE_TABLE[t % beat_len(b)], beat_len = ceil(60/bpm*sr/hop)*pe_bpm_len
    beat_len = (jnp.ceil(60.0 / bpm[:, 0] * SR / HOP_LENGTH).astype(jnp.int32)
                * PE_BPM_LEN)                                            # (B,)
    idx = jnp.arange(T, dtype=jnp.int32)[None, :] % beat_len[:, None]    # (B, T)
    pe = jnp.take(PE_TABLE, idx, axis=0).reshape(BT, D_MODEL)            # (B*T, D)

    emb = fused_forward(x0, pe, bpm, params)                             # (B, OUT_SIZE)
    # output_probability (len(inst_list)==1 branch): log(sqrt(sum(emb^2))), done in
    # the wrapper so the kernel only stores the lane-dense (B, 128) embedding.
    prob = 0.5 * jnp.log(jnp.sum(emb * emb, axis=1))                     # (B,)
    # TODO(synk): ConditionalSimNet1d multi-inst masking branch not implemented
    # (class undefined in source); this config uses the len(inst_list)==1 branch.
    return emb, {INST: prob}


# ----------------------------- main -----------------------------
if __name__ == "__main__":
    key = jax.random.PRNGKey(0)
    k_in, k_bpm = jax.random.split(key, 2)
    inp = jax.random.normal(k_in, (B, C, F0, T), jnp.float32)
    bpm = 120.0 + 100.0 * jax.random.uniform(k_bpm, (B, 1), jnp.float32)
    params = init_params(jax.random.PRNGKey(42))

    fwd = jax.jit(transformer_with_bpm_forward)
    emb, prob = fwd(inp, bpm, params)
    emb = jax.block_until_ready(emb)
    p = jax.block_until_ready(prob[INST])

    assert emb.shape == (B, OUT_SIZE) and emb.dtype == jnp.float32
    assert p.shape == (B,)
    assert bool(jnp.all(jnp.isfinite(emb))) and bool(jnp.all(jnp.isfinite(p)))
    print("KERNEL_OK")
</pallas_src>

<mosaic_0001>
module attributes {stable_mosaic.version = 11 : i64} {
  func.func @fused_kernel(%arg0: memref<64x16xf32, #tpu.memory_space<vmem>>, %arg1: memref<64x256xf32, #tpu.memory_space<vmem>>, %arg2: memref<2x1xf32, #tpu.memory_space<vmem>>, %arg3: memref<16x256xf32, #tpu.memory_space<vmem>>, %arg4: memref<1x256xf32, #tpu.memory_space<vmem>>, %arg5: memref<2x256x768xbf16, #tpu.memory_space<vmem>>, %arg6: memref<2x1x768xf32, #tpu.memory_space<vmem>>, %arg7: memref<8x64x256xbf16, #tpu.memory_space<vmem>>, %arg8: memref<2x1x256xf32, #tpu.memory_space<vmem>>, %arg9: memref<2x1x256xf32, #tpu.memory_space<vmem>>, %arg10: memref<2x1x256xf32, #tpu.memory_space<vmem>>, %arg11: memref<2x256x512xbf16, #tpu.memory_space<vmem>>, %arg12: memref<2x1x512xf32, #tpu.memory_space<vmem>>, %arg13: memref<2x512x256xbf16, #tpu.memory_space<vmem>>, %arg14: memref<2x1x256xf32, #tpu.memory_space<vmem>>, %arg15: memref<2x1x256xf32, #tpu.memory_space<vmem>>, %arg16: memref<2x1x256xf32, #tpu.memory_space<vmem>>, %arg17: memref<256x1xf32, #tpu.memory_space<vmem>>, %arg18: memref<1x1xf32, #tpu.memory_space<vmem>>, %arg19: memref<256x256xbf16, #tpu.memory_space<vmem>>, %arg20: memref<1x256xf32, #tpu.memory_space<vmem>>, %arg21: memref<1x256xf32, #tpu.memory_space<vmem>>, %arg22: memref<256x128xbf16, #tpu.memory_space<vmem>>, %arg23: memref<1x128xf32, #tpu.memory_space<vmem>>, %arg24: memref<2x128xf32, #tpu.memory_space<vmem>>) attributes {dimension_semantics = [], scalar_prefetch = 0 : i64, scratch_operands = 0 : i64, tpu.core_type = #tpu.core_type<tc>} {
    %c0 = arith.constant 0 : index
    %c0_0 = arith.constant 0 : index
    %0 = vector.load %arg0[%c0, %c0_0] : memref<64x16xf32, #tpu.memory_space<vmem>>, vector<64x16xf32>
    %c0_1 = arith.constant 0 : index
    %c0_2 = arith.constant 0 : index
    %1 = vector.load %arg3[%c0_1, %c0_2] : memref<16x256xf32, #tpu.memory_space<vmem>>, vector<16x256xf32>
    %cst = arith.constant dense<0.000000e+00> : vector<64x256xf32>
    %2 = tpu.matmul %0, %1, %cst {dimension_numbers = #tpu.dot_dimension_numbers<[1], [0], [0], [1], [0, 0, 1, 1], [], []>} : vector<64x16xf32>, vector<16x256xf32>, vector<64x256xf32> -> vector<64x256xf32>
    %c0_3 = arith.constant 0 : index
    %c0_4 = arith.constant 0 : index
    %3 = vector.load %arg4[%c0_3, %c0_4] : memref<1x256xf32, #tpu.memory_space<vmem>>, vector<1x256xf32>
    %4 = vector.broadcast %3 : vector<1x256xf32> to vector<64x256xf32>
    %5 = arith.addf %2, %4 : vector<64x256xf32>
    %c0_5 = arith.constant 0 : index
    %c0_6 = arith.constant 0 : index
    %6 = vector.load %arg1[%c0_5, %c0_6] : memref<64x256xf32, #tpu.memory_space<vmem>>, vector<64x256xf32>
    %7 = arith.addf %5, %6 : vector<64x256xf32>
    %8 = arith.truncf %7 : vector<64x256xf32> to vector<64x256xbf16>
    %c0_7 = arith.constant 0 : index
    %c0_8 = arith.constant 0 : index
    %c0_9 = arith.constant 0 : index
    %9 = vector.load %arg5[%c0_7, %c0_8, %c0_9] : memref<2x256x768xbf16, #tpu.memory_space<vmem>>, vector<1x256x768xbf16>
    %10 = vector.shape_cast %9 : vector<1x256x768xbf16> to vector<256x768xbf16>
    %cst_10 = arith.constant dense<0.000000e+00> : vector<64x768xf32>
    %11 = tpu.matmul %8, %10, %cst_10 {dimension_numbers = #tpu.dot_dimension_numbers<[1], [0], [0], [1], [0, 0, 1, 1], [], []>} : vector<64x256xbf16>, vector<256x768xbf16>, vector<64x768xf32> -> vector<64x768xf32>
    %c0_11 = arith.constant 0 : index
    %c0_12 = arith.constant 0 : index
    %c0_13 = arith.constant 0 : index
    %12 = vector.load %arg6[%c0_11, %c0_12, %c0_13] : memref<2x1x768xf32, #tpu.memory_space<vmem>>, vector<1x1x768xf32>
    %13 = vector.shape_cast %12 : vector<1x1x768xf32> to vector<1x768xf32>
    %14 = vector.broadcast %13 : vector<1x768xf32> to vector<64x768xf32>
    %15 = arith.addf %11, %14 : vector<64x768xf32>
    %16 = vector.shape_cast %15 : vector<64x768xf32> to vector<2x32x768xf32>
    %cst_14 = arith.constant 0.000000e+00 : f32
    %17 = vector.broadcast %cst_14 : f32 to vector<64x256xf32>
    %18 = vector.extract_strided_slice %16 {offsets = [0, 0, 0], sizes = [2, 32, 64], strides = [1, 1, 1]} : vector<2x32x768xf32> to vector<2x32x64xf32>
    %19 = vector.extract_strided_slice %16 {offsets = [0, 0, 256], sizes = [2, 32, 64], strides = [1, 1, 1]} : vector<2x32x768xf32> to vector<2x32x64xf32>
    %20 = vector.extract_strided_slice %16 {offsets = [0, 0, 512], sizes = [2, 32, 64], strides = [1, 1, 1]} : vector<2x32x768xf32> to vector<2x32x64xf32>
    %21 = arith.truncf %18 : vector<2x32x64xf32> to vector<2x32x64xbf16>
    %22 = arith.truncf %19 : vector<2x32x64xf32> to vector<2x32x64xbf16>
    "tpu.trace_start"() <{level = 10 : i32, message = "bqd,bkd->bqk"}> : () -> ()
    %cst_15 = arith.constant dense<0.000000e+00> : vector<2x32x32xf32>
    %23 = tpu.matmul %21, %22, %cst_15 {dimension_numbers = #tpu.dot_dimension_numbers<[2], [2], [1], [1], [0, 0, 0, 1, 1, 1], [0], [0]>} : vector<2x32x64xbf16>, vector<2x32x64xbf16>, vector<2x32x32xf32> -> vector<2x32x32xf32>
    "tpu.trace_stop"() : () -> ()
    %cst_16 = arith.constant 1.250000e-01 : f32
    %24 = vector.broadcast %cst_16 : f32 to vector<2x32x32xf32>
    %25 = arith.mulf %23, %24 : vector<2x32x32xf32>
    %cst_17 = arith.constant dense<0xFF800000> : vector<2x32xf32>
    %26 = vector.multi_reduction <maximumf>, %25, %cst_17 [2] : vector<2x32x32xf32> to vector<2x32xf32>
    %27 = vector.shape_cast %26 : vector<2x32xf32> to vector<2x32x1xf32>
    %28 = vector.broadcast %27 : vector<2x32x1xf32> to vector<2x32x32xf32>
    %29 = arith.subf %25, %28 : vector<2x32x32xf32>
    %30 = math.exp %29 : vector<2x32x32xf32>
    %cst_18 = arith.constant dense<0.000000e+00> : vector<2x32xf32>
    %31 = vector.multi_reduction <add>, %30, %cst_18 [2] : vector<2x32x32xf32> to vector<2x32xf32>
    %32 = vector.shape_cast %31 : vector<2x32xf32> to vector<2x32x1xf32>
    %33 = tpu.reciprocal %32 {approx = true} : vector<2x32x1xf32> -> vector<2x32x1xf32>
    %34 = vector.broadcast %33 : vector<2x32x1xf32> to vector<2x32x32xf32>
    %35 = arith.mulf %30, %34 : vector<2x32x32xf32>
    %36 = arith.truncf %35 : vector<2x32x32xf32> to vector<2x32x32xbf16>
    %37 = arith.truncf %20 : vector<2x32x64xf32> to vector<2x32x64xbf16>
    "tpu.trace_start"() <{level = 10 : i32, message = "bqk,bkd->bqd"}> : () -> ()
    %cst_19 = arith.constant dense<0.000000e+00> : vector<2x32x64xf32>
    %38 = tpu.matmul %36, %37, %cst_19 {dimension_numbers = #tpu.dot_dimension_numbers<[2], [1], [1], [2], [0, 0, 0, 1, 1, 2], [0], [0]>} : vector<2x32x32xbf16>, vector<2x32x64xbf16>, vector<2x32x64xf32> -> vector<2x32x64xf32>
    "tpu.trace_stop"() : () -> ()
    %39 = vector.shape_cast %38 : vector<2x32x64xf32> to vector<64x64xf32>
    %40 = arith.truncf %39 : vector<64x64xf32> to vector<64x64xbf16>
    %c0_20 = arith.constant 0 : index
    %c0_21 = arith.constant 0 : index
    %c0_22 = arith.constant 0 : index
    %41 = vector.load %arg7[%c0_20, %c0_21, %c0_22] : memref<8x64x256xbf16, #tpu.memory_space<vmem>>, vector<1x64x256xbf16>
    %42 = vector.shape_cast %41 : vector<1x64x256xbf16> to vector<64x256xbf16>
    %cst_23 = arith.constant dense<0.000000e+00> : vector<64x256xf32>
    %43 = tpu.matmul %40, %42, %cst_23 {dimension_numbers = #tpu.dot_dimension_numbers<[1], [0], [0], [1], [0, 0, 1, 1], [], []>} : vector<64x64xbf16>, vector<64x256xbf16>, vector<64x256xf32> -> vector<64x256xf32>
    %44 = arith.addf %17, %43 : vector<64x256xf32>
    %45 = vector.extract_strided_slice %16 {offsets = [0, 0, 64], sizes = [2, 32, 64], strides = [1, 1, 1]} : vector<2x32x768xf32> to vector<2x32x64xf32>
    %46 = vector.extract_strided_slice %16 {offsets = [0, 0, 320], sizes = [2, 32, 64], strides = [1, 1, 1]} : vector<2x32x768xf32> to vector<2x32x64xf32>
    %47 = vector.extract_strided_slice %16 {offsets = [0, 0, 576], sizes = [2, 32, 64], strides = [1, 1, 1]} : vector<2x32x768xf32> to vector<2x32x64xf32>
    %48 = arith.truncf %45 : vector<2x32x64xf32> to vector<2x32x64xbf16>
    %49 = arith.truncf %46 : vector<2x32x64xf32> to vector<2x32x64xbf16>
    "tpu.trace_start"() <{level = 10 : i32, message = "bqd,bkd->bqk"}> : () -> ()
    %cst_24 = arith.constant dense<0.000000e+00> : vector<2x32x32xf32>
    %50 = tpu.matmul %48, %49, %cst_24 {dimension_numbers = #tpu.dot_dimension_numbers<[2], [2], [1], [1], [0, 0, 0, 1, 1, 1], [0], [0]>} : vector<2x32x64xbf16>, vector<2x32x64xbf16>, vector<2x32x32xf32> -> vector<2x32x32xf32>
    "tpu.trace_stop"() : () -> ()
    %cst_25 = arith.constant 1.250000e-01 : f32
    %51 = vector.broadcast %cst_25 : f32 to vector<2x32x32xf32>
    %52 = arith.mulf %50, %51 : vector<2x32x32xf32>
    %cst_26 = arith.constant dense<0xFF800000> : vector<2x32xf32>
    %53 = vector.multi_reduction <maximumf>, %52, %cst_26 [2] : vector<2x32x32xf32> to vector<2x32xf32>
    %54 = vector.shape_cast %53 : vector<2x32xf32> to vector<2x32x1xf32>
    %55 = vector.broadcast %54 : vector<2x32x1xf32> to vector<2x32x32xf32>
    %56 = arith.subf %52, %55 : vector<2x32x32xf32>
    %57 = math.exp %56 : vector<2x32x32xf32>
    %cst_27 = arith.constant dense<0.000000e+00> : vector<2x32xf32>
    %58 = vector.multi_reduction <add>, %57, %cst_27 [2] : vector<2x32x32xf32> to vector<2x32xf32>
    %59 = vector.shape_cast %58 : vector<2x32xf32> to vector<2x32x1xf32>
    %60 = tpu.reciprocal %59 {approx = true} : vector<2x32x1xf32> -> vector<2x32x1xf32>
    %61 = vector.broadcast %60 : vector<2x32x1xf32> to vector<2x32x32xf32>
    %62 = arith.mulf %57, %61 : vector<2x32x32xf32>
    %63 = arith.truncf %62 : vector<2x32x32xf32> to vector<2x32x32xbf16>
    %64 = arith.truncf %47 : vector<2x32x64xf32> to vector<2x32x64xbf16>
    "tpu.trace_start"() <{level = 10 : i32, message = "bqk,bkd->bqd"}> : () -> ()
    %cst_28 = arith.constant dense<0.000000e+00> : vector<2x32x64xf32>
    %65 = tpu.matmul %63, %64, %cst_28 {dimension_numbers = #tpu.dot_dimension_numbers<[2], [1], [1], [2], [0, 0, 0, 1, 1, 2], [0], [0]>} : vector<2x32x32xbf16>, vector<2x32x64xbf16>, vector<2x32x64xf32> -> vector<2x32x64xf32>
    "tpu.trace_stop"() : () -> ()
    %66 = vector.shape_cast %65 : vector<2x32x64xf32> to vector<64x64xf32>
    %67 = arith.truncf %66 : vector<64x64xf32> to vector<64x64xbf16>
    %c1 = arith.constant 1 : index
    %c0_29 = arith.constant 0 : index
    %c0_30 = arith.constant 0 : index
    %68 = vector.load %arg7[%c1, %c0_29, %c0_30] : memref<8x64x256xbf16, #tpu.memory_space<vmem>>, vector<1x64x256xbf16>
    %69 = vector.shape_cast %68 : vector<1x64x256xbf16> to vector<64x256xbf16>
    %cst_31 = arith.constant dense<0.000000e+00> : vector<64x256xf32>
    %70 = tpu.matmul %67, %69, %cst_31 {dimension_numbers = #tpu.dot_dimension_numbers<[1], [0], [0], [1], [0, 0, 1, 1], [], []>} : vector<64x64xbf16>, vector<64x256xbf16>, vector<64x256xf32> -> vector<64x256xf32>
    %71 = arith.addf %44, %70 : vector<64x256xf32>
    %72 = vector.extract_strided_slice %16 {offsets = [0, 0, 128], sizes = [2, 32, 64], strides = [1, 1, 1]} : vector<2x32x768xf32> to vector<2x32x64xf32>
    %73 = vector.extract_strided_slice %16 {offsets = [0, 0, 384], sizes = [2, 32, 64], strides = [1, 1, 1]} : vector<2x32x768xf32> to vector<2x32x64xf32>
    %74 = vector.extract_strided_slice %16 {offsets = [0, 0, 640], sizes = [2, 32, 64], strides = [1, 1, 1]} : vector<2x32x768xf32> to vector<2x32x64xf32>
    %75 = arith.truncf %72 : vector<2x32x64xf32> to vector<2x32x64xbf16>
    %76 = arith.truncf %73 : vector<2x32x64xf32> to vector<2x32x64xbf16>
    "tpu.trace_start"() <{level = 10 : i32, message = "bqd,bkd->bqk"}> : () -> ()
    %cst_32 = arith.constant dense<0.000000e+00> : vector<2x32x32xf32>
    %77 = tpu.matmul %75, %76, %cst_32 {dimension_numbers = #tpu.dot_dimension_numbers<[2], [2], [1], [1], [0, 0, 0, 1, 1, 1], [0], [0]>} : vector<2x32x64xbf16>, vector<2x32x64xbf16>, vector<2x32x32xf32> -> vector<2x32x32xf32>
    "tpu.trace_stop"() : () -> ()
    %cst_33 = arith.constant 1.250000e-01 : f32
    %78 = vector.broadcast %cst_33 : f32 to vector<2x32x32xf32>
    %79 = arith.mulf %77, %78 : vector<2x32x32xf32>
    %cst_34 = arith.constant dense<0xFF800000> : vector<2x32xf32>
    %80 = vector.multi_reduction <maximumf>, %79, %cst_34 [2] : vector<2x32x32xf32> to vector<2x32xf32>
    %81 = vector.shape_cast %80 : vector<2x32xf32> to vector<2x32x1xf32>
    %82 = vector.broadcast %81 : vector<2x32x1xf32> to vector<2x32x32xf32>
    %83 = arith.subf %79, %82 : vector<2x32x32xf32>
    %84 = math.exp %83 : vector<2x32x32xf32>
    %cst_35 = arith.constant dense<0.000000e+00> : vector<2x32xf32>
    %85 = vector.multi_reduction <add>, %84, %cst_35 [2] : vector<2x32x32xf32> to vector<2x32xf32>
    %86 = vector.shape_cast %85 : vector<2x32xf32> to vector<2x32x1xf32>
    %87 = tpu.reciprocal %86 {approx = true} : vector<2x32x1xf32> -> vector<2x32x1xf32>
    %88 = vector.broadcast %87 : vector<2x32x1xf32> to vector<2x32x32xf32>
    %89 = arith.mulf %84, %88 : vector<2x32x32xf32>
    %90 = arith.truncf %89 : vector<2x32x32xf32> to vector<2x32x32xbf16>
    %91 = arith.truncf %74 : vector<2x32x64xf32> to vector<2x32x64xbf16>
    "tpu.trace_start"() <{level = 10 : i32, message = "bqk,bkd->bqd"}> : () -> ()
    %cst_36 = arith.constant dense<0.000000e+00> : vector<2x32x64xf32>
    %92 = tpu.matmul %90, %91, %cst_36 {dimension_numbers = #tpu.dot_dimension_numbers<[2], [1], [1], [2], [0, 0, 0, 1, 1, 2], [0], [0]>} : vector<2x32x32xbf16>, vector<2x32x64xbf16>, vector<2x32x64xf32> -> vector<2x32x64xf32>
    "tpu.trace_stop"() : () -> ()
    %93 = vector.shape_cast %92 : vector<2x32x64xf32> to vector<64x64xf32>
    %94 = arith.truncf %93 : vector<64x64xf32> to vector<64x64xbf16>
    %c2 = arith.constant 2 : index
    %c0_37 = arith.constant 0 : index
    %c0_38 = arith.constant 0 : index
    %95 = vector.load %arg7[%c2, %c0_37, %c0_38] : memref<8x64x256xbf16, #tpu.memory_space<vmem>>, vector<1x64x256xbf16>
    %96 = vector.shape_cast %95 : vector<1x64x256xbf16> to vector<64x256xbf16>
    %cst_39 = arith.constant dense<0.000000e+00> : vector<64x256xf32>
    %97 = tpu.matmul %94, %96, %cst_39 {dimension_numbers = #tpu.dot_dimension_numbers<[1], [0], [0], [1], [0, 0, 1, 1], [], []>} : vector<64x64xbf16>, vector<64x256xbf16>, vector<64x256xf32> -> vector<64x256xf32>
    %98 = arith.addf %71, %97 : vector<64x256xf32>
    %99 = vector.extract_strided_slice %16 {offsets = [0, 0, 192], sizes = [2, 32, 64], strides = [1, 1, 1]} : vector<2x32x768xf32> to vector<2x32x64xf32>
    %100 = vector.extract_strided_slice %16 {offsets = [0, 0, 448], sizes = [2, 32, 64], strides = [1, 1, 1]} : vector<2x32x768xf32> to vector<2x32x64xf32>
    %101 = vector.extract_strided_slice %16 {offsets = [0, 0, 704], sizes = [2, 32, 64], strides = [1, 1, 1]} : vector<2x32x768xf32> to vector<2x32x64xf32>
    %102 = arith.truncf %99 : vector<2x32x64xf32> to vector<2x32x64xbf16>
    %103 = arith.truncf %100 : vector<2x32x64xf32> to vector<2x32x64xbf16>
    "tpu.trace_start"() <{level = 10 : i32, message = "bqd,bkd->bqk"}> : () -> ()
    %cst_40 = arith.constant dense<0.000000e+00> : vector<2x32x32xf32>
    %104 = tpu.matmul %102, %103, %cst_40 {dimension_numbers = #tpu.dot_dimension_numbers<[2], [2], [1], [1], [0, 0, 0, 1, 1, 1], [0], [0]>} : vector<2x32x64xbf16>, vector<2x32x64xbf16>, vector<2x32x32xf32> -> vector<2x32x32xf32>
    "tpu.trace_stop"() : () -> ()
    %cst_41 = arith.constant 1.250000e-01 : f32
    %105 = vector.broadcast %cst_41 : f32 to vector<2x32x32xf32>
    %106 = arith.mulf %104, %105 : vector<2x32x32xf32>
    %cst_42 = arith.constant dense<0xFF800000> : vector<2x32xf32>
    %107 = vector.multi_reduction <maximumf>, %106, %cst_42 [2] : vector<2x32x32xf32> to vector<2x32xf32>
    %108 = vector.shape_cast %107 : vector<2x32xf32> to vector<2x32x1xf32>
    %109 = vector.broadcast %108 : vector<2x32x1xf32> to vector<2x32x32xf32>
    %110 = arith.subf %106, %109 : vector<2x32x32xf32>
    %111 = math.exp %110 : vector<2x32x32xf32>
    %cst_43 = arith.constant dense<0.000000e+00> : vector<2x32xf32>
    %112 = vector.multi_reduction <add>, %111, %cst_43 [2] : vector<2x32x32xf32> to vector<2x32xf32>
    %113 = vector.shape_cast %112 : vector<2x32xf32> to vector<2x32x1xf32>
    %114 = tpu.reciprocal %113 {approx = true} : vector<2x32x1xf32> -> vector<2x32x1xf32>
    %115 = vector.broadcast %114 : vector<2x32x1xf32> to vector<2x32x32xf32>
    %116 = arith.mulf %111, %115 : vector<2x32x32xf32>
    %117 = arith.truncf %116 : vector<2x32x32xf32> to vector<2x32x32xbf16>
    %118 = arith.truncf %101 : vector<2x32x64xf32> to vector<2x32x64xbf16>
    "tpu.trace_start"() <{level = 10 : i32, message = "bqk,bkd->bqd"}> : () -> ()
    %cst_44 = arith.constant dense<0.000000e+00> : vector<2x32x64xf32>
    %119 = tpu.matmul %117, %118, %cst_44 {dimension_numbers = #tpu.dot_dimension_numbers<[2], [1], [1], [2], [0, 0, 0, 1, 1, 2], [0], [0]>} : vector<2x32x32xbf16>, vector<2x32x64xbf16>, vector<2x32x64xf32> -> vector<2x32x64xf32>
    "tpu.trace_stop"() : () -> ()
    %120 = vector.shape_cast %119 : vector<2x32x64xf32> to vector<64x64xf32>
    %121 = arith.truncf %120 : vector<64x64xf32> to vector<64x64xbf16>
    %c3 = arith.constant 3 : index
    %c0_45 = arith.constant 0 : index
    %c0_46 = arith.constant 0 : index
    %122 = vector.load %arg7[%c3, %c0_45, %c0_46] : memref<8x64x256xbf16, #tpu.memory_space<vmem>>, vector<1x64x256xbf16>
    %123 = vector.shape_cast %122 : vector<1x64x256xbf16> to vector<64x256xbf16>
    %cst_47 = arith.constant dense<0.000000e+00> : vector<64x256xf32>
    %124 = tpu.matmul %121, %123, %cst_47 {dimension_numbers = #tpu.dot_dimension_numbers<[1], [0], [0], [1], [0, 0, 1, 1], [], []>} : vector<64x64xbf16>, vector<64x256xbf16>, vector<64x256xf32> -> vector<64x256xf32>
    %125 = arith.addf %98, %124 : vector<64x256xf32>
    %c0_48 = arith.constant 0 : index
    %c0_49 = arith.constant 0 : index
    %c0_50 = arith.constant 0 : index
    %126 = vector.load %arg8[%c0_48, %c0_49, %c0_50] : memref<2x1x256xf32, #tpu.memory_space<vmem>>, vector<1x1x256xf32>
    %127 = vector.shape_cast %126 : vector<1x1x256xf32> to vector<1x256xf32>
    %128 = vector.broadcast %127 : vector<1x256xf32> to vector<64x256xf32>
    %129 = arith.addf %125, %128 : vector<64x256xf32>
    %130 = arith.addf %129, %7 : vector<64x256xf32>
    %c0_51 = arith.constant 0 : index
    %c0_52 = arith.constant 0 : index
    %c0_53 = arith.constant 0 : index
    %131 = vector.load %arg9[%c0_51, %c0_52, %c0_53] : memref<2x1x256xf32, #tpu.memory_space<vmem>>, vector<1x1x256xf32>
    %132 = vector.shape_cast %131 : vector<1x1x256xf32> to vector<1x256xf32>
    %c0_54 = arith.constant 0 : index
    %c0_55 = arith.constant 0 : index
    %c0_56 = arith.constant 0 : index
    %133 = vector.load %arg10[%c0_54, %c0_55, %c0_56] : memref<2x1x256xf32, #tpu.memory_space<vmem>>, vector<1x1x256xf32>
    %134 = vector.shape_cast %133 : vector<1x1x256xf32> to vector<1x256xf32>
    %cst_57 = arith.constant dense<0.000000e+00> : vector<64xf32>
    %135 = vector.multi_reduction <add>, %130, %cst_57 [1] : vector<64x256xf32> to vector<64xf32>
    %136 = vector.shape_cast %135 : vector<64xf32> to vector<64x1xf32>
    %cst_58 = arith.constant 2.560000e+02 : f32
    %137 = vector.broadcast %cst_58 : f32 to vector<64x1xf32>
    %138 = arith.divf %136, %137 : vector<64x1xf32>
    %139 = vector.broadcast %138 : vector<64x1xf32> to vector<64x256xf32>
    %140 = arith.subf %130, %139 : vector<64x256xf32>
    %141 = arith.mulf %140, %140 : vector<64x256xf32>
    %cst_59 = arith.constant dense<0.000000e+00> : vector<64xf32>
    %142 = vector.multi_reduction <add>, %141, %cst_59 [1] : vector<64x256xf32> to vector<64xf32>
    %143 = vector.shape_cast %142 : vector<64xf32> to vector<64x1xf32>
    %cst_60 = arith.constant 2.560000e+02 : f32
    %144 = vector.broadcast %cst_60 : f32 to vector<64x1xf32>
    %145 = arith.divf %143, %144 : vector<64x1xf32>
    %cst_61 = arith.constant 9.99999974E-6 : f32
    %146 = vector.broadcast %cst_61 : f32 to vector<64x1xf32>
    %147 = arith.addf %145, %146 : vector<64x1xf32>
    %148 = math.rsqrt %147 : vector<64x1xf32>
    %149 = vector.broadcast %148 : vector<64x1xf32> to vector<64x256xf32>
    %150 = arith.mulf %140, %149 : vector<64x256xf32>
    %151 = vector.broadcast %132 : vector<1x256xf32> to vector<64x256xf32>
    %152 = arith.mulf %150, %151 : vector<64x256xf32>
    %153 = vector.broadcast %134 : vector<1x256xf32> to vector<64x256xf32>
    %154 = arith.addf %152, %153 : vector<64x256xf32>
    %155 = arith.truncf %154 : vector<64x256xf32> to vector<64x256xbf16>
    %c0_62 = arith.constant 0 : index
    %c0_63 = arith.constant 0 : index
    %c0_64 = arith.constant 0 : index
    %156 = vector.load %arg11[%c0_62, %c0_63, %c0_64] : memref<2x256x512xbf16, #tpu.memory_space<vmem>>, vector<1x256x512xbf16>
    %157 = vector.shape_cast %156 : vector<1x256x512xbf16> to vector<256x512xbf16>
    %cst_65 = arith.constant dense<0.000000e+00> : vector<64x512xf32>
    %158 = tpu.matmul %155, %157, %cst_65 {dimension_numbers = #tpu.dot_dimension_numbers<[1], [0], [0], [1], [0, 0, 1, 1], [], []>} : vector<64x256xbf16>, vector<256x512xbf16>, vector<64x512xf32> -> vector<64x512xf32>
    %c0_66 = arith.constant 0 : index
    %c0_67 = arith.constant 0 : index
    %c0_68 = arith.constant 0 : index
    %159 = vector.load %arg12[%c0_66, %c0_67, %c0_68] : memref<2x1x512xf32, #tpu.memory_space<vmem>>, vector<1x1x512xf32>
    %160 = vector.shape_cast %159 : vector<1x1x512xf32> to vector<1x512xf32>
    %161 = vector.broadcast %160 : vector<1x512xf32> to vector<64x512xf32>
    %162 = arith.addf %158, %161 : vector<64x512xf32>
    %cst_69 = arith.constant 0.000000e+00 : f32
    %163 = vector.broadcast %cst_69 : f32 to vector<64x512xf32>
    %164 = arith.maximumf %162, %163 : vector<64x512xf32>
    %165 = arith.truncf %164 : vector<64x512xf32> to vector<64x512xbf16>
    %c0_70 = arith.constant 0 : index
    %c0_71 = arith.constant 0 : index
    %c0_72 = arith.constant 0 : index
    %166 = vector.load %arg13[%c0_70, %c0_71, %c0_72] : memref<2x512x256xbf16, #tpu.memory_space<vmem>>, vector<1x512x256xbf16>
    %167 = vector.shape_cast %166 : vector<1x512x256xbf16> to vector<512x256xbf16>
    %cst_73 = arith.constant dense<0.000000e+00> : vector<64x256xf32>
    %168 = tpu.matmul %165, %167, %cst_73 {dimension_numbers = #tpu.dot_dimension_numbers<[1], [0], [0], [1], [0, 0, 1, 1], [], []>} : vector<64x512xbf16>, vector<512x256xbf16>, vector<64x256xf32> -> vector<64x256xf32>
    %c0_74 = arith.constant 0 : index
    %c0_75 = arith.constant 0 : index
    %c0_76 = arith.constant 0 : index
    %169 = vector.load %arg14[%c0_74, %c0_75, %c0_76] : memref<2x1x256xf32, #tpu.memory_space<vmem>>, vector<1x1x256xf32>
    %170 = vector.shape_cast %169 : vector<1x1x256xf32> to vector<1x256xf32>
    %171 = vector.broadcast %170 : vector<1x256xf32> to vector<64x256xf32>
    %172 = arith.addf %168, %171 : vector<64x256xf32>
    %173 = arith.addf %172, %154 : vector<64x256xf32>
    %c0_77 = arith.constant 0 : index
    %c0_78 = arith.constant 0 : index
    %c0_79 = arith.constant 0 : index
    %174 = vector.load %arg15[%c0_77, %c0_78, %c0_79] : memref<2x1x256xf32, #tpu.memory_space<vmem>>, vector<1x1x256xf32>
    %175 = vector.shape_cast %174 : vector<1x1x256xf32> to vector<1x256xf32>
    %c0_80 = arith.constant 0 : index
    %c0_81 = arith.constant 0 : index
    %c0_82 = arith.constant 0 : index
    %176 = vector.load %arg16[%c0_80, %c0_81, %c0_82] : memref<2x1x256xf32, #tpu.memory_space<vmem>>, vector<1x1x256xf32>
    %177 = vector.shape_cast %176 : vector<1x1x256xf32> to vector<1x256xf32>
    %cst_83 = arith.constant dense<0.000000e+00> : vector<64xf32>
    %178 = vector.multi_reduction <add>, %173, %cst_83 [1] : vector<64x256xf32> to vector<64xf32>
    %179 = vector.shape_cast %178 : vector<64xf32> to vector<64x1xf32>
    %cst_84 = arith.constant 2.560000e+02 : f32
    %180 = vector.broadcast %cst_84 : f32 to vector<64x1xf32>
    %181 = arith.divf %179, %180 : vector<64x1xf32>
    %182 = vector.broadcast %181 : vector<64x1xf32> to vector<64x256xf32>
    %183 = arith.subf %173, %182 : vector<64x256xf32>
    %184 = arith.mulf %183, %183 : vector<64x256xf32>
    %cst_85 = arith.constant dense<0.000000e+00> : vector<64xf32>
    %185 = vector.multi_reduction <add>, %184, %cst_85 [1] : vector<64x256xf32> to vector<64xf32>
    %186 = vector.shape_cast %185 : vector<64xf32> to vector<64x1xf32>
    %cst_86 = arith.constant 2.560000e+02 : f32
    %187 = vector.broadcast %cst_86 : f32 to vector<64x1xf32>
    %188 = arith.divf %186, %187 : vector<64x1xf32>
    %cst_87 = arith.constant 9.99999974E-6 : f32
    %189 = vector.broadcast %cst_87 : f32 to vector<64x1xf32>
    %190 = arith.addf %188, %189 : vector<64x1xf32>
    %191 = math.rsqrt %190 : vector<64x1xf32>
    %192 = vector.broadcast %191 : vector<64x1xf32> to vector<64x256xf32>
    %193 = arith.mulf %183, %192 : vector<64x256xf32>
    %194 = vector.broadcast %175 : vector<1x256xf32> to vector<64x256xf32>
    %195 = arith.mulf %193, %194 : vector<64x256xf32>
    %196 = vector.broadcast %177 : vector<1x256xf32> to vector<64x256xf32>
    %197 = arith.addf %195, %196 : vector<64x256xf32>
    %198 = arith.truncf %197 : vector<64x256xf32> to vector<64x256xbf16>
    %c1_88 = arith.constant 1 : index
    %c0_89 = arith.constant 0 : index
    %c0_90 = arith.constant 0 : index
    %199 = vector.load %arg5[%c1_88, %c0_89, %c0_90] : memref<2x256x768xbf16, #tpu.memory_space<vmem>>, vector<1x256x768xbf16>
    %200 = vector.shape_cast %199 : vector<1x256x768xbf16> to vector<256x768xbf16>
    %cst_91 = arith.constant dense<0.000000e+00> : vector<64x768xf32>
    %201 = tpu.matmul %198, %200, %cst_91 {dimension_numbers = #tpu.dot_dimension_numbers<[1], [0], [0], [1], [0, 0, 1, 1], [], []>} : vector<64x256xbf16>, vector<256x768xbf16>, vector<64x768xf32> -> vector<64x768xf32>
    %c1_92 = arith.constant 1 : index
    %c0_93 = arith.constant 0 : index
    %c0_94 = arith.constant 0 : index
    %202 = vector.load %arg6[%c1_92, %c0_93, %c0_94] : memref<2x1x768xf32, #tpu.memory_space<vmem>>, vector<1x1x768xf32>
    %203 = vector.shape_cast %202 : vector<1x1x768xf32> to vector<1x768xf32>
    %204 = vector.broadcast %203 : vector<1x768xf32> to vector<64x768xf32>
    %205 = arith.addf %201, %204 : vector<64x768xf32>
    %206 = vector.shape_cast %205 : vector<64x768xf32> to vector<2x32x768xf32>
    %cst_95 = arith.constant 0.000000e+00 : f32
    %207 = vector.broadcast %cst_95 : f32 to vector<64x256xf32>
    %208 = vector.extract_strided_slice %206 {offsets = [0, 0, 0], sizes = [2, 32, 64], strides = [1, 1, 1]} : vector<2x32x768xf32> to vector<2x32x64xf32>
    %209 = vector.extract_strided_slice %206 {offsets = [0, 0, 256], sizes = [2, 32, 64], strides = [1, 1, 1]} : vector<2x32x768xf32> to vector<2x32x64xf32>
    %210 = vector.extract_strided_slice %206 {offsets = [0, 0, 512], sizes = [2, 32, 64], strides = [1, 1, 1]} : vector<2x32x768xf32> to vector<2x32x64xf32>
    %211 = arith.truncf %208 : vector<2x32x64xf32> to vector<2x32x64xbf16>
    %212 = arith.truncf %209 : vector<2x32x64xf32> to vector<2x32x64xbf16>
    "tpu.trace_start"() <{level = 10 : i32, message = "bqd,bkd->bqk"}> : () -> ()
    %cst_96 = arith.constant dense<0.000000e+00> : vector<2x32x32xf32>
    %213 = tpu.matmul %211, %212, %cst_96 {dimension_numbers = #tpu.dot_dimension_numbers<[2], [2], [1], [1], [0, 0, 0, 1, 1, 1], [0], [0]>} : vector<2x32x64xbf16>, vector<2x32x64xbf16>, vector<2x32x32xf32> -> vector<2x32x32xf32>
    "tpu.trace_stop"() : () -> ()
    %cst_97 = arith.constant 1.250000e-01 : f32
    %214 = vector.broadcast %cst_97 : f32 to vector<2x32x32xf32>
    %215 = arith.mulf %213, %214 : vector<2x32x32xf32>
    %cst_98 = arith.constant dense<0xFF800000> : vector<2x32xf32>
    %216 = vector.multi_reduction <maximumf>, %215, %cst_98 [2] : vector<2x32x32xf32> to vector<2x32xf32>
    %217 = vector.shape_cast %216 : vector<2x32xf32> to vector<2x32x1xf32>
    %218 = vector.broadcast %217 : vector<2x32x1xf32> to vector<2x32x32xf32>
    %219 = arith.subf %215, %218 : vector<2x32x32xf32>
    %220 = math.exp %219 : vector<2x32x32xf32>
    %cst_99 = arith.constant dense<0.000000e+00> : vector<2x32xf32>
    %221 = vector.multi_reduction <add>, %220, %cst_99 [2] : vector<2x32x32xf32> to vector<2x32xf32>
    %222 = vector.shape_cast %221 : vector<2x32xf32> to vector<2x32x1xf32>
    %223 = tpu.reciprocal %222 {approx = true} : vector<2x32x1xf32> -> vector<2x32x1xf32>
    %224 = vector.broadcast %223 : vector<2x32x1xf32> to vector<2x32x32xf32>
    %225 = arith.mulf %220, %224 : vector<2x32x32xf32>
    %226 = arith.truncf %225 : vector<2x32x32xf32> to vector<2x32x32xbf16>
    %227 = arith.truncf %210 : vector<2x32x64xf32> to vector<2x32x64xbf16>
    "tpu.trace_start"() <{level = 10 : i32, message = "bqk,bkd->bqd"}> : () -> ()
    %cst_100 = arith.constant dense<0.000000e+00> : vector<2x32x64xf32>
    %228 = tpu.matmul %226, %227, %cst_100 {dimension_numbers = #tpu.dot_dimension_numbers<[2], [1], [1], [2], [0, 0, 0, 1, 1, 2], [0], [0]>} : vector<2x32x32xbf16>, vector<2x32x64xbf16>, vector<2x32x64xf32> -> vector<2x32x64xf32>
    "tpu.trace_stop"() : () -> ()
    %229 = vector.shape_cast %228 : vector<2x32x64xf32> to vector<64x64xf32>
    %230 = arith.truncf %229 : vector<64x64xf32> to vector<64x64xbf16>
    %c4 = arith.constant 4 : index
    %c0_101 = arith.constant 0 : index
    %c0_102 = arith.constant 0 : index
    %231 = vector.load %arg7[%c4, %c0_101, %c0_102] : memref<8x64x256xbf16, #tpu.memory_space<vmem>>, vector<1x64x256xbf16>
    %232 = vector.shape_cast %231 : vector<1x64x256xbf16> to vector<64x256xbf16>
    %cst_103 = arith.constant dense<0.000000e+00> : vector<64x256xf32>
    %233 = tpu.matmul %230, %232, %cst_103 {dimension_numbers = #tpu.dot_dimension_numbers<[1], [0], [0], [1], [0, 0, 1, 1], [], []>} : vector<64x64xbf16>, vector<64x256xbf16>, vector<64x256xf32> -> vector<64x256xf32>
    %234 = arith.addf %207, %233 : vector<64x256xf32>
    %235 = vector.extract_strided_slice %206 {offsets = [0, 0, 64], sizes = [2, 32, 64], strides = [1, 1, 1]} : vector<2x32x768xf32> to vector<2x32x64xf32>
    %236 = vector.extract_strided_slice %206 {offsets = [0, 0, 320], sizes = [2, 32, 64], strides = [1, 1, 1]} : vector<2x32x768xf32> to vector<2x32x64xf32>
    %237 = vector.extract_strided_slice %206 {offsets = [0, 0, 576], sizes = [2, 32, 64], strides = [1, 1, 1]} : vector<2x32x768xf32> to vector<2x32x64xf32>
    %238 = arith.truncf %235 : vector<2x32x64xf32> to vector<2x32x64xbf16>
    %239 = arith.truncf %236 : vector<2x32x64xf32> to vector<2x32x64xbf16>
    "tpu.trace_start"() <{level = 10 : i32, message = "bqd,bkd->bqk"}> : () -> ()
    %cst_104 = arith.constant dense<0.000000e+00> : vector<2x32x32xf32>
    %240 = tpu.matmul %238, %239, %cst_104 {dimension_numbers = #tpu.dot_dimension_numbers<[2], [2], [1], [1], [0, 0, 0, 1, 1, 1], [0], [0]>} : vector<2x32x64xbf16>, vector<2x32x64xbf16>, vector<2x32x32xf32> -> vector<2x32x32xf32>
    "tpu.trace_stop"() : () -> ()
    %cst_105 = arith.constant 1.250000e-01 : f32
    %241 = vector.broadcast %cst_105 : f32 to vector<2x32x32xf32>
    %242 = arith.mulf %240, %241 : vector<2x32x32xf32>
    %cst_106 = arith.constant dense<0xFF800000> : vector<2x32xf32>
    %243 = vector.multi_reduction <maximumf>, %242, %cst_106 [2] : vector<2x32x32xf32> to vector<2x32xf32>
    %244 = vector.shape_cast %243 : vector<2x32xf32> to vector<2x32x1xf32>
    %245 = vector.broadcast %244 : vector<2x32x1xf32> to vector<2x32x32xf32>
    %246 = arith.subf %242, %245 : vector<2x32x32xf32>
    %247 = math.exp %246 : vector<2x32x32xf32>
    %cst_107 = arith.constant dense<0.000000e+00> : vector<2x32xf32>
    %248 = vector.multi_reduction <add>, %247, %cst_107 [2] : vector<2x32x32xf32> to vector<2x32xf32>
    %249 = vector.shape_cast %248 : vector<2x32xf32> to vector<2x32x1xf32>
    %250 = tpu.reciprocal %249 {approx = true} : vector<2x32x1xf32> -> vector<2x32x1xf32>
    %251 = vector.broadcast %250 : vector<2x32x1xf32> to vector<2x32x32xf32>
    %252 = arith.mulf %247, %251 : vector<2x32x32xf32>
    %253 = arith.truncf %252 : vector<2x32x32xf32> to vector<2x32x32xbf16>
    %254 = arith.truncf %237 : vector<2x32x64xf32> to vector<2x32x64xbf16>
    "tpu.trace_start"() <{level = 10 : i32, message = "bqk,bkd->bqd"}> : () -> ()
    %cst_108 = arith.constant dense<0.000000e+00> : vector<2x32x64xf32>
    %255 = tpu.matmul %253, %254, %cst_108 {dimension_numbers = #tpu.dot_dimension_numbers<[2], [1], [1], [2], [0, 0, 0, 1, 1, 2], [0], [0]>} : vector<2x32x32xbf16>, vector<2x32x64xbf16>, vector<2x32x64xf32> -> vector<2x32x64xf32>
    "tpu.trace_stop"() : () -> ()
    %256 = vector.shape_cast %255 : vector<2x32x64xf32> to vector<64x64xf32>
    %257 = arith.truncf %256 : vector<64x64xf32> to vector<64x64xbf16>
    %c5 = arith.constant 5 : index
    %c0_109 = arith.constant 0 : index
    %c0_110 = arith.constant 0 : index
    %258 = vector.load %arg7[%c5, %c0_109, %c0_110] : memref<8x64x256xbf16, #tpu.memory_space<vmem>>, vector<1x64x256xbf16>
    %259 = vector.shape_cast %258 : vector<1x64x256xbf16> to vector<64x256xbf16>
    %cst_111 = arith.constant dense<0.000000e+00> : vector<64x256xf32>
    %260 = tpu.matmul %257, %259, %cst_111 {dimension_numbers = #tpu.dot_dimension_numbers<[1], [0], [0], [1], [0, 0, 1, 1], [], []>} : vector<64x64xbf16>, vector<64x256xbf16>, vector<64x256xf32> -> vector<64x256xf32>
    %261 = arith.addf %234, %260 : vector<64x256xf32>
    %262 = vector.extract_strided_slice %206 {offsets = [0, 0, 128], sizes = [2, 32, 64], strides = [1, 1, 1]} : vector<2x32x768xf32> to vector<2x32x64xf32>
    %263 = vector.extract_strided_slice %206 {offsets = [0, 0, 384], sizes = [2, 32, 64], strides = [1, 1, 1]} : vector<2x32x768xf32> to vector<2x32x64xf32>
    %264 = vector.extract_strided_slice %206 {offsets = [0, 0, 640], sizes = [2, 32, 64], strides = [1, 1, 1]} : vector<2x32x768xf32> to vector<2x32x64xf32>
    %265 = arith.truncf %262 : vector<2x32x64xf32> to vector<2x32x64xbf16>
    %266 = arith.truncf %263 : vector<2x32x64xf32> to vector<2x32x64xbf16>
    "tpu.trace_start"() <{level = 10 : i32, message = "bqd,bkd->bqk"}> : () -> ()
    %cst_112 = arith.constant dense<0.000000e+00> : vector<2x32x32xf32>
    %267 = tpu.matmul %265, %266, %cst_112 {dimension_numbers = #tpu.dot_dimension_numbers<[2], [2], [1], [1], [0, 0, 0, 1, 1, 1], [0], [0]>} : vector<2x32x64xbf16>, vector<2x32x64xbf16>, vector<2x32x32xf32> -> vector<2x32x32xf32>
    "tpu.trace_stop"() : () -> ()
    %cst_113 = arith.constant 1.250000e-01 : f32
    %268 = vector.broadcast %cst_113 : f32 to vector<2x32x32xf32>
    %269 = arith.mulf %267, %268 : vector<2x32x32xf32>
    %cst_114 = arith.constant dense<0xFF800000> : vector<2x32xf32>
    %270 = vector.multi_reduction <maximumf>, %269, %cst_114 [2] : vector<2x32x32xf32> to vector<2x32xf32>
    %271 = vector.shape_cast %270 : vector<2x32xf32> to vector<2x32x1xf32>
    %272 = vector.broadcast %271 : vector<2x32x1xf32> to vector<2x32x32xf32>
    %273 = arith.subf %269, %272 : vector<2x32x32xf32>
    %274 = math.exp %273 : vector<2x32x32xf32>
    %cst_115 = arith.constant dense<0.000000e+00> : vector<2x32xf32>
    %275 = vector.multi_reduction <add>, %274, %cst_115 [2] : vector<2x32x32xf32> to vector<2x32xf32>
    %276 = vector.shape_cast %275 : vector<2x32xf32> to vector<2x32x1xf32>
    %277 = tpu.reciprocal %276 {approx = true} : vector<2x32x1xf32> -> vector<2x32x1xf32>
    %278 = vector.broadcast %277 : vector<2x32x1xf32> to vector<2x32x32xf32>
    %279 = arith.mulf %274, %278 : vector<2x32x32xf32>
    %280 = arith.truncf %279 : vector<2x32x32xf32> to vector<2x32x32xbf16>
    %281 = arith.truncf %264 : vector<2x32x64xf32> to vector<2x32x64xbf16>
    "tpu.trace_start"() <{level = 10 : i32, message = "bqk,bkd->bqd"}> : () -> ()
    %cst_116 = arith.constant dense<0.000000e+00> : vector<2x32x64xf32>
    %282 = tpu.matmul %280, %281, %cst_116 {dimension_numbers = #tpu.dot_dimension_numbers<[2], [1], [1], [2], [0, 0, 0, 1, 1, 2], [0], [0]>} : vector<2x32x32xbf16>, vector<2x32x64xbf16>, vector<2x32x64xf32> -> vector<2x32x64xf32>
    "tpu.trace_stop"() : () -> ()
    %283 = vector.shape_cast %282 : vector<2x32x64xf32> to vector<64x64xf32>
    %284 = arith.truncf %283 : vector<64x64xf32> to vector<64x64xbf16>
    %c6 = arith.constant 6 : index
    %c0_117 = arith.constant 0 : index
    %c0_118 = arith.constant 0 : index
    %285 = vector.load %arg7[%c6, %c0_117, %c0_118] : memref<8x64x256xbf16, #tpu.memory_space<vmem>>, vector<1x64x256xbf16>
    %286 = vector.shape_cast %285 : vector<1x64x256xbf16> to vector<64x256xbf16>
    %cst_119 = arith.constant dense<0.000000e+00> : vector<64x256xf32>
    %287 = tpu.matmul %284, %286, %cst_119 {dimension_numbers = #tpu.dot_dimension_numbers<[1], [0], [0], [1], [0, 0, 1, 1], [], []>} : vector<64x64xbf16>, vector<64x256xbf16>, vector<64x256xf32> -> vector<64x256xf32>
    %288 = arith.addf %261, %287 : vector<64x256xf32>
    %289 = vector.extract_strided_slice %206 {offsets = [0, 0, 192], sizes = [2, 32, 64], strides = [1, 1, 1]} : vector<2x32x768xf32> to vector<2x32x64xf32>
    %290 = vector.extract_strided_slice %206 {offsets = [0, 0, 448], sizes = [2, 32, 64], strides = [1, 1, 1]} : vector<2x32x768xf32> to vector<2x32x64xf32>
    %291 = vector.extract_strided_slice %206 {offsets = [0, 0, 704], sizes = [2, 32, 64], strides = [1, 1, 1]} : vector<2x32x768xf32> to vector<2x32x64xf32>
    %292 = arith.truncf %289 : vector<2x32x64xf32> to vector<2x32x64xbf16>
    %293 = arith.truncf %290 : vector<2x32x64xf32> to vector<2x32x64xbf16>
    "tpu.trace_start"() <{level = 10 : i32, message = "bqd,bkd->bqk"}> : () -> ()
    %cst_120 = arith.constant dense<0.000000e+00> : vector<2x32x32xf32>
    %294 = tpu.matmul %292, %293, %cst_120 {dimension_numbers = #tpu.dot_dimension_numbers<[2], [2], [1], [1], [0, 0, 0, 1, 1, 1], [0], [0]>} : vector<2x32x64xbf16>, vector<2x32x64xbf16>, vector<2x32x32xf32> -> vector<2x32x32xf32>
    "tpu.trace_stop"() : () -> ()
    %cst_121 = arith.constant 1.250000e-01 : f32
    %295 = vector.broadcast %cst_121 : f32 to vector<2x32x32xf32>
    %296 = arith.mulf %294, %295 : vector<2x32x32xf32>
    %cst_122 = arith.constant dense<0xFF800000> : vector<2x32xf32>
    %297 = vector.multi_reduction <maximumf>, %296, %cst_122 [2] : vector<2x32x32xf32> to vector<2x32xf32>
    %298 = vector.shape_cast %297 : vector<2x32xf32> to vector<2x32x1xf32>
    %299 = vector.broadcast %298 : vector<2x32x1xf32> to vector<2x32x32xf32>
    %300 = arith.subf %296, %299 : vector<2x32x32xf32>
    %301 = math.exp %300 : vector<2x32x32xf32>
    %cst_123 = arith.constant dense<0.000000e+00> : vector<2x32xf32>
    %302 = vector.multi_reduction <add>, %301, %cst_123 [2] : vector<2x32x32xf32> to vector<2x32xf32>
    %303 = vector.shape_cast %302 : vector<2x32xf32> to vector<2x32x1xf32>
    %304 = tpu.reciprocal %303 {approx = true} : vector<2x32x1xf32> -> vector<2x32x1xf32>
    %305 = vector.broadcast %304 : vector<2x32x1xf32> to vector<2x32x32xf32>
    %306 = arith.mulf %301, %305 : vector<2x32x32xf32>
    %307 = arith.truncf %306 : vector<2x32x32xf32> to vector<2x32x32xbf16>
    %308 = arith.truncf %291 : vector<2x32x64xf32> to vector<2x32x64xbf16>
    "tpu.trace_start"() <{level = 10 : i32, message = "bqk,bkd->bqd"}> : () -> ()
    %cst_124 = arith.constant dense<0.000000e+00> : vector<2x32x64xf32>
    %309 = tpu.matmul %307, %308, %cst_124 {dimension_numbers = #tpu.dot_dimension_numbers<[2], [1], [1], [2], [0, 0, 0, 1, 1, 2], [0], [0]>} : vector<2x32x32xbf16>, vector<2x32x64xbf16>, vector<2x32x64xf32> -> vector<2x32x64xf32>
    "tpu.trace_stop"() : () -> ()
    %310 = vector.shape_cast %309 : vector<2x32x64xf32> to vector<64x64xf32>
    %311 = arith.truncf %310 : vector<64x64xf32> to vector<64x64xbf16>
    %c7 = arith.constant 7 : index
    %c0_125 = arith.constant 0 : index
    %c0_126 = arith.constant 0 : index
    %312 = vector.load %arg7[%c7, %c0_125, %c0_126] : memref<8x64x256xbf16, #tpu.memory_space<vmem>>, vector<1x64x256xbf16>
    %313 = vector.shape_cast %312 : vector<1x64x256xbf16> to vector<64x256xbf16>
    %cst_127 = arith.constant dense<0.000000e+00> : vector<64x256xf32>
    %314 = tpu.matmul %311, %313, %cst_127 {dimension_numbers = #tpu.dot_dimension_numbers<[1], [0], [0], [1], [0, 0, 1, 1], [], []>} : vector<64x64xbf16>, vector<64x256xbf16>, vector<64x256xf32> -> vector<64x256xf32>
    %315 = arith.addf %288, %314 : vector<64x256xf32>
    %c1_128 = arith.constant 1 : index
    %c0_129 = arith.constant 0 : index
    %c0_130 = arith.constant 0 : index
    %316 = vector.load %arg8[%c1_128, %c0_129, %c0_130] : memref<2x1x256xf32, #tpu.memory_space<vmem>>, vector<1x1x256xf32>
    %317 = vector.shape_cast %316 : vector<1x1x256xf32> to vector<1x256xf32>
    %318 = vector.broadcast %317 : vector<1x256xf32> to vector<64x256xf32>
    %319 = arith.addf %315, %318 : vector<64x256xf32>
    %320 = arith.addf %319, %197 : vector<64x256xf32>
    %c1_131 = arith.constant 1 : index
    %c0_132 = arith.constant 0 : index
    %c0_133 = arith.constant 0 : index
    %321 = vector.load %arg9[%c1_131, %c0_132, %c0_133] : memref<2x1x256xf32, #tpu.memory_space<vmem>>, vector<1x1x256xf32>
    %322 = vector.shape_cast %321 : vector<1x1x256xf32> to vector<1x256xf32>
    %c1_134 = arith.constant 1 : index
    %c0_135 = arith.constant 0 : index
    %c0_136 = arith.constant 0 : index
    %323 = vector.load %arg10[%c1_134, %c0_135, %c0_136] : memref<2x1x256xf32, #tpu.memory_space<vmem>>, vector<1x1x256xf32>
    %324 = vector.shape_cast %323 : vector<1x1x256xf32> to vector<1x256xf32>
    %cst_137 = arith.constant dense<0.000000e+00> : vector<64xf32>
    %325 = vector.multi_reduction <add>, %320, %cst_137 [1] : vector<64x256xf32> to vector<64xf32>
    %326 = vector.shape_cast %325 : vector<64xf32> to vector<64x1xf32>
    %cst_138 = arith.constant 2.560000e+02 : f32
    %327 = vector.broadcast %cst_138 : f32 to vector<64x1xf32>
    %328 = arith.divf %326, %327 : vector<64x1xf32>
    %329 = vector.broadcast %328 : vector<64x1xf32> to vector<64x256xf32>
    %330 = arith.subf %320, %329 : vector<64x256xf32>
    %331 = arith.mulf %330, %330 : vector<64x256xf32>
    %cst_139 = arith.constant dense<0.000000e+00> : vector<64xf32>
    %332 = vector.multi_reduction <add>, %331, %cst_139 [1] : vector<64x256xf32> to vector<64xf32>
    %333 = vector.shape_cast %332 : vector<64xf32> to vector<64x1xf32>
    %cst_140 = arith.constant 2.560000e+02 : f32
    %334 = vector.broadcast %cst_140 : f32 to vector<64x1xf32>
    %335 = arith.divf %333, %334 : vector<64x1xf32>
    %cst_141 = arith.constant 9.99999974E-6 : f32
    %336 = vector.broadcast %cst_141 : f32 to vector<64x1xf32>
    %337 = arith.addf %335, %336 : vector<64x1xf32>
    %338 = math.rsqrt %337 : vector<64x1xf32>
    %339 = vector.broadcast %338 : vector<64x1xf32> to vector<64x256xf32>
    %340 = arith.mulf %330, %339 : vector<64x256xf32>
    %341 = vector.broadcast %322 : vector<1x256xf32> to vector<64x256xf32>
    %342 = arith.mulf %340, %341 : vector<64x256xf32>
    %343 = vector.broadcast %324 : vector<1x256xf32> to vector<64x256xf32>
    %344 = arith.addf %342, %343 : vector<64x256xf32>
    %345 = arith.truncf %344 : vector<64x256xf32> to vector<64x256xbf16>
    %c1_142 = arith.constant 1 : index
    %c0_143 = arith.constant 0 : index
    %c0_144 = arith.constant 0 : index
    %346 = vector.load %arg11[%c1_142, %c0_143, %c0_144] : memref<2x256x512xbf16, #tpu.memory_space<vmem>>, vector<1x256x512xbf16>
    %347 = vector.shape_cast %346 : vector<1x256x512xbf16> to vector<256x512xbf16>
    %cst_145 = arith.constant dense<0.000000e+00> : vector<64x512xf32>
    %348 = tpu.matmul %345, %347, %cst_145 {dimension_numbers = #tpu.dot_dimension_numbers<[1], [0], [0], [1], [0, 0, 1, 1], [], []>} : vector<64x256xbf16>, vector<256x512xbf16>, vector<64x512xf32> -> vector<64x512xf32>
    %c1_146 = arith.constant 1 : index
    %c0_147 = arith.constant 0 : index
    %c0_148 = arith.constant 0 : index
    %349 = vector.load %arg12[%c1_146, %c0_147, %c0_148] : memref<2x1x512xf32, #tpu.memory_space<vmem>>, vector<1x1x512xf32>
    %350 = vector.shape_cast %349 : vector<1x1x512xf32> to vector<1x512xf32>
    %351 = vector.broadcast %350 : vector<1x512xf32> to vector<64x512xf32>
    %352 = arith.addf %348, %351 : vector<64x512xf32>
    %cst_149 = arith.constant 0.000000e+00 : f32
    %353 = vector.broadcast %cst_149 : f32 to vector<64x512xf32>
    %354 = arith.maximumf %352, %353 : vector<64x512xf32>
    %355 = arith.truncf %354 : vector<64x512xf32> to vector<64x512xbf16>
    %c1_150 = arith.constant 1 : index
    %c0_151 = arith.constant 0 : index
    %c0_152 = arith.constant 0 : index
    %356 = vector.load %arg13[%c1_150, %c0_151, %c0_152] : memref<2x512x256xbf16, #tpu.memory_space<vmem>>, vector<1x512x256xbf16>
    %357 = vector.shape_cast %356 : vector<1x512x256xbf16> to vector<512x256xbf16>
    %cst_153 = arith.constant dense<0.000000e+00> : vector<64x256xf32>
    %358 = tpu.matmul %355, %357, %cst_153 {dimension_numbers = #tpu.dot_dimension_numbers<[1], [0], [0], [1], [0, 0, 1, 1], [], []>} : vector<64x512xbf16>, vector<512x256xbf16>, vector<64x256xf32> -> vector<64x256xf32>
    %c1_154 = arith.constant 1 : index
    %c0_155 = arith.constant 0 : index
    %c0_156 = arith.constant 0 : index
    %359 = vector.load %arg14[%c1_154, %c0_155, %c0_156] : memref<2x1x256xf32, #tpu.memory_space<vmem>>, vector<1x1x256xf32>
    %360 = vector.shape_cast %359 : vector<1x1x256xf32> to vector<1x256xf32>
    %361 = vector.broadcast %360 : vector<1x256xf32> to vector<64x256xf32>
    %362 = arith.addf %358, %361 : vector<64x256xf32>
    %363 = arith.addf %362, %344 : vector<64x256xf32>
    %c1_157 = arith.constant 1 : index
    %c0_158 = arith.constant 0 : index
    %c0_159 = arith.constant 0 : index
    %364 = vector.load %arg15[%c1_157, %c0_158, %c0_159] : memref<2x1x256xf32, #tpu.memory_space<vmem>>, vector<1x1x256xf32>
    %365 = vector.shape_cast %364 : vector<1x1x256xf32> to vector<1x256xf32>
    %c1_160 = arith.constant 1 : index
    %c0_161 = arith.constant 0 : index
    %c0_162 = arith.constant 0 : index
    %366 = vector.load %arg16[%c1_160, %c0_161, %c0_162] : memref<2x1x256xf32, #tpu.memory_space<vmem>>, vector<1x1x256xf32>
    %367 = vector.shape_cast %366 : vector<1x1x256xf32> to vector<1x256xf32>
    %cst_163 = arith.constant dense<0.000000e+00> : vector<64xf32>
    %368 = vector.multi_reduction <add>, %363, %cst_163 [1] : vector<64x256xf32> to vector<64xf32>
    %369 = vector.shape_cast %368 : vector<64xf32> to vector<64x1xf32>
    %cst_164 = arith.constant 2.560000e+02 : f32
    %370 = vector.broadcast %cst_164 : f32 to vector<64x1xf32>
    %371 = arith.divf %369, %370 : vector<64x1xf32>
    %372 = vector.broadcast %371 : vector<64x1xf32> to vector<64x256xf32>
    %373 = arith.subf %363, %372 : vector<64x256xf32>
    %374 = arith.mulf %373, %373 : vector<64x256xf32>
    %cst_165 = arith.constant dense<0.000000e+00> : vector<64xf32>
    %375 = vector.multi_reduction <add>, %374, %cst_165 [1] : vector<64x256xf32> to vector<64xf32>
    %376 = vector.shape_cast %375 : vector<64xf32> to vector<64x1xf32>
    %cst_166 = arith.constant 2.560000e+02 : f32
    %377 = vector.broadcast %cst_166 : f32 to vector<64x1xf32>
    %378 = arith.divf %376, %377 : vector<64x1xf32>
    %cst_167 = arith.constant 9.99999974E-6 : f32
    %379 = vector.broadcast %cst_167 : f32 to vector<64x1xf32>
    %380 = arith.addf %378, %379 : vector<64x1xf32>
    %381 = math.rsqrt %380 : vector<64x1xf32>
    %382 = vector.broadcast %381 : vector<64x1xf32> to vector<64x256xf32>
    %383 = arith.mulf %373, %382 : vector<64x256xf32>
    %384 = vector.broadcast %365 : vector<1x256xf32> to vector<64x256xf32>
    %385 = arith.mulf %383, %384 : vector<64x256xf32>
    %386 = vector.broadcast %367 : vector<1x256xf32> to vector<64x256xf32>
    %387 = arith.addf %385, %386 : vector<64x256xf32>
    %c0_168 = arith.constant 0 : index
    %c0_169 = arith.constant 0 : index
    %388 = vector.load %arg17[%c0_168, %c0_169] : memref<256x1xf32, #tpu.memory_space<vmem>>, vector<256x1xf32>
    %cst_170 = arith.constant dense<0.000000e+00> : vector<64x1xf32>
    %389 = tpu.matmul %387, %388, %cst_170 {dimension_numbers = #tpu.dot_dimension_numbers<[1], [0], [0], [1], [0, 0, 1, 1], [], []>} : vector<64x256xf32>, vector<256x1xf32>, vector<64x1xf32> -> vector<64x1xf32>
    %c0_171 = arith.constant 0 : index
    %c0_172 = arith.constant 0 : index
    %390 = vector.load %arg18[%c0_171, %c0_172] : memref<1x1xf32, #tpu.memory_space<vmem>>, vector<1x1xf32>
    %391 = vector.broadcast %390 : vector<1x1xf32> to vector<64x1xf32>
    %392 = arith.addf %389, %391 : vector<64x1xf32>
    %393 = vector.shape_cast %392 : vector<64x1xf32> to vector<2x32x1xf32>
    %cst_173 = arith.constant dense<0xFF800000> : vector<2x1xf32>
    %394 = vector.multi_reduction <maximumf>, %393, %cst_173 [1] : vector<2x32x1xf32> to vector<2x1xf32>
    %395 = vector.shape_cast %394 : vector<2x1xf32> to vector<2x1x1xf32>
    %396 = vector.broadcast %395 : vector<2x1x1xf32> to vector<2x32x1xf32>
    %397 = arith.subf %393, %396 : vector<2x32x1xf32>
    %398 = math.exp %397 : vector<2x32x1xf32>
    %cst_174 = arith.constant dense<0.000000e+00> : vector<2x1xf32>
    %399 = vector.multi_reduction <add>, %398, %cst_174 [1] : vector<2x32x1xf32> to vector<2x1xf32>
    %400 = vector.shape_cast %399 : vector<2x1xf32> to vector<2x1x1xf32>
    %401 = tpu.reciprocal %400 {approx = true} : vector<2x1x1xf32> -> vector<2x1x1xf32>
    %402 = vector.broadcast %401 : vector<2x1x1xf32> to vector<2x32x1xf32>
    %403 = arith.mulf %398, %402 : vector<2x32x1xf32>
    %404 = vector.shape_cast %387 : vector<64x256xf32> to vector<2x32x256xf32>
    %405 = vector.broadcast %403 : vector<2x32x1xf32> to vector<2x32x256xf32>
    %406 = arith.mulf %404, %405 : vector<2x32x256xf32>
    %cst_175 = arith.constant dense<0.000000e+00> : vector<2x256xf32>
    %407 = vector.multi_reduction <add>, %406, %cst_175 [1] : vector<2x32x256xf32> to vector<2x256xf32>
    %c0_176 = arith.constant 0 : index
    %c0_177 = arith.constant 0 : index
    %408 = vector.load %arg2[%c0_176, %c0_177] : memref<2x1xf32, #tpu.memory_space<vmem>>, vector<2x1xf32>
    %cst_178 = arith.constant 6.000000e+01 : f32
    %409 = vector.broadcast %cst_178 : f32 to vector<2x1xf32>
    %410 = arith.subf %408, %409 : vector<2x1xf32>
    %cst_179 = arith.constant 0.00555555569 : f32
    %411 = vector.broadcast %cst_179 : f32 to vector<2x1xf32>
    %412 = arith.mulf %410, %411 : vector<2x1xf32>
    %413 = arith.truncf %407 : vector<2x256xf32> to vector<2x256xbf16>
    %c0_180 = arith.constant 0 : index
    %c0_181 = arith.constant 0 : index
    %414 = vector.load %arg19[%c0_180, %c0_181] : memref<256x256xbf16, #tpu.memory_space<vmem>>, vector<256x256xbf16>
    %cst_182 = arith.constant dense<0.000000e+00> : vector<2x256xf32>
    %415 = tpu.matmul %413, %414, %cst_182 {dimension_numbers = #tpu.dot_dimension_numbers<[1], [0], [0], [1], [0, 0, 1, 1], [], []>} : vector<2x256xbf16>, vector<256x256xbf16>, vector<2x256xf32> -> vector<2x256xf32>
    %c0_183 = arith.constant 0 : index
    %c0_184 = arith.constant 0 : index
    %416 = vector.load %arg20[%c0_183, %c0_184] : memref<1x256xf32, #tpu.memory_space<vmem>>, vector<1x256xf32>
    %417 = vector.broadcast %412 : vector<2x1xf32> to vector<2x256xf32>
    %418 = vector.broadcast %416 : vector<1x256xf32> to vector<2x256xf32>
    %419 = arith.mulf %417, %418 : vector<2x256xf32>
    %420 = arith.addf %415, %419 : vector<2x256xf32>
    %c0_185 = arith.constant 0 : index
    %c0_186 = arith.constant 0 : index
    %421 = vector.load %arg21[%c0_185, %c0_186] : memref<1x256xf32, #tpu.memory_space<vmem>>, vector<1x256xf32>
    %422 = vector.broadcast %421 : vector<1x256xf32> to vector<2x256xf32>
    %423 = arith.addf %420, %422 : vector<2x256xf32>
    %cst_187 = arith.constant 0.000000e+00 : f32
    %424 = vector.broadcast %cst_187 : f32 to vector<2x256xf32>
    %425 = arith.maximumf %423, %424 : vector<2x256xf32>
    %426 = arith.truncf %425 : vector<2x256xf32> to vector<2x256xbf16>
    %c0_188 = arith.constant 0 : index
    %c0_189 = arith.constant 0 : index
    %427 = vector.load %arg22[%c0_188, %c0_189] : memref<256x128xbf16, #tpu.memory_space<vmem>>, vector<256x128xbf16>
    %cst_190 = arith.constant dense<0.000000e+00> : vector<2x128xf32>
    %428 = tpu.matmul %426, %427, %cst_190 {dimension_numbers = #tpu.dot_dimension_numbers<[1], [0], [0], [1], [0, 0, 1, 1], [], []>} : vector<2x256xbf16>, vector<256x128xbf16>, vector<2x128xf32> -> vector<2x128xf32>
    %c0_191 = arith.constant 0 : index
    %c0_192 = arith.constant 0 : index
    %429 = vector.load %arg23[%c0_191, %c0_192] : memref<1x128xf32, #tpu.memory_space<vmem>>, vector<1x128xf32>
    %430 = vector.broadcast %429 : vector<1x128xf32> to vector<2x128xf32>
    %431 = arith.addf %428, %430 : vector<2x128xf32>
    %c0_193 = arith.constant 0 : index
    %c0_194 = arith.constant 0 : index
    %432 = vector.load %arg24[%c0_193, %c0_194] : memref<2x128xf32, #tpu.memory_space<vmem>>, vector<2x128xf32>
    tpu.vector_store %arg24[%c0_193, %c0_194], %431 {strides = array<i32>} : memref<2x128xf32, #tpu.memory_space<vmem>>, vector<2x128xf32>,
    return
  }
}

</mosaic_0001>

<llo_original>
// kernel: transformer_with_bpm_forward.1
$region0: #{transformer_with_bpm_forward.1}
  #allocation0 [shape = 'u32[]', space=smem, size = 0x4, offset = 0x4, fixed_abs, tag = 'smem constant byte address 0x4 - core index']
  #allocation1 [shape = 'u32[144,128]{1,0:T(1,128)}', space=vmem, size = 0x12000, scoped, tag = 'internal scratch']
  #allocation2 [shape = 'f32[1,1]{1,0:T(1,128)S(1)}', space=vmem, size = 0x200, scoped, tag = 'scoped memory for transformer_with_bpm_forward.1']
  %s0 = inlined_call_operand.vmem [shape: f32[64,16], index: 0, kind: input, shape index: {}]
  %s1 = inlined_call_operand.vmem [shape: f32[64,256], index: 1, kind: input, shape index: {}]
  %s2 = inlined_call_operand.vmem [shape: f32[2,1], index: 2, kind: input, shape index: {}]
  %s3 = inlined_call_operand.hbm [shape: f32[16,256], index: 3, kind: input, shape index: {}]
  %s4 = inlined_call_operand.hbm [shape: f32[1,256], index: 4, kind: input, shape index: {}]
  %s5 = inlined_call_operand.hbm [shape: bf16[2,256,768], index: 5, kind: input, shape index: {}]
  %s6 = inlined_call_operand.hbm [shape: f32[2,1,768], index: 6, kind: input, shape index: {}]
  %s7 = inlined_call_operand.hbm [shape: bf16[8,64,256], index: 7, kind: input, shape index: {}]
  %s8 = inlined_call_operand.hbm [shape: f32[2,1,256], index: 8, kind: input, shape index: {}]
  %s9 = inlined_call_operand.hbm [shape: f32[2,1,256], index: 9, kind: input, shape index: {}]
  %s10 = inlined_call_operand.hbm [shape: f32[2,1,256], index: 10, kind: input, shape index: {}]
  %s11 = inlined_call_operand.hbm [shape: bf16[2,256,512], index: 11, kind: input, shape index: {}]
  %s12 = inlined_call_operand.hbm [shape: f32[2,1,512], index: 12, kind: input, shape index: {}]
  %s13 = inlined_call_operand.hbm [shape: bf16[2,512,256], index: 13, kind: input, shape index: {}]
  %s14 = inlined_call_operand.hbm [shape: f32[2,1,256], index: 14, kind: input, shape index: {}]
  %s15 = inlined_call_operand.hbm [shape: f32[2,1,256], index: 15, kind: input, shape index: {}]
  %s16 = inlined_call_operand.hbm [shape: f32[2,1,256], index: 16, kind: input, shape index: {}]
  %s17 = inlined_call_operand.vmem [shape: f32[256,1], index: 17, kind: input, shape index: {}]
  %s18 = inlined_call_operand.<no memory space> [shape: f32[1,1], index: 18, kind: input, shape index: {}]
  %s19 = inlined_call_operand.hbm [shape: bf16[256,256], index: 19, kind: input, shape index: {}]
  %s20 = inlined_call_operand.hbm [shape: f32[1,256], index: 20, kind: input, shape index: {}]
  %s21 = inlined_call_operand.hbm [shape: f32[1,256], index: 21, kind: input, shape index: {}]
  %s22 = inlined_call_operand.hbm [shape: bf16[256,128], index: 22, kind: input, shape index: {}]
  %s23 = inlined_call_operand.hbm [shape: f32[1,128], index: 23, kind: input, shape index: {}]
  %s24 = inlined_call_operand.vmem [shape: f32[2,128], index: 24, kind: output, shape index: {}]
  %s25 = sld [smem:[#allocation0]]
  $region182: #{transformer_with_bpm_forward.1} parent=0
    _
  %s27 = ssub.s32 1, %s25
  %s28 = scalar_select 0, %s27, %s25
  %v29 = vstv %s18
  %30 = vst [vmem:[#allocation2] sm:$0x1] %v29
  $region1: #{transformer_with_bpm_forward.1} parent=0
    #allocation3 [shape = 'u8[16384]{0}', space=vmem, size = 0x4000, scoped, tag = 'input window, operand 3, single buffered']
    #allocation4 [shape = 's32[1]{0}', space=sflag, size = 0x4, scoped, tag = 'scoped memory for transformer_with_bpm_forward.1']
    #allocation5 [shape = 'u8[1024]{0}', space=vmem, size = 0x400, scoped, tag = 'input window, operand 4, single buffered']
    #allocation6 [shape = 's32[1]{0}', space=sflag, size = 0x4, scoped, tag = 'scoped memory for transformer_with_bpm_forward.1']
    #allocation7 [shape = 'u8[786432]{0}', space=vmem, size = 0xc0000, scoped, tag = 'input window, operand 5, single buffered']
    #allocation8 [shape = 'u8[6144]{0}', space=vmem, size = 0x1800, scoped, tag = 'input window, operand 6, single buffered']
    #allocation9 [shape = 's32[1]{0}', space=sflag, size = 0x4, scoped, tag = 'scoped memory for transformer_with_bpm_forward.1']
    #allocation10 [shape = 'u8[262144]{0}', space=vmem, size = 0x40000, scoped, tag = 'input window, operand 7, single buffered']
    #allocation11 [shape = 'u8[2048]{0}', space=vmem, size = 0x800, scoped, tag = 'input window, operand 8, single buffered']
    #allocation12 [shape = 's32[1]{0}', space=sflag, size = 0x4, scoped, tag = 'scoped memory for transformer_with_bpm_forward.1']
    #allocation13 [shape = 'u8[2048]{0}', space=vmem, size = 0x800, scoped, tag = 'input window, operand 9, single buffered']
    #allocation14 [shape = 'u8[2048]{0}', space=vmem, size = 0x800, scoped, tag = 'input window, operand 10, single buffered']
    #allocation15 [shape = 's32[1]{0}', space=sflag, size = 0x4, scoped, tag = 'scoped memory for transformer_with_bpm_forward.1']
    #allocation16 [shape = 'u8[524288]{0}', space=vmem, size = 0x80000, scoped, tag = 'input window, operand 11, single buffered']
    #allocation17 [shape = 'u8[4096]{0}', space=vmem, size = 0x1000, scoped, tag = 'input window, operand 12, single buffered']
    #allocation18 [shape = 's32[1]{0}', space=sflag, size = 0x4, scoped, tag = 'scoped memory for transformer_with_bpm_forward.1']
    #allocation19 [shape = 'u8[524288]{0}', space=vmem, size = 0x80000, scoped, tag = 'input window, operand 13, single buffered']
    #allocation20 [shape = 'u8[2048]{0}', space=vmem, size = 0x800, scoped, tag = 'input window, operand 14, single buffered']
    #allocation21 [shape = 's32[1]{0}', space=sflag, size = 0x4, scoped, tag = 'scoped memory for transformer_with_bpm_forward.1']
    #allocation22 [shape = 'u8[2048]{0}', space=vmem, size = 0x800, scoped, tag = 'input window, operand 15, single buffered']
    #allocation23 [shape = 'u8[2048]{0}', space=vmem, size = 0x800, scoped, tag = 'input window, operand 16, single buffered']
    #allocation24 [shape = 's32[1]{0}', space=sflag, size = 0x4, scoped, tag = 'scoped memory for transformer_with_bpm_forward.1']
    #allocation25 [shape = 'u8[131072]{0}', space=vmem, size = 0x20000, scoped, tag = 'input window, operand 19, single buffered']
    #allocation26 [shape = 'u8[1024]{0}', space=vmem, size = 0x400, scoped, tag = 'input window, operand 20, single buffered']
    #allocation27 [shape = 's32[1]{0}', space=sflag, size = 0x4, scoped, tag = 'scoped memory for transformer_with_bpm_forward.1']
    #allocation28 [shape = 'u8[1024]{0}', space=vmem, size = 0x400, scoped, tag = 'input window, operand 21, single buffered']
    #allocation29 [shape = 'u8[65536]{0}', space=vmem, size = 0x10000, scoped, tag = 'input window, operand 22, single buffered']
    #allocation30 [shape = 's32[1]{0}', space=sflag, size = 0x4, scoped, tag = 'scoped memory for transformer_with_bpm_forward.1']
    #allocation31 [shape = 'u8[512]{0}', space=vmem, size = 0x400, scoped, tag = 'input window, operand 23, single buffered']
    %31 = vsyncpa [#allocation4], 0
    %32 = vsyncpa [#allocation6], 0
    %33 = vsyncpa [#allocation9], 0
    %34 = vsyncpa [#allocation12], 0
    %35 = vsyncpa [#allocation15], 0
    %36 = vsyncpa [#allocation18], 0
    %37 = vsyncpa [#allocation21], 0
    %38 = vsyncpa [#allocation24], 0
    %39 = vsyncpa [#allocation27], 0
    %40 = vsyncpa [#allocation30], 0
    // Predicated region
    $region2: #{transformer_with_bpm_forward.1} parent=1 // pred_check
      _
    $region3: #{transformer_with_bpm_forward.1} parent=1 // pred_check_branch
      %42 = sbr.rel (0) target = $region5
    $region4: #{transformer_with_bpm_forward.1} parent=1 // pred_region
      _
    $region5: #{transformer_with_bpm_forward.1} parent=1 // pred_fallthru
      _
    // Predicated region
    $region6: #{transformer_with_bpm_forward.1} parent=1 // pred_check
      _
    $region7: #{transformer_with_bpm_forward.1} parent=1 // pred_check_branch
      %44 = sbr.rel (0) target = $region9
    $region8: #{transformer_with_bpm_forward.1} parent=1 // pred_region
      _
    $region9: #{transformer_with_bpm_forward.1} parent=1 // pred_fallthru
      _
    // Predicated region
    $region10: #{transformer_with_bpm_forward.1} parent=1 // pred_check
      _
    $region11: #{transformer_with_bpm_forward.1} parent=1 // pred_check_branch
      %46 = sbr.rel (0) target = $region13
    $region12: #{transformer_with_bpm_forward.1} parent=1 // pred_region
      _
    $region13: #{transformer_with_bpm_forward.1} parent=1 // pred_fallthru
      _
    // Predicated region
    $region14: #{transformer_with_bpm_forward.1} parent=1 // pred_check
      _
    $region15: #{transformer_with_bpm_forward.1} parent=1 // pred_check_branch
      %48 = sbr.rel (0) target = $region17
    $region16: #{transformer_with_bpm_forward.1} parent=1 // pred_region
      %s50 = ssub.s32 512, 512
      %51 = vsyncadd [#allocation4], %s50
      %s52 = sshll.u32 [#allocation3], 4
      %s53 = int_to_ptr.vmem [resolvable:$true] %s52
      %58 = dma.hbm_to_vmem [thread:$0]  %s3, 512, %s53, [#allocation4], 256, 256, 16
    $region17: #{transformer_with_bpm_forward.1} parent=1 // pred_fallthru
      _
    // Predicated region
    $region18: #{transformer_with_bpm_forward.1} parent=1 // pred_check
      _
    $region19: #{transformer_with_bpm_forward.1} parent=1 // pred_check_branch
      %60 = sbr.rel (0) target = $region21
    $region20: #{transformer_with_bpm_forward.1} parent=1 // pred_region
      %s62 = ssub.s32 32, 32
      %63 = vsyncadd [#allocation6], %s62
      %s65 = sshll.u32 [#allocation5], 4
      %s66 = int_to_ptr.vmem [resolvable:$true] %s65
      %68 = dma.hbm_to_vmem [thread:$0]  %s4, 32, %s66, [#allocation6]
    $region21: #{transformer_with_bpm_forward.1} parent=1 // pred_fallthru
      _
    // Predicated region
    $region22: #{transformer_with_bpm_forward.1} parent=1 // pred_check
      _
    $region23: #{transformer_with_bpm_forward.1} parent=1 // pred_check_branch
      %70 = sbr.rel (0) target = $region25
    $region24: #{transformer_with_bpm_forward.1} parent=1 // pred_region
      %s72 = ssub.s32 24576, 24576
      %73 = vsyncadd [#allocation6], %s72
      %s74 = sshll.u32 [#allocation7], 4
      %s75 = int_to_ptr.vmem [resolvable:$true] %s74
      %80 = dma.hbm_to_vmem [thread:$0]  %s5, 24576, %s75, [#allocation6], 384, 384, 24
    $region25: #{transformer_with_bpm_forward.1} parent=1 // pred_fallthru
      _
    // Predicated region
    $region26: #{transformer_with_bpm_forward.1} parent=1 // pred_check
      _
    $region27: #{transformer_with_bpm_forward.1} parent=1 // pred_check_branch
      %82 = sbr.rel (0) target = $region29
    $region28: #{transformer_with_bpm_forward.1} parent=1 // pred_region
      %s84 = ssub.s32 192, 192
      %85 = vsyncadd [#allocation9], %s84
      %s86 = sshll.u32 [#allocation8], 4
      %s87 = int_to_ptr.vmem [resolvable:$true] %s86
      %92 = dma.hbm_to_vmem [thread:$0]  %s6, 192, %s87, [#allocation9], 96, 96, 6
    $region29: #{transformer_with_bpm_forward.1} parent=1 // pred_fallthru
      _
    // Predicated region
    $region30: #{transformer_with_bpm_forward.1} parent=1 // pred_check
      _
    $region31: #{transformer_with_bpm_forward.1} parent=1 // pred_check_branch
      %94 = sbr.rel (0) target = $region33
    $region32: #{transformer_with_bpm_forward.1} parent=1 // pred_region
      %s96 = ssub.s32 8192, 8192
      %97 = vsyncadd [#allocation9], %s96
      %s98 = sshll.u32 [#allocation10], 4
      %s99 = int_to_ptr.vmem [resolvable:$true] %s98
      %104 = dma.hbm_to_vmem [thread:$0]  %s7, 8192, %s99, [#allocation9], 128, 128, 8
    $region33: #{transformer_with_bpm_forward.1} parent=1 // pred_fallthru
      _
    // Predicated region
    $region34: #{transformer_with_bpm_forward.1} parent=1 // pred_check
      _
    $region35: #{transformer_with_bpm_forward.1} parent=1 // pred_check_branch
      %106 = sbr.rel (0) target = $region37
    $region36: #{transformer_with_bpm_forward.1} parent=1 // pred_region
      %s108 = ssub.s32 64, 64
      %109 = vsyncadd [#allocation12], %s108
      %s110 = sshll.u32 [#allocation11], 4
      %s111 = int_to_ptr.vmem [resolvable:$true] %s110
      %116 = dma.hbm_to_vmem [thread:$0]  %s8, 64, %s111, [#allocation12], 32, 32, 2
    $region37: #{transformer_with_bpm_forward.1} parent=1 // pred_fallthru
      _
    // Predicated region
    $region38: #{transformer_with_bpm_forward.1} parent=1 // pred_check
      _
    $region39: #{transformer_with_bpm_forward.1} parent=1 // pred_check_branch
      %118 = sbr.rel (0) target = $region41
    $region40: #{transformer_with_bpm_forward.1} parent=1 // pred_region
      %s120 = ssub.s32 64, 64
      %121 = vsyncadd [#allocation12], %s120
      %s122 = sshll.u32 [#allocation13], 4
      %s123 = int_to_ptr.vmem [resolvable:$true] %s122
      %128 = dma.hbm_to_vmem [thread:$0]  %s9, 64, %s123, [#allocation12], 32, 32, 2
    $region41: #{transformer_with_bpm_forward.1} parent=1 // pred_fallthru
      _
    // Predicated region
    $region42: #{transformer_with_bpm_forward.1} parent=1 // pred_check
      _
    $region43: #{transformer_with_bpm_forward.1} parent=1 // pred_check_branch
      %130 = sbr.rel (0) target = $region45
    $region44: #{transformer_with_bpm_forward.1} parent=1 // pred_region
      %s132 = ssub.s32 64, 64
      %133 = vsyncadd [#allocation15], %s132
      %s134 = sshll.u32 [#allocation14], 4
      %s135 = int_to_ptr.vmem [resolvable:$true] %s134
      %140 = dma.hbm_to_vmem [thread:$0]  %s10, 64, %s135, [#allocation15], 32, 32, 2
    $region45: #{transformer_with_bpm_forward.1} parent=1 // pred_fallthru
      _
    // Predicated region
    $region46: #{transformer_with_bpm_forward.1} parent=1 // pred_check
      _
    $region47: #{transformer_with_bpm_forward.1} parent=1 // pred_check_branch
      %142 = sbr.rel (0) target = $region49
    $region48: #{transformer_with_bpm_forward.1} parent=1 // pred_region
      %s144 = ssub.s32 16384, 16384
      %145 = vsyncadd [#allocation15], %s144
      %s146 = sshll.u32 [#allocation16], 4
      %s147 = int_to_ptr.vmem [resolvable:$true] %s146
      %152 = dma.hbm_to_vmem [thread:$0]  %s11, 16384, %s147, [#allocation15], 256, 256, 16
    $region49: #{transformer_with_bpm_forward.1} parent=1 // pred_fallthru
      _
    // Predicated region
    $region50: #{transformer_with_bpm_forward.1} parent=1 // pred_check
      _
    $region51: #{transformer_with_bpm_forward.1} parent=1 // pred_check_branch
      %154 = sbr.rel (0) target = $region53
    $region52: #{transformer_with_bpm_forward.1} parent=1 // pred_region
      %s156 = ssub.s32 128, 128
      %157 = vsyncadd [#allocation18], %s156
      %s158 = sshll.u32 [#allocation17], 4
      %s159 = int_to_ptr.vmem [resolvable:$true] %s158
      %164 = dma.hbm_to_vmem [thread:$0]  %s12, 128, %s159, [#allocation18], 64, 64, 4
    $region53: #{transformer_with_bpm_forward.1} parent=1 // pred_fallthru
      _
    // Predicated region
    $region54: #{transformer_with_bpm_forward.1} parent=1 // pred_check
      _
    $region55: #{transformer_with_bpm_forward.1} parent=1 // pred_check_branch
      %166 = sbr.rel (0) target = $region57
    $region56: #{transformer_with_bpm_forward.1} parent=1 // pred_region
      %s168 = ssub.s32 16384, 16384
      %169 = vsyncadd [#allocation18], %s168
      %s170 = sshll.u32 [#allocation19], 4
      %s171 = int_to_ptr.vmem [resolvable:$true] %s170
      %176 = dma.hbm_to_vmem [thread:$0]  %s13, 16384, %s171, [#allocation18], 128, 128, 8
    $region57: #{transformer_with_bpm_forward.1} parent=1 // pred_fallthru
      _
    // Predicated region
    $region58: #{transformer_with_bpm_forward.1} parent=1 // pred_check
      _
    $region59: #{transformer_with_bpm_forward.1} parent=1 // pred_check_branch
      %178 = sbr.rel (0) target = $region61
    $region60: #{transformer_with_bpm_forward.1} parent=1 // pred_region
      %s180 = ssub.s32 64, 64
      %181 = vsyncadd [#allocation21], %s180
      %s182 = sshll.u32 [#allocation20], 4
      %s183 = int_to_ptr.vmem [resolvable:$true] %s182
      %188 = dma.hbm_to_vmem [thread:$0]  %s14, 64, %s183, [#allocation21], 32, 32, 2
    $region61: #{transformer_with_bpm_forward.1} parent=1 // pred_fallthru
      _
    // Predicated region
    $region62: #{transformer_with_bpm_forward.1} parent=1 // pred_check
      _
    $region63: #{transformer_with_bpm_forward.1} parent=1 // pred_check_branch
      %190 = sbr.rel (0) target = $region65
    $region64: #{transformer_with_bpm_forward.1} parent=1 // pred_region
      %s192 = ssub.s32 64, 64
      %193 = vsyncadd [#allocation21], %s192
      %s194 = sshll.u32 [#allocation22], 4
      %s195 = int_to_ptr.vmem [resolvable:$true] %s194
      %200 = dma.hbm_to_vmem [thread:$0]  %s15, 64, %s195, [#allocation21], 32, 32, 2
    $region65: #{transformer_with_bpm_forward.1} parent=1 // pred_fallthru
      _
    // Predicated region
    $region66: #{transformer_with_bpm_forward.1} parent=1 // pred_check
      _
    $region67: #{transformer_with_bpm_forward.1} parent=1 // pred_check_branch
      %202 = sbr.rel (0) target = $region69
    $region68: #{transformer_with_bpm_forward.1} parent=1 // pred_region
      %s204 = ssub.s32 64, 64
      %205 = vsyncadd [#allocation24], %s204
      %s206 = sshll.u32 [#allocation23], 4
      %s207 = int_to_ptr.vmem [resolvable:$true] %s206
      %212 = dma.hbm_to_vmem [thread:$0]  %s16, 64, %s207, [#allocation24], 32, 32, 2
    $region69: #{transformer_with_bpm_forward.1} parent=1 // pred_fallthru
      _
    // Predicated region
    $region70: #{transformer_with_bpm_forward.1} parent=1 // pred_check
      _
    $region71: #{transformer_with_bpm_forward.1} parent=1 // pred_check_branch
      %214 = sbr.rel (0) target = $region73
    $region72: #{transformer_with_bpm_forward.1} parent=1 // pred_region
      _
    $region73: #{transformer_with_bpm_forward.1} parent=1 // pred_fallthru
      _
    // Predicated region
    $region74: #{transformer_with_bpm_forward.1} parent=1 // pred_check
      _
    $region75: #{transformer_with_bpm_forward.1} parent=1 // pred_check_branch
      %216 = sbr.rel (0) target = $region77
    $region76: #{transformer_with_bpm_forward.1} parent=1 // pred_region
      _
    $region77: #{transformer_with_bpm_forward.1} parent=1 // pred_fallthru
      _
    // Predicated region
    $region78: #{transformer_with_bpm_forward.1} parent=1 // pred_check
      _
    $region79: #{transformer_with_bpm_forward.1} parent=1 // pred_check_branch
      %218 = sbr.rel (0) target = $region81
    $region80: #{transformer_with_bpm_forward.1} parent=1 // pred_region
      %s220 = ssub.s32 4096, 4096
      %221 = vsyncadd [#allocation24], %s220
      %s222 = sshll.u32 [#allocation25], 4
      %s223 = int_to_ptr.vmem [resolvable:$true] %s222
      %228 = dma.hbm_to_vmem [thread:$0]  %s19, 4096, %s223, [#allocation24], 128, 128, 8
    $region81: #{transformer_with_bpm_forward.1} parent=1 // pred_fallthru
      _
    // Predicated region
    $region82: #{transformer_with_bpm_forward.1} parent=1 // pred_check
      _
    $region83: #{transformer_with_bpm_forward.1} parent=1 // pred_check_branch
      %230 = sbr.rel (0) target = $region85
    $region84: #{transformer_with_bpm_forward.1} parent=1 // pred_region
      %s232 = ssub.s32 32, 32
      %233 = vsyncadd [#allocation27], %s232
      %s235 = sshll.u32 [#allocation26], 4
      %s236 = int_to_ptr.vmem [resolvable:$true] %s235
      %238 = dma.hbm_to_vmem [thread:$0]  %s20, 32, %s236, [#allocation27]
    $region85: #{transformer_with_bpm_forward.1} parent=1 // pred_fallthru
      _
    // Predicated region
    $region86: #{transformer_with_bpm_forward.1} parent=1 // pred_check
      _
    $region87: #{transformer_with_bpm_forward.1} parent=1 // pred_check_branch
      %240 = sbr.rel (0) target = $region89
    $region88: #{transformer_with_bpm_forward.1} parent=1 // pred_region
      %s242 = ssub.s32 32, 32
      %243 = vsyncadd [#allocation27], %s242
      %s245 = sshll.u32 [#allocation28], 4
      %s246 = int_to_ptr.vmem [resolvable:$true] %s245
      %248 = dma.hbm_to_vmem [thread:$0]  %s21, 32, %s246, [#allocation27]
    $region89: #{transformer_with_bpm_forward.1} parent=1 // pred_fallthru
      _
    // Predicated region
    $region90: #{transformer_with_bpm_forward.1} parent=1 // pred_check
      _
    $region91: #{transformer_with_bpm_forward.1} parent=1 // pred_check_branch
      %250 = sbr.rel (0) target = $region93
    $region92: #{transformer_with_bpm_forward.1} parent=1 // pred_region
      %s252 = ssub.s32 2048, 2048
      %253 = vsyncadd [#allocation30], %s252
      %s254 = sshll.u32 [#allocation29], 4
      %s255 = int_to_ptr.vmem [resolvable:$true] %s254
      %260 = dma.hbm_to_vmem [thread:$0]  %s22, 2048, %s255, [#allocation30], 64, 64, 4
    $region93: #{transformer_with_bpm_forward.1} parent=1 // pred_fallthru
      _
    // Predicated region
    $region94: #{transformer_with_bpm_forward.1} parent=1 // pred_check
      _
    $region95: #{transformer_with_bpm_forward.1} parent=1 // pred_check_branch
      %262 = sbr.rel (0) target = $region97
    $region96: #{transformer_with_bpm_forward.1} parent=1 // pred_region
      %s264 = ssub.s32 16, 16
      %265 = vsyncadd [#allocation30], %s264
      %s267 = sshll.u32 [#allocation31], 4
      %s268 = int_to_ptr.vmem [resolvable:$true] %s267
      %270 = dma.hbm_to_vmem [thread:$0]  %s23, 16, %s268, [#allocation30]
    $region97: #{transformer_with_bpm_forward.1} parent=1 // pred_fallthru
      _
    // Predicated region
    $region98: #{transformer_with_bpm_forward.1} parent=1 // pred_check
      _
    $region99: #{transformer_with_bpm_forward.1} parent=1 // pred_check_branch
      %272 = sbr.rel (0) target = $region101
    $region100: #{transformer_with_bpm_forward.1} parent=1 // pred_region
      %273 = dma.done [#allocation4], 512
    $region101: #{transformer_with_bpm_forward.1} parent=1 // pred_fallthru
      _
    // Predicated region
    $region102: #{transformer_with_bpm_forward.1} parent=1 // pred_check
      _
    $region103: #{transformer_with_bpm_forward.1} parent=1 // pred_check_branch
      %275 = sbr.rel (0) target = $region105
    $region104: #{transformer_with_bpm_forward.1} parent=1 // pred_region
      %276 = dma.done [#allocation6], 32
    $region105: #{transformer_with_bpm_forward.1} parent=1 // pred_fallthru
      _
    // Predicated region
    $region106: #{transformer_with_bpm_forward.1} parent=1 // pred_check
      _
    $region107: #{transformer_with_bpm_forward.1} parent=1 // pred_check_branch
      %278 = sbr.rel (0) target = $region109
    $region108: #{transformer_with_bpm_forward.1} parent=1 // pred_region
      %279 = dma.done [#allocation6], 24576
    $region109: #{transformer_with_bpm_forward.1} parent=1 // pred_fallthru
      _
    // Predicated region
    $region110: #{transformer_with_bpm_forward.1} parent=1 // pred_check
      _
    $region111: #{transformer_with_bpm_forward.1} parent=1 // pred_check_branch
      %281 = sbr.rel (0) target = $region113
    $region112: #{transformer_with_bpm_forward.1} parent=1 // pred_region
      %282 = dma.done [#allocation9], 192
    $region113: #{transformer_with_bpm_forward.1} parent=1 // pred_fallthru
      _
    // Predicated region
    $region114: #{transformer_with_bpm_forward.1} parent=1 // pred_check
      _
    $region115: #{transformer_with_bpm_forward.1} parent=1 // pred_check_branch
      %284 = sbr.rel (0) target = $region117
    $region116: #{transformer_with_bpm_forward.1} parent=1 // pred_region
      %285 = dma.done [#allocation9], 8192
    $region117: #{transformer_with_bpm_forward.1} parent=1 // pred_fallthru
      _
    // Predicated region
    $region118: #{transformer_with_bpm_forward.1} parent=1 // pred_check
      _
    $region119: #{transformer_with_bpm_forward.1} parent=1 // pred_check_branch
      %287 = sbr.rel (0) target = $region121
    $region120: #{transformer_with_bpm_forward.1} parent=1 // pred_region
      %288 = dma.done [#allocation12], 64
    $region121: #{transformer_with_bpm_forward.1} parent=1 // pred_fallthru
      _
    // Predicated region
    $region122: #{transformer_with_bpm_forward.1} parent=1 // pred_check
      _
    $region123: #{transformer_with_bpm_forward.1} parent=1 // pred_check_branch
      %290 = sbr.rel (0) target = $region125
    $region124: #{transformer_with_bpm_forward.1} parent=1 // pred_region
      %291 = dma.done [#allocation12], 64
    $region125: #{transformer_with_bpm_forward.1} parent=1 // pred_fallthru
      _
    // Predicated region
    $region126: #{transformer_with_bpm_forward.1} parent=1 // pred_check
      _
    $region127: #{transformer_with_bpm_forward.1} parent=1 // pred_check_branch
      %293 = sbr.rel (0) target = $region129
    $region128: #{transformer_with_bpm_forward.1} parent=1 // pred_region
      %294 = dma.done [#allocation15], 64
    $region129: #{transformer_with_bpm_forward.1} parent=1 // pred_fallthru
      _
    // Predicated region
    $region130: #{transformer_with_bpm_forward.1} parent=1 // pred_check
      _
    $region131: #{transformer_with_bpm_forward.1} parent=1 // pred_check_branch
      %296 = sbr.rel (0) target = $region133
    $region132: #{transformer_with_bpm_forward.1} parent=1 // pred_region
      %297 = dma.done [#allocation15], 16384
    $region133: #{transformer_with_bpm_forward.1} parent=1 // pred_fallthru
      _
    // Predicated region
    $region134: #{transformer_with_bpm_forward.1} parent=1 // pred_check
      _
    $region135: #{transformer_with_bpm_forward.1} parent=1 // pred_check_branch
      %299 = sbr.rel (0) target = $region137
    $region136: #{transformer_with_bpm_forward.1} parent=1 // pred_region
      %300 = dma.done [#allocation18], 128
    $region137: #{transformer_with_bpm_forward.1} parent=1 // pred_fallthru
      _
    // Predicated region
    $region138: #{transformer_with_bpm_forward.1} parent=1 // pred_check
      _
    $region139: #{transformer_with_bpm_forward.1} parent=1 // pred_check_branch
      %302 = sbr.rel (0) target = $region141
    $region140: #{transformer_with_bpm_forward.1} parent=1 // pred_region
      %303 = dma.done [#allocation18], 16384
    $region141: #{transformer_with_bpm_forward.1} parent=1 // pred_fallthru
      _
    // Predicated region
    $region142: #{transformer_with_bpm_forward.1} parent=1 // pred_check
      _
    $region143: #{transformer_with_bpm_forward.1} parent=1 // pred_check_branch
      %305 = sbr.rel (0) target = $region145
    $region144: #{transformer_with_bpm_forward.1} parent=1 // pred_region
      %306 = dma.done [#allocation21], 64
    $region145: #{transformer_with_bpm_forward.1} parent=1 // pred_fallthru
      _
    // Predicated region
    $region146: #{transformer_with_bpm_forward.1} parent=1 // pred_check
      _
    $region147: #{transformer_with_bpm_forward.1} parent=1 // pred_check_branch
      %308 = sbr.rel (0) target = $region149
    $region148: #{transformer_with_bpm_forward.1} parent=1 // pred_region
      %309 = dma.done [#allocation21], 64
    $region149: #{transformer_with_bpm_forward.1} parent=1 // pred_fallthru
      _
    // Predicated region
    $region150: #{transformer_with_bpm_forward.1} parent=1 // pred_check
      _
    $region151: #{transformer_with_bpm_forward.1} parent=1 // pred_check_branch
      %311 = sbr.rel (0) target = $region153
    $region152: #{transformer_with_bpm_forward.1} parent=1 // pred_region
      %312 = dma.done [#allocation24], 64
    $region153: #{transformer_with_bpm_forward.1} parent=1 // pred_fallthru
      _
    // Predicated region
    $region154: #{transformer_with_bpm_forward.1} parent=1 // pred_check
      _
    $region155: #{transformer_with_bpm_forward.1} parent=1 // pred_check_branch
      %314 = sbr.rel (0) target = $region157
    $region156: #{transformer_with_bpm_forward.1} parent=1 // pred_region
      %315 = dma.done [#allocation24], 4096
    $region157: #{transformer_with_bpm_forward.1} parent=1 // pred_fallthru
      _
    // Predicated region
    $region158: #{transformer_with_bpm_forward.1} parent=1 // pred_check
      _
    $region159: #{transformer_with_bpm_forward.1} parent=1 // pred_check_branch
      %317 = sbr.rel (0) target = $region161
    $region160: #{transformer_with_bpm_forward.1} parent=1 // pred_region
      %318 = dma.done [#allocation27], 32
    $region161: #{transformer_with_bpm_forward.1} parent=1 // pred_fallthru
      _
    // Predicated region
    $region162: #{transformer_with_bpm_forward.1} parent=1 // pred_check
      _
    $region163: #{transformer_with_bpm_forward.1} parent=1 // pred_check_branch
      %320 = sbr.rel (0) target = $region165
    $region164: #{transformer_with_bpm_forward.1} parent=1 // pred_region
      %321 = dma.done [#allocation27], 32
    $region165: #{transformer_with_bpm_forward.1} parent=1 // pred_fallthru
      _
    // Predicated region
    $region166: #{transformer_with_bpm_forward.1} parent=1 // pred_check
      _
    $region167: #{transformer_with_bpm_forward.1} parent=1 // pred_check_branch
      %323 = sbr.rel (0) target = $region169
    $region168: #{transformer_with_bpm_forward.1} parent=1 // pred_region
      %324 = dma.done [#allocation30], 2048
    $region169: #{transformer_with_bpm_forward.1} parent=1 // pred_fallthru
      _
    // Predicated region
    $region170: #{transformer_with_bpm_forward.1} parent=1 // pred_check
      _
    $region171: #{transformer_with_bpm_forward.1} parent=1 // pred_check_branch
      %326 = sbr.rel (0) target = $region173
    $region172: #{transformer_with_bpm_forward.1} parent=1 // pred_region
      %327 = dma.done [#allocation30], 16
    $region173: #{transformer_with_bpm_forward.1} parent=1 // pred_fallthru
      _
    %v329 = vld [vmem:[%s0] sm:$0xff]
    %v330 = vld [vmem:[%s0 + $0x8] sm:$0xff]
    %v331 = vld [vmem:[%s0 + $0x10] sm:$0xff]
    %v332 = vld [vmem:[%s0 + $0x18] sm:$0xff]
    %v333 = vld [vmem:[%s0 + $0x20] sm:$0xff]
    %v334 = vld [vmem:[%s0 + $0x28] sm:$0xff]
    %v335 = vld [vmem:[%s0 + $0x30] sm:$0xff]
    %v336 = vld [vmem:[%s0 + $0x38] sm:$0xff]
    %v337 = vld [vmem:[#allocation3] sm:$0xff]
    %v338 = vld [vmem:[#allocation3 + $0x8] sm:$0xff]
    %v339 = vld [vmem:[#allocation3 + $0x10] sm:$0xff]
    %v340 = vld [vmem:[#allocation3 + $0x18] sm:$0xff]
    %v341 = vld [vmem:[#allocation5] sm:$0x3]
    %v343 = vlaneseq
    %v344 = vshrl.u32 %v343, 7
    %v345 = vsub.s32 0, %v344
    %v346 = vrot.slane %v341, %v345
    %v347 = vlaneseq
    %v348 = vshrl.u32 %v347, 7
    %v349 = vsub.s32 1, %v348
    %v350 = vrot.slane %v341, %v349
    %vm353 = vcmask 130048
    %v355 = vsel %vm353, %v329, 0
    %v358 = vsel %vm353, %v330, 0
    %v361 = vsel %vm353, %v331, 0
    %v364 = vsel %vm353, %v332, 0
    %v367 = vsel %vm353, %v333, 0
    %v370 = vsel %vm353, %v334, 0
    %v373 = vsel %vm353, %v335, 0
    %v376 = vsel %vm353, %v336, 0
    %378 = vmatprep.subr.mxu0 %v338
    %379 = vmatpush1.msra.mxu0 %v337
    %380 = vmatprep.subr.mxu0 %v340
    %381 = vmatpush1.msra.mxu0 %v339
    %382 = vmatprep.subr.mxu0 0.0
    %383 = vmatpush1.msra.mxu0 0.0
    %384 = vmatprep.subr.mxu0 0.0
    %385 = vmatpush1.msra.mxu0 0.0
    %386 = vmatprep.subr.mxu0 0.0
    %387 = vmatpush1.msra.mxu0 0.0
    %388 = vmatprep.subr.mxu0 0.0
    %389 = vmatpush1.msra.mxu0 0.0
    %390 = vmatprep.subr.mxu0 0.0
    %391 = vmatpush1.msra.mxu0 0.0
    %392 = vmatprep.subr.mxu0 0.0
    %393 = vmatpush1.msra.mxu0 0.0
    %394 = vmatprep.subr.mxu0 0.0
    %395 = vmatpush1.msra.mxu0 0.0
    %396 = vmatprep.subr.mxu0 0.0
    %397 = vmatpush1.msra.mxu0 0.0
    %398 = vmatprep.subr.mxu0 0.0
    %399 = vmatpush1.msra.mxu0 0.0
    %400 = vmatprep.subr.mxu0 0.0
    %401 = vmatpush1.msra.mxu0 0.0
    %402 = vmatprep.subr.mxu0 0.0
    %403 = vmatpush1.msra.mxu0 0.0
    %404 = vmatprep.subr.mxu0 0.0
    %405 = vmatpush1.msra.mxu0 0.0
    %406 = vmatprep.subr.mxu0 0.0
    %407 = vmatpush1.msra.mxu0 0.0
    %408 = vmatprep.subr.mxu0 0.0
    %409 = vmatpush1.msra.mxu0 0.0
    %410 = vmatprep.subr.mxu0 0.0
    %411 = vmatpush1.msra.mxu0 0.0
    %412 = vmatprep.subr.mxu0 0.0
    %413 = vmatpush1.msra.mxu0 0.0
    %414 = vmatprep.subr.mxu0 0.0
    %415 = vmatpush1.msra.mxu0 0.0
    %416 = vmatprep.subr.mxu0 0.0
    %417 = vmatpush1.msra.mxu0 0.0
    %418 = vmatprep.subr.mxu0 0.0
    %419 = vmatpush1.msra.mxu0 0.0
    %420 = vmatprep.subr.mxu0 0.0
    %421 = vmatpush1.msra.mxu0 0.0
    %422 = vmatprep.subr.mxu0 0.0
    %423 = vmatpush1.msra.mxu0 0.0
    %424 = vmatprep.subr.mxu0 0.0
    %425 = vmatpush1.msra.mxu0 0.0
    %426 = vmatprep.subr.mxu0 0.0
    %427 = vmatpush1.msra.mxu0 0.0
    %428 = vmatprep.subr.mxu0 0.0
    %429 = vmatpush1.msra.mxu0 0.0
    %430 = vmatprep.subr.mxu0 0.0
    %431 = vmatpush1.msra.mxu0 0.0
    %432 = vmatprep.subr.mxu0 0.0
    %433 = vmatpush1.msra.mxu0 0.0
    %434 = vmatprep.subr.mxu0 0.0
    %435 = vmatpush1.msra.mxu0 0.0
    %436 = vmatprep.subr.mxu0 0.0
    %437 = vmatpush1.msra.mxu0 0.0
    %438 = vmatprep.subr.mxu0 0.0
    %439 = vmatpush1.msra.mxu0 0.0
    %440 = vmatprep.subr.mxu0 0.0
    %441 = vmatpush1.msra.mxu0 0.0
    %442 = vmatprep.mubr.f32.mxu0 0.0
    %443 = vmatmul.mubr.f32.gmra.mrb[0].mxu0 %v355
    %v444 = vpop.f32.mrb[0].mxu0
    %v445 = vadd.f32 %v346, %v444
    %v446 = vpop.f32.mrb[0].mxu0
    %v447 = vadd.f32 %v350, %v446
    %448 = vmatprep.mubr.f32.mxu0 0.0
    %449 = vmatmul.mubr.f32.gmra.mrb[0].mxu0 %v358
    %v450 = vpop.f32.mrb[0].mxu0
    %v451 = vadd.f32 %v346, %v450
    %v452 = vpop.f32.mrb[0].mxu0
    %v453 = vadd.f32 %v350, %v452
    %454 = vmatprep.mubr.f32.mxu0 0.0
    %455 = vmatmul.mubr.f32.gmra.mrb[0].mxu0 %v361
    %v456 = vpop.f32.mrb[0].mxu0
    %v457 = vadd.f32 %v346, %v456
    %v458 = vpop.f32.mrb[0].mxu0
    %v459 = vadd.f32 %v350, %v458
    %460 = vmatprep.mubr.f32.mxu0 0.0
    %461 = vmatmul.mubr.f32.gmra.mrb[0].mxu0 %v364
    %v462 = vpop.f32.mrb[0].mxu0
    %v463 = vadd.f32 %v346, %v462
    %v464 = vpop.f32.mrb[0].mxu0
    %v465 = vadd.f32 %v350, %v464
    %466 = vmatprep.mubr.f32.mxu0 0.0
    %467 = vmatmul.mubr.f32.gmra.mrb[0].mxu0 %v367
    %v468 = vpop.f32.mrb[0].mxu0
    %v469 = vadd.f32 %v346, %v468
    %v470 = vpop.f32.mrb[0].mxu0
    %v471 = vadd.f32 %v350, %v470
    %472 = vmatprep.mubr.f32.mxu0 0.0
    %473 = vmatmul.mubr.f32.gmra.mrb[0].mxu0 %v370
    %v474 = vpop.f32.mrb[0].mxu0
    %v475 = vadd.f32 %v346, %v474
    %v476 = vpop.f32.mrb[0].mxu0
    %v477 = vadd.f32 %v350, %v476
    %478 = vmatprep.mubr.f32.mxu0 0.0
    %479 = vmatmul.mubr.f32.gmra.mrb[0].mxu0 %v373
    %v480 = vpop.f32.mrb[0].mxu0
    %v481 = vadd.f32 %v346, %v480
    %v482 = vpop.f32.mrb[0].mxu0
    %v483 = vadd.f32 %v350, %v482
    %484 = vmatprep.mubr.f32.mxu0 0.0
    %485 = vmatmul.mubr.f32.gmra.mrb[0].mxu0 %v376
    %v486 = vpop.f32.mrb[0].mxu0
    %v487 = vadd.f32 %v346, %v486
    %v488 = vpop.f32.mrb[0].mxu0
    %v489 = vadd.f32 %v350, %v488
    %490 = vdwg.mxu0
    %v491 = vld [vmem:[%s1] sm:$0xff]
    %v492 = vld [vmem:[%s1 + $0x8] sm:$0xff]
    %v493 = vld [vmem:[%s1 + $0x10] sm:$0xff]
    %v494 = vld [vmem:[%s1 + $0x18] sm:$0xff]
    %v495 = vld [vmem:[%s1 + $0x20] sm:$0xff]
    %v496 = vld [vmem:[%s1 + $0x28] sm:$0xff]
    %v497 = vld [vmem:[%s1 + $0x30] sm:$0xff]
    %v498 = vld [vmem:[%s1 + $0x38] sm:$0xff]
    %v499 = vld [vmem:[%s1 + $0x40] sm:$0xff]
    %v500 = vld [vmem:[%s1 + $0x48] sm:$0xff]
    %v501 = vld [vmem:[%s1 + $0x50] sm:$0xff]
    %v502 = vld [vmem:[%s1 + $0x58] sm:$0xff]
    %v503 = vld [vmem:[%s1 + $0x60] sm:$0xff]
    %v504 = vld [vmem:[%s1 + $0x68] sm:$0xff]
    %v505 = vld [vmem:[%s1 + $0x70] sm:$0xff]
    %v506 = vld [vmem:[%s1 + $0x78] sm:$0xff]
    %v507 = vadd.f32 %v445, %v491
    %v508 = vadd.f32 %v447, %v492
    %v509 = vadd.f32 %v451, %v493
    %v510 = vadd.f32 %v453, %v494
    %v511 = vadd.f32 %v457, %v495
    %v512 = vadd.f32 %v459, %v496
    %v513 = vadd.f32 %v463, %v497
    %v514 = vadd.f32 %v465, %v498
    %v515 = vadd.f32 %v469, %v499
    %v516 = vadd.f32 %v471, %v500
    %v517 = vadd.f32 %v475, %v501
    %v518 = vadd.f32 %v477, %v502
    %v519 = vadd.f32 %v481, %v503
    %v520 = vadd.f32 %v483, %v504
    %v521 = vadd.f32 %v487, %v505
    %v522 = vadd.f32 %v489, %v506
    %v523 = vpack.c.bf16 %v509, %v507
    %v524 = vpack.c.bf16 %v510, %v508
    %v525 = vpack.c.bf16 %v513, %v511
    %v526 = vpack.c.bf16 %v514, %v512
    %v527 = vpack.c.bf16 %v517, %v515
    %v528 = vpack.c.bf16 %v518, %v516
    %v529 = vpack.c.bf16 %v521, %v519
    %v530 = vpack.c.bf16 %v522, %v520
    %v531 = vld [vmem:[#allocation7] sm:$0xff]
    %v532 = vld [vmem:[#allocation7 + $0x8] sm:$0xff]
    %v533 = vld [vmem:[#allocation7 + $0x10] sm:$0xff]
    %v534 = vld [vmem:[#allocation7 + $0x18] sm:$0xff]
    %v535 = vld [vmem:[#allocation7 + $0x20] sm:$0xff]
    %v536 = vld [vmem:[#allocation7 + $0x28] sm:$0xff]
    %v537 = vld [vmem:[#allocation7 + $0x30] sm:$0xff]
    %v538 = vld [vmem:[#allocation7 + $0x38] sm:$0xff]
    %v539 = vld [vmem:[#allocation7 + $0x40] sm:$0xff]
    %v540 = vld [vmem:[#allocation7 + $0x48] sm:$0xff]
    %v541 = vld [vmem:[#allocation7 + $0x50] sm:$0xff]
    %v542 = vld [vmem:[#allocation7 + $0x58] sm:$0xff]
    %v543 = vld [vmem:[#allocation7 + $0x60] sm:$0xff]
    %v544 = vld [vmem:[#allocation7 + $0x68] sm:$0xff]
    %v545 = vld [vmem:[#allocation7 + $0x70] sm:$0xff]
    %v546 = vld [vmem:[#allocation7 + $0x78] sm:$0xff]
    %v547 = vld [vmem:[#allocation7 + $0x80] sm:$0xff]
    %v548 = vld [vmem:[#allocation7 + $0x88] sm:$0xff]
    %v549 = vld [vmem:[#allocation7 + $0x90] sm:$0xff]
    %v550 = vld [vmem:[#allocation7 + $0x98] sm:$0xff]
    %v551 = vld [vmem:[#allocation7 + $0xa0] sm:$0xff]
    %v552 = vld [vmem:[#allocation7 + $0xa8] sm:$0xff]
    %v553 = vld [vmem:[#allocation7 + $0xb0] sm:$0xff]
    %v554 = vld [vmem:[#allocation7 + $0xb8] sm:$0xff]
    %v555 = vld [vmem:[#allocation7 + $0xc0] sm:$0xff]
    %v556 = vld [vmem:[#allocation7 + $0xc8] sm:$0xff]
    %v557 = vld [vmem:[#allocation7 + $0xd0] sm:$0xff]
    %v558 = vld [vmem:[#allocation7 + $0xd8] sm:$0xff]
    %v559 = vld [vmem:[#allocation7 + $0xe0] sm:$0xff]
    %v560 = vld [vmem:[#allocation7 + $0xe8] sm:$0xff]
    %v561 = vld [vmem:[#allocation7 + $0xf0] sm:$0xff]
    %v562 = vld [vmem:[#allocation7 + $0xf8] sm:$0xff]
    %v563 = vld [vmem:[#allocation7 + $0x100] sm:$0xff]
    %v564 = vld [vmem:[#allocation7 + $0x108] sm:$0xff]
    %v565 = vld [vmem:[#allocation7 + $0x110] sm:$0xff]
    %v566 = vld [vmem:[#allocation7 + $0x118] sm:$0xff]
    %v567 = vld [vmem:[#allocation7 + $0x120] sm:$0xff]
    %v568 = vld [vmem:[#allocation7 + $0x128] sm:$0xff]
    %v569 = vld [vmem:[#allocation7 + $0x130] sm:$0xff]
    %v570 = vld [vmem:[#allocation7 + $0x138] sm:$0xff]
    %v571 = vld [vmem:[#allocation7 + $0x140] sm:$0xff]
    %v572 = vld [vmem:[#allocation7 + $0x148] sm:$0xff]
    %v573 = vld [vmem:[#allocation7 + $0x150] sm:$0xff]
    %v574 = vld [vmem:[#allocation7 + $0x158] sm:$0xff]
    %v575 = vld [vmem:[#allocation7 + $0x160] sm:$0xff]
    %v576 = vld [vmem:[#allocation7 + $0x168] sm:$0xff]
    %v577 = vld [vmem:[#allocation7 + $0x170] sm:$0xff]
    %v578 = vld [vmem:[#allocation7 + $0x178] sm:$0xff]
    %v579 = vld [vmem:[#allocation7 + $0x180] sm:$0xff]
    %v580 = vld [vmem:[#allocation7 + $0x188] sm:$0xff]
    %v581 = vld [vmem:[#allocation7 + $0x190] sm:$0xff]
    %v582 = vld [vmem:[#allocation7 + $0x198] sm:$0xff]
    %v583 = vld [vmem:[#allocation7 + $0x1a0] sm:$0xff]
    %v584 = vld [vmem:[#allocation7 + $0x1a8] sm:$0xff]
    %v585 = vld [vmem:[#allocation7 + $0x1b0] sm:$0xff]
    %v586 = vld [vmem:[#allocation7 + $0x1b8] sm:$0xff]
    %v587 = vld [vmem:[#allocation7 + $0x1c0] sm:$0xff]
    %v588 = vld [vmem:[#allocation7 + $0x1c8] sm:$0xff]
    %v589 = vld [vmem:[#allocation7 + $0x1d0] sm:$0xff]
    %v590 = vld [vmem:[#allocation7 + $0x1d8] sm:$0xff]
    %v591 = vld [vmem:[#allocation7 + $0x1e0] sm:$0xff]
    %v592 = vld [vmem:[#allocation7 + $0x1e8] sm:$0xff]
    %v593 = vld [vmem:[#allocation7 + $0x1f0] sm:$0xff]
    %v594 = vld [vmem:[#allocation7 + $0x1f8] sm:$0xff]
    %v595 = vld [vmem:[#allocation7 + $0x200] sm:$0xff]
    %v596 = vld [vmem:[#allocation7 + $0x208] sm:$0xff]
    %v597 = vld [vmem:[#allocation7 + $0x210] sm:$0xff]
    %v598 = vld [vmem:[#allocation7 + $0x218] sm:$0xff]
    %v599 = vld [vmem:[#allocation7 + $0x220] sm:$0xff]
    %v600 = vld [vmem:[#allocation7 + $0x228] sm:$0xff]
    %v601 = vld [vmem:[#allocation7 + $0x230] sm:$0xff]
    %v602 = vld [vmem:[#allocation7 + $0x238] sm:$0xff]
    %v603 = vld [vmem:[#allocation7 + $0x240] sm:$0xff]
    %v604 = vld [vmem:[#allocation7 + $0x248] sm:$0xff]
    %v605 = vld [vmem:[#allocation7 + $0x250] sm:$0xff]
    %v606 = vld [vmem:[#allocation7 + $0x258] sm:$0xff]
    %v607 = vld [vmem:[#allocation7 + $0x260] sm:$0xff]
    %v608 = vld [vmem:[#allocation7 + $0x268] sm:$0xff]
    %v609 = vld [vmem:[#allocation7 + $0x270] sm:$0xff]
    %v610 = vld [vmem:[#allocation7 + $0x278] sm:$0xff]
    %v611 = vld [vmem:[#allocation7 + $0x280] sm:$0xff]
    %v612 = vld [vmem:[#allocation7 + $0x288] sm:$0xff]
    %v613 = vld [vmem:[#allocation7 + $0x290] sm:$0xff]
    %v614 = vld [vmem:[#allocation7 + $0x298] sm:$0xff]
    %v615 = vld [vmem:[#allocation7 + $0x2a0] sm:$0xff]
    %v616 = vld [vmem:[#allocation7 + $0x2a8] sm:$0xff]
    %v617 = vld [vmem:[#allocation7 + $0x2b0] sm:$0xff]
    %v618 = vld [vmem:[#allocation7 + $0x2b8] sm:$0xff]
    %v619 = vld [vmem:[#allocation7 + $0x2c0] sm:$0xff]
    %v620 = vld [vmem:[#allocation7 + $0x2c8] sm:$0xff]
    %v621 = vld [vmem:[#allocation7 + $0x2d0] sm:$0xff]
    %v622 = vld [vmem:[#allocation7 + $0x2d8] sm:$0xff]
    %v623 = vld [vmem:[#allocation7 + $0x2e0] sm:$0xff]
    %v624 = vld [vmem:[#allocation7 + $0x2e8] sm:$0xff]
    %v625 = vld [vmem:[#allocation7 + $0x2f0] sm:$0xff]
    %v626 = vld [vmem:[#allocation7 + $0x2f8] sm:$0xff]
    %v627 = vld [vmem:[#allocation8] sm:$0x3f]
    %v629 = vlaneseq
    %v630 = vshrl.u32 %v629, 7
    %v631 = vsub.s32 0, %v630
    %v632 = vrot.slane %v627, %v631
    %v633 = vlaneseq
    %v634 = vshrl.u32 %v633, 7
    %v635 = vsub.s32 1, %v634
    %v636 = vrot.slane %v627, %v635
    %v637 = vlaneseq
    %v638 = vshrl.u32 %v637, 7
    %v639 = vsub.s32 2, %v638
    %v640 = vrot.slane %v627, %v639
    %v641 = vlaneseq
    %v642 = vshrl.u32 %v641, 7
    %v643 = vsub.s32 3, %v642
    %v644 = vrot.slane %v627, %v643
    %v645 = vlaneseq
    %v646 = vshrl.u32 %v645, 7
    %v647 = vsub.s32 4, %v646
    %v648 = vrot.slane %v627, %v647
    %v649 = vlaneseq
    %v650 = vshrl.u32 %v649, 7
    %v651 = vsub.s32 5, %v650
    %v652 = vrot.slane %v627, %v651
    %v755 = vunpack.c.l.b16 %v531
    %v756 = vunpack.c.h.b16 %v531
    %v757 = vunpack.c.l.b16 %v532
    %v758 = vunpack.c.h.b16 %v532
    %v759 = vunpack.c.l.b16 %v533
    %v760 = vunpack.c.h.b16 %v533
    %v761 = vunpack.c.l.b16 %v534
    %v762 = vunpack.c.h.b16 %v534
    %v763 = vunpack.c.l.b16 %v535
    %v764 = vunpack.c.h.b16 %v535
    %v765 = vunpack.c.l.b16 %v536
    %v766 = vunpack.c.h.b16 %v536
    %v767 = vunpack.c.l.b16 %v537
    %v768 = vunpack.c.h.b16 %v537
    %v769 = vunpack.c.l.b16 %v538
    %v770 = vunpack.c.h.b16 %v538
    %v771 = vunpack.c.l.b16 %v539
    %v772 = vunpack.c.h.b16 %v539
    %v773 = vunpack.c.l.b16 %v540
    %v774 = vunpack.c.h.b16 %v540
    %v775 = vunpack.c.l.b16 %v541
    %v776 = vunpack.c.h.b16 %v541
    %v777 = vunpack.c.l.b16 %v542
    %v778 = vunpack.c.h.b16 %v542
    %v779 = vunpack.c.l.b16 %v543
    %v780 = vunpack.c.h.b16 %v543
    %v781 = vunpack.c.l.b16 %v544
    %v782 = vunpack.c.h.b16 %v544
    %v783 = vunpack.c.l.b16 %v545
    %v784 = vunpack.c.h.b16 %v545
    %v785 = vunpack.c.l.b16 %v546
    %v786 = vunpack.c.h.b16 %v546
    %v787 = vunpack.c.l.b16 %v547
    %v788 = vunpack.c.h.b16 %v547
    %v789 = vunpack.c.l.b16 %v548
    %v790 = vunpack.c.h.b16 %v548
    %v791 = vunpack.c.l.b16 %v549
    %v792 = vunpack.c.h.b16 %v549
    %v793 = vunpack.c.l.b16 %v550
    %v794 = vunpack.c.h.b16 %v550
    %v795 = vunpack.c.l.b16 %v551
    %v796 = vunpack.c.h.b16 %v551
    %v797 = vunpack.c.l.b16 %v552
    %v798 = vunpack.c.h.b16 %v552
    %v799 = vunpack.c.l.b16 %v553
    %v800 = vunpack.c.h.b16 %v553
    %v801 = vunpack.c.l.b16 %v554
    %v802 = vunpack.c.h.b16 %v554
    %v803 = vunpack.c.l.b16 %v555
    %v804 = vunpack.c.h.b16 %v555
    %v805 = vunpack.c.l.b16 %v556
    %v806 = vunpack.c.h.b16 %v556
    %v807 = vunpack.c.l.b16 %v557
    %v808 = vunpack.c.h.b16 %v557
    %v809 = vunpack.c.l.b16 %v558
    %v810 = vunpack.c.h.b16 %v558
    %v811 = vunpack.c.l.b16 %v559
    %v812 = vunpack.c.h.b16 %v559
    %v813 = vunpack.c.l.b16 %v560
    %v814 = vunpack.c.h.b16 %v560
    %v815 = vunpack.c.l.b16 %v561
    %v816 = vunpack.c.h.b16 %v561
    %v817 = vunpack.c.l.b16 %v562
    %v818 = vunpack.c.h.b16 %v562
    %v819 = vunpack.c.l.b16 %v563
    %v820 = vunpack.c.h.b16 %v563
    %v821 = vunpack.c.l.b16 %v564
    %v822 = vunpack.c.h.b16 %v564
    %v823 = vunpack.c.l.b16 %v565
    %v824 = vunpack.c.h.b16 %v565
    %v825 = vunpack.c.l.b16 %v566
    %v826 = vunpack.c.h.b16 %v566
    %v827 = vunpack.c.l.b16 %v567
    %v828 = vunpack.c.h.b16 %v567
    %v829 = vunpack.c.l.b16 %v568
    %v830 = vunpack.c.h.b16 %v568
    %v831 = vunpack.c.l.b16 %v569
    %v832 = vunpack.c.h.b16 %v569
    %v833 = vunpack.c.l.b16 %v570
    %v834 = vunpack.c.h.b16 %v570
    %v835 = vunpack.c.l.b16 %v571
    %v836 = vunpack.c.h.b16 %v571
    %v837 = vunpack.c.l.b16 %v572
    %v838 = vunpack.c.h.b16 %v572
    %v839 = vunpack.c.l.b16 %v573
    %v840 = vunpack.c.h.b16 %v573
    %v841 = vunpack.c.l.b16 %v574
    %v842 = vunpack.c.h.b16 %v574
    %v843 = vunpack.c.l.b16 %v575
    %v844 = vunpack.c.h.b16 %v575
    %v845 = vunpack.c.l.b16 %v576
    %v846 = vunpack.c.h.b16 %v576
    %v847 = vunpack.c.l.b16 %v577
    %v848 = vunpack.c.h.b16 %v577
    %v849 = vunpack.c.l.b16 %v578
    %v850 = vunpack.c.h.b16 %v578
    %v851 = vunpack.c.l.b16 %v579
    %v852 = vunpack.c.h.b16 %v579
    %v853 = vunpack.c.l.b16 %v580
    %v854 = vunpack.c.h.b16 %v580
    %v855 = vunpack.c.l.b16 %v581
    %v856 = vunpack.c.h.b16 %v581
    %v857 = vunpack.c.l.b16 %v582
    %v858 = vunpack.c.h.b16 %v582
    %v859 = vunpack.c.l.b16 %v583
    %v860 = vunpack.c.h.b16 %v583
    %v861 = vunpack.c.l.b16 %v584
    %v862 = vunpack.c.h.b16 %v584
    %v863 = vunpack.c.l.b16 %v585
    %v864 = vunpack.c.h.b16 %v585
    %v865 = vunpack.c.l.b16 %v586
    %v866 = vunpack.c.h.b16 %v586
    %v867 = vunpack.c.l.b16 %v587
    %v868 = vunpack.c.h.b16 %v587
    %v869 = vunpack.c.l.b16 %v588
    %v870 = vunpack.c.h.b16 %v588
    %v871 = vunpack.c.l.b16 %v589
    %v872 = vunpack.c.h.b16 %v589
    %v873 = vunpack.c.l.b16 %v590
    %v874 = vunpack.c.h.b16 %v590
    %v875 = vunpack.c.l.b16 %v591
    %v876 = vunpack.c.h.b16 %v591
    %v877 = vunpack.c.l.b16 %v592
    %v878 = vunpack.c.h.b16 %v592
    %v879 = vunpack.c.l.b16 %v593
    %v880 = vunpack.c.h.b16 %v593
    %v881 = vunpack.c.l.b16 %v594
    %v882 = vunpack.c.h.b16 %v594
    %v883 = vunpack.c.l.b16 %v595
    %v884 = vunpack.c.h.b16 %v595
    %v885 = vunpack.c.l.b16 %v596
    %v886 = vunpack.c.h.b16 %v596
    %v887 = vunpack.c.l.b16 %v597
    %v888 = vunpack.c.h.b16 %v597
    %v889 = vunpack.c.l.b16 %v598
    %v890 = vunpack.c.h.b16 %v598
    %v891 = vunpack.c.l.b16 %v599
    %v892 = vunpack.c.h.b16 %v599
    %v893 = vunpack.c.l.b16 %v600
    %v894 = vunpack.c.h.b16 %v600
    %v895 = vunpack.c.l.b16 %v601
    %v896 = vunpack.c.h.b16 %v601
    %v897 = vunpack.c.l.b16 %v602
    %v898 = vunpack.c.h.b16 %v602
    %v899 = vunpack.c.l.b16 %v603
    %v900 = vunpack.c.h.b16 %v603
    %v901 = vunpack.c.l.b16 %v604
    %v902 = vunpack.c.h.b16 %v604
    %v903 = vunpack.c.l.b16 %v605
    %v904 = vunpack.c.h.b16 %v605
    %v905 = vunpack.c.l.b16 %v606
    %v906 = vunpack.c.h.b16 %v606
    %v907 = vunpack.c.l.b16 %v607
    %v908 = vunpack.c.h.b16 %v607
    %v909 = vunpack.c.l.b16 %v608
    %v910 = vunpack.c.h.b16 %v608
    %v911 = vunpack.c.l.b16 %v609
    %v912 = vunpack.c.h.b16 %v609
    %v913 = vunpack.c.l.b16 %v610
    %v914 = vunpack.c.h.b16 %v610
    %v915 = vunpack.c.l.b16 %v611
    %v916 = vunpack.c.h.b16 %v611
    %v917 = vunpack.c.l.b16 %v612
    %v918 = vunpack.c.h.b16 %v612
    %v919 = vunpack.c.l.b16 %v613
    %v920 = vunpack.c.h.b16 %v613
    %v921 = vunpack.c.l.b16 %v614
    %v922 = vunpack.c.h.b16 %v614
    %v923 = vunpack.c.l.b16 %v615
    %v924 = vunpack.c.h.b16 %v615
    %v925 = vunpack.c.l.b16 %v616
    %v926 = vunpack.c.h.b16 %v616
    %v927 = vunpack.c.l.b16 %v617
    %v928 = vunpack.c.h.b16 %v617
    %v929 = vunpack.c.l.b16 %v618
    %v930 = vunpack.c.h.b16 %v618
    %v931 = vunpack.c.l.b16 %v619
    %v932 = vunpack.c.h.b16 %v619
    %v933 = vunpack.c.l.b16 %v620
    %v934 = vunpack.c.h.b16 %v620
    %v935 = vunpack.c.l.b16 %v621
    %v936 = vunpack.c.h.b16 %v621
    %v937 = vunpack.c.l.b16 %v622
    %v938 = vunpack.c.h.b16 %v622
    %v939 = vunpack.c.l.b16 %v623
    %v940 = vunpack.c.h.b16 %v623
    %v941 = vunpack.c.l.b16 %v624
    %v942 = vunpack.c.h.b16 %v624
    %v943 = vunpack.c.l.b16 %v625
    %v944 = vunpack.c.h.b16 %v625
    %v945 = vunpack.c.l.b16 %v626
    %v946 = vunpack.c.h.b16 %v626
    %v947 = vpack.c.b16 %v761, %v755
    %v948 = vpack.c.b16 %v762, %v756
    %v949 = vpack.c.b16 %v763, %v757
    %v950 = vpack.c.b16 %v764, %v758
    %v951 = vpack.c.b16 %v765, %v759
    %v952 = vpack.c.b16 %v766, %v760
    %v953 = vpack.c.b16 %v773, %v767
    %v954 = vpack.c.b16 %v774, %v768
    %v955 = vpack.c.b16 %v775, %v769
    %v956 = vpack.c.b16 %v776, %v770
    %v957 = vpack.c.b16 %v777, %v771
    %v958 = vpack.c.b16 %v778, %v772
    %v959 = vpack.c.b16 %v785, %v779
    %v960 = vpack.c.b16 %v786, %v780
    %v961 = vpack.c.b16 %v787, %v781
    %v962 = vpack.c.b16 %v788, %v782
    %v963 = vpack.c.b16 %v789, %v783
    %v964 = vpack.c.b16 %v790, %v784
    %v965 = vpack.c.b16 %v797, %v791
    %v966 = vpack.c.b16 %v798, %v792
    %v967 = vpack.c.b16 %v799, %v793
    %v968 = vpack.c.b16 %v800, %v794
    %v969 = vpack.c.b16 %v801, %v795
    %v970 = vpack.c.b16 %v802, %v796
    %v971 = vpack.c.b16 %v809, %v803
    %v972 = vpack.c.b16 %v810, %v804
    %v973 = vpack.c.b16 %v811, %v805
    %v974 = vpack.c.b16 %v812, %v806
    %v975 = vpack.c.b16 %v813, %v807
    %v976 = vpack.c.b16 %v814, %v808
    %v977 = vpack.c.b16 %v821, %v815
    %v978 = vpack.c.b16 %v822, %v816
    %v979 = vpack.c.b16 %v823, %v817
    %v980 = vpack.c.b16 %v824, %v818
    %v981 = vpack.c.b16 %v825, %v819
    %v982 = vpack.c.b16 %v826, %v820
    %v983 = vpack.c.b16 %v833, %v827
    %v984 = vpack.c.b16 %v834, %v828
    %v985 = vpack.c.b16 %v835, %v829
    %v986 = vpack.c.b16 %v836, %v830
    %v987 = vpack.c.b16 %v837, %v831
    %v988 = vpack.c.b16 %v838, %v832
    %v989 = vpack.c.b16 %v845, %v839
    %v990 = vpack.c.b16 %v846, %v840
    %v991 = vpack.c.b16 %v847, %v841
    %v992 = vpack.c.b16 %v848, %v842
    %v993 = vpack.c.b16 %v849, %v843
    %v994 = vpack.c.b16 %v850, %v844
    %v995 = vpack.c.b16 %v857, %v851
    %v996 = vpack.c.b16 %v858, %v852
    %v997 = vpack.c.b16 %v859, %v853
    %v998 = vpack.c.b16 %v860, %v854
    %v999 = vpack.c.b16 %v861, %v855
    %v1000 = vpack.c.b16 %v862, %v856
    %v1001 = vpack.c.b16 %v869, %v863
    %v1002 = vpack.c.b16 %v870, %v864
    %v1003 = vpack.c.b16 %v871, %v865
    %v1004 = vpack.c.b16 %v872, %v866
    %v1005 = vpack.c.b16 %v873, %v867
    %v1006 = vpack.c.b16 %v874, %v868
    %v1007 = vpack.c.b16 %v881, %v875
    %v1008 = vpack.c.b16 %v882, %v876
    %v1009 = vpack.c.b16 %v883, %v877
    %v1010 = vpack.c.b16 %v884, %v878
    %v1011 = vpack.c.b16 %v885, %v879
    %v1012 = vpack.c.b16 %v886, %v880
    %v1013 = vpack.c.b16 %v893, %v887
    %v1014 = vpack.c.b16 %v894, %v888
    %v1015 = vpack.c.b16 %v895, %v889
    %v1016 = vpack.c.b16 %v896, %v890
    %v1017 = vpack.c.b16 %v897, %v891
    %v1018 = vpack.c.b16 %v898, %v892
    %v1019 = vpack.c.b16 %v905, %v899
    %v1020 = vpack.c.b16 %v906, %v900
    %v1021 = vpack.c.b16 %v907, %v901
    %v1022 = vpack.c.b16 %v908, %v902
    %v1023 = vpack.c.b16 %v909, %v903
    %v1024 = vpack.c.b16 %v910, %v904
    %v1025 = vpack.c.b16 %v917, %v911
    %v1026 = vpack.c.b16 %v918, %v912
    %v1027 = vpack.c.b16 %v919, %v913
    %v1028 = vpack.c.b16 %v920, %v914
    %v1029 = vpack.c.b16 %v921, %v915
    %v1030 = vpack.c.b16 %v922, %v916
    %v1031 = vpack.c.b16 %v929, %v923
    %v1032 = vpack.c.b16 %v930, %v924
    %v1033 = vpack.c.b16 %v931, %v925
    %v1034 = vpack.c.b16 %v932, %v926
    %v1035 = vpack.c.b16 %v933, %v927
    %v1036 = vpack.c.b16 %v934, %v928
    %v1037 = vpack.c.b16 %v941, %v935
    %v1038 = vpack.c.b16 %v942, %v936
    %v1039 = vpack.c.b16 %v943, %v937
    %v1040 = vpack.c.b16 %v944, %v938
    %v1041 = vpack.c.b16 %v945, %v939
    %v1042 = vpack.c.b16 %v946, %v940
    %1139 = vmatprep.subr.bf16.mxu0 %v948
    %1140 = vmatpush1.bf16.msra.mxu0 %v947
    %1141 = vmatprep.subr.bf16.mxu0 %v954
    %1142 = vmatpush1.bf16.msra.mxu0 %v953
    %1143 = vmatprep.subr.bf16.mxu0 %v960
    %1144 = vmatpush1.bf16.msra.mxu0 %v959
    %1145 = vmatprep.subr.bf16.mxu0 %v966
    %1146 = vmatpush1.bf16.msra.mxu0 %v965
    %1147 = vmatprep.subr.bf16.mxu0 %v972
    %1148 = vmatpush1.bf16.msra.mxu0 %v971
    %1149 = vmatprep.subr.bf16.mxu0 %v978
    %1150 = vmatpush1.bf16.msra.mxu0 %v977
    %1151 = vmatprep.subr.bf16.mxu0 %v984
    %1152 = vmatpush1.bf16.msra.mxu0 %v983
    %1153 = vmatprep.subr.bf16.mxu0 %v990
    %1154 = vmatpush1.bf16.msra.mxu0 %v989
    %1155 = vmatprep.subr.bf16.mxu0 %v996
    %1156 = vmatpush1.bf16.msra.mxu0 %v995
    %1157 = vmatprep.subr.bf16.mxu0 %v1002
    %1158 = vmatpush1.bf16.msra.mxu0 %v1001
    %1159 = vmatprep.subr.bf16.mxu0 %v1008
    %1160 = vmatpush1.bf16.msra.mxu0 %v1007
    %1161 = vmatprep.subr.bf16.mxu0 %v1014
    %1162 = vmatpush1.bf16.msra.mxu0 %v1013
    %1163 = vmatprep.subr.bf16.mxu0 %v1020
    %1164 = vmatpush1.bf16.msra.mxu0 %v1019
    %1165 = vmatprep.subr.bf16.mxu0 %v1026
    %1166 = vmatpush1.bf16.msra.mxu0 %v1025
    %1167 = vmatprep.subr.bf16.mxu0 %v1032
    %1168 = vmatpush1.bf16.msra.mxu0 %v1031
    %1169 = vmatprep.subr.bf16.mxu0 %v1038
    %1170 = vmatpush1.bf16.msra.mxu0 %v1037
    %1171 = vmatprep.mubr.bf16.mxu0 %v524
    %1172 = vmatmul.mubr.bf16.gmra.mrb[0].mxu0 %v523
    %v1173 = vpop.f32.mrb[0].mxu0
    %v1174 = vadd.f32 %v632, %v1173
    %v1175 = vpop.f32.mrb[0].mxu0
    %v1176 = vadd.f32 %v636, %v1175
    %v1177 = vpop.f32.mrb[0].mxu0
    %v1178 = vadd.f32 %v632, %v1177
    %v1179 = vpop.f32.mrb[0].mxu0
    %v1180 = vadd.f32 %v636, %v1179
    %1181 = vmatprep.mubr.bf16.mxu0 %v526
    %1182 = vmatmul.mubr.bf16.gmra.mrb[0].mxu0 %v525
    %v1183 = vpop.f32.mrb[0].mxu0
    %v1184 = vadd.f32 %v632, %v1183
    %v1185 = vpop.f32.mrb[0].mxu0
    %v1186 = vadd.f32 %v636, %v1185
    %v1187 = vpop.f32.mrb[0].mxu0
    %v1188 = vadd.f32 %v632, %v1187
    %v1189 = vpop.f32.mrb[0].mxu0
    %v1190 = vadd.f32 %v636, %v1189
    %1191 = vmatprep.mubr.bf16.mxu0 %v528
    %1192 = vmatmul.mubr.bf16.gmra.mrb[0].mxu0 %v527
    %v1193 = vpop.f32.mrb[0].mxu0
    %v1194 = vadd.f32 %v632, %v1193
    %v1195 = vpop.f32.mrb[0].mxu0
    %v1196 = vadd.f32 %v636, %v1195
    %v1197 = vpop.f32.mrb[0].mxu0
    %v1198 = vadd.f32 %v632, %v1197
    %v1199 = vpop.f32.mrb[0].mxu0
    %v1200 = vadd.f32 %v636, %v1199
    %1201 = vmatprep.mubr.bf16.mxu0 %v530
    %1202 = vmatmul.mubr.bf16.gmra.mrb[0].mxu0 %v529
    %v1203 = vpop.f32.mrb[0].mxu0
    %v1204 = vadd.f32 %v632, %v1203
    %v1205 = vpop.f32.mrb[0].mxu0
    %v1206 = vadd.f32 %v636, %v1205
    %v1207 = vpop.f32.mrb[0].mxu0
    %v1208 = vadd.f32 %v632, %v1207
    %v1209 = vpop.f32.mrb[0].mxu0
    %v1210 = vadd.f32 %v636, %v1209
    %1211 = vdwg.mxu0
    %1212 = vmatprep.subr.bf16.mxu0 %v950
    %1213 = vmatpush1.bf16.msra.mxu0 %v949
    %1214 = vmatprep.subr.bf16.mxu0 %v956
    %1215 = vmatpush1.bf16.msra.mxu0 %v955
    %1216 = vmatprep.subr.bf16.mxu0 %v962
    %1217 = vmatpush1.bf16.msra.mxu0 %v961
    %1218 = vmatprep.subr.bf16.mxu0 %v968
    %1219 = vmatpush1.bf16.msra.mxu0 %v967
    %1220 = vmatprep.subr.bf16.mxu0 %v974
    %1221 = vmatpush1.bf16.msra.mxu0 %v973
    %1222 = vmatprep.subr.bf16.mxu0 %v980
    %1223 = vmatpush1.bf16.msra.mxu0 %v979
    %1224 = vmatprep.subr.bf16.mxu0 %v986
    %1225 = vmatpush1.bf16.msra.mxu0 %v985
    %1226 = vmatprep.subr.bf16.mxu0 %v992
    %1227 = vmatpush1.bf16.msra.mxu0 %v991
    %1228 = vmatprep.subr.bf16.mxu0 %v998
    %1229 = vmatpush1.bf16.msra.mxu0 %v997
    %1230 = vmatprep.subr.bf16.mxu0 %v1004
    %1231 = vmatpush1.bf16.msra.mxu0 %v1003
    %1232 = vmatprep.subr.bf16.mxu0 %v1010
    %1233 = vmatpush1.bf16.msra.mxu0 %v1009
    %1234 = vmatprep.subr.bf16.mxu0 %v1016
    %1235 = vmatpush1.bf16.msra.mxu0 %v1015
    %1236 = vmatprep.subr.bf16.mxu0 %v1022
    %1237 = vmatpush1.bf16.msra.mxu0 %v1021
    %1238 = vmatprep.subr.bf16.mxu0 %v1028
    %1239 = vmatpush1.bf16.msra.mxu0 %v1027
    %1240 = vmatprep.subr.bf16.mxu0 %v1034
    %1241 = vmatpush1.bf16.msra.mxu0 %v1033
    %1242 = vmatprep.subr.bf16.mxu0 %v1040
    %1243 = vmatpush1.bf16.msra.mxu0 %v1039
    %1244 = vmatprep.mubr.bf16.mxu0 %v524
    %1245 = vmatmul.mubr.bf16.gmra.mrb[0].mxu0 %v523
    %v1246 = vpop.f32.mrb[0].mxu0
    %v1247 = vadd.f32 %v640, %v1246
    %v1248 = vpop.f32.mrb[0].mxu0
    %v1249 = vadd.f32 %v644, %v1248
    %v1250 = vpop.f32.mrb[0].mxu0
    %v1251 = vadd.f32 %v640, %v1250
    %v1252 = vpop.f32.mrb[0].mxu0
    %v1253 = vadd.f32 %v644, %v1252
    %1254 = vmatprep.mubr.bf16.mxu0 %v526
    %1255 = vmatmul.mubr.bf16.gmra.mrb[0].mxu0 %v525
    %v1256 = vpop.f32.mrb[0].mxu0
    %v1257 = vadd.f32 %v640, %v1256
    %v1258 = vpop.f32.mrb[0].mxu0
    %v1259 = vadd.f32 %v644, %v1258
    %v1260 = vpop.f32.mrb[0].mxu0
    %v1261 = vadd.f32 %v640, %v1260
    %v1262 = vpop.f32.mrb[0].mxu0
    %v1263 = vadd.f32 %v644, %v1262
    %1264 = vmatprep.mubr.bf16.mxu0 %v528
    %1265 = vmatmul.mubr.bf16.gmra.mrb[0].mxu0 %v527
    %v1266 = vpop.f32.mrb[0].mxu0
    %v1267 = vadd.f32 %v640, %v1266
    %v1268 = vpop.f32.mrb[0].mxu0
    %v1269 = vadd.f32 %v644, %v1268
    %v1270 = vpop.f32.mrb[0].mxu0
    %v1271 = vadd.f32 %v640, %v1270
    %v1272 = vpop.f32.mrb[0].mxu0
    %v1273 = vadd.f32 %v644, %v1272
    %1274 = vmatprep.mubr.bf16.mxu0 %v530
    %1275 = vmatmul.mubr.bf16.gmra.mrb[0].mxu0 %v529
    %v1276 = vpop.f32.mrb[0].mxu0
    %v1277 = vadd.f32 %v640, %v1276
    %v1278 = vpop.f32.mrb[0].mxu0
    %v1279 = vadd.f32 %v644, %v1278
    %v1280 = vpop.f32.mrb[0].mxu0
    %v1281 = vadd.f32 %v640, %v1280
    %v1282 = vpop.f32.mrb[0].mxu0
    %v1283 = vadd.f32 %v644, %v1282
    %1284 = vdwg.mxu0
    %1285 = vmatprep.subr.bf16.mxu0 %v952
    %1286 = vmatpush1.bf16.msra.mxu0 %v951
    %1287 = vmatprep.subr.bf16.mxu0 %v958
    %1288 = vmatpush1.bf16.msra.mxu0 %v957
    %1289 = vmatprep.subr.bf16.mxu0 %v964
    %1290 = vmatpush1.bf16.msra.mxu0 %v963
    %1291 = vmatprep.subr.bf16.mxu0 %v970
    %1292 = vmatpush1.bf16.msra.mxu0 %v969
    %1293 = vmatprep.subr.bf16.mxu0 %v976
    %1294 = vmatpush1.bf16.msra.mxu0 %v975
    %1295 = vmatprep.subr.bf16.mxu0 %v982
    %1296 = vmatpush1.bf16.msra.mxu0 %v981
    %1297 = vmatprep.subr.bf16.mxu0 %v988
    %1298 = vmatpush1.bf16.msra.mxu0 %v987
    %1299 = vmatprep.subr.bf16.mxu0 %v994
    %1300 = vmatpush1.bf16.msra.mxu0 %v993
    %1301 = vmatprep.subr.bf16.mxu0 %v1000
    %1302 = vmatpush1.bf16.msra.mxu0 %v999
    %1303 = vmatprep.subr.bf16.mxu0 %v1006
    %1304 = vmatpush1.bf16.msra.mxu0 %v1005
    %1305 = vmatprep.subr.bf16.mxu0 %v1012
    %1306 = vmatpush1.bf16.msra.mxu0 %v1011
    %1307 = vmatprep.subr.bf16.mxu0 %v1018
    %1308 = vmatpush1.bf16.msra.mxu0 %v1017
    %1309 = vmatprep.subr.bf16.mxu0 %v1024
    %1310 = vmatpush1.bf16.msra.mxu0 %v1023
    %1311 = vmatprep.subr.bf16.mxu0 %v1030
    %1312 = vmatpush1.bf16.msra.mxu0 %v1029
    %1313 = vmatprep.subr.bf16.mxu0 %v1036
    %1314 = vmatpush1.bf16.msra.mxu0 %v1035
    %1315 = vmatprep.subr.bf16.mxu0 %v1042
    %1316 = vmatpush1.bf16.msra.mxu0 %v1041
    %1317 = vmatprep.mubr.bf16.mxu0 %v524
    %1318 = vmatmul.mubr.bf16.gmra.mrb[0].mxu0 %v523
    %v1319 = vpop.f32.mrb[0].mxu0
    %v1320 = vadd.f32 %v648, %v1319
    %v1321 = vpop.f32.mrb[0].mxu0
    %v1322 = vadd.f32 %v652, %v1321
    %v1323 = vpop.f32.mrb[0].mxu0
    %v1324 = vadd.f32 %v648, %v1323
    %v1325 = vpop.f32.mrb[0].mxu0
    %v1326 = vadd.f32 %v652, %v1325
    %1327 = vmatprep.mubr.bf16.mxu0 %v526
    %1328 = vmatmul.mubr.bf16.gmra.mrb[0].mxu0 %v525
    %v1329 = vpop.f32.mrb[0].mxu0
    %v1330 = vadd.f32 %v648, %v1329
    %v1331 = vpop.f32.mrb[0].mxu0
    %v1332 = vadd.f32 %v652, %v1331
    %v1333 = vpop.f32.mrb[0].mxu0
    %v1334 = vadd.f32 %v648, %v1333
    %v1335 = vpop.f32.mrb[0].mxu0
    %v1336 = vadd.f32 %v652, %v1335
    %1337 = vmatprep.mubr.bf16.mxu0 %v528
    %1338 = vmatmul.mubr.bf16.gmra.mrb[0].mxu0 %v527
    %v1339 = vpop.f32.mrb[0].mxu0
    %v1340 = vadd.f32 %v648, %v1339
    %v1341 = vpop.f32.mrb[0].mxu0
    %v1342 = vadd.f32 %v652, %v1341
    %v1343 = vpop.f32.mrb[0].mxu0
    %v1344 = vadd.f32 %v648, %v1343
    %v1345 = vpop.f32.mrb[0].mxu0
    %v1346 = vadd.f32 %v652, %v1345
    %1347 = vmatprep.mubr.bf16.mxu0 %v530
    %1348 = vmatmul.mubr.bf16.gmra.mrb[0].mxu0 %v529
    %v1349 = vpop.f32.mrb[0].mxu0
    %v1350 = vadd.f32 %v648, %v1349
    %v1351 = vpop.f32.mrb[0].mxu0
    %v1352 = vadd.f32 %v652, %v1351
    %v1353 = vpop.f32.mrb[0].mxu0
    %v1354 = vadd.f32 %v648, %v1353
    %v1355 = vpop.f32.mrb[0].mxu0
    %v1356 = vadd.f32 %v652, %v1355
    %1357 = vdwg.mxu0
    %v1358 = vpack.c.bf16 %v1178, %v1174
    %v1359 = vpack.c.bf16 %v1188, %v1184
    %v1360 = vpack.c.bf16 %v1198, %v1194
    %v1361 = vpack.c.bf16 %v1208, %v1204
    %v1362 = vpack.c.bf16 %v1251, %v1247
    %v1363 = vpack.c.bf16 %v1261, %v1257
    %v1364 = vpack.c.bf16 %v1271, %v1267
    %v1365 = vpack.c.bf16 %v1281, %v1277
    %vm1366 = vcmask 523264
    %v1368 = vsel %vm1366, %v1358, 0
    %v1371 = vsel %vm1366, %v1359, 0
    %v1374 = vsel %vm1366, %v1362, 0
    %v1377 = vsel %vm1366, %v1363, 0
    %1379 = vmatprep.subr.bf16.mxu0 0
    %1380 = vmatpush1.bf16.xpose.msra.mxu0 %v1374
    %1381 = vmatprep.subr.bf16.mxu0 0
    %1382 = vmatpush1.bf16.xpose.msra.mxu0 %v1377
    %1383 = vmatprep.subr.bf16.mxu0 0
    %1384 = vmatpush1.bf16.xpose.msra.mxu0 0
    %1385 = vmatprep.subr.bf16.mxu0 0
    %1386 = vmatpush1.bf16.xpose.msra.mxu0 0
    %1387 = vmatprep.subr.bf16.mxu0 0
    %1388 = vmatpush1.bf16.xpose.msra.mxu0 0
    %1389 = vmatprep.subr.bf16.mxu0 0
    %1390 = vmatpush1.bf16.xpose.msra.mxu0 0
    %1391 = vmatprep.subr.bf16.mxu0 0
    %1392 = vmatpush1.bf16.xpose.msra.mxu0 0
    %1393 = vmatprep.subr.bf16.mxu0 0
    %1394 = vmatpush1.bf16.xpose.msra.mxu0 0
    %1395 = vmatprep.subr.bf16.mxu0 0
    %1396 = vmatpush1.bf16.xpose.msra.mxu0 0
    %1397 = vmatprep.subr.bf16.mxu0 0
    %1398 = vmatpush1.bf16.xpose.msra.mxu0 0
    %1399 = vmatprep.subr.bf16.mxu0 0
    %1400 = vmatpush1.bf16.xpose.msra.mxu0 0
    %1401 = vmatprep.subr.bf16.mxu0 0
    %1402 = vmatpush1.bf16.xpose.msra.mxu0 0
    %1403 = vmatprep.subr.bf16.mxu0 0
    %1404 = vmatpush1.bf16.xpose.msra.mxu0 0
    %1405 = vmatprep.subr.bf16.mxu0 0
    %1406 = vmatpush1.bf16.xpose.msra.mxu0 0
    %1407 = vmatprep.subr.bf16.mxu0 0
    %1408 = vmatpush1.bf16.xpose.msra.mxu0 0
    %1409 = vmatprep.subr.bf16.mxu0 0
    %1410 = vmatpush1.bf16.xpose.msra.mxu0 0
    %1411 = vmatprep.mubr.bf16.mxu0 0
    %1412 = vmatmul.mubr.bf16.gmra.mrb[0].mxu0 %v1368
    %v1413 = vpop.f32.mrb[0].mxu0
    %v1414 = vadd.f32 0.0, %v1413
    %v1415 = vpop.f32.mrb[0].mxu0
    %v1416 = vpop.f32.mrb[0].mxu0
    %v1417 = vadd.f32 0.0, %v1416
    %v1418 = vpop.f32.mrb[0].mxu0
    %1419 = vmatprep.mubr.bf16.mxu0 0
    %1420 = vmatmul.mubr.bf16.gmra.mrb[0].mxu0 %v1371
    %v1421 = vpop.f32.mrb[0].mxu0
    %v1422 = vadd.f32 0.0, %v1421
    %v1423 = vpop.f32.mrb[0].mxu0
    %v1424 = vpop.f32.mrb[0].mxu0
    %v1425 = vadd.f32 0.0, %v1424
    %v1426 = vpop.f32.mrb[0].mxu0
    %1427 = vdwg.mxu0
    %v1429 = vsel %vm1366, %v1360, 0
    %v1432 = vsel %vm1366, %v1361, 0
    %v1435 = vsel %vm1366, %v1364, 0
    %v1438 = vsel %vm1366, %v1365, 0
    %1440 = vmatprep.subr.bf16.mxu0 0
    %1441 = vmatpush1.bf16.xpose.msra.mxu0 %v1435
    %1442 = vmatprep.subr.bf16.mxu0 0
    %1443 = vmatpush1.bf16.xpose.msra.mxu0 %v1438
    %1444 = vmatprep.subr.bf16.mxu0 0
    %1445 = vmatpush1.bf16.xpose.msra.mxu0 0
    %1446 = vmatprep.subr.bf16.mxu0 0
    %1447 = vmatpush1.bf16.xpose.msra.mxu0 0
    %1448 = vmatprep.subr.bf16.mxu0 0
    %1449 = vmatpush1.bf16.xpose.msra.mxu0 0
    %1450 = vmatprep.subr.bf16.mxu0 0
    %1451 = vmatpush1.bf16.xpose.msra.mxu0 0
    %1452 = vmatprep.subr.bf16.mxu0 0
    %1453 = vmatpush1.bf16.xpose.msra.mxu0 0
    %1454 = vmatprep.subr.bf16.mxu0 0
    %1455 = vmatpush1.bf16.xpose.msra.mxu0 0
    %1456 = vmatprep.subr.bf16.mxu0 0
    %1457 = vmatpush1.bf16.xpose.msra.mxu0 0
    %1458 = vmatprep.subr.bf16.mxu0 0
    %1459 = vmatpush1.bf16.xpose.msra.mxu0 0
    %1460 = vmatprep.subr.bf16.mxu0 0
    %1461 = vmatpush1.bf16.xpose.msra.mxu0 0
    %1462 = vmatprep.subr.bf16.mxu0 0
    %1463 = vmatpush1.bf16.xpose.msra.mxu0 0
    %1464 = vmatprep.subr.bf16.mxu0 0
    %1465 = vmatpush1.bf16.xpose.msra.mxu0 0
    %1466 = vmatprep.subr.bf16.mxu0 0
    %1467 = vmatpush1.bf16.xpose.msra.mxu0 0
    %1468 = vmatprep.subr.bf16.mxu0 0
    %1469 = vmatpush1.bf16.xpose.msra.mxu0 0
    %1470 = vmatprep.subr.bf16.mxu0 0
    %1471 = vmatpush1.bf16.xpose.msra.mxu0 0
    %1472 = vmatprep.mubr.bf16.mxu0 0
    %1473 = vmatmul.mubr.bf16.gmra.mrb[0].mxu0 %v1429
    %v1474 = vpop.f32.mrb[0].mxu0
    %v1475 = vadd.f32 0.0, %v1474
    %v1476 = vpop.f32.mrb[0].mxu0
    %v1477 = vpop.f32.mrb[0].mxu0
    %v1478 = vadd.f32 0.0, %v1477
    %v1479 = vpop.f32.mrb[0].mxu0
    %1480 = vmatprep.mubr.bf16.mxu0 0
    %1481 = vmatmul.mubr.bf16.gmra.mrb[0].mxu0 %v1432
    %v1482 = vpop.f32.mrb[0].mxu0
    %v1483 = vadd.f32 0.0, %v1482
    %v1484 = vpop.f32.mrb[0].mxu0
    %v1485 = vpop.f32.mrb[0].mxu0
    %v1486 = vadd.f32 0.0, %v1485
    %v1487 = vpop.f32.mrb[0].mxu0
    %1488 = vdwg.mxu0
    %v1489 = vmul.f32 %v1414, 0.125
    %v1490 = vmul.f32 %v1417, 0.125
    %v1491 = vmul.f32 %v1422, 0.125
    %v1492 = vmul.f32 %v1425, 0.125
    %v1493 = vmul.f32 %v1475, 0.125
    %v1494 = vmul.f32 %v1478, 0.125
    %v1495 = vmul.f32 %v1483, 0.125
    %v1496 = vmul.f32 %v1486, 0.125
    %vm1497 = vcmask 261120
    %v1498 = vsel %vm1497, %v1489, -inf
    %1499 = vmax.xlane.f32.xlu0 %v1498
    %v1500 = vpop.xlane.xlu0 %1499
    %v1501 = vsel %vm1497, %v1490, -inf
    %1502 = vmax.xlane.f32.xlu0 %v1501
    %v1503 = vpop.xlane.xlu0 %1502
    %v1504 = vsel %vm1497, %v1491, -inf
    %1505 = vmax.xlane.f32.xlu0 %v1504
    %v1506 = vpop.xlane.xlu0 %1505
    %v1507 = vsel %vm1497, %v1492, -inf
    %1508 = vmax.xlane.f32.xlu0 %v1507
    %v1509 = vpop.xlane.xlu0 %1508
    %v1510 = vsel %vm1497, %v1493, -inf
    %1511 = vmax.xlane.f32.xlu0 %v1510
    %v1512 = vpop.xlane.xlu0 %1511
    %v1513 = vsel %vm1497, %v1494, -inf
    %1514 = vmax.xlane.f32.xlu0 %v1513
    %v1515 = vpop.xlane.xlu0 %1514
    %v1516 = vsel %vm1497, %v1495, -inf
    %1517 = vmax.xlane.f32.xlu0 %v1516
    %v1518 = vpop.xlane.xlu0 %1517
    %v1519 = vsel %vm1497, %v1496, -inf
    %1520 = vmax.xlane.f32.xlu0 %v1519
    %v1521 = vpop.xlane.xlu0 %1520
    %v1522 = vsub.f32 %v1489, %v1500
    %v1523 = vsub.f32 %v1490, %v1503
    %v1524 = vsub.f32 %v1491, %v1506
    %v1525 = vsub.f32 %v1492, %v1509
    %v1526 = vsub.f32 %v1493, %v1512
    %v1527 = vsub.f32 %v1494, %v1515
    %v1528 = vsub.f32 %v1495, %v1518
    %v1529 = vsub.f32 %v1496, %v1521
    %v1530 = vmul.f32 %v1522, 1.442695
    %v1531 = vpow.pop %v1530
    %v1532 = vmul.f32 %v1523, 1.442695
    %v1533 = vpow.pop %v1532
    %v1534 = vmul.f32 %v1524, 1.442695
    %v1535 = vpow.pop %v1534
    %v1536 = vmul.f32 %v1525, 1.442695
    %v1537 = vpow.pop %v1536
    %v1538 = vmul.f32 %v1526, 1.442695
    %v1539 = vpow.pop %v1538
    %v1540 = vmul.f32 %v1527, 1.442695
    %v1541 = vpow.pop %v1540
    %v1542 = vmul.f32 %v1528, 1.442695
    %v1543 = vpow.pop %v1542
    %v1544 = vmul.f32 %v1529, 1.442695
    %v1545 = vpow.pop %v1544
    %v1546 = vsel %vm1497, %v1531, 0.0
    %1547 = vadd.xlane.f32.xlu0 %v1546
    %v1548 = vpop.xlane.xlu0 %1547
    %v1549 = vsel %vm1497, %v1533, 0.0
    %1550 = vadd.xlane.f32.xlu0 %v1549
    %v1551 = vpop.xlane.xlu0 %1550
    %v1552 = vsel %vm1497, %v1535, 0.0
    %1553 = vadd.xlane.f32.xlu0 %v1552
    %v1554 = vpop.xlane.xlu0 %1553
    %v1555 = vsel %vm1497, %v1537, 0.0
    %1556 = vadd.xlane.f32.xlu0 %v1555
    %v1557 = vpop.xlane.xlu0 %1556
    %v1558 = vsel %vm1497, %v1539, 0.0
    %1559 = vadd.xlane.f32.xlu0 %v1558
    %v1560 = vpop.xlane.xlu0 %1559
    %v1561 = vsel %vm1497, %v1541, 0.0
    %1562 = vadd.xlane.f32.xlu0 %v1561
    %v1563 = vpop.xlane.xlu0 %1562
    %v1564 = vsel %vm1497, %v1543, 0.0
    %1565 = vadd.xlane.f32.xlu0 %v1564
    %v1566 = vpop.xlane.xlu0 %1565
    %v1567 = vsel %vm1497, %v1545, 0.0
    %1568 = vadd.xlane.f32.xlu0 %v1567
    %v1569 = vpop.xlane.xlu0 %1568
    %v1570 = vrcp.pop %v1548
    %v1571 = vrcp.pop %v1551
    %v1572 = vrcp.pop %v1554
    %v1573 = vrcp.pop %v1557
    %v1574 = vrcp.pop %v1560
    %v1575 = vrcp.pop %v1563
    %v1576 = vrcp.pop %v1566
    %v1577 = vrcp.pop %v1569
    %v1578 = vmul.f32 %v1531, %v1570
    %v1579 = vmul.f32 %v1533, %v1571
    %v1580 = vmul.f32 %v1535, %v1572
    %v1581 = vmul.f32 %v1537, %v1573
    %v1582 = vmul.f32 %v1539, %v1574
    %v1583 = vmul.f32 %v1541, %v1575
    %v1584 = vmul.f32 %v1543, %v1576
    %v1585 = vmul.f32 %v1545, %v1577
    %v1586 = vpack.c.bf16 %v1579, %v1578
    %v1587 = vpack.c.bf16 %v1581, %v1580
    %v1588 = vpack.c.bf16 %v1583, %v1582
    %v1589 = vpack.c.bf16 %v1585, %v1584
    %v1590 = vpack.c.bf16 %v1324, %v1320
    %v1591 = vpack.c.bf16 %v1334, %v1330
    %v1592 = vpack.c.bf16 %v1344, %v1340
    %v1593 = vpack.c.bf16 %v1354, %v1350
    %v1595 = vsel %vm1497, %v1586, 0
    %v1598 = vsel %vm1497, %v1587, 0
    %1600 = vmatprep.subr.bf16.mxu0 0
    %1601 = vmatpush1.bf16.msra.mxu0 %v1590
    %1602 = vmatprep.subr.bf16.mxu0 0
    %1603 = vmatpush1.bf16.msra.mxu0 %v1591
    %1604 = vmatprep.subr.bf16.mxu0 0
    %1605 = vmatpush1.bf16.msra.mxu0 0
    %1606 = vmatprep.subr.bf16.mxu0 0
    %1607 = vmatpush1.bf16.msra.mxu0 0
    %1608 = vmatprep.subr.bf16.mxu0 0
    %1609 = vmatpush1.bf16.msra.mxu0 0
    %1610 = vmatprep.subr.bf16.mxu0 0
    %1611 = vmatpush1.bf16.msra.mxu0 0
    %1612 = vmatprep.subr.bf16.mxu0 0
    %1613 = vmatpush1.bf16.msra.mxu0 0
    %1614 = vmatprep.subr.bf16.mxu0 0
    %1615 = vmatpush1.bf16.msra.mxu0 0
    %1616 = vmatprep.subr.bf16.mxu0 0
    %1617 = vmatpush1.bf16.msra.mxu0 0
    %1618 = vmatprep.subr.bf16.mxu0 0
    %1619 = vmatpush1.bf16.msra.mxu0 0
    %1620 = vmatprep.subr.bf16.mxu0 0
    %1621 = vmatpush1.bf16.msra.mxu0 0
    %1622 = vmatprep.subr.bf16.mxu0 0
    %1623 = vmatpush1.bf16.msra.mxu0 0
    %1624 = vmatprep.subr.bf16.mxu0 0
    %1625 = vmatpush1.bf16.msra.mxu0 0
    %1626 = vmatprep.subr.bf16.mxu0 0
    %1627 = vmatpush1.bf16.msra.mxu0 0
    %1628 = vmatprep.subr.bf16.mxu0 0
    %1629 = vmatpush1.bf16.msra.mxu0 0
    %1630 = vmatprep.subr.bf16.mxu0 0
    %1631 = vmatpush1.bf16.msra.mxu0 0
    %1632 = vmatprep.mubr.bf16.mxu0 0
    %1633 = vmatmul.mubr.bf16.gmra.mrb[0].mxu0 %v1595
    %v1634 = vpop.f32.mrb[0].mxu0
    %v1635 = vadd.f32 0.0, %v1634
    %v1636 = vpop.f32.mrb[0].mxu0
    %v1637 = vpop.f32.mrb[0].mxu0
    %v1638 = vadd.f32 0.0, %v1637
    %v1639 = vpop.f32.mrb[0].mxu0
    %1640 = vmatprep.mubr.bf16.mxu0 0
    %1641 = vmatmul.mubr.bf16.gmra.mrb[0].mxu0 %v1598
    %v1642 = vpop.f32.mrb[0].mxu0
    %v1643 = vadd.f32 0.0, %v1642
    %v1644 = vpop.f32.mrb[0].mxu0
    %v1645 = vpop.f32.mrb[0].mxu0
    %v1646 = vadd.f32 0.0, %v1645
    %v1647 = vpop.f32.mrb[0].mxu0
    %1648 = vdwg.mxu0
    %v1650 = vsel %vm1497, %v1588, 0
    %v1653 = vsel %vm1497, %v1589, 0
    %1655 = vmatprep.subr.bf16.mxu0 0
    %1656 = vmatpush1.bf16.msra.mxu0 %v1592
    %1657 = vmatprep.subr.bf16.mxu0 0
    %1658 = vmatpush1.bf16.msra.mxu0 %v1593
    %1659 = vmatprep.subr.bf16.mxu0 0
    %1660 = vmatpush1.bf16.msra.mxu0 0
    %1661 = vmatprep.subr.bf16.mxu0 0
    %1662 = vmatpush1.bf16.msra.mxu0 0
    %1663 = vmatprep.subr.bf16.mxu0 0
    %1664 = vmatpush1.bf16.msra.mxu0 0
    %1665 = vmatprep.subr.bf16.mxu0 0
    %1666 = vmatpush1.bf16.msra.mxu0 0
    %1667 = vmatprep.subr.bf16.mxu0 0
    %1668 = vmatpush1.bf16.msra.mxu0 0
    %1669 = vmatprep.subr.bf16.mxu0 0
    %1670 = vmatpush1.bf16.msra.mxu0 0
    %1671 = vmatprep.subr.bf16.mxu0 0
    %1672 = vmatpush1.bf16.msra.mxu0 0
    %1673 = vmatprep.subr.bf16.mxu0 0
    %1674 = vmatpush1.bf16.msra.mxu0 0
    %1675 = vmatprep.subr.bf16.mxu0 0
    %1676 = vmatpush1.bf16.msra.mxu0 0
    %1677 = vmatprep.subr.bf16.mxu0 0
    %1678 = vmatpush1.bf16.msra.mxu0 0
    %1679 = vmatprep.subr.bf16.mxu0 0
    %1680 = vmatpush1.bf16.msra.mxu0 0
    %1681 = vmatprep.subr.bf16.mxu0 0
    %1682 = vmatpush1.bf16.msra.mxu0 0
    %1683 = vmatprep.subr.bf16.mxu0 0
    %1684 = vmatpush1.bf16.msra.mxu0 0
    %1685 = vmatprep.subr.bf16.mxu0 0
    %1686 = vmatpush1.bf16.msra.mxu0 0
    %1687 = vmatprep.mubr.bf16.mxu0 0
    %1688 = vmatmul.mubr.bf16.gmra.mrb[0].mxu0 %v1650
    %v1689 = vpop.f32.mrb[0].mxu0
    %v1690 = vadd.f32 0.0, %v1689
    %v1691 = vpop.f32.mrb[0].mxu0
    %v1692 = vpop.f32.mrb[0].mxu0
    %v1693 = vadd.f32 0.0, %v1692
    %v1694 = vpop.f32.mrb[0].mxu0
    %1695 = vmatprep.mubr.bf16.mxu0 0
    %1696 = vmatmul.mubr.bf16.gmra.mrb[0].mxu0 %v1653
    %v1697 = vpop.f32.mrb[0].mxu0
    %v1698 = vadd.f32 0.0, %v1697
    %v1699 = vpop.f32.mrb[0].mxu0
    %v1700 = vpop.f32.mrb[0].mxu0
    %v1701 = vadd.f32 0.0, %v1700
    %v1702 = vpop.f32.mrb[0].mxu0
    %1703 = vdwg.mxu0
    %v1704 = vpack.c.bf16 %v1638, %v1635
    %v1705 = vpack.c.bf16 %v1646, %v1643
    %v1706 = vpack.c.bf16 %v1693, %v1690
    %v1707 = vpack.c.bf16 %v1701, %v1698
    %v1708 = vld [vmem:[#allocation10] sm:$0xff]
    %v1709 = vld [vmem:[#allocation10 + $0x8] sm:$0xff]
    %v1710 = vld [vmem:[#allocation10 + $0x10] sm:$0xff]
    %v1711 = vld [vmem:[#allocation10 + $0x18] sm:$0xff]
    %v1712 = vld [vmem:[#allocation10 + $0x20] sm:$0xff]
    %v1713 = vld [vmem:[#allocation10 + $0x28] sm:$0xff]
    %v1714 = vld [vmem:[#allocation10 + $0x30] sm:$0xff]
    %v1715 = vld [vmem:[#allocation10 + $0x38] sm:$0xff]
    %1718 = vrot.lane.b32.xlu0 %v1358, 64
    %v1719 = vpop.permute.xlu0 %1718
    %1720 = vrot.lane.b32.xlu0 %v1359, 64
    %v1721 = vpop.permute.xlu0 %1720
    %1724 = vrot.lane.b32.xlu0 %v1362, 64
    %v1725 = vpop.permute.xlu0 %1724
    %1726 = vrot.lane.b32.xlu0 %v1363, 64
    %v1727 = vpop.permute.xlu0 %1726
    %v1729 = vsel %vm1366, %v1719, 0
    %v1732 = vsel %vm1366, %v1721, 0
    %v1735 = vsel %vm1366, %v1725, 0
    %v1738 = vsel %vm1366, %v1727, 0
    %1740 = vmatprep.subr.bf16.mxu0 0
    %1741 = vmatpush1.bf16.xpose.msra.mxu0 %v1735
    %1742 = vmatprep.subr.bf16.mxu0 0
    %1743 = vmatpush1.bf16.xpose.msra.mxu0 %v1738
    %1744 = vmatprep.subr.bf16.mxu0 0
    %1745 = vmatpush1.bf16.xpose.msra.mxu0 0
    %1746 = vmatprep.subr.bf16.mxu0 0
    %1747 = vmatpush1.bf16.xpose.msra.mxu0 0
    %1748 = vmatprep.subr.bf16.mxu0 0
    %1749 = vmatpush1.bf16.xpose.msra.mxu0 0
    %1750 = vmatprep.subr.bf16.mxu0 0
    %1751 = vmatpush1.bf16.xpose.msra.mxu0 0
    %1752 = vmatprep.subr.bf16.mxu0 0
    %1753 = vmatpush1.bf16.xpose.msra.mxu0 0
    %1754 = vmatprep.subr.bf16.mxu0 0
    %1755 = vmatpush1.bf16.xpose.msra.mxu0 0
    %1756 = vmatprep.subr.bf16.mxu0 0
    %1757 = vmatpush1.bf16.xpose.msra.mxu0 0
    %1758 = vmatprep.subr.bf16.mxu0 0
    %1759 = vmatpush1.bf16.xpose.msra.mxu0 0
    %1760 = vmatprep.subr.bf16.mxu0 0
    %1761 = vmatpush1.bf16.xpose.msra.mxu0 0
    %1762 = vmatprep.subr.bf16.mxu0 0
    %1763 = vmatpush1.bf16.xpose.msra.mxu0 0
    %1764 = vmatprep.subr.bf16.mxu0 0
    %1765 = vmatpush1.bf16.xpose.msra.mxu0 0
    %1766 = vmatprep.subr.bf16.mxu0 0
    %1767 = vmatpush1.bf16.xpose.msra.mxu0 0
    %1768 = vmatprep.subr.bf16.mxu0 0
    %1769 = vmatpush1.bf16.xpose.msra.mxu0 0
    %1770 = vmatprep.subr.bf16.mxu0 0
    %1771 = vmatpush1.bf16.xpose.msra.mxu0 0
    %1772 = vmatprep.mubr.bf16.mxu0 0
    %1773 = vmatmul.mubr.bf16.gmra.mrb[0].mxu0 %v1729
    %v1774 = vpop.f32.mrb[0].mxu0
    %v1775 = vadd.f32 0.0, %v1774
    %v1776 = vpop.f32.mrb[0].mxu0
    %v1777 = vpop.f32.mrb[0].mxu0
    %v1778 = vadd.f32 0.0, %v1777
    %v1779 = vpop.f32.mrb[0].mxu0
    %1780 = vmatprep.mubr.bf16.mxu0 0
    %1781 = vmatmul.mubr.bf16.gmra.mrb[0].mxu0 %v1732
    %v1782 = vpop.f32.mrb[0].mxu0
    %v1783 = vadd.f32 0.0, %v1782
    %v1784 = vpop.f32.mrb[0].mxu0
    %v1785 = vpop.f32.mrb[0].mxu0
    %v1786 = vadd.f32 0.0, %v1785
    %v1787 = vpop.f32.mrb[0].mxu0
    %1788 = vdwg.mxu0
    %1791 = vrot.lane.b32.xlu0 %v1360, 64
    %v1792 = vpop.permute.xlu0 %1791
    %1793 = vrot.lane.b32.xlu0 %v1361, 64
    %v1794 = vpop.permute.xlu0 %1793
    %1797 = vrot.lane.b32.xlu0 %v1364, 64
    %v1798 = vpop.permute.xlu0 %1797
    %1799 = vrot.lane.b32.xlu0 %v1365, 64
    %v1800 = vpop.permute.xlu0 %1799
    %v1802 = vsel %vm1366, %v1792, 0
    %v1805 = vsel %vm1366, %v1794, 0
    %v1808 = vsel %vm1366, %v1798, 0
    %v1811 = vsel %vm1366, %v1800, 0
    %1813 = vmatprep.subr.bf16.mxu0 0
    %1814 = vmatpush1.bf16.xpose.msra.mxu0 %v1808
    %1815 = vmatprep.subr.bf16.mxu0 0
    %1816 = vmatpush1.bf16.xpose.msra.mxu0 %v1811
    %1817 = vmatprep.subr.bf16.mxu0 0
    %1818 = vmatpush1.bf16.xpose.msra.mxu0 0
    %1819 = vmatprep.subr.bf16.mxu0 0
    %1820 = vmatpush1.bf16.xpose.msra.mxu0 0
    %1821 = vmatprep.subr.bf16.mxu0 0
    %1822 = vmatpush1.bf16.xpose.msra.mxu0 0
    %1823 = vmatprep.subr.bf16.mxu0 0
    %1824 = vmatpush1.bf16.xpose.msra.mxu0 0
    %1825 = vmatprep.subr.bf16.mxu0 0
    %1826 = vmatpush1.bf16.xpose.msra.mxu0 0
    %1827 = vmatprep.subr.bf16.mxu0 0
    %1828 = vmatpush1.bf16.xpose.msra.mxu0 0
    %1829 = vmatprep.subr.bf16.mxu0 0
    %1830 = vmatpush1.bf16.xpose.msra.mxu0 0
    %1831 = vmatprep.subr.bf16.mxu0 0
    %1832 = vmatpush1.bf16.xpose.msra.mxu0 0
    %1833 = vmatprep.subr.bf16.mxu0 0
    %1834 = vmatpush1.bf16.xpose.msra.mxu0 0
    %1835 = vmatprep.subr.bf16.mxu0 0
    %1836 = vmatpush1.bf16.xpose.msra.mxu0 0
    %1837 = vmatprep.subr.bf16.mxu0 0
    %1838 = vmatpush1.bf16.xpose.msra.mxu0 0
    %1839 = vmatprep.subr.bf16.mxu0 0
    %1840 = vmatpush1.bf16.xpose.msra.mxu0 0
    %1841 = vmatprep.subr.bf16.mxu0 0
    %1842 = vmatpush1.bf16.xpose.msra.mxu0 0
    %1843 = vmatprep.subr.bf16.mxu0 0
    %1844 = vmatpush1.bf16.xpose.msra.mxu0 0
    %1845 = vmatprep.mubr.bf16.mxu0 0
    %1846 = vmatmul.mubr.bf16.gmra.mrb[0].mxu0 %v1802
    %v1847 = vpop.f32.mrb[0].mxu0
    %v1848 = vadd.f32 0.0, %v1847
    %v1849 = vpop.f32.mrb[0].mxu0
    %v1850 = vpop.f32.mrb[0].mxu0
    %v1851 = vadd.f32 0.0, %v1850
    %v1852 = vpop.f32.mrb[0].mxu0
    %1853 = vmatprep.mubr.bf16.mxu0 0
    %1854 = vmatmul.mubr.bf16.gmra.mrb[0].mxu0 %v1805
    %v1855 = vpop.f32.mrb[0].mxu0
    %v1856 = vadd.f32 0.0, %v1855
    %v1857 = vpop.f32.mrb[0].mxu0
    %v1858 = vpop.f32.mrb[0].mxu0
    %v1859 = vadd.f32 0.0, %v1858
    %v1860 = vpop.f32.mrb[0].mxu0
    %1861 = vdwg.mxu0
    %v1862 = vmul.f32 %v1775, 0.125
    %v1863 = vmul.f32 %v1778, 0.125
    %v1864 = vmul.f32 %v1783, 0.125
    %v1865 = vmul.f32 %v1786, 0.125
    %v1866 = vmul.f32 %v1848, 0.125
    %v1867 = vmul.f32 %v1851, 0.125
    %v1868 = vmul.f32 %v1856, 0.125
    %v1869 = vmul.f32 %v1859, 0.125
    %v1870 = vsel %vm1497, %v1862, -inf
    %1871 = vmax.xlane.f32.xlu0 %v1870
    %v1872 = vpop.xlane.xlu0 %1871
    %v1873 = vsel %vm1497, %v1863, -inf
    %1874 = vmax.xlane.f32.xlu0 %v1873
    %v1875 = vpop.xlane.xlu0 %1874
    %v1876 = vsel %vm1497, %v1864, -inf
    %1877 = vmax.xlane.f32.xlu0 %v1876
    %v1878 = vpop.xlane.xlu0 %1877
    %v1879 = vsel %vm1497, %v1865, -inf
    %1880 = vmax.xlane.f32.xlu0 %v1879
    %v1881 = vpop.xlane.xlu0 %1880
    %v1882 = vsel %vm1497, %v1866, -inf
    %1883 = vmax.xlane.f32.xlu0 %v1882
    %v1884 = vpop.xlane.xlu0 %1883
    %v1885 = vsel %vm1497, %v1867, -inf
    %1886 = vmax.xlane.f32.xlu0 %v1885
    %v1887 = vpop.xlane.xlu0 %1886
    %v1888 = vsel %vm1497, %v1868, -inf
    %1889 = vmax.xlane.f32.xlu0 %v1888
    %v1890 = vpop.xlane.xlu0 %1889
    %v1891 = vsel %vm1497, %v1869, -inf
    %1892 = vmax.xlane.f32.xlu0 %v1891
    %v1893 = vpop.xlane.xlu0 %1892
    %v1894 = vsub.f32 %v1862, %v1872
    %v1895 = vsub.f32 %v1863, %v1875
    %v1896 = vsub.f32 %v1864, %v1878
    %v1897 = vsub.f32 %v1865, %v1881
    %v1898 = vsub.f32 %v1866, %v1884
    %v1899 = vsub.f32 %v1867, %v1887
    %v1900 = vsub.f32 %v1868, %v1890
    %v1901 = vsub.f32 %v1869, %v1893
    %v1902 = vmul.f32 %v1894, 1.442695
    %v1903 = vpow.pop %v1902
    %v1904 = vmul.f32 %v1895, 1.442695
    %v1905 = vpow.pop %v1904
    %v1906 = vmul.f32 %v1896, 1.442695
    %v1907 = vpow.pop %v1906
    %v1908 = vmul.f32 %v1897, 1.442695
    %v1909 = vpow.pop %v1908
    %v1910 = vmul.f32 %v1898, 1.442695
    %v1911 = vpow.pop %v1910
    %v1912 = vmul.f32 %v1899, 1.442695
    %v1913 = vpow.pop %v1912
    %v1914 = vmul.f32 %v1900, 1.442695
    %v1915 = vpow.pop %v1914
    %v1916 = vmul.f32 %v1901, 1.442695
    %v1917 = vpow.pop %v1916
    %v1918 = vsel %vm1497, %v1903, 0.0
    %1919 = vadd.xlane.f32.xlu0 %v1918
    %v1920 = vpop.xlane.xlu0 %1919
    %v1921 = vsel %vm1497, %v1905, 0.0
    %1922 = vadd.xlane.f32.xlu0 %v1921
    %v1923 = vpop.xlane.xlu0 %1922
    %v1924 = vsel %vm1497, %v1907, 0.0
    %1925 = vadd.xlane.f32.xlu0 %v1924
    %v1926 = vpop.xlane.xlu0 %1925
    %v1927 = vsel %vm1497, %v1909, 0.0
    %1928 = vadd.xlane.f32.xlu0 %v1927
    %v1929 = vpop.xlane.xlu0 %1928
    %v1930 = vsel %vm1497, %v1911, 0.0
    %1931 = vadd.xlane.f32.xlu0 %v1930
    %v1932 = vpop.xlane.xlu0 %1931
    %v1933 = vsel %vm1497, %v1913, 0.0
    %1934 = vadd.xlane.f32.xlu0 %v1933
    %v1935 = vpop.xlane.xlu0 %1934
    %v1936 = vsel %vm1497, %v1915, 0.0
    %1937 = vadd.xlane.f32.xlu0 %v1936
    %v1938 = vpop.xlane.xlu0 %1937
    %v1939 = vsel %vm1497, %v1917, 0.0
    %1940 = vadd.xlane.f32.xlu0 %v1939
    %v1941 = vpop.xlane.xlu0 %1940
    %v1942 = vrcp.pop %v1920
    %v1943 = vrcp.pop %v1923
    %v1944 = vrcp.pop %v1926
    %v1945 = vrcp.pop %v1929
    %v1946 = vrcp.pop %v1932
    %v1947 = vrcp.pop %v1935
    %v1948 = vrcp.pop %v1938
    %v1949 = vrcp.pop %v1941
    %v1950 = vmul.f32 %v1903, %v1942
    %v1951 = vmul.f32 %v1905, %v1943
    %v1952 = vmul.f32 %v1907, %v1944
    %v1953 = vmul.f32 %v1909, %v1945
    %v1954 = vmul.f32 %v1911, %v1946
    %v1955 = vmul.f32 %v1913, %v1947
    %v1956 = vmul.f32 %v1915, %v1948
    %v1957 = vmul.f32 %v1917, %v1949
    %v1958 = vpack.c.bf16 %v1951, %v1950
    %v1959 = vpack.c.bf16 %v1953, %v1952
    %v1960 = vpack.c.bf16 %v1955, %v1954
    %v1961 = vpack.c.bf16 %v1957, %v1956
    %1964 = vrot.lane.b32.xlu0 %v1590, 64
    %v1965 = vpop.permute.xlu0 %1964
    %1966 = vrot.lane.b32.xlu0 %v1591, 64
    %v1967 = vpop.permute.xlu0 %1966
    %v1971 = vsel %vm1497, %v1958, 0
    %v1974 = vsel %vm1497, %v1959, 0
    %1976 = vmatprep.subr.bf16.mxu0 0
    %1977 = vmatpush1.bf16.msra.mxu0 %v1965
    %1978 = vmatprep.subr.bf16.mxu0 0
    %1979 = vmatpush1.bf16.msra.mxu0 %v1967
    %1980 = vmatprep.subr.bf16.mxu0 0
    %1981 = vmatpush1.bf16.msra.mxu0 0
    %1982 = vmatprep.subr.bf16.mxu0 0
    %1983 = vmatpush1.bf16.msra.mxu0 0
    %1984 = vmatprep.subr.bf16.mxu0 0
    %1985 = vmatpush1.bf16.msra.mxu0 0
    %1986 = vmatprep.subr.bf16.mxu0 0
    %1987 = vmatpush1.bf16.msra.mxu0 0
    %1988 = vmatprep.subr.bf16.mxu0 0
    %1989 = vmatpush1.bf16.msra.mxu0 0
    %1990 = vmatprep.subr.bf16.mxu0 0
    %1991 = vmatpush1.bf16.msra.mxu0 0
    %1992 = vmatprep.subr.bf16.mxu0 0
    %1993 = vmatpush1.bf16.msra.mxu0 0
    %1994 = vmatprep.subr.bf16.mxu0 0
    %1995 = vmatpush1.bf16.msra.mxu0 0
    %1996 = vmatprep.subr.bf16.mxu0 0
    %1997 = vmatpush1.bf16.msra.mxu0 0
    %1998 = vmatprep.subr.bf16.mxu0 0
    %1999 = vmatpush1.bf16.msra.mxu0 0
    %2000 = vmatprep.subr.bf16.mxu0 0
    %2001 = vmatpush1.bf16.msra.mxu0 0
    %2002 = vmatprep.subr.bf16.mxu0 0
    %2003 = vmatpush1.bf16.msra.mxu0 0
    %2004 = vmatprep.subr.bf16.mxu0 0
    %2005 = vmatpush1.bf16.msra.mxu0 0
    %2006 = vmatprep.subr.bf16.mxu0 0
    %2007 = vmatpush1.bf16.msra.mxu0 0
    %2008 = vmatprep.mubr.bf16.mxu0 0
    %2009 = vmatmul.mubr.bf16.gmra.mrb[0].mxu0 %v1971
    %v2010 = vpop.f32.mrb[0].mxu0
    %v2011 = vadd.f32 0.0, %v2010
    %v2012 = vpop.f32.mrb[0].mxu0
    %v2013 = vpop.f32.mrb[0].mxu0
    %v2014 = vadd.f32 0.0, %v2013
    %v2015 = vpop.f32.mrb[0].mxu0
    %2016 = vmatprep.mubr.bf16.mxu0 0
    %2017 = vmatmul.mubr.bf16.gmra.mrb[0].mxu0 %v1974
    %v2018 = vpop.f32.mrb[0].mxu0
    %v2019 = vadd.f32 0.0, %v2018
    %v2020 = vpop.f32.mrb[0].mxu0
    %v2021 = vpop.f32.mrb[0].mxu0
    %v2022 = vadd.f32 0.0, %v2021
    %v2023 = vpop.f32.mrb[0].mxu0
    %2024 = vdwg.mxu0
    %2027 = vrot.lane.b32.xlu0 %v1592, 64
    %v2028 = vpop.permute.xlu0 %2027
    %2029 = vrot.lane.b32.xlu0 %v1593, 64
    %v2030 = vpop.permute.xlu0 %2029
    %v2034 = vsel %vm1497, %v1960, 0
    %v2037 = vsel %vm1497, %v1961, 0
    %2039 = vmatprep.subr.bf16.mxu0 0
    %2040 = vmatpush1.bf16.msra.mxu0 %v2028
    %2041 = vmatprep.subr.bf16.mxu0 0
    %2042 = vmatpush1.bf16.msra.mxu0 %v2030
    %2043 = vmatprep.subr.bf16.mxu0 0
    %2044 = vmatpush1.bf16.msra.mxu0 0
    %2045 = vmatprep.subr.bf16.mxu0 0
    %2046 = vmatpush1.bf16.msra.mxu0 0
    %2047 = vmatprep.subr.bf16.mxu0 0
    %2048 = vmatpush1.bf16.msra.mxu0 0
    %2049 = vmatprep.subr.bf16.mxu0 0
    %2050 = vmatpush1.bf16.msra.mxu0 0
    %2051 = vmatprep.subr.bf16.mxu0 0
    %2052 = vmatpush1.bf16.msra.mxu0 0
    %2053 = vmatprep.subr.bf16.mxu0 0
    %2054 = vmatpush1.bf16.msra.mxu0 0
    %2055 = vmatprep.subr.bf16.mxu0 0
    %2056 = vmatpush1.bf16.msra.mxu0 0
    %2057 = vmatprep.subr.bf16.mxu0 0
    %2058 = vmatpush1.bf16.msra.mxu0 0
    %2059 = vmatprep.subr.bf16.mxu0 0
    %2060 = vmatpush1.bf16.msra.mxu0 0
    %2061 = vmatprep.subr.bf16.mxu0 0
    %2062 = vmatpush1.bf16.msra.mxu0 0
    %2063 = vmatprep.subr.bf16.mxu0 0
    %2064 = vmatpush1.bf16.msra.mxu0 0
    %2065 = vmatprep.subr.bf16.mxu0 0
    %2066 = vmatpush1.bf16.msra.mxu0 0
    %2067 = vmatprep.subr.bf16.mxu0 0
    %2068 = vmatpush1.bf16.msra.mxu0 0
    %2069 = vmatprep.subr.bf16.mxu0 0
    %2070 = vmatpush1.bf16.msra.mxu0 0
    %2071 = vmatprep.mubr.bf16.mxu0 0
    %2072 = vmatmul.mubr.bf16.gmra.mrb[0].mxu0 %v2034
    %v2073 = vpop.f32.mrb[0].mxu0
    %v2074 = vadd.f32 0.0, %v2073
    %v2075 = vpop.f32.mrb[0].mxu0
    %v2076 = vpop.f32.mrb[0].mxu0
    %v2077 = vadd.f32 0.0, %v2076
    %v2078 = vpop.f32.mrb[0].mxu0
    %2079 = vmatprep.mubr.bf16.mxu0 0
    %2080 = vmatmul.mubr.bf16.gmra.mrb[0].mxu0 %v2037
    %v2081 = vpop.f32.mrb[0].mxu0
    %v2082 = vadd.f32 0.0, %v2081
    %v2083 = vpop.f32.mrb[0].mxu0
    %v2084 = vpop.f32.mrb[0].mxu0
    %v2085 = vadd.f32 0.0, %v2084
    %v2086 = vpop.f32.mrb[0].mxu0
    %2087 = vdwg.mxu0
    %v2088 = vpack.c.bf16 %v2014, %v2011
    %v2089 = vpack.c.bf16 %v2022, %v2019
    %v2090 = vpack.c.bf16 %v2077, %v2074
    %v2091 = vpack.c.bf16 %v2085, %v2082
    %s2092 = scalar_lea.vmem [#allocation10], 64
    %v2093 = vld [vmem:[%s2092] sm:$0xff]
    %v2094 = vld [vmem:[%s2092 + $0x8] sm:$0xff]
    %v2095 = vld [vmem:[%s2092 + $0x10] sm:$0xff]
    %v2096 = vld [vmem:[%s2092 + $0x18] sm:$0xff]
    %v2097 = vld [vmem:[%s2092 + $0x20] sm:$0xff]
    %v2098 = vld [vmem:[%s2092 + $0x28] sm:$0xff]
    %v2099 = vld [vmem:[%s2092 + $0x30] sm:$0xff]
    %v2100 = vld [vmem:[%s2092 + $0x38] sm:$0xff]
    %v2109 = vunpack.c.l.b16 %v2093
    %v2110 = vunpack.c.h.b16 %v2093
    %v2111 = vunpack.c.l.b16 %v2094
    %v2112 = vunpack.c.h.b16 %v2094
    %v2113 = vunpack.c.l.b16 %v2095
    %v2114 = vunpack.c.h.b16 %v2095
    %v2115 = vunpack.c.l.b16 %v2096
    %v2116 = vunpack.c.h.b16 %v2096
    %v2117 = vunpack.c.l.b16 %v2097
    %v2118 = vunpack.c.h.b16 %v2097
    %v2119 = vunpack.c.l.b16 %v2098
    %v2120 = vunpack.c.h.b16 %v2098
    %v2121 = vunpack.c.l.b16 %v2099
    %v2122 = vunpack.c.h.b16 %v2099
    %v2123 = vunpack.c.l.b16 %v2100
    %v2124 = vunpack.c.h.b16 %v2100
    %v2125 = vpack.c.b16 %v2111, %v2109
    %v2126 = vpack.c.b16 %v2112, %v2110
    %v2127 = vpack.c.b16 %v2115, %v2113
    %v2128 = vpack.c.b16 %v2116, %v2114
    %v2129 = vpack.c.b16 %v2119, %v2117
    %v2130 = vpack.c.b16 %v2120, %v2118
    %v2131 = vpack.c.b16 %v2123, %v2121
    %v2132 = vpack.c.b16 %v2124, %v2122
    %v2142 = vsel %vm1366, %v2088, 0
    %v2145 = vsel %vm1366, %v2089, 0
    %v2148 = vsel %vm1366, %v2090, 0
    %v2151 = vsel %vm1366, %v2091, 0
    %2153 = vmatprep.subr.bf16.mxu0 %v2126
    %2154 = vmatpush1.bf16.msra.mxu0 %v2125
    %2155 = vmatprep.subr.bf16.mxu0 %v2128
    %2156 = vmatpush1.bf16.msra.mxu0 %v2127
    %2157 = vmatprep.subr.bf16.mxu0 %v2130
    %2158 = vmatpush1.bf16.msra.mxu0 %v2129
    %2159 = vmatprep.subr.bf16.mxu0 %v2132
    %2160 = vmatpush1.bf16.msra.mxu0 %v2131
    %2161 = vmatprep.subr.bf16.mxu0 0
    %2162 = vmatpush1.bf16.msra.mxu0 0
    %2163 = vmatprep.subr.bf16.mxu0 0
    %2164 = vmatpush1.bf16.msra.mxu0 0
    %2165 = vmatprep.subr.bf16.mxu0 0
    %2166 = vmatpush1.bf16.msra.mxu0 0
    %2167 = vmatprep.subr.bf16.mxu0 0
    %2168 = vmatpush1.bf16.msra.mxu0 0
    %2169 = vmatprep.subr.bf16.mxu0 0
    %2170 = vmatpush1.bf16.msra.mxu0 0
    %2171 = vmatprep.subr.bf16.mxu0 0
    %2172 = vmatpush1.bf16.msra.mxu0 0
    %2173 = vmatprep.subr.bf16.mxu0 0
    %2174 = vmatpush1.bf16.msra.mxu0 0
    %2175 = vmatprep.subr.bf16.mxu0 0
    %2176 = vmatpush1.bf16.msra.mxu0 0
    %2177 = vmatprep.subr.bf16.mxu0 0
    %2178 = vmatpush1.bf16.msra.mxu0 0
    %2179 = vmatprep.subr.bf16.mxu0 0
    %2180 = vmatpush1.bf16.msra.mxu0 0
    %2181 = vmatprep.subr.bf16.mxu0 0
    %2182 = vmatpush1.bf16.msra.mxu0 0
    %2183 = vmatprep.subr.bf16.mxu0 0
    %2184 = vmatpush1.bf16.msra.mxu0 0
    %2185 = vmatprep.mubr.bf16.mxu0 0
    %2186 = vmatmul.mubr.bf16.gmra.mrb[0].mxu0 %v2142
    %v2187 = vpop.f32.mrb[0].mxu0
    %v2188 = vadd.f32 0.0, %v2187
    %v2189 = vpop.f32.mrb[0].mxu0
    %v2190 = vadd.f32 0.0, %v2189
    %v2191 = vpop.f32.mrb[0].mxu0
    %v2192 = vadd.f32 0.0, %v2191
    %v2193 = vpop.f32.mrb[0].mxu0
    %v2194 = vadd.f32 0.0, %v2193
    %2195 = vmatprep.mubr.bf16.mxu0 0
    %2196 = vmatmul.mubr.bf16.gmra.mrb[0].mxu0 %v2145
    %v2197 = vpop.f32.mrb[0].mxu0
    %v2198 = vadd.f32 0.0, %v2197
    %v2199 = vpop.f32.mrb[0].mxu0
    %v2200 = vadd.f32 0.0, %v2199
    %v2201 = vpop.f32.mrb[0].mxu0
    %v2202 = vadd.f32 0.0, %v2201
    %v2203 = vpop.f32.mrb[0].mxu0
    %v2204 = vadd.f32 0.0, %v2203
    %2205 = vmatprep.mubr.bf16.mxu0 0
    %2206 = vmatmul.mubr.bf16.gmra.mrb[0].mxu0 %v2148
    %v2207 = vpop.f32.mrb[0].mxu0
    %v2208 = vadd.f32 0.0, %v2207
    %v2209 = vpop.f32.mrb[0].mxu0
    %v2210 = vadd.f32 0.0, %v2209
    %v2211 = vpop.f32.mrb[0].mxu0
    %v2212 = vadd.f32 0.0, %v2211
    %v2213 = vpop.f32.mrb[0].mxu0
    %v2214 = vadd.f32 0.0, %v2213
    %2215 = vmatprep.mubr.bf16.mxu0 0
    %2216 = vmatmul.mubr.bf16.gmra.mrb[0].mxu0 %v2151
    %v2217 = vpop.f32.mrb[0].mxu0
    %v2218 = vadd.f32 0.0, %v2217
    %v2219 = vpop.f32.mrb[0].mxu0
    %v2220 = vadd.f32 0.0, %v2219
    %v2221 = vpop.f32.mrb[0].mxu0
    %v2222 = vadd.f32 0.0, %v2221
    %v2223 = vpop.f32.mrb[0].mxu0
    %v2224 = vadd.f32 0.0, %v2223
    %2225 = vdwg.mxu0
    %v2234 = vunpack.c.l.b16 %v1708
    %v2235 = vunpack.c.h.b16 %v1708
    %v2236 = vunpack.c.l.b16 %v1709
    %v2237 = vunpack.c.h.b16 %v1709
    %v2238 = vunpack.c.l.b16 %v1710
    %v2239 = vunpack.c.h.b16 %v1710
    %v2240 = vunpack.c.l.b16 %v1711
    %v2241 = vunpack.c.h.b16 %v1711
    %v2242 = vunpack.c.l.b16 %v1712
    %v2243 = vunpack.c.h.b16 %v1712
    %v2244 = vunpack.c.l.b16 %v1713
    %v2245 = vunpack.c.h.b16 %v1713
    %v2246 = vunpack.c.l.b16 %v1714
    %v2247 = vunpack.c.h.b16 %v1714
    %v2248 = vunpack.c.l.b16 %v1715
    %v2249 = vunpack.c.h.b16 %v1715
    %v2250 = vpack.c.b16 %v2236, %v2234
    %v2251 = vpack.c.b16 %v2237, %v2235
    %v2252 = vpack.c.b16 %v2240, %v2238
    %v2253 = vpack.c.b16 %v2241, %v2239
    %v2254 = vpack.c.b16 %v2244, %v2242
    %v2255 = vpack.c.b16 %v2245, %v2243
    %v2256 = vpack.c.b16 %v2248, %v2246
    %v2257 = vpack.c.b16 %v2249, %v2247
    %v2267 = vsel %vm1366, %v1704, 0
    %v2270 = vsel %vm1366, %v1705, 0
    %v2273 = vsel %vm1366, %v1706, 0
    %v2276 = vsel %vm1366, %v1707, 0
    %2278 = vmatprep.subr.bf16.mxu0 %v2251
    %2279 = vmatpush1.bf16.msra.mxu0 %v2250
    %2280 = vmatprep.subr.bf16.mxu0 %v2253
    %2281 = vmatpush1.bf16.msra.mxu0 %v2252
    %2282 = vmatprep.subr.bf16.mxu0 %v2255
    %2283 = vmatpush1.bf16.msra.mxu0 %v2254
    %2284 = vmatprep.subr.bf16.mxu0 %v2257
    %2285 = vmatpush1.bf16.msra.mxu0 %v2256
    %2286 = vmatprep.subr.bf16.mxu0 0
    %2287 = vmatpush1.bf16.msra.mxu0 0
    %2288 = vmatprep.subr.bf16.mxu0 0
    %2289 = vmatpush1.bf16.msra.mxu0 0
    %2290 = vmatprep.subr.bf16.mxu0 0
    %2291 = vmatpush1.bf16.msra.mxu0 0
    %2292 = vmatprep.subr.bf16.mxu0 0
    %2293 = vmatpush1.bf16.msra.mxu0 0
    %2294 = vmatprep.subr.bf16.mxu0 0
    %2295 = vmatpush1.bf16.msra.mxu0 0
    %2296 = vmatprep.subr.bf16.mxu0 0
    %2297 = vmatpush1.bf16.msra.mxu0 0
    %2298 = vmatprep.subr.bf16.mxu0 0
    %2299 = vmatpush1.bf16.msra.mxu0 0
    %2300 = vmatprep.subr.bf16.mxu0 0
    %2301 = vmatpush1.bf16.msra.mxu0 0
    %2302 = vmatprep.subr.bf16.mxu0 0
    %2303 = vmatpush1.bf16.msra.mxu0 0
    %2304 = vmatprep.subr.bf16.mxu0 0
    %2305 = vmatpush1.bf16.msra.mxu0 0
    %2306 = vmatprep.subr.bf16.mxu0 0
    %2307 = vmatpush1.bf16.msra.mxu0 0
    %2308 = vmatprep.subr.bf16.mxu0 0
    %2309 = vmatpush1.bf16.msra.mxu0 0
    %2310 = vmatprep.mubr.bf16.mxu0 0
    %2311 = vmatmul.mubr.bf16.gmra.mrb[0].mxu0 %v2267
    %v2312 = vpop.f32.mrb[0].mxu0
    %v2313 = vadd.f32 %v2188, %v2312
    %v2314 = vpop.f32.mrb[0].mxu0
    %v2315 = vadd.f32 %v2190, %v2314
    %v2316 = vpop.f32.mrb[0].mxu0
    %v2317 = vadd.f32 %v2192, %v2316
    %v2318 = vpop.f32.mrb[0].mxu0
    %v2319 = vadd.f32 %v2194, %v2318
    %2320 = vmatprep.mubr.bf16.mxu0 0
    %2321 = vmatmul.mubr.bf16.gmra.mrb[0].mxu0 %v2270
    %v2322 = vpop.f32.mrb[0].mxu0
    %v2323 = vadd.f32 %v2198, %v2322
    %v2324 = vpop.f32.mrb[0].mxu0
    %v2325 = vadd.f32 %v2200, %v2324
    %v2326 = vpop.f32.mrb[0].mxu0
    %v2327 = vadd.f32 %v2202, %v2326
    %v2328 = vpop.f32.mrb[0].mxu0
    %v2329 = vadd.f32 %v2204, %v2328
    %2330 = vmatprep.mubr.bf16.mxu0 0
    %2331 = vmatmul.mubr.bf16.gmra.mrb[0].mxu0 %v2273
    %v2332 = vpop.f32.mrb[0].mxu0
    %v2333 = vadd.f32 %v2208, %v2332
    %v2334 = vpop.f32.mrb[0].mxu0
    %v2335 = vadd.f32 %v2210, %v2334
    %v2336 = vpop.f32.mrb[0].mxu0
    %v2337 = vadd.f32 %v2212, %v2336
    %v2338 = vpop.f32.mrb[0].mxu0
    %v2339 = vadd.f32 %v2214, %v2338
    %2340 = vmatprep.mubr.bf16.mxu0 0
    %2341 = vmatmul.mubr.bf16.gmra.mrb[0].mxu0 %v2276
    %v2342 = vpop.f32.mrb[0].mxu0
    %v2343 = vadd.f32 %v2218, %v2342
    %v2344 = vpop.f32.mrb[0].mxu0
    %v2345 = vadd.f32 %v2220, %v2344
    %v2346 = vpop.f32.mrb[0].mxu0
    %v2347 = vadd.f32 %v2222, %v2346
    %v2348 = vpop.f32.mrb[0].mxu0
    %v2349 = vadd.f32 %v2224, %v2348
    %2350 = vdwg.mxu0
    %v2351 = vpack.c.bf16 %v1180, %v1176
    %v2352 = vpack.c.bf16 %v1190, %v1186
    %v2353 = vpack.c.bf16 %v1200, %v1196
    %v2354 = vpack.c.bf16 %v1210, %v1206
    %v2355 = vpack.c.bf16 %v1253, %v1249
    %v2356 = vpack.c.bf16 %v1263, %v1259
    %v2357 = vpack.c.bf16 %v1273, %v1269
    %v2358 = vpack.c.bf16 %v1283, %v1279
    %v2360 = vsel %vm1366, %v2351, 0
    %v2363 = vsel %vm1366, %v2352, 0
    %v2366 = vsel %vm1366, %v2355, 0
    %v2369 = vsel %vm1366, %v2356, 0
    %2371 = vmatprep.subr.bf16.mxu0 0
    %2372 = vmatpush1.bf16.xpose.msra.mxu0 %v2366
    %2373 = vmatprep.subr.bf16.mxu0 0
    %2374 = vmatpush1.bf16.xpose.msra.mxu0 %v2369
    %2375 = vmatprep.subr.bf16.mxu0 0
    %2376 = vmatpush1.bf16.xpose.msra.mxu0 0
    %2377 = vmatprep.subr.bf16.mxu0 0
    %2378 = vmatpush1.bf16.xpose.msra.mxu0 0
    %2379 = vmatprep.subr.bf16.mxu0 0
    %2380 = vmatpush1.bf16.xpose.msra.mxu0 0
    %2381 = vmatprep.subr.bf16.mxu0 0
    %2382 = vmatpush1.bf16.xpose.msra.mxu0 0
    %2383 = vmatprep.subr.bf16.mxu0 0
    %2384 = vmatpush1.bf16.xpose.msra.mxu0 0
    %2385 = vmatprep.subr.bf16.mxu0 0
    %2386 = vmatpush1.bf16.xpose.msra.mxu0 0
    %2387 = vmatprep.subr.bf16.mxu0 0
    %2388 = vmatpush1.bf16.xpose.msra.mxu0 0
    %2389 = vmatprep.subr.bf16.mxu0 0
    %2390 = vmatpush1.bf16.xpose.msra.mxu0 0
    %2391 = vmatprep.subr.bf16.mxu0 0
    %2392 = vmatpush1.bf16.xpose.msra.mxu0 0
    %2393 = vmatprep.subr.bf16.mxu0 0
    %2394 = vmatpush1.bf16.xpose.msra.mxu0 0
    %2395 = vmatprep.subr.bf16.mxu0 0
    %2396 = vmatpush1.bf16.xpose.msra.mxu0 0
    %2397 = vmatprep.subr.bf16.mxu0 0
    %2398 = vmatpush1.bf16.xpose.msra.mxu0 0
    %2399 = vmatprep.subr.bf16.mxu0 0
    %2400 = vmatpush1.bf16.xpose.msra.mxu0 0
    %2401 = vmatprep.subr.bf16.mxu0 0
    %2402 = vmatpush1.bf16.xpose.msra.mxu0 0
    %2403 = vmatprep.mubr.bf16.mxu0 0
    %2404 = vmatmul.mubr.bf16.gmra.mrb[0].mxu0 %v2360
    %v2405 = vpop.f32.mrb[0].mxu0
    %v2406 = vadd.f32 0.0, %v2405
    %v2407 = vpop.f32.mrb[0].mxu0
    %v2408 = vpop.f32.mrb[0].mxu0
    %v2409 = vadd.f32 0.0, %v2408
    %v2410 = vpop.f32.mrb[0].mxu0
    %2411 = vmatprep.mubr.bf16.mxu0 0
    %2412 = vmatmul.mubr.bf16.gmra.mrb[0].mxu0 %v2363
    %v2413 = vpop.f32.mrb[0].mxu0
    %v2414 = vadd.f32 0.0, %v2413
    %v2415 = vpop.f32.mrb[0].mxu0
    %v2416 = vpop.f32.mrb[0].mxu0
    %v2417 = vadd.f32 0.0, %v2416
    %v2418 = vpop.f32.mrb[0].mxu0
    %2419 = vdwg.mxu0
    %v2421 = vsel %vm1366, %v2353, 0
    %v2424 = vsel %vm1366, %v2354, 0
    %v2427 = vsel %vm1366, %v2357, 0
    %v2430 = vsel %vm1366, %v2358, 0
    %2432 = vmatprep.subr.bf16.mxu0 0
    %2433 = vmatpush1.bf16.xpose.msra.mxu0 %v2427
    %2434 = vmatprep.subr.bf16.mxu0 0
    %2435 = vmatpush1.bf16.xpose.msra.mxu0 %v2430
    %2436 = vmatprep.subr.bf16.mxu0 0
    %2437 = vmatpush1.bf16.xpose.msra.mxu0 0
    %2438 = vmatprep.subr.bf16.mxu0 0
    %2439 = vmatpush1.bf16.xpose.msra.mxu0 0
    %2440 = vmatprep.subr.bf16.mxu0 0
    %2441 = vmatpush1.bf16.xpose.msra.mxu0 0
    %2442 = vmatprep.subr.bf16.mxu0 0
    %2443 = vmatpush1.bf16.xpose.msra.mxu0 0
    %2444 = vmatprep.subr.bf16.mxu0 0
    %2445 = vmatpush1.bf16.xpose.msra.mxu0 0
    %2446 = vmatprep.subr.bf16.mxu0 0
    %2447 = vmatpush1.bf16.xpose.msra.mxu0 0
    %2448 = vmatprep.subr.bf16.mxu0 0
    %2449 = vmatpush1.bf16.xpose.msra.mxu0 0
    %2450 = vmatprep.subr.bf16.mxu0 0
    %2451 = vmatpush1.bf16.xpose.msra.mxu0 0
    %2452 = vmatprep.subr.bf16.mxu0 0
    %2453 = vmatpush1.bf16.xpose.msra.mxu0 0
    %2454 = vmatprep.subr.bf16.mxu0 0
    %2455 = vmatpush1.bf16.xpose.msra.mxu0 0
    %2456 = vmatprep.subr.bf16.mxu0 0
    %2457 = vmatpush1.bf16.xpose.msra.mxu0 0
    %2458 = vmatprep.subr.bf16.mxu0 0
    %2459 = vmatpush1.bf16.xpose.msra.mxu0 0
    %2460 = vmatprep.subr.bf16.mxu0 0
    %2461 = vmatpush1.bf16.xpose.msra.mxu0 0
    %2462 = vmatprep.subr.bf16.mxu0 0
    %2463 = vmatpush1.bf16.xpose.msra.mxu0 0
    %2464 = vmatprep.mubr.bf16.mxu0 0
    %2465 = vmatmul.mubr.bf16.gmra.mrb[0].mxu0 %v2421
    %v2466 = vpop.f32.mrb[0].mxu0
    %v2467 = vadd.f32 0.0, %v2466
    %v2468 = vpop.f32.mrb[0].mxu0
    %v2469 = vpop.f32.mrb[0].mxu0
    %v2470 = vadd.f32 0.0, %v2469
    %v2471 = vpop.f32.mrb[0].mxu0
    %2472 = vmatprep.mubr.bf16.mxu0 0
    %2473 = vmatmul.mubr.bf16.gmra.mrb[0].mxu0 %v2424
    %v2474 = vpop.f32.mrb[0].mxu0
    %v2475 = vadd.f32 0.0, %v2474
    %v2476 = vpop.f32.mrb[0].mxu0
    %v2477 = vpop.f32.mrb[0].mxu0
    %v2478 = vadd.f32 0.0, %v2477
    %v2479 = vpop.f32.mrb[0].mxu0
    %2480 = vdwg.mxu0
    %v2481 = vmul.f32 %v2406, 0.125
    %v2482 = vmul.f32 %v2409, 0.125
    %v2483 = vmul.f32 %v2414, 0.125
    %v2484 = vmul.f32 %v2417, 0.125
    %v2485 = vmul.f32 %v2467, 0.125
    %v2486 = vmul.f32 %v2470, 0.125
    %v2487 = vmul.f32 %v2475, 0.125
    %v2488 = vmul.f32 %v2478, 0.125
    %v2489 = vsel %vm1497, %v2481, -inf
    %2490 = vmax.xlane.f32.xlu0 %v2489
    %v2491 = vpop.xlane.xlu0 %2490
    %v2492 = vsel %vm1497, %v2482, -inf
    %2493 = vmax.xlane.f32.xlu0 %v2492
    %v2494 = vpop.xlane.xlu0 %2493
    %v2495 = vsel %vm1497, %v2483, -inf
    %2496 = vmax.xlane.f32.xlu0 %v2495
    %v2497 = vpop.xlane.xlu0 %2496
    %v2498 = vsel %vm1497, %v2484, -inf
    %2499 = vmax.xlane.f32.xlu0 %v2498
    %v2500 = vpop.xlane.xlu0 %2499
    %v2501 = vsel %vm1497, %v2485, -inf
    %2502 = vmax.xlane.f32.xlu0 %v2501
    %v2503 = vpop.xlane.xlu0 %2502
    %v2504 = vsel %vm1497, %v2486, -inf
    %2505 = vmax.xlane.f32.xlu0 %v2504
    %v2506 = vpop.xlane.xlu0 %2505
    %v2507 = vsel %vm1497, %v2487, -inf
    %2508 = vmax.xlane.f32.xlu0 %v2507
    %v2509 = vpop.xlane.xlu0 %2508
    %v2510 = vsel %vm1497, %v2488, -inf
    %2511 = vmax.xlane.f32.xlu0 %v2510
    %v2512 = vpop.xlane.xlu0 %2511
    %v2513 = vsub.f32 %v2481, %v2491
    %v2514 = vsub.f32 %v2482, %v2494
    %v2515 = vsub.f32 %v2483, %v2497
    %v2516 = vsub.f32 %v2484, %v2500
    %v2517 = vsub.f32 %v2485, %v2503
    %v2518 = vsub.f32 %v2486, %v2506
    %v2519 = vsub.f32 %v2487, %v2509
    %v2520 = vsub.f32 %v2488, %v2512
    %v2521 = vmul.f32 %v2513, 1.442695
    %v2522 = vpow.pop %v2521
    %v2523 = vmul.f32 %v2514, 1.442695
    %v2524 = vpow.pop %v2523
    %v2525 = vmul.f32 %v2515, 1.442695
    %v2526 = vpow.pop %v2525
    %v2527 = vmul.f32 %v2516, 1.442695
    %v2528 = vpow.pop %v2527
    %v2529 = vmul.f32 %v2517, 1.442695
    %v2530 = vpow.pop %v2529
    %v2531 = vmul.f32 %v2518, 1.442695
    %v2532 = vpow.pop %v2531
    %v2533 = vmul.f32 %v2519, 1.442695
    %v2534 = vpow.pop %v2533
    %v2535 = vmul.f32 %v2520, 1.442695
    %v2536 = vpow.pop %v2535
    %v2537 = vsel %vm1497, %v2522, 0.0
    %2538 = vadd.xlane.f32.xlu0 %v2537
    %v2539 = vpop.xlane.xlu0 %2538
    %v2540 = vsel %vm1497, %v2524, 0.0
    %2541 = vadd.xlane.f32.xlu0 %v2540
    %v2542 = vpop.xlane.xlu0 %2541
    %v2543 = vsel %vm1497, %v2526, 0.0
    %2544 = vadd.xlane.f32.xlu0 %v2543
    %v2545 = vpop.xlane.xlu0 %2544
    %v2546 = vsel %vm1497, %v2528, 0.0
    %2547 = vadd.xlane.f32.xlu0 %v2546
    %v2548 = vpop.xlane.xlu0 %2547
    %v2549 = vsel %vm1497, %v2530, 0.0
    %2550 = vadd.xlane.f32.xlu0 %v2549
    %v2551 = vpop.xlane.xlu0 %2550
    %v2552 = vsel %vm1497, %v2532, 0.0
    %2553 = vadd.xlane.f32.xlu0 %v2552
    %v2554 = vpop.xlane.xlu0 %2553
    %v2555 = vsel %vm1497, %v2534, 0.0
    %2556 = vadd.xlane.f32.xlu0 %v2555
    %v2557 = vpop.xlane.xlu0 %2556
    %v2558 = vsel %vm1497, %v2536, 0.0
    %2559 = vadd.xlane.f32.xlu0 %v2558
    %v2560 = vpop.xlane.xlu0 %2559
    %v2561 = vrcp.pop %v2539
    %v2562 = vrcp.pop %v2542
    %v2563 = vrcp.pop %v2545
    %v2564 = vrcp.pop %v2548
    %v2565 = vrcp.pop %v2551
    %v2566 = vrcp.pop %v2554
    %v2567 = vrcp.pop %v2557
    %v2568 = vrcp.pop %v2560
    %v2569 = vmul.f32 %v2522, %v2561
    %v2570 = vmul.f32 %v2524, %v2562
    %v2571 = vmul.f32 %v2526, %v2563
    %v2572 = vmul.f32 %v2528, %v2564
    %v2573 = vmul.f32 %v2530, %v2565
    %v2574 = vmul.f32 %v2532, %v2566
    %v2575 = vmul.f32 %v2534, %v2567
    %v2576 = vmul.f32 %v2536, %v2568
    %v2577 = vpack.c.bf16 %v2570, %v2569
    %v2578 = vpack.c.bf16 %v2572, %v2571
    %v2579 = vpack.c.bf16 %v2574, %v2573
    %v2580 = vpack.c.bf16 %v2576, %v2575
    %v2581 = vpack.c.bf16 %v1326, %v1322
    %v2582 = vpack.c.bf16 %v1336, %v1332
    %v2583 = vpack.c.bf16 %v1346, %v1342
    %v2584 = vpack.c.bf16 %v1356, %v1352
    %v2586 = vsel %vm1497, %v2577, 0
    %v2589 = vsel %vm1497, %v2578, 0
    %2591 = vmatprep.subr.bf16.mxu0 0
    %2592 = vmatpush1.bf16.msra.mxu0 %v2581
    %2593 = vmatprep.subr.bf16.mxu0 0
    %2594 = vmatpush1.bf16.msra.mxu0 %v2582
    %2595 = vmatprep.subr.bf16.mxu0 0
    %2596 = vmatpush1.bf16.msra.mxu0 0
    %2597 = vmatprep.subr.bf16.mxu0 0
    %2598 = vmatpush1.bf16.msra.mxu0 0
    %2599 = vmatprep.subr.bf16.mxu0 0
    %2600 = vmatpush1.bf16.msra.mxu0 0
    %2601 = vmatprep.subr.bf16.mxu0 0
    %2602 = vmatpush1.bf16.msra.mxu0 0
    %2603 = vmatprep.subr.bf16.mxu0 0
    %2604 = vmatpush1.bf16.msra.mxu0 0
    %2605 = vmatprep.subr.bf16.mxu0 0
    %2606 = vmatpush1.bf16.msra.mxu0 0
    %2607 = vmatprep.subr.bf16.mxu0 0
    %2608 = vmatpush1.bf16.msra.mxu0 0
    %2609 = vmatprep.subr.bf16.mxu0 0
    %2610 = vmatpush1.bf16.msra.mxu0 0
    %2611 = vmatprep.subr.bf16.mxu0 0
    %2612 = vmatpush1.bf16.msra.mxu0 0
    %2613 = vmatprep.subr.bf16.mxu0 0
    %2614 = vmatpush1.bf16.msra.mxu0 0
    %2615 = vmatprep.subr.bf16.mxu0 0
    %2616 = vmatpush1.bf16.msra.mxu0 0
    %2617 = vmatprep.subr.bf16.mxu0 0
    %2618 = vmatpush1.bf16.msra.mxu0 0
    %2619 = vmatprep.subr.bf16.mxu0 0
    %2620 = vmatpush1.bf16.msra.mxu0 0
    %2621 = vmatprep.subr.bf16.mxu0 0
    %2622 = vmatpush1.bf16.msra.mxu0 0
    %2623 = vmatprep.mubr.bf16.mxu0 0
    %2624 = vmatmul.mubr.bf16.gmra.mrb[0].mxu0 %v2586
    %v2625 = vpop.f32.mrb[0].mxu0
    %v2626 = vadd.f32 0.0, %v2625
    %v2627 = vpop.f32.mrb[0].mxu0
    %v2628 = vpop.f32.mrb[0].mxu0
    %v2629 = vadd.f32 0.0, %v2628
    %v2630 = vpop.f32.mrb[0].mxu0
    %2631 = vmatprep.mubr.bf16.mxu0 0
    %2632 = vmatmul.mubr.bf16.gmra.mrb[0].mxu0 %v2589
    %v2633 = vpop.f32.mrb[0].mxu0
    %v2634 = vadd.f32 0.0, %v2633
    %v2635 = vpop.f32.mrb[0].mxu0
    %v2636 = vpop.f32.mrb[0].mxu0
    %v2637 = vadd.f32 0.0, %v2636
    %v2638 = vpop.f32.mrb[0].mxu0
    %2639 = vdwg.mxu0
    %v2641 = vsel %vm1497, %v2579, 0
    %v2644 = vsel %vm1497, %v2580, 0
    %2646 = vmatprep.subr.bf16.mxu0 0
    %2647 = vmatpush1.bf16.msra.mxu0 %v2583
    %2648 = vmatprep.subr.bf16.mxu0 0
    %2649 = vmatpush1.bf16.msra.mxu0 %v2584
    %2650 = vmatprep.subr.bf16.mxu0 0
    %2651 = vmatpush1.bf16.msra.mxu0 0
    %2652 = vmatprep.subr.bf16.mxu0 0
    %2653 = vmatpush1.bf16.msra.mxu0 0
    %2654 = vmatprep.subr.bf16.mxu0 0
    %2655 = vmatpush1.bf16.msra.mxu0 0
    %2656 = vmatprep.subr.bf16.mxu0 0
    %2657 = vmatpush1.bf16.msra.mxu0 0
    %2658 = vmatprep.subr.bf16.mxu0 0
    %2659 = vmatpush1.bf16.msra.mxu0 0
    %2660 = vmatprep.subr.bf16.mxu0 0
    %2661 = vmatpush1.bf16.msra.mxu0 0
    %2662 = vmatprep.subr.bf16.mxu0 0
    %2663 = vmatpush1.bf16.msra.mxu0 0
    %2664 = vmatprep.subr.bf16.mxu0 0
    %2665 = vmatpush1.bf16.msra.mxu0 0
    %2666 = vmatprep.subr.bf16.mxu0 0
    %2667 = vmatpush1.bf16.msra.mxu0 0
    %2668 = vmatprep.subr.bf16.mxu0 0
    %2669 = vmatpush1.bf16.msra.mxu0 0
    %2670 = vmatprep.subr.bf16.mxu0 0
    %2671 = vmatpush1.bf16.msra.mxu0 0
    %2672 = vmatprep.subr.bf16.mxu0 0
    %2673 = vmatpush1.bf16.msra.mxu0 0
    %2674 = vmatprep.subr.bf16.mxu0 0
    %2675 = vmatpush1.bf16.msra.mxu0 0
    %2676 = vmatprep.subr.bf16.mxu0 0
    %2677 = vmatpush1.bf16.msra.mxu0 0
    %2678 = vmatprep.mubr.bf16.mxu0 0
    %2679 = vmatmul.mubr.bf16.gmra.mrb[0].mxu0 %v2641
    %v2680 = vpop.f32.mrb[0].mxu0
    %v2681 = vadd.f32 0.0, %v2680
    %v2682 = vpop.f32.mrb[0].mxu0
    %v2683 = vpop.f32.mrb[0].mxu0
    %v2684 = vadd.f32 0.0, %v2683
    %v2685 = vpop.f32.mrb[0].mxu0
    %2686 = vmatprep.mubr.bf16.mxu0 0
    %2687 = vmatmul.mubr.bf16.gmra.mrb[0].mxu0 %v2644
    %v2688 = vpop.f32.mrb[0].mxu0
    %v2689 = vadd.f32 0.0, %v2688
    %v2690 = vpop.f32.mrb[0].mxu0
    %v2691 = vpop.f32.mrb[0].mxu0
    %v2692 = vadd.f32 0.0, %v2691
    %v2693 = vpop.f32.mrb[0].mxu0
    %2694 = vdwg.mxu0
    %v2695 = vpack.c.bf16 %v2629, %v2626
    %v2696 = vpack.c.bf16 %v2637, %v2634
    %v2697 = vpack.c.bf16 %v2684, %v2681
    %v2698 = vpack.c.bf16 %v2692, %v2689
    %s2699 = scalar_lea.vmem [#allocation10], 128
    %v2700 = vld [vmem:[%s2699] sm:$0xff]
    %v2701 = vld [vmem:[%s2699 + $0x8] sm:$0xff]
    %v2702 = vld [vmem:[%s2699 + $0x10] sm:$0xff]
    %v2703 = vld [vmem:[%s2699 + $0x18] sm:$0xff]
    %v2704 = vld [vmem:[%s2699 + $0x20] sm:$0xff]
    %v2705 = vld [vmem:[%s2699 + $0x28] sm:$0xff]
    %v2706 = vld [vmem:[%s2699 + $0x30] sm:$0xff]
    %v2707 = vld [vmem:[%s2699 + $0x38] sm:$0xff]
    %v2716 = vunpack.c.l.b16 %v2700
    %v2717 = vunpack.c.h.b16 %v2700
    %v2718 = vunpack.c.l.b16 %v2701
    %v2719 = vunpack.c.h.b16 %v2701
    %v2720 = vunpack.c.l.b16 %v2702
    %v2721 = vunpack.c.h.b16 %v2702
    %v2722 = vunpack.c.l.b16 %v2703
    %v2723 = vunpack.c.h.b16 %v2703
    %v2724 = vunpack.c.l.b16 %v2704
    %v2725 = vunpack.c.h.b16 %v2704
    %v2726 = vunpack.c.l.b16 %v2705
    %v2727 = vunpack.c.h.b16 %v2705
    %v2728 = vunpack.c.l.b16 %v2706
    %v2729 = vunpack.c.h.b16 %v2706
    %v2730 = vunpack.c.l.b16 %v2707
    %v2731 = vunpack.c.h.b16 %v2707
    %v2732 = vpack.c.b16 %v2718, %v2716
    %v2733 = vpack.c.b16 %v2719, %v2717
    %v2734 = vpack.c.b16 %v2722, %v2720
    %v2735 = vpack.c.b16 %v2723, %v2721
    %v2736 = vpack.c.b16 %v2726, %v2724
    %v2737 = vpack.c.b16 %v2727, %v2725
    %v2738 = vpack.c.b16 %v2730, %v2728
    %v2739 = vpack.c.b16 %v2731, %v2729
    %v2749 = vsel %vm1366, %v2695, 0
    %v2752 = vsel %vm1366, %v2696, 0
    %v2755 = vsel %vm1366, %v2697, 0
    %v2758 = vsel %vm1366, %v2698, 0
    %2760 = vmatprep.subr.bf16.mxu0 %v2733
    %2761 = vmatpush1.bf16.msra.mxu0 %v2732
    %2762 = vmatprep.subr.bf16.mxu0 %v2735
    %2763 = vmatpush1.bf16.msra.mxu0 %v2734
    %2764 = vmatprep.subr.bf16.mxu0 %v2737
    %2765 = vmatpush1.bf16.msra.mxu0 %v2736
    %2766 = vmatprep.subr.bf16.mxu0 %v2739
    %2767 = vmatpush1.bf16.msra.mxu0 %v2738
    %2768 = vmatprep.subr.bf16.mxu0 0
    %2769 = vmatpush1.bf16.msra.mxu0 0
    %2770 = vmatprep.subr.bf16.mxu0 0
    %2771 = vmatpush1.bf16.msra.mxu0 0
    %2772 = vmatprep.subr.bf16.mxu0 0
    %2773 = vmatpush1.bf16.msra.mxu0 0
    %2774 = vmatprep.subr.bf16.mxu0 0
    %2775 = vmatpush1.bf16.msra.mxu0 0
    %2776 = vmatprep.subr.bf16.mxu0 0
    %2777 = vmatpush1.bf16.msra.mxu0 0
    %2778 = vmatprep.subr.bf16.mxu0 0
    %2779 = vmatpush1.bf16.msra.mxu0 0
    %2780 = vmatprep.subr.bf16.mxu0 0
    %2781 = vmatpush1.bf16.msra.mxu0 0
    %2782 = vmatprep.subr.bf16.mxu0 0
    %2783 = vmatpush1.bf16.msra.mxu0 0
    %2784 = vmatprep.subr.bf16.mxu0 0
    %2785 = vmatpush1.bf16.msra.mxu0 0
    %2786 = vmatprep.subr.bf16.mxu0 0
    %2787 = vmatpush1.bf16.msra.mxu0 0
    %2788 = vmatprep.subr.bf16.mxu0 0
    %2789 = vmatpush1.bf16.msra.mxu0 0
    %2790 = vmatprep.subr.bf16.mxu0 0
    %2791 = vmatpush1.bf16.msra.mxu0 0
    %2792 = vmatprep.mubr.bf16.mxu0 0
    %2793 = vmatmul.mubr.bf16.gmra.mrb[0].mxu0 %v2749
    %v2794 = vpop.f32.mrb[0].mxu0
    %v2795 = vadd.f32 0.0, %v2794
    %v2796 = vpop.f32.mrb[0].mxu0
    %v2797 = vadd.f32 0.0, %v2796
    %v2798 = vpop.f32.mrb[0].mxu0
    %v2799 = vadd.f32 0.0, %v2798
    %v2800 = vpop.f32.mrb[0].mxu0
    %v2801 = vadd.f32 0.0, %v2800
    %2802 = vmatprep.mubr.bf16.mxu0 0
    %2803 = vmatmul.mubr.bf16.gmra.mrb[0].mxu0 %v2752
    %v2804 = vpop.f32.mrb[0].mxu0
    %v2805 = vadd.f32 0.0, %v2804
    %v2806 = vpop.f32.mrb[0].mxu0
    %v2807 = vadd.f32 0.0, %v2806
    %v2808 = vpop.f32.mrb[0].mxu0
    %v2809 = vadd.f32 0.0, %v2808
    %v2810 = vpop.f32.mrb[0].mxu0
    %v2811 = vadd.f32 0.0, %v2810
    %2812 = vmatprep.mubr.bf16.mxu0 0
    %2813 = vmatmul.mubr.bf16.gmra.mrb[0].mxu0 %v2755
    %v2814 = vpop.f32.mrb[0].mxu0
    %v2815 = vadd.f32 0.0, %v2814
    %v2816 = vpop.f32.mrb[0].mxu0
    %v2817 = vadd.f32 0.0, %v2816
    %v2818 = vpop.f32.mrb[0].mxu0
    %v2819 = vadd.f32 0.0, %v2818
    %v2820 = vpop.f32.mrb[0].mxu0
    %v2821 = vadd.f32 0.0, %v2820
    %2822 = vmatprep.mubr.bf16.mxu0 0
    %2823 = vmatmul.mubr.bf16.gmra.mrb[0].mxu0 %v2758
    %v2824 = vpop.f32.mrb[0].mxu0
    %v2825 = vadd.f32 0.0, %v2824
    %v2826 = vpop.f32.mrb[0].mxu0
    %v2827 = vadd.f32 0.0, %v2826
    %v2828 = vpop.f32.mrb[0].mxu0
    %v2829 = vadd.f32 0.0, %v2828
    %v2830 = vpop.f32.mrb[0].mxu0
    %v2831 = vadd.f32 0.0, %v2830
    %2832 = vdwg.mxu0
    %v2833 = vadd.f32 %v2313, %v2795
    %v2834 = vadd.f32 %v2315, %v2797
    %v2835 = vadd.f32 %v2317, %v2799
    %v2836 = vadd.f32 %v2319, %v2801
    %v2837 = vadd.f32 %v2323, %v2805
    %v2838 = vadd.f32 %v2325, %v2807
    %v2839 = vadd.f32 %v2327, %v2809
    %v2840 = vadd.f32 %v2329, %v2811
    %v2841 = vadd.f32 %v2333, %v2815
    %v2842 = vadd.f32 %v2335, %v2817
    %v2843 = vadd.f32 %v2337, %v2819
    %v2844 = vadd.f32 %v2339, %v2821
    %v2845 = vadd.f32 %v2343, %v2825
    %v2846 = vadd.f32 %v2345, %v2827
    %v2847 = vadd.f32 %v2347, %v2829
    %v2848 = vadd.f32 %v2349, %v2831
    %2851 = vrot.lane.b32.xlu0 %v2351, 64
    %v2852 = vpop.permute.xlu0 %2851
    %2853 = vrot.lane.b32.xlu0 %v2352, 64
    %v2854 = vpop.permute.xlu0 %2853
    %2857 = vrot.lane.b32.xlu0 %v2355, 64
    %v2858 = vpop.permute.xlu0 %2857
    %2859 = vrot.lane.b32.xlu0 %v2356, 64
    %v2860 = vpop.permute.xlu0 %2859
    %v2862 = vsel %vm1366, %v2852, 0
    %v2865 = vsel %vm1366, %v2854, 0
    %v2868 = vsel %vm1366, %v2858, 0
    %v2871 = vsel %vm1366, %v2860, 0
    %2873 = vmatprep.subr.bf16.mxu0 0
    %2874 = vmatpush1.bf16.xpose.msra.mxu0 %v2868
    %2875 = vmatprep.subr.bf16.mxu0 0
    %2876 = vmatpush1.bf16.xpose.msra.mxu0 %v2871
    %2877 = vmatprep.subr.bf16.mxu0 0
    %2878 = vmatpush1.bf16.xpose.msra.mxu0 0
    %2879 = vmatprep.subr.bf16.mxu0 0
    %2880 = vmatpush1.bf16.xpose.msra.mxu0 0
    %2881 = vmatprep.subr.bf16.mxu0 0
    %2882 = vmatpush1.bf16.xpose.msra.mxu0 0
    %2883 = vmatprep.subr.bf16.mxu0 0
    %2884 = vmatpush1.bf16.xpose.msra.mxu0 0
    %2885 = vmatprep.subr.bf16.mxu0 0
    %2886 = vmatpush1.bf16.xpose.msra.mxu0 0
    %2887 = vmatprep.subr.bf16.mxu0 0
    %2888 = vmatpush1.bf16.xpose.msra.mxu0 0
    %2889 = vmatprep.subr.bf16.mxu0 0
    %2890 = vmatpush1.bf16.xpose.msra.mxu0 0
    %2891 = vmatprep.subr.bf16.mxu0 0
    %2892 = vmatpush1.bf16.xpose.msra.mxu0 0
    %2893 = vmatprep.subr.bf16.mxu0 0
    %2894 = vmatpush1.bf16.xpose.msra.mxu0 0
    %2895 = vmatprep.subr.bf16.mxu0 0
    %2896 = vmatpush1.bf16.xpose.msra.mxu0 0
    %2897 = vmatprep.subr.bf16.mxu0 0
    %2898 = vmatpush1.bf16.xpose.msra.mxu0 0
    %2899 = vmatprep.subr.bf16.mxu0 0
    %2900 = vmatpush1.bf16.xpose.msra.mxu0 0
    %2901 = vmatprep.subr.bf16.mxu0 0
    %2902 = vmatpush1.bf16.xpose.msra.mxu0 0
    %2903 = vmatprep.subr.bf16.mxu0 0
    %2904 = vmatpush1.bf16.xpose.msra.mxu0 0
    %2905 = vmatprep.mubr.bf16.mxu0 0
    %2906 = vmatmul.mubr.bf16.gmra.mrb[0].mxu0 %v2862
    %v2907 = vpop.f32.mrb[0].mxu0
    %v2908 = vadd.f32 0.0, %v2907
    %v2909 = vpop.f32.mrb[0].mxu0
    %v2910 = vpop.f32.mrb[0].mxu0
    %v2911 = vadd.f32 0.0, %v2910
    %v2912 = vpop.f32.mrb[0].mxu0
    %2913 = vmatprep.mubr.bf16.mxu0 0
    %2914 = vmatmul.mubr.bf16.gmra.mrb[0].mxu0 %v2865
    %v2915 = vpop.f32.mrb[0].mxu0
    %v2916 = vadd.f32 0.0, %v2915
    %v2917 = vpop.f32.mrb[0].mxu0
    %v2918 = vpop.f32.mrb[0].mxu0
    %v2919 = vadd.f32 0.0, %v2918
    %v2920 = vpop.f32.mrb[0].mxu0
    %2921 = vdwg.mxu0
    %2924 = vrot.lane.b32.xlu0 %v2353, 64
    %v2925 = vpop.permute.xlu0 %2924
    %2926 = vrot.lane.b32.xlu0 %v2354, 64
    %v2927 = vpop.permute.xlu0 %2926
    %2930 = vrot.lane.b32.xlu0 %v2357, 64
    %v2931 = vpop.permute.xlu0 %2930
    %2932 = vrot.lane.b32.xlu0 %v2358, 64
    %v2933 = vpop.permute.xlu0 %2932
    %v2935 = vsel %vm1366, %v2925, 0
    %v2938 = vsel %vm1366, %v2927, 0
    %v2941 = vsel %vm1366, %v2931, 0
    %v2944 = vsel %vm1366, %v2933, 0
    %2946 = vmatprep.subr.bf16.mxu0 0
    %2947 = vmatpush1.bf16.xpose.msra.mxu0 %v2941
    %2948 = vmatprep.subr.bf16.mxu0 0
    %2949 = vmatpush1.bf16.xpose.msra.mxu0 %v2944
    %2950 = vmatprep.subr.bf16.mxu0 0
    %2951 = vmatpush1.bf16.xpose.msra.mxu0 0
    %2952 = vmatprep.subr.bf16.mxu0 0
    %2953 = vmatpush1.bf16.xpose.msra.mxu0 0
    %2954 = vmatprep.subr.bf16.mxu0 0
    %2955 = vmatpush1.bf16.xpose.msra.mxu0 0
    %2956 = vmatprep.subr.bf16.mxu0 0
    %2957 = vmatpush1.bf16.xpose.msra.mxu0 0
    %2958 = vmatprep.subr.bf16.mxu0 0
    %2959 = vmatpush1.bf16.xpose.msra.mxu0 0
    %2960 = vmatprep.subr.bf16.mxu0 0
    %2961 = vmatpush1.bf16.xpose.msra.mxu0 0
    %2962 = vmatprep.subr.bf16.mxu0 0
    %2963 = vmatpush1.bf16.xpose.msra.mxu0 0
    %2964 = vmatprep.subr.bf16.mxu0 0
    %2965 = vmatpush1.bf16.xpose.msra.mxu0 0
    %2966 = vmatprep.subr.bf16.mxu0 0
    %2967 = vmatpush1.bf16.xpose.msra.mxu0 0
    %2968 = vmatprep.subr.bf16.mxu0 0
    %2969 = vmatpush1.bf16.xpose.msra.mxu0 0
    %2970 = vmatprep.subr.bf16.mxu0 0
    %2971 = vmatpush1.bf16.xpose.msra.mxu0 0
    %2972 = vmatprep.subr.bf16.mxu0 0
    %2973 = vmatpush1.bf16.xpose.msra.mxu0 0
    %2974 = vmatprep.subr.bf16.mxu0 0
    %2975 = vmatpush1.bf16.xpose.msra.mxu0 0
    %2976 = vmatprep.subr.bf16.mxu0 0
    %2977 = vmatpush1.bf16.xpose.msra.mxu0 0
    %2978 = vmatprep.mubr.bf16.mxu0 0
    %2979 = vmatmul.mubr.bf16.gmra.mrb[0].mxu0 %v2935
    %v2980 = vpop.f32.mrb[0].mxu0
    %v2981 = vadd.f32 0.0, %v2980
    %v2982 = vpop.f32.mrb[0].mxu0
    %v2983 = vpop.f32.mrb[0].mxu0
    %v2984 = vadd.f32 0.0, %v2983
    %v2985 = vpop.f32.mrb[0].mxu0
    %2986 = vmatprep.mubr.bf16.mxu0 0
    %2987 = vmatmul.mubr.bf16.gmra.mrb[0].mxu0 %v2938
    %v2988 = vpop.f32.mrb[0].mxu0
    %v2989 = vadd.f32 0.0, %v2988
    %v2990 = vpop.f32.mrb[0].mxu0
    %v2991 = vpop.f32.mrb[0].mxu0
    %v2992 = vadd.f32 0.0, %v2991
    %v2993 = vpop.f32.mrb[0].mxu0
    %2994 = vdwg.mxu0
    %v2995 = vmul.f32 %v2908, 0.125
    %v2996 = vmul.f32 %v2911, 0.125
    %v2997 = vmul.f32 %v2916, 0.125
    %v2998 = vmul.f32 %v2919, 0.125
    %v2999 = vmul.f32 %v2981, 0.125
    %v3000 = vmul.f32 %v2984, 0.125
    %v3001 = vmul.f32 %v2989, 0.125
    %v3002 = vmul.f32 %v2992, 0.125
    %v3003 = vsel %vm1497, %v2995, -inf
    %3004 = vmax.xlane.f32.xlu0 %v3003
    %v3005 = vpop.xlane.xlu0 %3004
    %v3006 = vsel %vm1497, %v2996, -inf
    %3007 = vmax.xlane.f32.xlu0 %v3006
    %v3008 = vpop.xlane.xlu0 %3007
    %v3009 = vsel %vm1497, %v2997, -inf
    %3010 = vmax.xlane.f32.xlu0 %v3009
    %v3011 = vpop.xlane.xlu0 %3010
    %v3012 = vsel %vm1497, %v2998, -inf
    %3013 = vmax.xlane.f32.xlu0 %v3012
    %v3014 = vpop.xlane.xlu0 %3013
    %v3015 = vsel %vm1497, %v2999, -inf
    %3016 = vmax.xlane.f32.xlu0 %v3015
    %v3017 = vpop.xlane.xlu0 %3016
    %v3018 = vsel %vm1497, %v3000, -inf
    %3019 = vmax.xlane.f32.xlu0 %v3018
    %v3020 = vpop.xlane.xlu0 %3019
    %v3021 = vsel %vm1497, %v3001, -inf
    %3022 = vmax.xlane.f32.xlu0 %v3021
    %v3023 = vpop.xlane.xlu0 %3022
    %v3024 = vsel %vm1497, %v3002, -inf
    %3025 = vmax.xlane.f32.xlu0 %v3024
    %v3026 = vpop.xlane.xlu0 %3025
    %v3027 = vsub.f32 %v2995, %v3005
    %v3028 = vsub.f32 %v2996, %v3008
    %v3029 = vsub.f32 %v2997, %v3011
    %v3030 = vsub.f32 %v2998, %v3014
    %v3031 = vsub.f32 %v2999, %v3017
    %v3032 = vsub.f32 %v3000, %v3020
    %v3033 = vsub.f32 %v3001, %v3023
    %v3034 = vsub.f32 %v3002, %v3026
    %v3035 = vmul.f32 %v3027, 1.442695
    %v3036 = vpow.pop %v3035
    %v3037 = vmul.f32 %v3028, 1.442695
    %v3038 = vpow.pop %v3037
    %v3039 = vmul.f32 %v3029, 1.442695
    %v3040 = vpow.pop %v3039
    %v3041 = vmul.f32 %v3030, 1.442695
    %v3042 = vpow.pop %v3041
    %v3043 = vmul.f32 %v3031, 1.442695
    %v3044 = vpow.pop %v3043
    %v3045 = vmul.f32 %v3032, 1.442695
    %v3046 = vpow.pop %v3045
    %v3047 = vmul.f32 %v3033, 1.442695
    %v3048 = vpow.pop %v3047
    %v3049 = vmul.f32 %v3034, 1.442695
    %v3050 = vpow.pop %v3049
    %v3051 = vsel %vm1497, %v3036, 0.0
    %3052 = vadd.xlane.f32.xlu0 %v3051
    %v3053 = vpop.xlane.xlu0 %3052
    %v3054 = vsel %vm1497, %v3038, 0.0
    %3055 = vadd.xlane.f32.xlu0 %v3054
    %v3056 = vpop.xlane.xlu0 %3055
    %v3057 = vsel %vm1497, %v3040, 0.0
    %3058 = vadd.xlane.f32.xlu0 %v3057
    %v3059 = vpop.xlane.xlu0 %3058
    %v3060 = vsel %vm1497, %v3042, 0.0
    %3061 = vadd.xlane.f32.xlu0 %v3060
    %v3062 = vpop.xlane.xlu0 %3061
    %v3063 = vsel %vm1497, %v3044, 0.0
    %3064 = vadd.xlane.f32.xlu0 %v3063
    %v3065 = vpop.xlane.xlu0 %3064
    %v3066 = vsel %vm1497, %v3046, 0.0
    %3067 = vadd.xlane.f32.xlu0 %v3066
    %v3068 = vpop.xlane.xlu0 %3067
    %v3069 = vsel %vm1497, %v3048, 0.0
    %3070 = vadd.xlane.f32.xlu0 %v3069
    %v3071 = vpop.xlane.xlu0 %3070
    %v3072 = vsel %vm1497, %v3050, 0.0
    %3073 = vadd.xlane.f32.xlu0 %v3072
    %v3074 = vpop.xlane.xlu0 %3073
    %v3075 = vrcp.pop %v3053
    %v3076 = vrcp.pop %v3056
    %v3077 = vrcp.pop %v3059
    %v3078 = vrcp.pop %v3062
    %v3079 = vrcp.pop %v3065
    %v3080 = vrcp.pop %v3068
    %v3081 = vrcp.pop %v3071
    %v3082 = vrcp.pop %v3074
    %v3083 = vmul.f32 %v3036, %v3075
    %v3084 = vmul.f32 %v3038, %v3076
    %v3085 = vmul.f32 %v3040, %v3077
    %v3086 = vmul.f32 %v3042, %v3078
    %v3087 = vmul.f32 %v3044, %v3079
    %v3088 = vmul.f32 %v3046, %v3080
    %v3089 = vmul.f32 %v3048, %v3081
    %v3090 = vmul.f32 %v3050, %v3082
    %v3091 = vpack.c.bf16 %v3084, %v3083
    %v3092 = vpack.c.bf16 %v3086, %v3085
    %v3093 = vpack.c.bf16 %v3088, %v3087
    %v3094 = vpack.c.bf16 %v3090, %v3089
    %3097 = vrot.lane.b32.xlu0 %v2581, 64
    %v3098 = vpop.permute.xlu0 %3097
    %3099 = vrot.lane.b32.xlu0 %v2582, 64
    %v3100 = vpop.permute.xlu0 %3099
    %v3104 = vsel %vm1497, %v3091, 0
    %v3107 = vsel %vm1497, %v3092, 0
    %3109 = vmatprep.subr.bf16.mxu0 0
    %3110 = vmatpush1.bf16.msra.mxu0 %v3098
    %3111 = vmatprep.subr.bf16.mxu0 0
    %3112 = vmatpush1.bf16.msra.mxu0 %v3100
    %3113 = vmatprep.subr.bf16.mxu0 0
    %3114 = vmatpush1.bf16.msra.mxu0 0
    %3115 = vmatprep.subr.bf16.mxu0 0
    %3116 = vmatpush1.bf16.msra.mxu0 0
    %3117 = vmatprep.subr.bf16.mxu0 0
    %3118 = vmatpush1.bf16.msra.mxu0 0
    %3119 = vmatprep.subr.bf16.mxu0 0
    %3120 = vmatpush1.bf16.msra.mxu0 0
    %3121 = vmatprep.subr.bf16.mxu0 0
    %3122 = vmatpush1.bf16.msra.mxu0 0
    %3123 = vmatprep.subr.bf16.mxu0 0
    %3124 = vmatpush1.bf16.msra.mxu0 0
    %3125 = vmatprep.subr.bf16.mxu0 0
    %3126 = vmatpush1.bf16.msra.mxu0 0
    %3127 = vmatprep.subr.bf16.mxu0 0
    %3128 = vmatpush1.bf16.msra.mxu0 0
    %3129 = vmatprep.subr.bf16.mxu0 0
    %3130 = vmatpush1.bf16.msra.mxu0 0
    %3131 = vmatprep.subr.bf16.mxu0 0
    %3132 = vmatpush1.bf16.msra.mxu0 0
    %3133 = vmatprep.subr.bf16.mxu0 0
    %3134 = vmatpush1.bf16.msra.mxu0 0
    %3135 = vmatprep.subr.bf16.mxu0 0
    %3136 = vmatpush1.bf16.msra.mxu0 0
    %3137 = vmatprep.subr.bf16.mxu0 0
    %3138 = vmatpush1.bf16.msra.mxu0 0
    %3139 = vmatprep.subr.bf16.mxu0 0
    %3140 = vmatpush1.bf16.msra.mxu0 0
    %3141 = vmatprep.mubr.bf16.mxu0 0
    %3142 = vmatmul.mubr.bf16.gmra.mrb[0].mxu0 %v3104
    %v3143 = vpop.f32.mrb[0].mxu0
    %v3144 = vadd.f32 0.0, %v3143
    %v3145 = vpop.f32.mrb[0].mxu0
    %v3146 = vpop.f32.mrb[0].mxu0
    %v3147 = vadd.f32 0.0, %v3146
    %v3148 = vpop.f32.mrb[0].mxu0
    %3149 = vmatprep.mubr.bf16.mxu0 0
    %3150 = vmatmul.mubr.bf16.gmra.mrb[0].mxu0 %v3107
    %v3151 = vpop.f32.mrb[0].mxu0
    %v3152 = vadd.f32 0.0, %v3151
    %v3153 = vpop.f32.mrb[0].mxu0
    %v3154 = vpop.f32.mrb[0].mxu0
    %v3155 = vadd.f32 0.0, %v3154
    %v3156 = vpop.f32.mrb[0].mxu0
    %3157 = vdwg.mxu0
    %3160 = vrot.lane.b32.xlu0 %v2583, 64
    %v3161 = vpop.permute.xlu0 %3160
    %3162 = vrot.lane.b32.xlu0 %v2584, 64
    %v3163 = vpop.permute.xlu0 %3162
    %v3167 = vsel %vm1497, %v3093, 0
    %v3170 = vsel %vm1497, %v3094, 0
    %3172 = vmatprep.subr.bf16.mxu0 0
    %3173 = vmatpush1.bf16.msra.mxu0 %v3161
    %3174 = vmatprep.subr.bf16.mxu0 0
    %3175 = vmatpush1.bf16.msra.mxu0 %v3163
    %3176 = vmatprep.subr.bf16.mxu0 0
    %3177 = vmatpush1.bf16.msra.mxu0 0
    %3178 = vmatprep.subr.bf16.mxu0 0
    %3179 = vmatpush1.bf16.msra.mxu0 0
    %3180 = vmatprep.subr.bf16.mxu0 0
    %3181 = vmatpush1.bf16.msra.mxu0 0
    %3182 = vmatprep.subr.bf16.mxu0 0
    %3183 = vmatpush1.bf16.msra.mxu0 0
    %3184 = vmatprep.subr.bf16.mxu0 0
    %3185 = vmatpush1.bf16.msra.mxu0 0
    %3186 = vmatprep.subr.bf16.mxu0 0
    %3187 = vmatpush1.bf16.msra.mxu0 0
    %3188 = vmatprep.subr.bf16.mxu0 0
    %3189 = vmatpush1.bf16.msra.mxu0 0
    %3190 = vmatprep.subr.bf16.mxu0 0
    %3191 = vmatpush1.bf16.msra.mxu0 0
    %3192 = vmatprep.subr.bf16.mxu0 0
    %3193 = vmatpush1.bf16.msra.mxu0 0
    %3194 = vmatprep.subr.bf16.mxu0 0
    %3195 = vmatpush1.bf16.msra.mxu0 0
    %3196 = vmatprep.subr.bf16.mxu0 0
    %3197 = vmatpush1.bf16.msra.mxu0 0
    %3198 = vmatprep.subr.bf16.mxu0 0
    %3199 = vmatpush1.bf16.msra.mxu0 0
    %3200 = vmatprep.subr.bf16.mxu0 0
    %3201 = vmatpush1.bf16.msra.mxu0 0
    %3202 = vmatprep.subr.bf16.mxu0 0
    %3203 = vmatpush1.bf16.msra.mxu0 0
    %3204 = vmatprep.mubr.bf16.mxu0 0
    %3205 = vmatmul.mubr.bf16.gmra.mrb[0].mxu0 %v3167
    %v3206 = vpop.f32.mrb[0].mxu0
    %v3207 = vadd.f32 0.0, %v3206
    %v3208 = vpop.f32.mrb[0].mxu0
    %v3209 = vpop.f32.mrb[0].mxu0
    %v3210 = vadd.f32 0.0, %v3209
    %v3211 = vpop.f32.mrb[0].mxu0
    %3212 = vmatprep.mubr.bf16.mxu0 0
    %3213 = vmatmul.mubr.bf16.gmra.mrb[0].mxu0 %v3170
    %v3214 = vpop.f32.mrb[0].mxu0
    %v3215 = vadd.f32 0.0, %v3214
    %v3216 = vpop.f32.mrb[0].mxu0
    %v3217 = vpop.f32.mrb[0].mxu0
    %v3218 = vadd.f32 0.0, %v3217
    %v3219 = vpop.f32.mrb[0].mxu0
    %3220 = vdwg.mxu0
    %v3221 = vpack.c.bf16 %v3147, %v3144
    %v3222 = vpack.c.bf16 %v3155, %v3152
    %v3223 = vpack.c.bf16 %v3210, %v3207
    %v3224 = vpack.c.bf16 %v3218, %v3215
    %s3225 = scalar_lea.vmem [#allocation10], 192
    %v3226 = vld [vmem:[%s3225] sm:$0xff]
    %v3227 = vld [vmem:[%s3225 + $0x8] sm:$0xff]
    %v3228 = vld [vmem:[%s3225 + $0x10] sm:$0xff]
    %v3229 = vld [vmem:[%s3225 + $0x18] sm:$0xff]
    %v3230 = vld [vmem:[%s3225 + $0x20] sm:$0xff]
    %v3231 = vld [vmem:[%s3225 + $0x28] sm:$0xff]
    %v3232 = vld [vmem:[%s3225 + $0x30] sm:$0xff]
    %v3233 = vld [vmem:[%s3225 + $0x38] sm:$0xff]
    %v3242 = vunpack.c.l.b16 %v3226
    %v3243 = vunpack.c.h.b16 %v3226
    %v3244 = vunpack.c.l.b16 %v3227
    %v3245 = vunpack.c.h.b16 %v3227
    %v3246 = vunpack.c.l.b16 %v3228
    %v3247 = vunpack.c.h.b16 %v3228
    %v3248 = vunpack.c.l.b16 %v3229
    %v3249 = vunpack.c.h.b16 %v3229
    %v3250 = vunpack.c.l.b16 %v3230
    %v3251 = vunpack.c.h.b16 %v3230
    %v3252 = vunpack.c.l.b16 %v3231
    %v3253 = vunpack.c.h.b16 %v3231
    %v3254 = vunpack.c.l.b16 %v3232
    %v3255 = vunpack.c.h.b16 %v3232
    %v3256 = vunpack.c.l.b16 %v3233
    %v3257 = vunpack.c.h.b16 %v3233
    %v3258 = vpack.c.b16 %v3244, %v3242
    %v3259 = vpack.c.b16 %v3245, %v3243
    %v3260 = vpack.c.b16 %v3248, %v3246
    %v3261 = vpack.c.b16 %v3249, %v3247
    %v3262 = vpack.c.b16 %v3252, %v3250
    %v3263 = vpack.c.b16 %v3253, %v3251
    %v3264 = vpack.c.b16 %v3256, %v3254
    %v3265 = vpack.c.b16 %v3257, %v3255
    %v3275 = vsel %vm1366, %v3221, 0
    %v3278 = vsel %vm1366, %v3222, 0
    %v3281 = vsel %vm1366, %v3223, 0
    %v3284 = vsel %vm1366, %v3224, 0
    %3286 = vmatprep.subr.bf16.mxu0 %v3259
    %3287 = vmatpush1.bf16.msra.mxu0 %v3258
    %3288 = vmatprep.subr.bf16.mxu0 %v3261
    %3289 = vmatpush1.bf16.msra.mxu0 %v3260
    %3290 = vmatprep.subr.bf16.mxu0 %v3263
    %3291 = vmatpush1.bf16.msra.mxu0 %v3262
    %3292 = vmatprep.subr.bf16.mxu0 %v3265
    %3293 = vmatpush1.bf16.msra.mxu0 %v3264
    %3294 = vmatprep.subr.bf16.mxu0 0
    %3295 = vmatpush1.bf16.msra.mxu0 0
    %3296 = vmatprep.subr.bf16.mxu0 0
    %3297 = vmatpush1.bf16.msra.mxu0 0
    %3298 = vmatprep.subr.bf16.mxu0 0
    %3299 = vmatpush1.bf16.msra.mxu0 0
    %3300 = vmatprep.subr.bf16.mxu0 0
    %3301 = vmatpush1.bf16.msra.mxu0 0
    %3302 = vmatprep.subr.bf16.mxu0 0
    %3303 = vmatpush1.bf16.msra.mxu0 0
    %3304 = vmatprep.subr.bf16.mxu0 0
    %3305 = vmatpush1.bf16.msra.mxu0 0
    %3306 = vmatprep.subr.bf16.mxu0 0
    %3307 = vmatpush1.bf16.msra.mxu0 0
    %3308 = vmatprep.subr.bf16.mxu0 0
    %3309 = vmatpush1.bf16.msra.mxu0 0
    %3310 = vmatprep.subr.bf16.mxu0 0
    %3311 = vmatpush1.bf16.msra.mxu0 0
    %3312 = vmatprep.subr.bf16.mxu0 0
    %3313 = vmatpush1.bf16.msra.mxu0 0
    %3314 = vmatprep.subr.bf16.mxu0 0
    %3315 = vmatpush1.bf16.msra.mxu0 0
    %3316 = vmatprep.subr.bf16.mxu0 0
    %3317 = vmatpush1.bf16.msra.mxu0 0
    %3318 = vmatprep.mubr.bf16.mxu0 0
    %3319 = vmatmul.mubr.bf16.gmra.mrb[0].mxu0 %v3275
    %v3320 = vpop.f32.mrb[0].mxu0
    %v3321 = vadd.f32 0.0, %v3320
    %v3322 = vpop.f32.mrb[0].mxu0
    %v3323 = vadd.f32 0.0, %v3322
    %v3324 = vpop.f32.mrb[0].mxu0
    %v3325 = vadd.f32 0.0, %v3324
    %v3326 = vpop.f32.mrb[0].mxu0
    %v3327 = vadd.f32 0.0, %v3326
    %3328 = vmatprep.mubr.bf16.mxu0 0
    %3329 = vmatmul.mubr.bf16.gmra.mrb[0].mxu0 %v3278
    %v3330 = vpop.f32.mrb[0].mxu0
    %v3331 = vadd.f32 0.0, %v3330
    %v3332 = vpop.f32.mrb[0].mxu0
    %v3333 = vadd.f32 0.0, %v3332
    %v3334 = vpop.f32.mrb[0].mxu0
    %v3335 = vadd.f32 0.0, %v3334
    %v3336 = vpop.f32.mrb[0].mxu0
    %v3337 = vadd.f32 0.0, %v3336
    %3338 = vmatprep.mubr.bf16.mxu0 0
    %3339 = vmatmul.mubr.bf16.gmra.mrb[0].mxu0 %v3281
    %v3340 = vpop.f32.mrb[0].mxu0
    %v3341 = vadd.f32 0.0, %v3340
    %v3342 = vpop.f32.mrb[0].mxu0
    %v3343 = vadd.f32 0.0, %v3342
    %v3344 = vpop.f32.mrb[0].mxu0
    %v3345 = vadd.f32 0.0, %v3344
    %v3346 = vpop.f32.mrb[0].mxu0
    %v3347 = vadd.f32 0.0, %v3346
    %3348 = vmatprep.mubr.bf16.mxu0 0
    %3349 = vmatmul.mubr.bf16.gmra.mrb[0].mxu0 %v3284
    %v3350 = vpop.f32.mrb[0].mxu0
    %v3351 = vadd.f32 0.0, %v3350
    %v3352 = vpop.f32.mrb[0].mxu0
    %v3353 = vadd.f32 0.0, %v3352
    %v3354 = vpop.f32.mrb[0].mxu0
    %v3355 = vadd.f32 0.0, %v3354
    %v3356 = vpop.f32.mrb[0].mxu0
    %v3357 = vadd.f32 0.0, %v3356
    %3358 = vdwg.mxu0
    %v3359 = vadd.f32 %v2833, %v3321
    %v3360 = vadd.f32 %v2834, %v3323
    %v3361 = vadd.f32 %v2835, %v3325
    %v3362 = vadd.f32 %v2836, %v3327
    %v3363 = vadd.f32 %v2837, %v3331
    %v3364 = vadd.f32 %v2838, %v3333
    %v3365 = vadd.f32 %v2839, %v3335
    %v3366 = vadd.f32 %v2840, %v3337
    %v3367 = vadd.f32 %v2841, %v3341
    %v3368 = vadd.f32 %v2842, %v3343
    %v3369 = vadd.f32 %v2843, %v3345
    %v3370 = vadd.f32 %v2844, %v3347
    %v3371 = vadd.f32 %v2845, %v3351
    %v3372 = vadd.f32 %v2846, %v3353
    %v3373 = vadd.f32 %v2847, %v3355
    %v3374 = vadd.f32 %v2848, %v3357
    %v3375 = vld [vmem:[#allocation11] sm:$0x3]
    %v3377 = vlaneseq
    %v3378 = vshrl.u32 %v3377, 7
    %v3379 = vsub.s32 0, %v3378
    %v3380 = vrot.slane %v3375, %v3379
    %v3381 = vlaneseq
    %v3382 = vshrl.u32 %v3381, 7
    %v3383 = vsub.s32 1, %v3382
    %v3384 = vrot.slane %v3375, %v3383
    %v3387 = vadd.f32 %v3359, %v3380
    %v3388 = vadd.f32 %v3360, %v3384
    %v3389 = vadd.f32 %v3361, %v3380
    %v3390 = vadd.f32 %v3362, %v3384
    %v3391 = vadd.f32 %v3363, %v3380
    %v3392 = vadd.f32 %v3364, %v3384
    %v3393 = vadd.f32 %v3365, %v3380
    %v3394 = vadd.f32 %v3366, %v3384
    %v3395 = vadd.f32 %v3367, %v3380
    %v3396 = vadd.f32 %v3368, %v3384
    %v3397 = vadd.f32 %v3369, %v3380
    %v3398 = vadd.f32 %v3370, %v3384
    %v3399 = vadd.f32 %v3371, %v3380
    %v3400 = vadd.f32 %v3372, %v3384
    %v3401 = vadd.f32 %v3373, %v3380
    %v3402 = vadd.f32 %v3374, %v3384
    %v3403 = vadd.f32 %v3387, %v507
    %v3404 = vadd.f32 %v3388, %v508
    %v3405 = vadd.f32 %v3389, %v509
    %v3406 = vadd.f32 %v3390, %v510
    %v3407 = vadd.f32 %v3391, %v511
    %v3408 = vadd.f32 %v3392, %v512
    %v3409 = vadd.f32 %v3393, %v513
    %v3410 = vadd.f32 %v3394, %v514
    %v3411 = vadd.f32 %v3395, %v515
    %v3412 = vadd.f32 %v3396, %v516
    %v3413 = vadd.f32 %v3397, %v517
    %v3414 = vadd.f32 %v3398, %v518
    %v3415 = vadd.f32 %v3399, %v519
    %v3416 = vadd.f32 %v3400, %v520
    %v3417 = vadd.f32 %v3401, %v521
    %v3418 = vadd.f32 %v3402, %v522
    %v3419 = vld [vmem:[#allocation13] sm:$0x3]
    %v3420 = vld [vmem:[#allocation14] sm:$0x3]
    %v3421 = vadd.f32 %v3403, %v3404
    %3422 = vadd.xlane.f32.xlu0 %v3421
    %v3423 = vpop.xlane.xlu0 %3422
    %v3424 = vadd.f32 %v3405, %v3406
    %3425 = vadd.xlane.f32.xlu0 %v3424
    %v3426 = vpop.xlane.xlu0 %3425
    %v3427 = vadd.f32 %v3407, %v3408
    %3428 = vadd.xlane.f32.xlu0 %v3427
    %v3429 = vpop.xlane.xlu0 %3428
    %v3430 = vadd.f32 %v3409, %v3410
    %3431 = vadd.xlane.f32.xlu0 %v3430
    %v3432 = vpop.xlane.xlu0 %3431
    %v3433 = vadd.f32 %v3411, %v3412
    %3434 = vadd.xlane.f32.xlu0 %v3433
    %v3435 = vpop.xlane.xlu0 %3434
    %v3436 = vadd.f32 %v3413, %v3414
    %3437 = vadd.xlane.f32.xlu0 %v3436
    %v3438 = vpop.xlane.xlu0 %3437
    %v3439 = vadd.f32 %v3415, %v3416
    %3440 = vadd.xlane.f32.xlu0 %v3439
    %v3441 = vpop.xlane.xlu0 %3440
    %v3442 = vadd.f32 %v3417, %v3418
    %3443 = vadd.xlane.f32.xlu0 %v3442
    %v3444 = vpop.xlane.xlu0 %3443
    %v3445 = vrcp.pop 256.0
    %v3446 = vmul.f32 %v3423, %v3445
    %v3447 = vmul.f32 %v3426, %v3445
    %v3448 = vmul.f32 %v3429, %v3445
    %v3449 = vmul.f32 %v3432, %v3445
    %v3450 = vmul.f32 %v3435, %v3445
    %v3451 = vmul.f32 %v3438, %v3445
    %v3452 = vmul.f32 %v3441, %v3445
    %v3453 = vmul.f32 %v3444, %v3445
    %v3454 = vsub.f32 %v3403, %v3446
    %v3455 = vsub.f32 %v3404, %v3446
    %v3456 = vsub.f32 %v3405, %v3447
    %v3457 = vsub.f32 %v3406, %v3447
    %v3458 = vsub.f32 %v3407, %v3448
    %v3459 = vsub.f32 %v3408, %v3448
    %v3460 = vsub.f32 %v3409, %v3449
    %v3461 = vsub.f32 %v3410, %v3449
    %v3462 = vsub.f32 %v3411, %v3450
    %v3463 = vsub.f32 %v3412, %v3450
    %v3464 = vsub.f32 %v3413, %v3451
    %v3465 = vsub.f32 %v3414, %v3451
    %v3466 = vsub.f32 %v3415, %v3452
    %v3467 = vsub.f32 %v3416, %v3452
    %v3468 = vsub.f32 %v3417, %v3453
    %v3469 = vsub.f32 %v3418, %v3453
    %v3470 = vmul.f32 %v3454, %v3454
    %v3471 = vmul.f32 %v3455, %v3455
    %v3472 = vmul.f32 %v3456, %v3456
    %v3473 = vmul.f32 %v3457, %v3457
    %v3474 = vmul.f32 %v3458, %v3458
    %v3475 = vmul.f32 %v3459, %v3459
    %v3476 = vmul.f32 %v3460, %v3460
    %v3477 = vmul.f32 %v3461, %v3461
    %v3478 = vmul.f32 %v3462, %v3462
    %v3479 = vmul.f32 %v3463, %v3463
    %v3480 = vmul.f32 %v3464, %v3464
    %v3481 = vmul.f32 %v3465, %v3465
    %v3482 = vmul.f32 %v3466, %v3466
    %v3483 = vmul.f32 %v3467, %v3467
    %v3484 = vmul.f32 %v3468, %v3468
    %v3485 = vmul.f32 %v3469, %v3469
    %v3486 = vadd.f32 %v3470, %v3471
    %3487 = vadd.xlane.f32.xlu0 %v3486
    %v3488 = vpop.xlane.xlu0 %3487
    %v3489 = vadd.f32 %v3472, %v3473
    %3490 = vadd.xlane.f32.xlu0 %v3489
    %v3491 = vpop.xlane.xlu0 %3490
    %v3492 = vadd.f32 %v3474, %v3475
    %3493 = vadd.xlane.f32.xlu0 %v3492
    %v3494 = vpop.xlane.xlu0 %3493
    %v3495 = vadd.f32 %v3476, %v3477
    %3496 = vadd.xlane.f32.xlu0 %v3495
    %v3497 = vpop.xlane.xlu0 %3496
    %v3498 = vadd.f32 %v3478, %v3479
    %3499 = vadd.xlane.f32.xlu0 %v3498
    %v3500 = vpop.xlane.xlu0 %3499
    %v3501 = vadd.f32 %v3480, %v3481
    %3502 = vadd.xlane.f32.xlu0 %v3501
    %v3503 = vpop.xlane.xlu0 %3502
    %v3504 = vadd.f32 %v3482, %v3483
    %3505 = vadd.xlane.f32.xlu0 %v3504
    %v3506 = vpop.xlane.xlu0 %3505
    %v3507 = vadd.f32 %v3484, %v3485
    %3508 = vadd.xlane.f32.xlu0 %v3507
    %v3509 = vpop.xlane.xlu0 %3508
    %v3510 = vmul.f32 %v3488, %v3445
    %v3511 = vmul.f32 %v3491, %v3445
    %v3512 = vmul.f32 %v3494, %v3445
    %v3513 = vmul.f32 %v3497, %v3445
    %v3514 = vmul.f32 %v3500, %v3445
    %v3515 = vmul.f32 %v3503, %v3445
    %v3516 = vmul.f32 %v3506, %v3445
    %v3517 = vmul.f32 %v3509, %v3445
    %v3518 = vadd.f32 %v3510, 1e-05
    %v3519 = vadd.f32 %v3511, 1e-05
    %v3520 = vadd.f32 %v3512, 1e-05
    %v3521 = vadd.f32 %v3513, 1e-05
    %v3522 = vadd.f32 %v3514, 1e-05
    %v3523 = vadd.f32 %v3515, 1e-05
    %v3524 = vadd.f32 %v3516, 1e-05
    %v3525 = vadd.f32 %v3517, 1e-05
    %v3526 = vrsqrt.pop %v3518
    %v3527 = vrsqrt.pop %v3519
    %v3528 = vrsqrt.pop %v3520
    %v3529 = vrsqrt.pop %v3521
    %v3530 = vrsqrt.pop %v3522
    %v3531 = vrsqrt.pop %v3523
    %v3532 = vrsqrt.pop %v3524
    %v3533 = vrsqrt.pop %v3525
    %v3534 = vmul.f32 %v3454, %v3526
    %v3535 = vmul.f32 %v3455, %v3526
    %v3536 = vmul.f32 %v3456, %v3527
    %v3537 = vmul.f32 %v3457, %v3527
    %v3538 = vmul.f32 %v3458, %v3528
    %v3539 = vmul.f32 %v3459, %v3528
    %v3540 = vmul.f32 %v3460, %v3529
    %v3541 = vmul.f32 %v3461, %v3529
    %v3542 = vmul.f32 %v3462, %v3530
    %v3543 = vmul.f32 %v3463, %v3530
    %v3544 = vmul.f32 %v3464, %v3531
    %v3545 = vmul.f32 %v3465, %v3531
    %v3546 = vmul.f32 %v3466, %v3532
    %v3547 = vmul.f32 %v3467, %v3532
    %v3548 = vmul.f32 %v3468, %v3533
    %v3549 = vmul.f32 %v3469, %v3533
    %v3551 = vlaneseq
    %v3552 = vshrl.u32 %v3551, 7
    %v3553 = vsub.s32 0, %v3552
    %v3554 = vrot.slane %v3419, %v3553
    %v3555 = vlaneseq
    %v3556 = vshrl.u32 %v3555, 7
    %v3557 = vsub.s32 1, %v3556
    %v3558 = vrot.slane %v3419, %v3557
    %v3561 = vmul.f32 %v3534, %v3554
    %v3562 = vmul.f32 %v3535, %v3558
    %v3563 = vmul.f32 %v3536, %v3554
    %v3564 = vmul.f32 %v3537, %v3558
    %v3565 = vmul.f32 %v3538, %v3554
    %v3566 = vmul.f32 %v3539, %v3558
    %v3567 = vmul.f32 %v3540, %v3554
    %v3568 = vmul.f32 %v3541, %v3558
    %v3569 = vmul.f32 %v3542, %v3554
    %v3570 = vmul.f32 %v3543, %v3558
    %v3571 = vmul.f32 %v3544, %v3554
    %v3572 = vmul.f32 %v3545, %v3558
    %v3573 = vmul.f32 %v3546, %v3554
    %v3574 = vmul.f32 %v3547, %v3558
    %v3575 = vmul.f32 %v3548, %v3554
    %v3576 = vmul.f32 %v3549, %v3558
    %v3578 = vlaneseq
    %v3579 = vshrl.u32 %v3578, 7
    %v3580 = vsub.s32 0, %v3579
    %v3581 = vrot.slane %v3420, %v3580
    %v3582 = vlaneseq
    %v3583 = vshrl.u32 %v3582, 7
    %v3584 = vsub.s32 1, %v3583
    %v3585 = vrot.slane %v3420, %v3584
    %v3588 = vadd.f32 %v3561, %v3581
    %v3589 = vadd.f32 %v3562, %v3585
    %v3590 = vadd.f32 %v3563, %v3581
    %v3591 = vadd.f32 %v3564, %v3585
    %v3592 = vadd.f32 %v3565, %v3581
    %v3593 = vadd.f32 %v3566, %v3585
    %v3594 = vadd.f32 %v3567, %v3581
    %v3595 = vadd.f32 %v3568, %v3585
    %v3596 = vadd.f32 %v3569, %v3581
    %v3597 = vadd.f32 %v3570, %v3585
    %v3598 = vadd.f32 %v3571, %v3581
    %v3599 = vadd.f32 %v3572, %v3585
    %v3600 = vadd.f32 %v3573, %v3581
    %v3601 = vadd.f32 %v3574, %v3585
    %v3602 = vadd.f32 %v3575, %v3581
    %v3603 = vadd.f32 %v3576, %v3585
    %v3604 = vpack.c.bf16 %v3590, %v3588
    %v3605 = vpack.c.bf16 %v3591, %v3589
    %v3606 = vpack.c.bf16 %v3594, %v3592
    %v3607 = vpack.c.bf16 %v3595, %v3593
    %v3608 = vpack.c.bf16 %v3598, %v3596
    %v3609 = vpack.c.bf16 %v3599, %v3597
    %v3610 = vpack.c.bf16 %v3602, %v3600
    %v3611 = vpack.c.bf16 %v3603, %v3601
    %v3612 = vld [vmem:[#allocation16] sm:$0xff]
    %v3613 = vld [vmem:[#allocation16 + $0x8] sm:$0xff]
    %v3614 = vld [vmem:[#allocation16 + $0x10] sm:$0xff]
    %v3615 = vld [vmem:[#allocation16 + $0x18] sm:$0xff]
    %v3616 = vld [vmem:[#allocation16 + $0x20] sm:$0xff]
    %v3617 = vld [vmem:[#allocation16 + $0x28] sm:$0xff]
    %v3618 = vld [vmem:[#allocation16 + $0x30] sm:$0xff]
    %v3619 = vld [vmem:[#allocation16 + $0x38] sm:$0xff]
    %v3620 = vld [vmem:[#allocation16 + $0x40] sm:$0xff]
    %v3621 = vld [vmem:[#allocation16 + $0x48] sm:$0xff]
    %v3622 = vld [vmem:[#allocation16 + $0x50] sm:$0xff]
    %v3623 = vld [vmem:[#allocation16 + $0x58] sm:$0xff]
    %v3624 = vld [vmem:[#allocation16 + $0x60] sm:$0xff]
    %v3625 = vld [vmem:[#allocation16 + $0x68] sm:$0xff]
    %v3626 = vld [vmem:[#allocation16 + $0x70] sm:$0xff]
    %v3627 = vld [vmem:[#allocation16 + $0x78] sm:$0xff]
    %v3628 = vld [vmem:[#allocation16 + $0x80] sm:$0xff]
    %v3629 = vld [vmem:[#allocation16 + $0x88] sm:$0xff]
    %v3630 = vld [vmem:[#allocation16 + $0x90] sm:$0xff]
    %v3631 = vld [vmem:[#allocation16 + $0x98] sm:$0xff]
    %v3632 = vld [vmem:[#allocation16 + $0xa0] sm:$0xff]
    %v3633 = vld [vmem:[#allocation16 + $0xa8] sm:$0xff]
    %v3634 = vld [vmem:[#allocation16 + $0xb0] sm:$0xff]
    %v3635 = vld [vmem:[#allocation16 + $0xb8] sm:$0xff]
    %v3636 = vld [vmem:[#allocation16 + $0xc0] sm:$0xff]
    %v3637 = vld [vmem:[#allocation16 + $0xc8] sm:$0xff]
    %v3638 = vld [vmem:[#allocation16 + $0xd0] sm:$0xff]
    %v3639 = vld [vmem:[#allocation16 + $0xd8] sm:$0xff]
    %v3640 = vld [vmem:[#allocation16 + $0xe0] sm:$0xff]
    %v3641 = vld [vmem:[#allocation16 + $0xe8] sm:$0xff]
    %v3642 = vld [vmem:[#allocation16 + $0xf0] sm:$0xff]
    %v3643 = vld [vmem:[#allocation16 + $0xf8] sm:$0xff]
    %v3644 = vld [vmem:[#allocation16 + $0x100] sm:$0xff]
    %v3645 = vld [vmem:[#allocation16 + $0x108] sm:$0xff]
    %v3646 = vld [vmem:[#allocation16 + $0x110] sm:$0xff]
    %v3647 = vld [vmem:[#allocation16 + $0x118] sm:$0xff]
    %v3648 = vld [vmem:[#allocation16 + $0x120] sm:$0xff]
    %v3649 = vld [vmem:[#allocation16 + $0x128] sm:$0xff]
    %v3650 = vld [vmem:[#allocation16 + $0x130] sm:$0xff]
    %v3651 = vld [vmem:[#allocation16 + $0x138] sm:$0xff]
    %v3652 = vld [vmem:[#allocation16 + $0x140] sm:$0xff]
    %v3653 = vld [vmem:[#allocation16 + $0x148] sm:$0xff]
    %v3654 = vld [vmem:[#allocation16 + $0x150] sm:$0xff]
    %v3655 = vld [vmem:[#allocation16 + $0x158] sm:$0xff]
    %v3656 = vld [vmem:[#allocation16 + $0x160] sm:$0xff]
    %v3657 = vld [vmem:[#allocation16 + $0x168] sm:$0xff]
    %v3658 = vld [vmem:[#allocation16 + $0x170] sm:$0xff]
    %v3659 = vld [vmem:[#allocation16 + $0x178] sm:$0xff]
    %v3660 = vld [vmem:[#allocation16 + $0x180] sm:$0xff]
    %v3661 = vld [vmem:[#allocation16 + $0x188] sm:$0xff]
    %v3662 = vld [vmem:[#allocation16 + $0x190] sm:$0xff]
    %v3663 = vld [vmem:[#allocation16 + $0x198] sm:$0xff]
    %v3664 = vld [vmem:[#allocation16 + $0x1a0] sm:$0xff]
    %v3665 = vld [vmem:[#allocation16 + $0x1a8] sm:$0xff]
    %v3666 = vld [vmem:[#allocation16 + $0x1b0] sm:$0xff]
    %v3667 = vld [vmem:[#allocation16 + $0x1b8] sm:$0xff]
    %v3668 = vld [vmem:[#allocation16 + $0x1c0] sm:$0xff]
    %v3669 = vld [vmem:[#allocation16 + $0x1c8] sm:$0xff]
    %v3670 = vld [vmem:[#allocation16 + $0x1d0] sm:$0xff]
    %v3671 = vld [vmem:[#allocation16 + $0x1d8] sm:$0xff]
    %v3672 = vld [vmem:[#allocation16 + $0x1e0] sm:$0xff]
    %v3673 = vld [vmem:[#allocation16 + $0x1e8] sm:$0xff]
    %v3674 = vld [vmem:[#allocation16 + $0x1f0] sm:$0xff]
    %v3675 = vld [vmem:[#allocation16 + $0x1f8] sm:$0xff]
    %v3676 = vld [vmem:[#allocation17] sm:$0xf]
    %v3678 = vlaneseq
    %v3679 = vshrl.u32 %v3678, 7
    %v3680 = vsub.s32 0, %v3679
    %v3681 = vrot.slane %v3676, %v3680
    %v3682 = vlaneseq
    %v3683 = vshrl.u32 %v3682, 7
    %v3684 = vsub.s32 1, %v3683
    %v3685 = vrot.slane %v3676, %v3684
    %v3686 = vlaneseq
    %v3687 = vshrl.u32 %v3686, 7
    %v3688 = vsub.s32 2, %v3687
    %v3689 = vrot.slane %v3676, %v3688
    %v3690 = vlaneseq
    %v3691 = vshrl.u32 %v3690, 7
    %v3692 = vsub.s32 3, %v3691
    %v3693 = vrot.slane %v3676, %v3692
    %v3762 = vunpack.c.l.b16 %v3612
    %v3763 = vunpack.c.h.b16 %v3612
    %v3764 = vunpack.c.l.b16 %v3613
    %v3765 = vunpack.c.h.b16 %v3613
    %v3766 = vunpack.c.l.b16 %v3614
    %v3767 = vunpack.c.h.b16 %v3614
    %v3768 = vunpack.c.l.b16 %v3615
    %v3769 = vunpack.c.h.b16 %v3615
    %v3770 = vunpack.c.l.b16 %v3616
    %v3771 = vunpack.c.h.b16 %v3616
    %v3772 = vunpack.c.l.b16 %v3617
    %v3773 = vunpack.c.h.b16 %v3617
    %v3774 = vunpack.c.l.b16 %v3618
    %v3775 = vunpack.c.h.b16 %v3618
    %v3776 = vunpack.c.l.b16 %v3619
    %v3777 = vunpack.c.h.b16 %v3619
    %v3778 = vunpack.c.l.b16 %v3620
    %v3779 = vunpack.c.h.b16 %v3620
    %v3780 = vunpack.c.l.b16 %v3621
    %v3781 = vunpack.c.h.b16 %v3621
    %v3782 = vunpack.c.l.b16 %v3622
    %v3783 = vunpack.c.h.b16 %v3622
    %v3784 = vunpack.c.l.b16 %v3623
    %v3785 = vunpack.c.h.b16 %v3623
    %v3786 = vunpack.c.l.b16 %v3624
    %v3787 = vunpack.c.h.b16 %v3624
    %v3788 = vunpack.c.l.b16 %v3625
    %v3789 = vunpack.c.h.b16 %v3625
    %v3790 = vunpack.c.l.b16 %v3626
    %v3791 = vunpack.c.h.b16 %v3626
    %v3792 = vunpack.c.l.b16 %v3627
    %v3793 = vunpack.c.h.b16 %v3627
    %v3794 = vunpack.c.l.b16 %v3628
    %v3795 = vunpack.c.h.b16 %v3628
    %v3796 = vunpack.c.l.b16 %v3629
    %v3797 = vunpack.c.h.b16 %v3629
    %v3798 = vunpack.c.l.b16 %v3630
    %v3799 = vunpack.c.h.b16 %v3630
    %v3800 = vunpack.c.l.b16 %v3631
    %v3801 = vunpack.c.h.b16 %v3631
    %v3802 = vunpack.c.l.b16 %v3632
    %v3803 = vunpack.c.h.b16 %v3632
    %v3804 = vunpack.c.l.b16 %v3633
    %v3805 = vunpack.c.h.b16 %v3633
    %v3806 = vunpack.c.l.b16 %v3634
    %v3807 = vunpack.c.h.b16 %v3634
    %v3808 = vunpack.c.l.b16 %v3635
    %v3809 = vunpack.c.h.b16 %v3635
    %v3810 = vunpack.c.l.b16 %v3636
    %v3811 = vunpack.c.h.b16 %v3636
    %v3812 = vunpack.c.l.b16 %v3637
    %v3813 = vunpack.c.h.b16 %v3637
    %v3814 = vunpack.c.l.b16 %v3638
    %v3815 = vunpack.c.h.b16 %v3638
    %v3816 = vunpack.c.l.b16 %v3639
    %v3817 = vunpack.c.h.b16 %v3639
    %v3818 = vunpack.c.l.b16 %v3640
    %v3819 = vunpack.c.h.b16 %v3640
    %v3820 = vunpack.c.l.b16 %v3641
    %v3821 = vunpack.c.h.b16 %v3641
    %v3822 = vunpack.c.l.b16 %v3642
    %v3823 = vunpack.c.h.b16 %v3642
    %v3824 = vunpack.c.l.b16 %v3643
    %v3825 = vunpack.c.h.b16 %v3643
    %v3826 = vunpack.c.l.b16 %v3644
    %v3827 = vunpack.c.h.b16 %v3644
    %v3828 = vunpack.c.l.b16 %v3645
    %v3829 = vunpack.c.h.b16 %v3645
    %v3830 = vunpack.c.l.b16 %v3646
    %v3831 = vunpack.c.h.b16 %v3646
    %v3832 = vunpack.c.l.b16 %v3647
    %v3833 = vunpack.c.h.b16 %v3647
    %v3834 = vunpack.c.l.b16 %v3648
    %v3835 = vunpack.c.h.b16 %v3648
    %v3836 = vunpack.c.l.b16 %v3649
    %v3837 = vunpack.c.h.b16 %v3649
    %v3838 = vunpack.c.l.b16 %v3650
    %v3839 = vunpack.c.h.b16 %v3650
    %v3840 = vunpack.c.l.b16 %v3651
    %v3841 = vunpack.c.h.b16 %v3651
    %v3842 = vunpack.c.l.b16 %v3652
    %v3843 = vunpack.c.h.b16 %v3652
    %v3844 = vunpack.c.l.b16 %v3653
    %v3845 = vunpack.c.h.b16 %v3653
    %v3846 = vunpack.c.l.b16 %v3654
    %v3847 = vunpack.c.h.b16 %v3654
    %v3848 = vunpack.c.l.b16 %v3655
    %v3849 = vunpack.c.h.b16 %v3655
    %v3850 = vunpack.c.l.b16 %v3656
    %v3851 = vunpack.c.h.b16 %v3656
    %v3852 = vunpack.c.l.b16 %v3657
    %v3853 = vunpack.c.h.b16 %v3657
    %v3854 = vunpack.c.l.b16 %v3658
    %v3855 = vunpack.c.h.b16 %v3658
    %v3856 = vunpack.c.l.b16 %v3659
    %v3857 = vunpack.c.h.b16 %v3659
    %v3858 = vunpack.c.l.b16 %v3660
    %v3859 = vunpack.c.h.b16 %v3660
    %v3860 = vunpack.c.l.b16 %v3661
    %v3861 = vunpack.c.h.b16 %v3661
    %v3862 = vunpack.c.l.b16 %v3662
    %v3863 = vunpack.c.h.b16 %v3662
    %v3864 = vunpack.c.l.b16 %v3663
    %v3865 = vunpack.c.h.b16 %v3663
    %v3866 = vunpack.c.l.b16 %v3664
    %v3867 = vunpack.c.h.b16 %v3664
    %v3868 = vunpack.c.l.b16 %v3665
    %v3869 = vunpack.c.h.b16 %v3665
    %v3870 = vunpack.c.l.b16 %v3666
    %v3871 = vunpack.c.h.b16 %v3666
    %v3872 = vunpack.c.l.b16 %v3667
    %v3873 = vunpack.c.h.b16 %v3667
    %v3874 = vunpack.c.l.b16 %v3668
    %v3875 = vunpack.c.h.b16 %v3668
    %v3876 = vunpack.c.l.b16 %v3669
    %v3877 = vunpack.c.h.b16 %v3669
    %v3878 = vunpack.c.l.b16 %v3670
    %v3879 = vunpack.c.h.b16 %v3670
    %v3880 = vunpack.c.l.b16 %v3671
    %v3881 = vunpack.c.h.b16 %v3671
    %v3882 = vunpack.c.l.b16 %v3672
    %v3883 = vunpack.c.h.b16 %v3672
    %v3884 = vunpack.c.l.b16 %v3673
    %v3885 = vunpack.c.h.b16 %v3673
    %v3886 = vunpack.c.l.b16 %v3674
    %v3887 = vunpack.c.h.b16 %v3674
    %v3888 = vunpack.c.l.b16 %v3675
    %v3889 = vunpack.c.h.b16 %v3675
    %v3890 = vpack.c.b16 %v3766, %v3762
    %v3891 = vpack.c.b16 %v3767, %v3763
    %v3892 = vpack.c.b16 %v3768, %v3764
    %v3893 = vpack.c.b16 %v3769, %v3765
    %v3894 = vpack.c.b16 %v3774, %v3770
    %v3895 = vpack.c.b16 %v3775, %v3771
    %v3896 = vpack.c.b16 %v3776, %v3772
    %v3897 = vpack.c.b16 %v3777, %v3773
    %v3898 = vpack.c.b16 %v3782, %v3778
    %v3899 = vpack.c.b16 %v3783, %v3779
    %v3900 = vpack.c.b16 %v3784, %v3780
    %v3901 = vpack.c.b16 %v3785, %v3781
    %v3902 = vpack.c.b16 %v3790, %v3786
    %v3903 = vpack.c.b16 %v3791, %v3787
    %v3904 = vpack.c.b16 %v3792, %v3788
    %v3905 = vpack.c.b16 %v3793, %v3789
    %v3906 = vpack.c.b16 %v3798, %v3794
    %v3907 = vpack.c.b16 %v3799, %v3795
    %v3908 = vpack.c.b16 %v3800, %v3796
    %v3909 = vpack.c.b16 %v3801, %v3797
    %v3910 = vpack.c.b16 %v3806, %v3802
    %v3911 = vpack.c.b16 %v3807, %v3803
    %v3912 = vpack.c.b16 %v3808, %v3804
    %v3913 = vpack.c.b16 %v3809, %v3805
    %v3914 = vpack.c.b16 %v3814, %v3810
    %v3915 = vpack.c.b16 %v3815, %v3811
    %v3916 = vpack.c.b16 %v3816, %v3812
    %v3917 = vpack.c.b16 %v3817, %v3813
    %v3918 = vpack.c.b16 %v3822, %v3818
    %v3919 = vpack.c.b16 %v3823, %v3819
    %v3920 = vpack.c.b16 %v3824, %v3820
    %v3921 = vpack.c.b16 %v3825, %v3821
    %v3922 = vpack.c.b16 %v3830, %v3826
    %v3923 = vpack.c.b16 %v3831, %v3827
    %v3924 = vpack.c.b16 %v3832, %v3828
    %v3925 = vpack.c.b16 %v3833, %v3829
    %v3926 = vpack.c.b16 %v3838, %v3834
    %v3927 = vpack.c.b16 %v3839, %v3835
    %v3928 = vpack.c.b16 %v3840, %v3836
    %v3929 = vpack.c.b16 %v3841, %v3837
    %v3930 = vpack.c.b16 %v3846, %v3842
    %v3931 = vpack.c.b16 %v3847, %v3843
    %v3932 = vpack.c.b16 %v3848, %v3844
    %v3933 = vpack.c.b16 %v3849, %v3845
    %v3934 = vpack.c.b16 %v3854, %v3850
    %v3935 = vpack.c.b16 %v3855, %v3851
    %v3936 = vpack.c.b16 %v3856, %v3852
    %v3937 = vpack.c.b16 %v3857, %v3853
    %v3938 = vpack.c.b16 %v3862, %v3858
    %v3939 = vpack.c.b16 %v3863, %v3859
    %v3940 = vpack.c.b16 %v3864, %v3860
    %v3941 = vpack.c.b16 %v3865, %v3861
    %v3942 = vpack.c.b16 %v3870, %v3866
    %v3943 = vpack.c.b16 %v3871, %v3867
    %v3944 = vpack.c.b16 %v3872, %v3868
    %v3945 = vpack.c.b16 %v3873, %v3869
    %v3946 = vpack.c.b16 %v3878, %v3874
    %v3947 = vpack.c.b16 %v3879, %v3875
    %v3948 = vpack.c.b16 %v3880, %v3876
    %v3949 = vpack.c.b16 %v3881, %v3877
    %v3950 = vpack.c.b16 %v3886, %v3882
    %v3951 = vpack.c.b16 %v3887, %v3883
    %v3952 = vpack.c.b16 %v3888, %v3884
    %v3953 = vpack.c.b16 %v3889, %v3885
    %4018 = vmatprep.subr.bf16.mxu0 %v3891
    %4019 = vmatpush1.bf16.msra.mxu0 %v3890
    %4020 = vmatprep.subr.bf16.mxu0 %v3895
    %4021 = vmatpush1.bf16.msra.mxu0 %v3894
    %4022 = vmatprep.subr.bf16.mxu0 %v3899
    %4023 = vmatpush1.bf16.msra.mxu0 %v3898
    %4024 = vmatprep.subr.bf16.mxu0 %v3903
    %4025 = vmatpush1.bf16.msra.mxu0 %v3902
    %4026 = vmatprep.subr.bf16.mxu0 %v3907
    %4027 = vmatpush1.bf16.msra.mxu0 %v3906
    %4028 = vmatprep.subr.bf16.mxu0 %v3911
    %4029 = vmatpush1.bf16.msra.mxu0 %v3910
    %4030 = vmatprep.subr.bf16.mxu0 %v3915
    %4031 = vmatpush1.bf16.msra.mxu0 %v3914
    %4032 = vmatprep.subr.bf16.mxu0 %v3919
    %4033 = vmatpush1.bf16.msra.mxu0 %v3918
    %4034 = vmatprep.subr.bf16.mxu0 %v3923
    %4035 = vmatpush1.bf16.msra.mxu0 %v3922
    %4036 = vmatprep.subr.bf16.mxu0 %v3927
    %4037 = vmatpush1.bf16.msra.mxu0 %v3926
    %4038 = vmatprep.subr.bf16.mxu0 %v3931
    %4039 = vmatpush1.bf16.msra.mxu0 %v3930
    %4040 = vmatprep.subr.bf16.mxu0 %v3935
    %4041 = vmatpush1.bf16.msra.mxu0 %v3934
    %4042 = vmatprep.subr.bf16.mxu0 %v3939
    %4043 = vmatpush1.bf16.msra.mxu0 %v3938
    %4044 = vmatprep.subr.bf16.mxu0 %v3943
    %4045 = vmatpush1.bf16.msra.mxu0 %v3942
    %4046 = vmatprep.subr.bf16.mxu0 %v3947
    %4047 = vmatpush1.bf16.msra.mxu0 %v3946
    %4048 = vmatprep.subr.bf16.mxu0 %v3951
    %4049 = vmatpush1.bf16.msra.mxu0 %v3950
    %4050 = vmatprep.mubr.bf16.mxu0 %v3605
    %4051 = vmatmul.mubr.bf16.gmra.mrb[0].mxu0 %v3604
    %v4052 = vpop.f32.mrb[0].mxu0
    %v4053 = vadd.f32 %v3681, %v4052
    %v4054 = vpop.f32.mrb[0].mxu0
    %v4055 = vadd.f32 %v3685, %v4054
    %v4056 = vpop.f32.mrb[0].mxu0
    %v4057 = vadd.f32 %v3681, %v4056
    %v4058 = vpop.f32.mrb[0].mxu0
    %v4059 = vadd.f32 %v3685, %v4058
    %4060 = vmatprep.mubr.bf16.mxu0 %v3607
    %4061 = vmatmul.mubr.bf16.gmra.mrb[0].mxu0 %v3606
    %v4062 = vpop.f32.mrb[0].mxu0
    %v4063 = vadd.f32 %v3681, %v4062
    %v4064 = vpop.f32.mrb[0].mxu0
    %v4065 = vadd.f32 %v3685, %v4064
    %v4066 = vpop.f32.mrb[0].mxu0
    %v4067 = vadd.f32 %v3681, %v4066
    %v4068 = vpop.f32.mrb[0].mxu0
    %v4069 = vadd.f32 %v3685, %v4068
    %4070 = vmatprep.mubr.bf16.mxu0 %v3609
    %4071 = vmatmul.mubr.bf16.gmra.mrb[0].mxu0 %v3608
    %v4072 = vpop.f32.mrb[0].mxu0
    %v4073 = vadd.f32 %v3681, %v4072
    %v4074 = vpop.f32.mrb[0].mxu0
    %v4075 = vadd.f32 %v3685, %v4074
    %v4076 = vpop.f32.mrb[0].mxu0
    %v4077 = vadd.f32 %v3681, %v4076
    %v4078 = vpop.f32.mrb[0].mxu0
    %v4079 = vadd.f32 %v3685, %v4078
    %4080 = vmatprep.mubr.bf16.mxu0 %v3611
    %4081 = vmatmul.mubr.bf16.gmra.mrb[0].mxu0 %v3610
    %v4082 = vpop.f32.mrb[0].mxu0
    %v4083 = vadd.f32 %v3681, %v4082
    %v4084 = vpop.f32.mrb[0].mxu0
    %v4085 = vadd.f32 %v3685, %v4084
    %v4086 = vpop.f32.mrb[0].mxu0
    %v4087 = vadd.f32 %v3681, %v4086
    %v4088 = vpop.f32.mrb[0].mxu0
    %v4089 = vadd.f32 %v3685, %v4088
    %4090 = vdwg.mxu0
    %4091 = vmatprep.subr.bf16.mxu0 %v3893
    %4092 = vmatpush1.bf16.msra.mxu0 %v3892
    %4093 = vmatprep.subr.bf16.mxu0 %v3897
    %4094 = vmatpush1.bf16.msra.mxu0 %v3896
    %4095 = vmatprep.subr.bf16.mxu0 %v3901
    %4096 = vmatpush1.bf16.msra.mxu0 %v3900
    %4097 = vmatprep.subr.bf16.mxu0 %v3905
    %4098 = vmatpush1.bf16.msra.mxu0 %v3904
    %4099 = vmatprep.subr.bf16.mxu0 %v3909
    %4100 = vmatpush1.bf16.msra.mxu0 %v3908
    %4101 = vmatprep.subr.bf16.mxu0 %v3913
    %4102 = vmatpush1.bf16.msra.mxu0 %v3912
    %4103 = vmatprep.subr.bf16.mxu0 %v3917
    %4104 = vmatpush1.bf16.msra.mxu0 %v3916
    %4105 = vmatprep.subr.bf16.mxu0 %v3921
    %4106 = vmatpush1.bf16.msra.mxu0 %v3920
    %4107 = vmatprep.subr.bf16.mxu0 %v3925
    %4108 = vmatpush1.bf16.msra.mxu0 %v3924
    %4109 = vmatprep.subr.bf16.mxu0 %v3929
    %4110 = vmatpush1.bf16.msra.mxu0 %v3928
    %4111 = vmatprep.subr.bf16.mxu0 %v3933
    %4112 = vmatpush1.bf16.msra.mxu0 %v3932
    %4113 = vmatprep.subr.bf16.mxu0 %v3937
    %4114 = vmatpush1.bf16.msra.mxu0 %v3936
    %4115 = vmatprep.subr.bf16.mxu0 %v3941
    %4116 = vmatpush1.bf16.msra.mxu0 %v3940
    %4117 = vmatprep.subr.bf16.mxu0 %v3945
    %4118 = vmatpush1.bf16.msra.mxu0 %v3944
    %4119 = vmatprep.subr.bf16.mxu0 %v3949
    %4120 = vmatpush1.bf16.msra.mxu0 %v3948
    %4121 = vmatprep.subr.bf16.mxu0 %v3953
    %4122 = vmatpush1.bf16.msra.mxu0 %v3952
    %4123 = vmatprep.mubr.bf16.mxu0 %v3605
    %4124 = vmatmul.mubr.bf16.gmra.mrb[0].mxu0 %v3604
    %v4125 = vpop.f32.mrb[0].mxu0
    %v4126 = vadd.f32 %v3689, %v4125
    %v4127 = vpop.f32.mrb[0].mxu0
    %v4128 = vadd.f32 %v3693, %v4127
    %v4129 = vpop.f32.mrb[0].mxu0
    %v4130 = vadd.f32 %v3689, %v4129
    %v4131 = vpop.f32.mrb[0].mxu0
    %v4132 = vadd.f32 %v3693, %v4131
    %4133 = vmatprep.mubr.bf16.mxu0 %v3607
    %4134 = vmatmul.mubr.bf16.gmra.mrb[0].mxu0 %v3606
    %v4135 = vpop.f32.mrb[0].mxu0
    %v4136 = vadd.f32 %v3689, %v4135
    %v4137 = vpop.f32.mrb[0].mxu0
    %v4138 = vadd.f32 %v3693, %v4137
    %v4139 = vpop.f32.mrb[0].mxu0
    %v4140 = vadd.f32 %v3689, %v4139
    %v4141 = vpop.f32.mrb[0].mxu0
    %v4142 = vadd.f32 %v3693, %v4141
    %4143 = vmatprep.mubr.bf16.mxu0 %v3609
    %4144 = vmatmul.mubr.bf16.gmra.mrb[0].mxu0 %v3608
    %v4145 = vpop.f32.mrb[0].mxu0
    %v4146 = vadd.f32 %v3689, %v4145
    %v4147 = vpop.f32.mrb[0].mxu0
    %v4148 = vadd.f32 %v3693, %v4147
    %v4149 = vpop.f32.mrb[0].mxu0
    %v4150 = vadd.f32 %v3689, %v4149
    %v4151 = vpop.f32.mrb[0].mxu0
    %v4152 = vadd.f32 %v3693, %v4151
    %4153 = vmatprep.mubr.bf16.mxu0 %v3611
    %4154 = vmatmul.mubr.bf16.gmra.mrb[0].mxu0 %v3610
    %v4155 = vpop.f32.mrb[0].mxu0
    %v4156 = vadd.f32 %v3689, %v4155
    %v4157 = vpop.f32.mrb[0].mxu0
    %v4158 = vadd.f32 %v3693, %v4157
    %v4159 = vpop.f32.mrb[0].mxu0
    %v4160 = vadd.f32 %v3689, %v4159
    %v4161 = vpop.f32.mrb[0].mxu0
    %v4162 = vadd.f32 %v3693, %v4161
    %4163 = vdwg.mxu0
    %v4164 = vmax.f32 %v4053, 0.0
    %v4165 = vmax.f32 %v4055, 0.0
    %v4166 = vmax.f32 %v4126, 0.0
    %v4167 = vmax.f32 %v4128, 0.0
    %v4168 = vmax.f32 %v4057, 0.0
    %v4169 = vmax.f32 %v4059, 0.0
    %v4170 = vmax.f32 %v4130, 0.0
    %v4171 = vmax.f32 %v4132, 0.0
    %v4172 = vmax.f32 %v4063, 0.0
    %v4173 = vmax.f32 %v4065, 0.0
    %v4174 = vmax.f32 %v4136, 0.0
    %v4175 = vmax.f32 %v4138, 0.0
    %v4176 = vmax.f32 %v4067, 0.0
    %v4177 = vmax.f32 %v4069, 0.0
    %v4178 = vmax.f32 %v4140, 0.0
    %v4179 = vmax.f32 %v4142, 0.0
    %v4180 = vmax.f32 %v4073, 0.0
    %v4181 = vmax.f32 %v4075, 0.0
    %v4182 = vmax.f32 %v4146, 0.0
    %v4183 = vmax.f32 %v4148, 0.0
    %v4184 = vmax.f32 %v4077, 0.0
    %v4185 = vmax.f32 %v4079, 0.0
    %v4186 = vmax.f32 %v4150, 0.0
    %v4187 = vmax.f32 %v4152, 0.0
    %v4188 = vmax.f32 %v4083, 0.0
    %v4189 = vmax.f32 %v4085, 0.0
    %v4190 = vmax.f32 %v4156, 0.0
    %v4191 = vmax.f32 %v4158, 0.0
    %v4192 = vmax.f32 %v4087, 0.0
    %v4193 = vmax.f32 %v4089, 0.0
    %v4194 = vmax.f32 %v4160, 0.0
    %v4195 = vmax.f32 %v4162, 0.0
    %v4196 = vpack.c.bf16 %v4168, %v4164
    %v4197 = vpack.c.bf16 %v4169, %v4165
    %v4198 = vpack.c.bf16 %v4170, %v4166
    %v4199 = vpack.c.bf16 %v4171, %v4167
    %v4200 = vpack.c.bf16 %v4176, %v4172
    %v4201 = vpack.c.bf16 %v4177, %v4173
    %v4202 = vpack.c.bf16 %v4178, %v4174
    %v4203 = vpack.c.bf16 %v4179, %v4175
    %v4204 = vpack.c.bf16 %v4184, %v4180
    %v4205 = vpack.c.bf16 %v4185, %v4181
    %v4206 = vpack.c.bf16 %v4186, %v4182
    %v4207 = vpack.c.bf16 %v4187, %v4183
    %v4208 = vpack.c.bf16 %v4192, %v4188
    %v4209 = vpack.c.bf16 %v4193, %v4189
    %v4210 = vpack.c.bf16 %v4194, %v4190
    %v4211 = vpack.c.bf16 %v4195, %v4191
    %v4212 = vld [vmem:[#allocation19] sm:$0xff]
    %v4213 = vld [vmem:[#allocation19 + $0x8] sm:$0xff]
    %v4214 = vld [vmem:[#allocation19 + $0x10] sm:$0xff]
    %v4215 = vld [vmem:[#allocation19 + $0x18] sm:$0xff]
    %v4216 = vld [vmem:[#allocation19 + $0x20] sm:$0xff]
    %v4217 = vld [vmem:[#allocation19 + $0x28] sm:$0xff]
    %v4218 = vld [vmem:[#allocation19 + $0x30] sm:$0xff]
    %v4219 = vld [vmem:[#allocation19 + $0x38] sm:$0xff]
    %v4220 = vld [vmem:[#allocation19 + $0x40] sm:$0xff]
    %v4221 = vld [vmem:[#allocation19 + $0x48] sm:$0xff]
    %v4222 = vld [vmem:[#allocation19 + $0x50] sm:$0xff]
    %v4223 = vld [vmem:[#allocation19 + $0x58] sm:$0xff]
    %v4224 = vld [vmem:[#allocation19 + $0x60] sm:$0xff]
    %v4225 = vld [vmem:[#allocation19 + $0x68] sm:$0xff]
    %v4226 = vld [vmem:[#allocation19 + $0x70] sm:$0xff]
    %v4227 = vld [vmem:[#allocation19 + $0x78] sm:$0xff]
    %v4228 = vld [vmem:[#allocation19 + $0x80] sm:$0xff]
    %v4229 = vld [vmem:[#allocation19 + $0x88] sm:$0xff]
    %v4230 = vld [vmem:[#allocation19 + $0x90] sm:$0xff]
    %v4231 = vld [vmem:[#allocation19 + $0x98] sm:$0xff]
    %v4232 = vld [vmem:[#allocation19 + $0xa0] sm:$0xff]
    %v4233 = vld [vmem:[#allocation19 + $0xa8] sm:$0xff]
    %v4234 = vld [vmem:[#allocation19 + $0xb0] sm:$0xff]
    %v4235 = vld [vmem:[#allocation19 + $0xb8] sm:$0xff]
    %v4236 = vld [vmem:[#allocation19 + $0xc0] sm:$0xff]
    %v4237 = vld [vmem:[#allocation19 + $0xc8] sm:$0xff]
    %v4238 = vld [vmem:[#allocation19 + $0xd0] sm:$0xff]
    %v4239 = vld [vmem:[#allocation19 + $0xd8] sm:$0xff]
    %v4240 = vld [vmem:[#allocation19 + $0xe0] sm:$0xff]
    %v4241 = vld [vmem:[#allocation19 + $0xe8] sm:$0xff]
    %v4242 = vld [vmem:[#allocation19 + $0xf0] sm:$0xff]
    %v4243 = vld [vmem:[#allocation19 + $0xf8] sm:$0xff]
    %v4244 = vld [vmem:[#allocation19 + $0x100] sm:$0xff]
    %v4245 = vld [vmem:[#allocation19 + $0x108] sm:$0xff]
    %v4246 = vld [vmem:[#allocation19 + $0x110] sm:$0xff]
    %v4247 = vld [vmem:[#allocation19 + $0x118] sm:$0xff]
    %v4248 = vld [vmem:[#allocation19 + $0x120] sm:$0xff]
    %v4249 = vld [vmem:[#allocation19 + $0x128] sm:$0xff]
    %v4250 = vld [vmem:[#allocation19 + $0x130] sm:$0xff]
    %v4251 = vld [vmem:[#allocation19 + $0x138] sm:$0xff]
    %v4252 = vld [vmem:[#allocation19 + $0x140] sm:$0xff]
    %v4253 = vld [vmem:[#allocation19 + $0x148] sm:$0xff]
    %v4254 = vld [vmem:[#allocation19 + $0x150] sm:$0xff]
    %v4255 = vld [vmem:[#allocation19 + $0x158] sm:$0xff]
    %v4256 = vld [vmem:[#allocation19 + $0x160] sm:$0xff]
    %v4257 = vld [vmem:[#allocation19 + $0x168] sm:$0xff]
    %v4258 = vld [vmem:[#allocation19 + $0x170] sm:$0xff]
    %v4259 = vld [vmem:[#allocation19 + $0x178] sm:$0xff]
    %v4260 = vld [vmem:[#allocation19 + $0x180] sm:$0xff]
    %v4261 = vld [vmem:[#allocation19 + $0x188] sm:$0xff]
    %v4262 = vld [vmem:[#allocation19 + $0x190] sm:$0xff]
    %v4263 = vld [vmem:[#allocation19 + $0x198] sm:$0xff]
    %v4264 = vld [vmem:[#allocation19 + $0x1a0] sm:$0xff]
    %v4265 = vld [vmem:[#allocation19 + $0x1a8] sm:$0xff]
    %v4266 = vld [vmem:[#allocation19 + $0x1b0] sm:$0xff]
    %v4267 = vld [vmem:[#allocation19 + $0x1b8] sm:$0xff]
    %v4268 = vld [vmem:[#allocation19 + $0x1c0] sm:$0xff]
    %v4269 = vld [vmem:[#allocation19 + $0x1c8] sm:$0xff]
    %v4270 = vld [vmem:[#allocation19 + $0x1d0] sm:$0xff]
    %v4271 = vld [vmem:[#allocation19 + $0x1d8] sm:$0xff]
    %v4272 = vld [vmem:[#allocation19 + $0x1e0] sm:$0xff]
    %v4273 = vld [vmem:[#allocation19 + $0x1e8] sm:$0xff]
    %v4274 = vld [vmem:[#allocation19 + $0x1f0] sm:$0xff]
    %v4275 = vld [vmem:[#allocation19 + $0x1f8] sm:$0xff]
    %v4276 = vld [vmem:[#allocation20] sm:$0x3]
    %v4278 = vlaneseq
    %v4279 = vshrl.u32 %v4278, 7
    %v4280 = vsub.s32 0, %v4279
    %v4281 = vrot.slane %v4276, %v4280
    %v4282 = vlaneseq
    %v4283 = vshrl.u32 %v4282, 7
    %v4284 = vsub.s32 1, %v4283
    %v4285 = vrot.slane %v4276, %v4284
    %v4352 = vunpack.c.l.b16 %v4212
    %v4353 = vunpack.c.h.b16 %v4212
    %v4354 = vunpack.c.l.b16 %v4213
    %v4355 = vunpack.c.h.b16 %v4213
    %v4356 = vunpack.c.l.b16 %v4214
    %v4357 = vunpack.c.h.b16 %v4214
    %v4358 = vunpack.c.l.b16 %v4215
    %v4359 = vunpack.c.h.b16 %v4215
    %v4360 = vunpack.c.l.b16 %v4216
    %v4361 = vunpack.c.h.b16 %v4216
    %v4362 = vunpack.c.l.b16 %v4217
    %v4363 = vunpack.c.h.b16 %v4217
    %v4364 = vunpack.c.l.b16 %v4218
    %v4365 = vunpack.c.h.b16 %v4218
    %v4366 = vunpack.c.l.b16 %v4219
    %v4367 = vunpack.c.h.b16 %v4219
    %v4368 = vunpack.c.l.b16 %v4220
    %v4369 = vunpack.c.h.b16 %v4220
    %v4370 = vunpack.c.l.b16 %v4221
    %v4371 = vunpack.c.h.b16 %v4221
    %v4372 = vunpack.c.l.b16 %v4222
    %v4373 = vunpack.c.h.b16 %v4222
    %v4374 = vunpack.c.l.b16 %v4223
    %v4375 = vunpack.c.h.b16 %v4223
    %v4376 = vunpack.c.l.b16 %v4224
    %v4377 = vunpack.c.h.b16 %v4224
    %v4378 = vunpack.c.l.b16 %v4225
    %v4379 = vunpack.c.h.b16 %v4225
    %v4380 = vunpack.c.l.b16 %v4226
    %v4381 = vunpack.c.h.b16 %v4226
    %v4382 = vunpack.c.l.b16 %v4227
    %v4383 = vunpack.c.h.b16 %v4227
    %v4384 = vunpack.c.l.b16 %v4228
    %v4385 = vunpack.c.h.b16 %v4228
    %v4386 = vunpack.c.l.b16 %v4229
    %v4387 = vunpack.c.h.b16 %v4229
    %v4388 = vunpack.c.l.b16 %v4230
    %v4389 = vunpack.c.h.b16 %v4230
    %v4390 = vunpack.c.l.b16 %v4231
    %v4391 = vunpack.c.h.b16 %v4231
    %v4392 = vunpack.c.l.b16 %v4232
    %v4393 = vunpack.c.h.b16 %v4232
    %v4394 = vunpack.c.l.b16 %v4233
    %v4395 = vunpack.c.h.b16 %v4233
    %v4396 = vunpack.c.l.b16 %v4234
    %v4397 = vunpack.c.h.b16 %v4234
    %v4398 = vunpack.c.l.b16 %v4235
    %v4399 = vunpack.c.h.b16 %v4235
    %v4400 = vunpack.c.l.b16 %v4236
    %v4401 = vunpack.c.h.b16 %v4236
    %v4402 = vunpack.c.l.b16 %v4237
    %v4403 = vunpack.c.h.b16 %v4237
    %v4404 = vunpack.c.l.b16 %v4238
    %v4405 = vunpack.c.h.b16 %v4238
    %v4406 = vunpack.c.l.b16 %v4239
    %v4407 = vunpack.c.h.b16 %v4239
    %v4408 = vunpack.c.l.b16 %v4240
    %v4409 = vunpack.c.h.b16 %v4240
    %v4410 = vunpack.c.l.b16 %v4241
    %v4411 = vunpack.c.h.b16 %v4241
    %v4412 = vunpack.c.l.b16 %v4242
    %v4413 = vunpack.c.h.b16 %v4242
    %v4414 = vunpack.c.l.b16 %v4243
    %v4415 = vunpack.c.h.b16 %v4243
    %v4416 = vunpack.c.l.b16 %v4244
    %v4417 = vunpack.c.h.b16 %v4244
    %v4418 = vunpack.c.l.b16 %v4245
    %v4419 = vunpack.c.h.b16 %v4245
    %v4420 = vunpack.c.l.b16 %v4246
    %v4421 = vunpack.c.h.b16 %v4246
    %v4422 = vunpack.c.l.b16 %v4247
    %v4423 = vunpack.c.h.b16 %v4247
    %v4424 = vunpack.c.l.b16 %v4248
    %v4425 = vunpack.c.h.b16 %v4248
    %v4426 = vunpack.c.l.b16 %v4249
    %v4427 = vunpack.c.h.b16 %v4249
    %v4428 = vunpack.c.l.b16 %v4250
    %v4429 = vunpack.c.h.b16 %v4250
    %v4430 = vunpack.c.l.b16 %v4251
    %v4431 = vunpack.c.h.b16 %v4251
    %v4432 = vunpack.c.l.b16 %v4252
    %v4433 = vunpack.c.h.b16 %v4252
    %v4434 = vunpack.c.l.b16 %v4253
    %v4435 = vunpack.c.h.b16 %v4253
    %v4436 = vunpack.c.l.b16 %v4254
    %v4437 = vunpack.c.h.b16 %v4254
    %v4438 = vunpack.c.l.b16 %v4255
    %v4439 = vunpack.c.h.b16 %v4255
    %v4440 = vunpack.c.l.b16 %v4256
    %v4441 = vunpack.c.h.b16 %v4256
    %v4442 = vunpack.c.l.b16 %v4257
    %v4443 = vunpack.c.h.b16 %v4257
    %v4444 = vunpack.c.l.b16 %v4258
    %v4445 = vunpack.c.h.b16 %v4258
    %v4446 = vunpack.c.l.b16 %v4259
    %v4447 = vunpack.c.h.b16 %v4259
    %v4448 = vunpack.c.l.b16 %v4260
    %v4449 = vunpack.c.h.b16 %v4260
    %v4450 = vunpack.c.l.b16 %v4261
    %v4451 = vunpack.c.h.b16 %v4261
    %v4452 = vunpack.c.l.b16 %v4262
    %v4453 = vunpack.c.h.b16 %v4262
    %v4454 = vunpack.c.l.b16 %v4263
    %v4455 = vunpack.c.h.b16 %v4263
    %v4456 = vunpack.c.l.b16 %v4264
    %v4457 = vunpack.c.h.b16 %v4264
    %v4458 = vunpack.c.l.b16 %v4265
    %v4459 = vunpack.c.h.b16 %v4265
    %v4460 = vunpack.c.l.b16 %v4266
    %v4461 = vunpack.c.h.b16 %v4266
    %v4462 = vunpack.c.l.b16 %v4267
    %v4463 = vunpack.c.h.b16 %v4267
    %v4464 = vunpack.c.l.b16 %v4268
    %v4465 = vunpack.c.h.b16 %v4268
    %v4466 = vunpack.c.l.b16 %v4269
    %v4467 = vunpack.c.h.b16 %v4269
    %v4468 = vunpack.c.l.b16 %v4270
    %v4469 = vunpack.c.h.b16 %v4270
    %v4470 = vunpack.c.l.b16 %v4271
    %v4471 = vunpack.c.h.b16 %v4271
    %v4472 = vunpack.c.l.b16 %v4272
    %v4473 = vunpack.c.h.b16 %v4272
    %v4474 = vunpack.c.l.b16 %v4273
    %v4475 = vunpack.c.h.b16 %v4273
    %v4476 = vunpack.c.l.b16 %v4274
    %v4477 = vunpack.c.h.b16 %v4274
    %v4478 = vunpack.c.l.b16 %v4275
    %v4479 = vunpack.c.h.b16 %v4275
    %v4480 = vpack.c.b16 %v4354, %v4352
    %v4481 = vpack.c.b16 %v4355, %v4353
    %v4482 = vpack.c.b16 %v4358, %v4356
    %v4483 = vpack.c.b16 %v4359, %v4357
    %v4484 = vpack.c.b16 %v4362, %v4360
    %v4485 = vpack.c.b16 %v4363, %v4361
    %v4486 = vpack.c.b16 %v4366, %v4364
    %v4487 = vpack.c.b16 %v4367, %v4365
    %v4488 = vpack.c.b16 %v4370, %v4368
    %v4489 = vpack.c.b16 %v4371, %v4369
    %v4490 = vpack.c.b16 %v4374, %v4372
    %v4491 = vpack.c.b16 %v4375, %v4373
    %v4492 = vpack.c.b16 %v4378, %v4376
    %v4493 = vpack.c.b16 %v4379, %v4377
    %v4494 = vpack.c.b16 %v4382, %v4380
    %v4495 = vpack.c.b16 %v4383, %v4381
    %v4496 = vpack.c.b16 %v4386, %v4384
    %v4497 = vpack.c.b16 %v4387, %v4385
    %v4498 = vpack.c.b16 %v4390, %v4388
    %v4499 = vpack.c.b16 %v4391, %v4389
    %v4500 = vpack.c.b16 %v4394, %v4392
    %v4501 = vpack.c.b16 %v4395, %v4393
    %v4502 = vpack.c.b16 %v4398, %v4396
    %v4503 = vpack.c.b16 %v4399, %v4397
    %v4504 = vpack.c.b16 %v4402, %v4400
    %v4505 = vpack.c.b16 %v4403, %v4401
    %v4506 = vpack.c.b16 %v4406, %v4404
    %v4507 = vpack.c.b16 %v4407, %v4405
    %v4508 = vpack.c.b16 %v4410, %v4408
    %v4509 = vpack.c.b16 %v4411, %v4409
    %v4510 = vpack.c.b16 %v4414, %v4412
    %v4511 = vpack.c.b16 %v4415, %v4413
    %v4512 = vpack.c.b16 %v4418, %v4416
    %v4513 = vpack.c.b16 %v4419, %v4417
    %v4514 = vpack.c.b16 %v4422, %v4420
    %v4515 = vpack.c.b16 %v4423, %v4421
    %v4516 = vpack.c.b16 %v4426, %v4424
    %v4517 = vpack.c.b16 %v4427, %v4425
    %v4518 = vpack.c.b16 %v4430, %v4428
    %v4519 = vpack.c.b16 %v4431, %v4429
    %v4520 = vpack.c.b16 %v4434, %v4432
    %v4521 = vpack.c.b16 %v4435, %v4433
    %v4522 = vpack.c.b16 %v4438, %v4436
    %v4523 = vpack.c.b16 %v4439, %v4437
    %v4524 = vpack.c.b16 %v4442, %v4440
    %v4525 = vpack.c.b16 %v4443, %v4441
    %v4526 = vpack.c.b16 %v4446, %v4444
    %v4527 = vpack.c.b16 %v4447, %v4445
    %v4528 = vpack.c.b16 %v4450, %v4448
    %v4529 = vpack.c.b16 %v4451, %v4449
    %v4530 = vpack.c.b16 %v4454, %v4452
    %v4531 = vpack.c.b16 %v4455, %v4453
    %v4532 = vpack.c.b16 %v4458, %v4456
    %v4533 = vpack.c.b16 %v4459, %v4457
    %v4534 = vpack.c.b16 %v4462, %v4460
    %v4535 = vpack.c.b16 %v4463, %v4461
    %v4536 = vpack.c.b16 %v4466, %v4464
    %v4537 = vpack.c.b16 %v4467, %v4465
    %v4538 = vpack.c.b16 %v4470, %v4468
    %v4539 = vpack.c.b16 %v4471, %v4469
    %v4540 = vpack.c.b16 %v4474, %v4472
    %v4541 = vpack.c.b16 %v4475, %v4473
    %v4542 = vpack.c.b16 %v4478, %v4476
    %v4543 = vpack.c.b16 %v4479, %v4477
    %4608 = vmatprep.subr.bf16.mxu0 %v4481
    %4609 = vmatpush1.bf16.msra.mxu0 %v4480
    %4610 = vmatprep.subr.bf16.mxu0 %v4483
    %4611 = vmatpush1.bf16.msra.mxu0 %v4482
    %4612 = vmatprep.subr.bf16.mxu0 %v4485
    %4613 = vmatpush1.bf16.msra.mxu0 %v4484
    %4614 = vmatprep.subr.bf16.mxu0 %v4487
    %4615 = vmatpush1.bf16.msra.mxu0 %v4486
    %4616 = vmatprep.subr.bf16.mxu0 %v4489
    %4617 = vmatpush1.bf16.msra.mxu0 %v4488
    %4618 = vmatprep.subr.bf16.mxu0 %v4491
    %4619 = vmatpush1.bf16.msra.mxu0 %v4490
    %4620 = vmatprep.subr.bf16.mxu0 %v4493
    %4621 = vmatpush1.bf16.msra.mxu0 %v4492
    %4622 = vmatprep.subr.bf16.mxu0 %v4495
    %4623 = vmatpush1.bf16.msra.mxu0 %v4494
    %4624 = vmatprep.subr.bf16.mxu0 %v4497
    %4625 = vmatpush1.bf16.msra.mxu0 %v4496
    %4626 = vmatprep.subr.bf16.mxu0 %v4499
    %4627 = vmatpush1.bf16.msra.mxu0 %v4498
    %4628 = vmatprep.subr.bf16.mxu0 %v4501
    %4629 = vmatpush1.bf16.msra.mxu0 %v4500
    %4630 = vmatprep.subr.bf16.mxu0 %v4503
    %4631 = vmatpush1.bf16.msra.mxu0 %v4502
    %4632 = vmatprep.subr.bf16.mxu0 %v4505
    %4633 = vmatpush1.bf16.msra.mxu0 %v4504
    %4634 = vmatprep.subr.bf16.mxu0 %v4507
    %4635 = vmatpush1.bf16.msra.mxu0 %v4506
    %4636 = vmatprep.subr.bf16.mxu0 %v4509
    %4637 = vmatpush1.bf16.msra.mxu0 %v4508
    %4638 = vmatprep.subr.bf16.mxu0 %v4511
    %4639 = vmatpush1.bf16.msra.mxu0 %v4510
    %4640 = vmatprep.mubr.bf16.mxu0 %v4197
    %4641 = vmatmul.mubr.bf16.gmra.mrb[0].mxu0 %v4196
    %v4642 = vpop.f32.mrb[0].mxu0
    %v4643 = vadd.f32 %v4281, %v4642
    %v4644 = vpop.f32.mrb[0].mxu0
    %v4645 = vadd.f32 %v4285, %v4644
    %v4646 = vpop.f32.mrb[0].mxu0
    %v4647 = vadd.f32 %v4281, %v4646
    %v4648 = vpop.f32.mrb[0].mxu0
    %v4649 = vadd.f32 %v4285, %v4648
    %4650 = vmatprep.mubr.bf16.mxu0 %v4201
    %4651 = vmatmul.mubr.bf16.gmra.mrb[0].mxu0 %v4200
    %v4652 = vpop.f32.mrb[0].mxu0
    %v4653 = vadd.f32 %v4281, %v4652
    %v4654 = vpop.f32.mrb[0].mxu0
    %v4655 = vadd.f32 %v4285, %v4654
    %v4656 = vpop.f32.mrb[0].mxu0
    %v4657 = vadd.f32 %v4281, %v4656
    %v4658 = vpop.f32.mrb[0].mxu0
    %v4659 = vadd.f32 %v4285, %v4658
    %4660 = vmatprep.mubr.bf16.mxu0 %v4205
    %4661 = vmatmul.mubr.bf16.gmra.mrb[0].mxu0 %v4204
    %v4662 = vpop.f32.mrb[0].mxu0
    %v4663 = vadd.f32 %v4281, %v4662
    %v4664 = vpop.f32.mrb[0].mxu0
    %v4665 = vadd.f32 %v4285, %v4664
    %v4666 = vpop.f32.mrb[0].mxu0
    %v4667 = vadd.f32 %v4281, %v4666
    %v4668 = vpop.f32.mrb[0].mxu0
    %v4669 = vadd.f32 %v4285, %v4668
    %4670 = vmatprep.mubr.bf16.mxu0 %v4209
    %4671 = vmatmul.mubr.bf16.gmra.mrb[0].mxu0 %v4208
    %v4672 = vpop.f32.mrb[0].mxu0
    %v4673 = vadd.f32 %v4281, %v4672
    %v4674 = vpop.f32.mrb[0].mxu0
    %v4675 = vadd.f32 %v4285, %v4674
    %v4676 = vpop.f32.mrb[0].mxu0
    %v4677 = vadd.f32 %v4281, %v4676
    %v4678 = vpop.f32.mrb[0].mxu0
    %v4679 = vadd.f32 %v4285, %v4678
    %4680 = vdwg.mxu0
    %4681 = vmatprep.subr.bf16.mxu0 %v4513
    %4682 = vmatpush1.bf16.msra.mxu0 %v4512
    %4683 = vmatprep.subr.bf16.mxu0 %v4515
    %4684 = vmatpush1.bf16.msra.mxu0 %v4514
    %4685 = vmatprep.subr.bf16.mxu0 %v4517
    %4686 = vmatpush1.bf16.msra.mxu0 %v4516
    %4687 = vmatprep.subr.bf16.mxu0 %v4519
    %4688 = vmatpush1.bf16.msra.mxu0 %v4518
    %4689 = vmatprep.subr.bf16.mxu0 %v4521
    %4690 = vmatpush1.bf16.msra.mxu0 %v4520
    %4691 = vmatprep.subr.bf16.mxu0 %v4523
    %4692 = vmatpush1.bf16.msra.mxu0 %v4522
    %4693 = vmatprep.subr.bf16.mxu0 %v4525
    %4694 = vmatpush1.bf16.msra.mxu0 %v4524
    %4695 = vmatprep.subr.bf16.mxu0 %v4527
    %4696 = vmatpush1.bf16.msra.mxu0 %v4526
    %4697 = vmatprep.subr.bf16.mxu0 %v4529
    %4698 = vmatpush1.bf16.msra.mxu0 %v4528
    %4699 = vmatprep.subr.bf16.mxu0 %v4531
    %4700 = vmatpush1.bf16.msra.mxu0 %v4530
    %4701 = vmatprep.subr.bf16.mxu0 %v4533
    %4702 = vmatpush1.bf16.msra.mxu0 %v4532
    %4703 = vmatprep.subr.bf16.mxu0 %v4535
    %4704 = vmatpush1.bf16.msra.mxu0 %v4534
    %4705 = vmatprep.subr.bf16.mxu0 %v4537
    %4706 = vmatpush1.bf16.msra.mxu0 %v4536
    %4707 = vmatprep.subr.bf16.mxu0 %v4539
    %4708 = vmatpush1.bf16.msra.mxu0 %v4538
    %4709 = vmatprep.subr.bf16.mxu0 %v4541
    %4710 = vmatpush1.bf16.msra.mxu0 %v4540
    %4711 = vmatprep.subr.bf16.mxu0 %v4543
    %4712 = vmatpush1.bf16.msra.mxu0 %v4542
    %4713 = vmatprep.mubr.bf16.mxu0 %v4199
    %4714 = vmatmul.mubr.bf16.gmra.mrb[0].mxu0 %v4198
    %v4715 = vpop.f32.mrb[0].mxu0
    %v4716 = vadd.f32 %v4643, %v4715
    %v4717 = vpop.f32.mrb[0].mxu0
    %v4718 = vadd.f32 %v4645, %v4717
    %v4719 = vpop.f32.mrb[0].mxu0
    %v4720 = vadd.f32 %v4647, %v4719
    %v4721 = vpop.f32.mrb[0].mxu0
    %v4722 = vadd.f32 %v4649, %v4721
    %4723 = vmatprep.mubr.bf16.mxu0 %v4203
    %4724 = vmatmul.mubr.bf16.gmra.mrb[0].mxu0 %v4202
    %v4725 = vpop.f32.mrb[0].mxu0
    %v4726 = vadd.f32 %v4653, %v4725
    %v4727 = vpop.f32.mrb[0].mxu0
    %v4728 = vadd.f32 %v4655, %v4727
    %v4729 = vpop.f32.mrb[0].mxu0
    %v4730 = vadd.f32 %v4657, %v4729
    %v4731 = vpop.f32.mrb[0].mxu0
    %v4732 = vadd.f32 %v4659, %v4731
    %4733 = vmatprep.mubr.bf16.mxu0 %v4207
    %4734 = vmatmul.mubr.bf16.gmra.mrb[0].mxu0 %v4206
    %v4735 = vpop.f32.mrb[0].mxu0
    %v4736 = vadd.f32 %v4663, %v4735
    %v4737 = vpop.f32.mrb[0].mxu0
    %v4738 = vadd.f32 %v4665, %v4737
    %v4739 = vpop.f32.mrb[0].mxu0
    %v4740 = vadd.f32 %v4667, %v4739
    %v4741 = vpop.f32.mrb[0].mxu0
    %v4742 = vadd.f32 %v4669, %v4741
    %4743 = vmatprep.mubr.bf16.mxu0 %v4211
    %4744 = vmatmul.mubr.bf16.gmra.mrb[0].mxu0 %v4210
    %v4745 = vpop.f32.mrb[0].mxu0
    %v4746 = vadd.f32 %v4673, %v4745
    %v4747 = vpop.f32.mrb[0].mxu0
    %v4748 = vadd.f32 %v4675, %v4747
    %v4749 = vpop.f32.mrb[0].mxu0
    %v4750 = vadd.f32 %v4677, %v4749
    %v4751 = vpop.f32.mrb[0].mxu0
    %v4752 = vadd.f32 %v4679, %v4751
    %4753 = vdwg.mxu0
    %v4754 = vadd.f32 %v4716, %v3588
    %v4755 = vadd.f32 %v4718, %v3589
    %v4756 = vadd.f32 %v4720, %v3590
    %v4757 = vadd.f32 %v4722, %v3591
    %v4758 = vadd.f32 %v4726, %v3592
    %v4759 = vadd.f32 %v4728, %v3593
    %v4760 = vadd.f32 %v4730, %v3594
    %v4761 = vadd.f32 %v4732, %v3595
    %v4762 = vadd.f32 %v4736, %v3596
    %v4763 = vadd.f32 %v4738, %v3597
    %v4764 = vadd.f32 %v4740, %v3598
    %v4765 = vadd.f32 %v4742, %v3599
    %v4766 = vadd.f32 %v4746, %v3600
    %v4767 = vadd.f32 %v4748, %v3601
    %v4768 = vadd.f32 %v4750, %v3602
    %v4769 = vadd.f32 %v4752, %v3603
    %v4770 = vld [vmem:[#allocation22] sm:$0x3]
    %v4771 = vld [vmem:[#allocation23] sm:$0x3]
    %v4772 = vadd.f32 %v4754, %v4755
    %4773 = vadd.xlane.f32.xlu0 %v4772
    %v4774 = vpop.xlane.xlu0 %4773
    %v4775 = vadd.f32 %v4756, %v4757
    %4776 = vadd.xlane.f32.xlu0 %v4775
    %v4777 = vpop.xlane.xlu0 %4776
    %v4778 = vadd.f32 %v4758, %v4759
    %4779 = vadd.xlane.f32.xlu0 %v4778
    %v4780 = vpop.xlane.xlu0 %4779
    %v4781 = vadd.f32 %v4760, %v4761
    %4782 = vadd.xlane.f32.xlu0 %v4781
    %v4783 = vpop.xlane.xlu0 %4782
    %v4784 = vadd.f32 %v4762, %v4763
    %4785 = vadd.xlane.f32.xlu0 %v4784
    %v4786 = vpop.xlane.xlu0 %4785
    %v4787 = vadd.f32 %v4764, %v4765
    %4788 = vadd.xlane.f32.xlu0 %v4787
    %v4789 = vpop.xlane.xlu0 %4788
    %v4790 = vadd.f32 %v4766, %v4767
    %4791 = vadd.xlane.f32.xlu0 %v4790
    %v4792 = vpop.xlane.xlu0 %4791
    %v4793 = vadd.f32 %v4768, %v4769
    %4794 = vadd.xlane.f32.xlu0 %v4793
    %v4795 = vpop.xlane.xlu0 %4794
    %v4796 = vmul.f32 %v4774, %v3445
    %v4797 = vmul.f32 %v4777, %v3445
    %v4798 = vmul.f32 %v4780, %v3445
    %v4799 = vmul.f32 %v4783, %v3445
    %v4800 = vmul.f32 %v4786, %v3445
    %v4801 = vmul.f32 %v4789, %v3445
    %v4802 = vmul.f32 %v4792, %v3445
    %v4803 = vmul.f32 %v4795, %v3445
    %v4804 = vsub.f32 %v4754, %v4796
    %v4805 = vsub.f32 %v4755, %v4796
    %v4806 = vsub.f32 %v4756, %v4797
    %v4807 = vsub.f32 %v4757, %v4797
    %v4808 = vsub.f32 %v4758, %v4798
    %v4809 = vsub.f32 %v4759, %v4798
    %v4810 = vsub.f32 %v4760, %v4799
    %v4811 = vsub.f32 %v4761, %v4799
    %v4812 = vsub.f32 %v4762, %v4800
    %v4813 = vsub.f32 %v4763, %v4800
    %v4814 = vsub.f32 %v4764, %v4801
    %v4815 = vsub.f32 %v4765, %v4801
    %v4816 = vsub.f32 %v4766, %v4802
    %v4817 = vsub.f32 %v4767, %v4802
    %v4818 = vsub.f32 %v4768, %v4803
    %v4819 = vsub.f32 %v4769, %v4803
    %v4820 = vmul.f32 %v4804, %v4804
    %v4821 = vmul.f32 %v4805, %v4805
    %v4822 = vmul.f32 %v4806, %v4806
    %v4823 = vmul.f32 %v4807, %v4807
    %v4824 = vmul.f32 %v4808, %v4808
    %v4825 = vmul.f32 %v4809, %v4809
    %v4826 = vmul.f32 %v4810, %v4810
    %v4827 = vmul.f32 %v4811, %v4811
    %v4828 = vmul.f32 %v4812, %v4812
    %v4829 = vmul.f32 %v4813, %v4813
    %v4830 = vmul.f32 %v4814, %v4814
    %v4831 = vmul.f32 %v4815, %v4815
    %v4832 = vmul.f32 %v4816, %v4816
    %v4833 = vmul.f32 %v4817, %v4817
    %v4834 = vmul.f32 %v4818, %v4818
    %v4835 = vmul.f32 %v4819, %v4819
    %v4836 = vadd.f32 %v4820, %v4821
    %4837 = vadd.xlane.f32.xlu0 %v4836
    %v4838 = vpop.xlane.xlu0 %4837
    %v4839 = vadd.f32 %v4822, %v4823
    %4840 = vadd.xlane.f32.xlu0 %v4839
    %v4841 = vpop.xlane.xlu0 %4840
    %v4842 = vadd.f32 %v4824, %v4825
    %4843 = vadd.xlane.f32.xlu0 %v4842
    %v4844 = vpop.xlane.xlu0 %4843
    %v4845 = vadd.f32 %v4826, %v4827
    %4846 = vadd.xlane.f32.xlu0 %v4845
    %v4847 = vpop.xlane.xlu0 %4846
    %v4848 = vadd.f32 %v4828, %v4829
    %4849 = vadd.xlane.f32.xlu0 %v4848
    %v4850 = vpop.xlane.xlu0 %4849
    %v4851 = vadd.f32 %v4830, %v4831
    %4852 = vadd.xlane.f32.xlu0 %v4851
    %v4853 = vpop.xlane.xlu0 %4852
    %v4854 = vadd.f32 %v4832, %v4833
    %4855 = vadd.xlane.f32.xlu0 %v4854
    %v4856 = vpop.xlane.xlu0 %4855
    %v4857 = vadd.f32 %v4834, %v4835
    %4858 = vadd.xlane.f32.xlu0 %v4857
    %v4859 = vpop.xlane.xlu0 %4858
    %v4860 = vmul.f32 %v4838, %v3445
    %v4861 = vmul.f32 %v4841, %v3445
    %v4862 = vmul.f32 %v4844, %v3445
    %v4863 = vmul.f32 %v4847, %v3445
    %v4864 = vmul.f32 %v4850, %v3445
    %v4865 = vmul.f32 %v4853, %v3445
    %v4866 = vmul.f32 %v4856, %v3445
    %v4867 = vmul.f32 %v4859, %v3445
    %v4868 = vadd.f32 %v4860, 1e-05
    %v4869 = vadd.f32 %v4861, 1e-05
    %v4870 = vadd.f32 %v4862, 1e-05
    %v4871 = vadd.f32 %v4863, 1e-05
    %v4872 = vadd.f32 %v4864, 1e-05
    %v4873 = vadd.f32 %v4865, 1e-05
    %v4874 = vadd.f32 %v4866, 1e-05
    %v4875 = vadd.f32 %v4867, 1e-05
    %v4876 = vrsqrt.pop %v4868
    %v4877 = vrsqrt.pop %v4869
    %v4878 = vrsqrt.pop %v4870
    %v4879 = vrsqrt.pop %v4871
    %v4880 = vrsqrt.pop %v4872
    %v4881 = vrsqrt.pop %v4873
    %v4882 = vrsqrt.pop %v4874
    %v4883 = vrsqrt.pop %v4875
    %v4884 = vmul.f32 %v4804, %v4876
    %v4885 = vmul.f32 %v4805, %v4876
    %v4886 = vmul.f32 %v4806, %v4877
    %v4887 = vmul.f32 %v4807, %v4877
    %v4888 = vmul.f32 %v4808, %v4878
    %v4889 = vmul.f32 %v4809, %v4878
    %v4890 = vmul.f32 %v4810, %v4879
    %v4891 = vmul.f32 %v4811, %v4879
    %v4892 = vmul.f32 %v4812, %v4880
    %v4893 = vmul.f32 %v4813, %v4880
    %v4894 = vmul.f32 %v4814, %v4881
    %v4895 = vmul.f32 %v4815, %v4881
    %v4896 = vmul.f32 %v4816, %v4882
    %v4897 = vmul.f32 %v4817, %v4882
    %v4898 = vmul.f32 %v4818, %v4883
    %v4899 = vmul.f32 %v4819, %v4883
    %v4901 = vlaneseq
    %v4902 = vshrl.u32 %v4901, 7
    %v4903 = vsub.s32 0, %v4902
    %v4904 = vrot.slane %v4770, %v4903
    %v4905 = vlaneseq
    %v4906 = vshrl.u32 %v4905, 7
    %v4907 = vsub.s32 1, %v4906
    %v4908 = vrot.slane %v4770, %v4907
    %v4911 = vmul.f32 %v4884, %v4904
    %v4912 = vmul.f32 %v4885, %v4908
    %v4913 = vmul.f32 %v4886, %v4904
    %v4914 = vmul.f32 %v4887, %v4908
    %v4915 = vmul.f32 %v4888, %v4904
    %v4916 = vmul.f32 %v4889, %v4908
    %v4917 = vmul.f32 %v4890, %v4904
    %v4918 = vmul.f32 %v4891, %v4908
    %v4919 = vmul.f32 %v4892, %v4904
    %v4920 = vmul.f32 %v4893, %v4908
    %v4921 = vmul.f32 %v4894, %v4904
    %v4922 = vmul.f32 %v4895, %v4908
    %v4923 = vmul.f32 %v4896, %v4904
    %v4924 = vmul.f32 %v4897, %v4908
    %v4925 = vmul.f32 %v4898, %v4904
    %v4926 = vmul.f32 %v4899, %v4908
    %v4928 = vlaneseq
    %v4929 = vshrl.u32 %v4928, 7
    %v4930 = vsub.s32 0, %v4929
    %v4931 = vrot.slane %v4771, %v4930
    %v4932 = vlaneseq
    %v4933 = vshrl.u32 %v4932, 7
    %v4934 = vsub.s32 1, %v4933
    %v4935 = vrot.slane %v4771, %v4934
    %v4938 = vadd.f32 %v4911, %v4931
    %v4939 = vadd.f32 %v4912, %v4935
    %v4940 = vadd.f32 %v4913, %v4931
    %v4941 = vadd.f32 %v4914, %v4935
    %v4942 = vadd.f32 %v4915, %v4931
    %v4943 = vadd.f32 %v4916, %v4935
    %v4944 = vadd.f32 %v4917, %v4931
    %v4945 = vadd.f32 %v4918, %v4935
    %v4946 = vadd.f32 %v4919, %v4931
    %v4947 = vadd.f32 %v4920, %v4935
    %v4948 = vadd.f32 %v4921, %v4931
    %v4949 = vadd.f32 %v4922, %v4935
    %v4950 = vadd.f32 %v4923, %v4931
    %v4951 = vadd.f32 %v4924, %v4935
    %v4952 = vadd.f32 %v4925, %v4931
    %v4953 = vadd.f32 %v4926, %v4935
    %v4954 = vpack.c.bf16 %v4940, %v4938
    %v4955 = vpack.c.bf16 %v4941, %v4939
    %v4956 = vpack.c.bf16 %v4944, %v4942
    %v4957 = vpack.c.bf16 %v4945, %v4943
    %v4958 = vpack.c.bf16 %v4948, %v4946
    %v4959 = vpack.c.bf16 %v4949, %v4947
    %v4960 = vpack.c.bf16 %v4952, %v4950
    %v4961 = vpack.c.bf16 %v4953, %v4951
    %s4962 = scalar_lea.vmem [#allocation7], 768
    %v4963 = vld [vmem:[%s4962] sm:$0xff]
    %v4964 = vld [vmem:[%s4962 + $0x8] sm:$0xff]
    %v4965 = vld [vmem:[%s4962 + $0x10] sm:$0xff]
    %v4966 = vld [vmem:[%s4962 + $0x18] sm:$0xff]
    %v4967 = vld [vmem:[%s4962 + $0x20] sm:$0xff]
    %v4968 = vld [vmem:[%s4962 + $0x28] sm:$0xff]
    %v4969 = vld [vmem:[%s4962 + $0x30] sm:$0xff]
    %v4970 = vld [vmem:[%s4962 + $0x38] sm:$0xff]
    %v4971 = vld [vmem:[%s4962 + $0x40] sm:$0xff]
    %v4972 = vld [vmem:[%s4962 + $0x48] sm:$0xff]
    %v4973 = vld [vmem:[%s4962 + $0x50] sm:$0xff]
    %v4974 = vld [vmem:[%s4962 + $0x58] sm:$0xff]
    %v4975 = vld [vmem:[%s4962 + $0x60] sm:$0xff]
    %v4976 = vld [vmem:[%s4962 + $0x68] sm:$0xff]
    %v4977 = vld [vmem:[%s4962 + $0x70] sm:$0xff]
    %v4978 = vld [vmem:[%s4962 + $0x78] sm:$0xff]
    %v4979 = vld [vmem:[%s4962 + $0x80] sm:$0xff]
    %v4980 = vld [vmem:[%s4962 + $0x88] sm:$0xff]
    %v4981 = vld [vmem:[%s4962 + $0x90] sm:$0xff]
    %v4982 = vld [vmem:[%s4962 + $0x98] sm:$0xff]
    %v4983 = vld [vmem:[%s4962 + $0xa0] sm:$0xff]
    %v4984 = vld [vmem:[%s4962 + $0xa8] sm:$0xff]
    %v4985 = vld [vmem:[%s4962 + $0xb0] sm:$0xff]
    %v4986 = vld [vmem:[%s4962 + $0xb8] sm:$0xff]
    %v4987 = vld [vmem:[%s4962 + $0xc0] sm:$0xff]
    %v4988 = vld [vmem:[%s4962 + $0xc8] sm:$0xff]
    %v4989 = vld [vmem:[%s4962 + $0xd0] sm:$0xff]
    %v4990 = vld [vmem:[%s4962 + $0xd8] sm:$0xff]
    %v4991 = vld [vmem:[%s4962 + $0xe0] sm:$0xff]
    %v4992 = vld [vmem:[%s4962 + $0xe8] sm:$0xff]
    %v4993 = vld [vmem:[%s4962 + $0xf0] sm:$0xff]
    %v4994 = vld [vmem:[%s4962 + $0xf8] sm:$0xff]
    %v4995 = vld [vmem:[%s4962 + $0x100] sm:$0xff]
    %v4996 = vld [vmem:[%s4962 + $0x108] sm:$0xff]
    %v4997 = vld [vmem:[%s4962 + $0x110] sm:$0xff]
    %v4998 = vld [vmem:[%s4962 + $0x118] sm:$0xff]
    %v4999 = vld [vmem:[%s4962 + $0x120] sm:$0xff]
    %v5000 = vld [vmem:[%s4962 + $0x128] sm:$0xff]
    %v5001 = vld [vmem:[%s4962 + $0x130] sm:$0xff]
    %v5002 = vld [vmem:[%s4962 + $0x138] sm:$0xff]
    %v5003 = vld [vmem:[%s4962 + $0x140] sm:$0xff]
    %v5004 = vld [vmem:[%s4962 + $0x148] sm:$0xff]
    %v5005 = vld [vmem:[%s4962 + $0x150] sm:$0xff]
    %v5006 = vld [vmem:[%s4962 + $0x158] sm:$0xff]
    %v5007 = vld [vmem:[%s4962 + $0x160] sm:$0xff]
    %v5008 = vld [vmem:[%s4962 + $0x168] sm:$0xff]
    %v5009 = vld [vmem:[%s4962 + $0x170] sm:$0xff]
    %v5010 = vld [vmem:[%s4962 + $0x178] sm:$0xff]
    %v5011 = vld [vmem:[%s4962 + $0x180] sm:$0xff]
    %v5012 = vld [vmem:[%s4962 + $0x188] sm:$0xff]
    %v5013 = vld [vmem:[%s4962 + $0x190] sm:$0xff]
    %v5014 = vld [vmem:[%s4962 + $0x198] sm:$0xff]
    %v5015 = vld [vmem:[%s4962 + $0x1a0] sm:$0xff]
    %v5016 = vld [vmem:[%s4962 + $0x1a8] sm:$0xff]
    %v5017 = vld [vmem:[%s4962 + $0x1b0] sm:$0xff]
    %v5018 = vld [vmem:[%s4962 + $0x1b8] sm:$0xff]
    %v5019 = vld [vmem:[%s4962 + $0x1c0] sm:$0xff]
    %v5020 = vld [vmem:[%s4962 + $0x1c8] sm:$0xff]
    %v5021 = vld [vmem:[%s4962 + $0x1d0] sm:$0xff]
    %v5022 = vld [vmem:[%s4962 + $0x1d8] sm:$0xff]
    %v5023 = vld [vmem:[%s4962 + $0x1e0] sm:$0xff]
    %v5024 = vld [vmem:[%s4962 + $0x1e8] sm:$0xff]
    %v5025 = vld [vmem:[%s4962 + $0x1f0] sm:$0xff]
    %v5026 = vld [vmem:[%s4962 + $0x1f8] sm:$0xff]
    %v5027 = vld [vmem:[%s4962 + $0x200] sm:$0xff]
    %v5028 = vld [vmem:[%s4962 + $0x208] sm:$0xff]
    %v5029 = vld [vmem:[%s4962 + $0x210] sm:$0xff]
    %v5030 = vld [vmem:[%s4962 + $0x218] sm:$0xff]
    %v5031 = vld [vmem:[%s4962 + $0x220] sm:$0xff]
    %v5032 = vld [vmem:[%s4962 + $0x228] sm:$0xff]
    %v5033 = vld [vmem:[%s4962 + $0x230] sm:$0xff]
    %v5034 = vld [vmem:[%s4962 + $0x238] sm:$0xff]
    %v5035 = vld [vmem:[%s4962 + $0x240] sm:$0xff]
    %v5036 = vld [vmem:[%s4962 + $0x248] sm:$0xff]
    %v5037 = vld [vmem:[%s4962 + $0x250] sm:$0xff]
    %v5038 = vld [vmem:[%s4962 + $0x258] sm:$0xff]
    %v5039 = vld [vmem:[%s4962 + $0x260] sm:$0xff]
    %v5040 = vld [vmem:[%s4962 + $0x268] sm:$0xff]
    %v5041 = vld [vmem:[%s4962 + $0x270] sm:$0xff]
    %v5042 = vld [vmem:[%s4962 + $0x278] sm:$0xff]
    %v5043 = vld [vmem:[%s4962 + $0x280] sm:$0xff]
    %v5044 = vld [vmem:[%s4962 + $0x288] sm:$0xff]
    %v5045 = vld [vmem:[%s4962 + $0x290] sm:$0xff]
    %v5046 = vld [vmem:[%s4962 + $0x298] sm:$0xff]
    %v5047 = vld [vmem:[%s4962 + $0x2a0] sm:$0xff]
    %v5048 = vld [vmem:[%s4962 + $0x2a8] sm:$0xff]
    %v5049 = vld [vmem:[%s4962 + $0x2b0] sm:$0xff]
    %v5050 = vld [vmem:[%s4962 + $0x2b8] sm:$0xff]
    %v5051 = vld [vmem:[%s4962 + $0x2c0] sm:$0xff]
    %v5052 = vld [vmem:[%s4962 + $0x2c8] sm:$0xff]
    %v5053 = vld [vmem:[%s4962 + $0x2d0] sm:$0xff]
    %v5054 = vld [vmem:[%s4962 + $0x2d8] sm:$0xff]
    %v5055 = vld [vmem:[%s4962 + $0x2e0] sm:$0xff]
    %v5056 = vld [vmem:[%s4962 + $0x2e8] sm:$0xff]
    %v5057 = vld [vmem:[%s4962 + $0x2f0] sm:$0xff]
    %v5058 = vld [vmem:[%s4962 + $0x2f8] sm:$0xff]
    %s5059 = scalar_lea.vmem [#allocation8], 6
    %v5060 = vld [vmem:[%s5059] sm:$0x3f]
    %v5062 = vlaneseq
    %v5063 = vshrl.u32 %v5062, 7
    %v5064 = vsub.s32 0, %v5063
    %v5065 = vrot.slane %v5060, %v5064
    %v5066 = vlaneseq
    %v5067 = vshrl.u32 %v5066, 7
    %v5068 = vsub.s32 1, %v5067
    %v5069 = vrot.slane %v5060, %v5068
    %v5070 = vlaneseq
    %v5071 = vshrl.u32 %v5070, 7
    %v5072 = vsub.s32 2, %v5071
    %v5073 = vrot.slane %v5060, %v5072
    %v5074 = vlaneseq
    %v5075 = vshrl.u32 %v5074, 7
    %v5076 = vsub.s32 3, %v5075
    %v5077 = vrot.slane %v5060, %v5076
    %v5078 = vlaneseq
    %v5079 = vshrl.u32 %v5078, 7
    %v5080 = vsub.s32 4, %v5079
    %v5081 = vrot.slane %v5060, %v5080
    %v5082 = vlaneseq
    %v5083 = vshrl.u32 %v5082, 7
    %v5084 = vsub.s32 5, %v5083
    %v5085 = vrot.slane %v5060, %v5084
    %v5188 = vunpack.c.l.b16 %v4963
    %v5189 = vunpack.c.h.b16 %v4963
    %v5190 = vunpack.c.l.b16 %v4964
    %v5191 = vunpack.c.h.b16 %v4964
    %v5192 = vunpack.c.l.b16 %v4965
    %v5193 = vunpack.c.h.b16 %v4965
    %v5194 = vunpack.c.l.b16 %v4966
    %v5195 = vunpack.c.h.b16 %v4966
    %v5196 = vunpack.c.l.b16 %v4967
    %v5197 = vunpack.c.h.b16 %v4967
    %v5198 = vunpack.c.l.b16 %v4968
    %v5199 = vunpack.c.h.b16 %v4968
    %v5200 = vunpack.c.l.b16 %v4969
    %v5201 = vunpack.c.h.b16 %v4969
    %v5202 = vunpack.c.l.b16 %v4970
    %v5203 = vunpack.c.h.b16 %v4970
    %v5204 = vunpack.c.l.b16 %v4971
    %v5205 = vunpack.c.h.b16 %v4971
    %v5206 = vunpack.c.l.b16 %v4972
    %v5207 = vunpack.c.h.b16 %v4972
    %v5208 = vunpack.c.l.b16 %v4973
    %v5209 = vunpack.c.h.b16 %v4973
    %v5210 = vunpack.c.l.b16 %v4974
    %v5211 = vunpack.c.h.b16 %v4974
    %v5212 = vunpack.c.l.b16 %v4975
    %v5213 = vunpack.c.h.b16 %v4975
    %v5214 = vunpack.c.l.b16 %v4976
    %v5215 = vunpack.c.h.b16 %v4976
    %v5216 = vunpack.c.l.b16 %v4977
    %v5217 = vunpack.c.h.b16 %v4977
    %v5218 = vunpack.c.l.b16 %v4978
    %v5219 = vunpack.c.h.b16 %v4978
    %v5220 = vunpack.c.l.b16 %v4979
    %v5221 = vunpack.c.h.b16 %v4979
    %v5222 = vunpack.c.l.b16 %v4980
    %v5223 = vunpack.c.h.b16 %v4980
    %v5224 = vunpack.c.l.b16 %v4981
    %v5225 = vunpack.c.h.b16 %v4981
    %v5226 = vunpack.c.l.b16 %v4982
    %v5227 = vunpack.c.h.b16 %v4982
    %v5228 = vunpack.c.l.b16 %v4983
    %v5229 = vunpack.c.h.b16 %v4983
    %v5230 = vunpack.c.l.b16 %v4984
    %v5231 = vunpack.c.h.b16 %v4984
    %v5232 = vunpack.c.l.b16 %v4985
    %v5233 = vunpack.c.h.b16 %v4985
    %v5234 = vunpack.c.l.b16 %v4986
    %v5235 = vunpack.c.h.b16 %v4986
    %v5236 = vunpack.c.l.b16 %v4987
    %v5237 = vunpack.c.h.b16 %v4987
    %v5238 = vunpack.c.l.b16 %v4988
    %v5239 = vunpack.c.h.b16 %v4988
    %v5240 = vunpack.c.l.b16 %v4989
    %v5241 = vunpack.c.h.b16 %v4989
    %v5242 = vunpack.c.l.b16 %v4990
    %v5243 = vunpack.c.h.b16 %v4990
    %v5244 = vunpack.c.l.b16 %v4991
    %v5245 = vunpack.c.h.b16 %v4991
    %v5246 = vunpack.c.l.b16 %v4992
    %v5247 = vunpack.c.h.b16 %v4992
    %v5248 = vunpack.c.l.b16 %v4993
    %v5249 = vunpack.c.h.b16 %v4993
    %v5250 = vunpack.c.l.b16 %v4994
    %v5251 = vunpack.c.h.b16 %v4994
    %v5252 = vunpack.c.l.b16 %v4995
    %v5253 = vunpack.c.h.b16 %v4995
    %v5254 = vunpack.c.l.b16 %v4996
    %v5255 = vunpack.c.h.b16 %v4996
    %v5256 = vunpack.c.l.b16 %v4997
    %v5257 = vunpack.c.h.b16 %v4997
    %v5258 = vunpack.c.l.b16 %v4998
    %v5259 = vunpack.c.h.b16 %v4998
    %v5260 = vunpack.c.l.b16 %v4999
    %v5261 = vunpack.c.h.b16 %v4999
    %v5262 = vunpack.c.l.b16 %v5000
    %v5263 = vunpack.c.h.b16 %v5000
    %v5264 = vunpack.c.l.b16 %v5001
    %v5265 = vunpack.c.h.b16 %v5001
    %v5266 = vunpack.c.l.b16 %v5002
    %v5267 = vunpack.c.h.b16 %v5002
    %v5268 = vunpack.c.l.b16 %v5003
    %v5269 = vunpack.c.h.b16 %v5003
    %v5270 = vunpack.c.l.b16 %v5004
    %v5271 = vunpack.c.h.b16 %v5004
    %v5272 = vunpack.c.l.b16 %v5005
    %v5273 = vunpack.c.h.b16 %v5005
    %v5274 = vunpack.c.l.b16 %v5006
    %v5275 = vunpack.c.h.b16 %v5006
    %v5276 = vunpack.c.l.b16 %v5007
    %v5277 = vunpack.c.h.b16 %v5007
    %v5278 = vunpack.c.l.b16 %v5008
    %v5279 = vunpack.c.h.b16 %v5008
    %v5280 = vunpack.c.l.b16 %v5009
    %v5281 = vunpack.c.h.b16 %v5009
    %v5282 = vunpack.c.l.b16 %v5010
    %v5283 = vunpack.c.h.b16 %v5010
    %v5284 = vunpack.c.l.b16 %v5011
    %v5285 = vunpack.c.h.b16 %v5011
    %v5286 = vunpack.c.l.b16 %v5012
    %v5287 = vunpack.c.h.b16 %v5012
    %v5288 = vunpack.c.l.b16 %v5013
    %v5289 = vunpack.c.h.b16 %v5013
    %v5290 = vunpack.c.l.b16 %v5014
    %v5291 = vunpack.c.h.b16 %v5014
    %v5292 = vunpack.c.l.b16 %v5015
    %v5293 = vunpack.c.h.b16 %v5015
    %v5294 = vunpack.c.l.b16 %v5016
    %v5295 = vunpack.c.h.b16 %v5016
    %v5296 = vunpack.c.l.b16 %v5017
    %v5297 = vunpack.c.h.b16 %v5017
    %v5298 = vunpack.c.l.b16 %v5018
    %v5299 = vunpack.c.h.b16 %v5018
    %v5300 = vunpack.c.l.b16 %v5019
    %v5301 = vunpack.c.h.b16 %v5019
    %v5302 = vunpack.c.l.b16 %v5020
    %v5303 = vunpack.c.h.b16 %v5020
    %v5304 = vunpack.c.l.b16 %v5021
    %v5305 = vunpack.c.h.b16 %v5021
    %v5306 = vunpack.c.l.b16 %v5022
    %v5307 = vunpack.c.h.b16 %v5022
    %v5308 = vunpack.c.l.b16 %v5023
    %v5309 = vunpack.c.h.b16 %v5023
    %v5310 = vunpack.c.l.b16 %v5024
    %v5311 = vunpack.c.h.b16 %v5024
    %v5312 = vunpack.c.l.b16 %v5025
    %v5313 = vunpack.c.h.b16 %v5025
    %v5314 = vunpack.c.l.b16 %v5026
    %v5315 = vunpack.c.h.b16 %v5026
    %v5316 = vunpack.c.l.b16 %v5027
    %v5317 = vunpack.c.h.b16 %v5027
    %v5318 = vunpack.c.l.b16 %v5028
    %v5319 = vunpack.c.h.b16 %v5028
    %v5320 = vunpack.c.l.b16 %v5029
    %v5321 = vunpack.c.h.b16 %v5029
    %v5322 = vunpack.c.l.b16 %v5030
    %v5323 = vunpack.c.h.b16 %v5030
    %v5324 = vunpack.c.l.b16 %v5031
    %v5325 = vunpack.c.h.b16 %v5031
    %v5326 = vunpack.c.l.b16 %v5032
    %v5327 = vunpack.c.h.b16 %v5032
    %v5328 = vunpack.c.l.b16 %v5033
    %v5329 = vunpack.c.h.b16 %v5033
    %v5330 = vunpack.c.l.b16 %v5034
    %v5331 = vunpack.c.h.b16 %v5034
    %v5332 = vunpack.c.l.b16 %v5035
    %v5333 = vunpack.c.h.b16 %v5035
    %v5334 = vunpack.c.l.b16 %v5036
    %v5335 = vunpack.c.h.b16 %v5036
    %v5336 = vunpack.c.l.b16 %v5037
    %v5337 = vunpack.c.h.b16 %v5037
    %v5338 = vunpack.c.l.b16 %v5038
    %v5339 = vunpack.c.h.b16 %v5038
    %v5340 = vunpack.c.l.b16 %v5039
    %v5341 = vunpack.c.h.b16 %v5039
    %v5342 = vunpack.c.l.b16 %v5040
    %v5343 = vunpack.c.h.b16 %v5040
    %v5344 = vunpack.c.l.b16 %v5041
    %v5345 = vunpack.c.h.b16 %v5041
    %v5346 = vunpack.c.l.b16 %v5042
    %v5347 = vunpack.c.h.b16 %v5042
    %v5348 = vunpack.c.l.b16 %v5043
    %v5349 = vunpack.c.h.b16 %v5043
    %v5350 = vunpack.c.l.b16 %v5044
    %v5351 = vunpack.c.h.b16 %v5044
    %v5352 = vunpack.c.l.b16 %v5045
    %v5353 = vunpack.c.h.b16 %v5045
    %v5354 = vunpack.c.l.b16 %v5046
    %v5355 = vunpack.c.h.b16 %v5046
    %v5356 = vunpack.c.l.b16 %v5047
    %v5357 = vunpack.c.h.b16 %v5047
    %v5358 = vunpack.c.l.b16 %v5048
    %v5359 = vunpack.c.h.b16 %v5048
    %v5360 = vunpack.c.l.b16 %v5049
    %v5361 = vunpack.c.h.b16 %v5049
    %v5362 = vunpack.c.l.b16 %v5050
    %v5363 = vunpack.c.h.b16 %v5050
    %v5364 = vunpack.c.l.b16 %v5051
    %v5365 = vunpack.c.h.b16 %v5051
    %v5366 = vunpack.c.l.b16 %v5052
    %v5367 = vunpack.c.h.b16 %v5052
    %v5368 = vunpack.c.l.b16 %v5053
    %v5369 = vunpack.c.h.b16 %v5053
    %v5370 = vunpack.c.l.b16 %v5054
    %v5371 = vunpack.c.h.b16 %v5054
    %v5372 = vunpack.c.l.b16 %v5055
    %v5373 = vunpack.c.h.b16 %v5055
    %v5374 = vunpack.c.l.b16 %v5056
    %v5375 = vunpack.c.h.b16 %v5056
    %v5376 = vunpack.c.l.b16 %v5057
    %v5377 = vunpack.c.h.b16 %v5057
    %v5378 = vunpack.c.l.b16 %v5058
    %v5379 = vunpack.c.h.b16 %v5058
    %v5380 = vpack.c.b16 %v5194, %v5188
    %v5381 = vpack.c.b16 %v5195, %v5189
    %v5382 = vpack.c.b16 %v5196, %v5190
    %v5383 = vpack.c.b16 %v5197, %v5191
    %v5384 = vpack.c.b16 %v5198, %v5192
    %v5385 = vpack.c.b16 %v5199, %v5193
    %v5386 = vpack.c.b16 %v5206, %v5200
    %v5387 = vpack.c.b16 %v5207, %v5201
    %v5388 = vpack.c.b16 %v5208, %v5202
    %v5389 = vpack.c.b16 %v5209, %v5203
    %v5390 = vpack.c.b16 %v5210, %v5204
    %v5391 = vpack.c.b16 %v5211, %v5205
    %v5392 = vpack.c.b16 %v5218, %v5212
    %v5393 = vpack.c.b16 %v5219, %v5213
    %v5394 = vpack.c.b16 %v5220, %v5214
    %v5395 = vpack.c.b16 %v5221, %v5215
    %v5396 = vpack.c.b16 %v5222, %v5216
    %v5397 = vpack.c.b16 %v5223, %v5217
    %v5398 = vpack.c.b16 %v5230, %v5224
    %v5399 = vpack.c.b16 %v5231, %v5225
    %v5400 = vpack.c.b16 %v5232, %v5226
    %v5401 = vpack.c.b16 %v5233, %v5227
    %v5402 = vpack.c.b16 %v5234, %v5228
    %v5403 = vpack.c.b16 %v5235, %v5229
    %v5404 = vpack.c.b16 %v5242, %v5236
    %v5405 = vpack.c.b16 %v5243, %v5237
    %v5406 = vpack.c.b16 %v5244, %v5238
    %v5407 = vpack.c.b16 %v5245, %v5239
    %v5408 = vpack.c.b16 %v5246, %v5240
    %v5409 = vpack.c.b16 %v5247, %v5241
    %v5410 = vpack.c.b16 %v5254, %v5248
    %v5411 = vpack.c.b16 %v5255, %v5249
    %v5412 = vpack.c.b16 %v5256, %v5250
    %v5413 = vpack.c.b16 %v5257, %v5251
    %v5414 = vpack.c.b16 %v5258, %v5252
    %v5415 = vpack.c.b16 %v5259, %v5253
    %v5416 = vpack.c.b16 %v5266, %v5260
    %v5417 = vpack.c.b16 %v5267, %v5261
    %v5418 = vpack.c.b16 %v5268, %v5262
    %v5419 = vpack.c.b16 %v5269, %v5263
    %v5420 = vpack.c.b16 %v5270, %v5264
    %v5421 = vpack.c.b16 %v5271, %v5265
    %v5422 = vpack.c.b16 %v5278, %v5272
    %v5423 = vpack.c.b16 %v5279, %v5273
    %v5424 = vpack.c.b16 %v5280, %v5274
    %v5425 = vpack.c.b16 %v5281, %v5275
    %v5426 = vpack.c.b16 %v5282, %v5276
    %v5427 = vpack.c.b16 %v5283, %v5277
    %v5428 = vpack.c.b16 %v5290, %v5284
    %v5429 = vpack.c.b16 %v5291, %v5285
    %v5430 = vpack.c.b16 %v5292, %v5286
    %v5431 = vpack.c.b16 %v5293, %v5287
    %v5432 = vpack.c.b16 %v5294, %v5288
    %v5433 = vpack.c.b16 %v5295, %v5289
    %v5434 = vpack.c.b16 %v5302, %v5296
    %v5435 = vpack.c.b16 %v5303, %v5297
    %v5436 = vpack.c.b16 %v5304, %v5298
    %v5437 = vpack.c.b16 %v5305, %v5299
    %v5438 = vpack.c.b16 %v5306, %v5300
    %v5439 = vpack.c.b16 %v5307, %v5301
    %v5440 = vpack.c.b16 %v5314, %v5308
    %v5441 = vpack.c.b16 %v5315, %v5309
    %v5442 = vpack.c.b16 %v5316, %v5310
    %v5443 = vpack.c.b16 %v5317, %v5311
    %v5444 = vpack.c.b16 %v5318, %v5312
    %v5445 = vpack.c.b16 %v5319, %v5313
    %v5446 = vpack.c.b16 %v5326, %v5320
    %v5447 = vpack.c.b16 %v5327, %v5321
    %v5448 = vpack.c.b16 %v5328, %v5322
    %v5449 = vpack.c.b16 %v5329, %v5323
    %v5450 = vpack.c.b16 %v5330, %v5324
    %v5451 = vpack.c.b16 %v5331, %v5325
    %v5452 = vpack.c.b16 %v5338, %v5332
    %v5453 = vpack.c.b16 %v5339, %v5333
    %v5454 = vpack.c.b16 %v5340, %v5334
    %v5455 = vpack.c.b16 %v5341, %v5335
    %v5456 = vpack.c.b16 %v5342, %v5336
    %v5457 = vpack.c.b16 %v5343, %v5337
    %v5458 = vpack.c.b16 %v5350, %v5344
    %v5459 = vpack.c.b16 %v5351, %v5345
    %v5460 = vpack.c.b16 %v5352, %v5346
    %v5461 = vpack.c.b16 %v5353, %v5347
    %v5462 = vpack.c.b16 %v5354, %v5348
    %v5463 = vpack.c.b16 %v5355, %v5349
    %v5464 = vpack.c.b16 %v5362, %v5356
    %v5465 = vpack.c.b16 %v5363, %v5357
    %v5466 = vpack.c.b16 %v5364, %v5358
    %v5467 = vpack.c.b16 %v5365, %v5359
    %v5468 = vpack.c.b16 %v5366, %v5360
    %v5469 = vpack.c.b16 %v5367, %v5361
    %v5470 = vpack.c.b16 %v5374, %v5368
    %v5471 = vpack.c.b16 %v5375, %v5369
    %v5472 = vpack.c.b16 %v5376, %v5370
    %v5473 = vpack.c.b16 %v5377, %v5371
    %v5474 = vpack.c.b16 %v5378, %v5372
    %v5475 = vpack.c.b16 %v5379, %v5373
    %5572 = vmatprep.subr.bf16.mxu0 %v5381
    %5573 = vmatpush1.bf16.msra.mxu0 %v5380
    %5574 = vmatprep.subr.bf16.mxu0 %v5387
    %5575 = vmatpush1.bf16.msra.mxu0 %v5386
    %5576 = vmatprep.subr.bf16.mxu0 %v5393
    %5577 = vmatpush1.bf16.msra.mxu0 %v5392
    %5578 = vmatprep.subr.bf16.mxu0 %v5399
    %5579 = vmatpush1.bf16.msra.mxu0 %v5398
    %5580 = vmatprep.subr.bf16.mxu0 %v5405
    %5581 = vmatpush1.bf16.msra.mxu0 %v5404
    %5582 = vmatprep.subr.bf16.mxu0 %v5411
    %5583 = vmatpush1.bf16.msra.mxu0 %v5410
    %5584 = vmatprep.subr.bf16.mxu0 %v5417
    %5585 = vmatpush1.bf16.msra.mxu0 %v5416
    %5586 = vmatprep.subr.bf16.mxu0 %v5423
    %5587 = vmatpush1.bf16.msra.mxu0 %v5422
    %5588 = vmatprep.subr.bf16.mxu0 %v5429
    %5589 = vmatpush1.bf16.msra.mxu0 %v5428
    %5590 = vmatprep.subr.bf16.mxu0 %v5435
    %5591 = vmatpush1.bf16.msra.mxu0 %v5434
    %5592 = vmatprep.subr.bf16.mxu0 %v5441
    %5593 = vmatpush1.bf16.msra.mxu0 %v5440
    %5594 = vmatprep.subr.bf16.mxu0 %v5447
    %5595 = vmatpush1.bf16.msra.mxu0 %v5446
    %5596 = vmatprep.subr.bf16.mxu0 %v5453
    %5597 = vmatpush1.bf16.msra.mxu0 %v5452
    %5598 = vmatprep.subr.bf16.mxu0 %v5459
    %5599 = vmatpush1.bf16.msra.mxu0 %v5458
    %5600 = vmatprep.subr.bf16.mxu0 %v5465
    %5601 = vmatpush1.bf16.msra.mxu0 %v5464
    %5602 = vmatprep.subr.bf16.mxu0 %v5471
    %5603 = vmatpush1.bf16.msra.mxu0 %v5470
    %5604 = vmatprep.mubr.bf16.mxu0 %v4955
    %5605 = vmatmul.mubr.bf16.gmra.mrb[0].mxu0 %v4954
    %v5606 = vpop.f32.mrb[0].mxu0
    %v5607 = vadd.f32 %v5065, %v5606
    %v5608 = vpop.f32.mrb[0].mxu0
    %v5609 = vadd.f32 %v5069, %v5608
    %v5610 = vpop.f32.mrb[0].mxu0
    %v5611 = vadd.f32 %v5065, %v5610
    %v5612 = vpop.f32.mrb[0].mxu0
    %v5613 = vadd.f32 %v5069, %v5612
    %5614 = vmatprep.mubr.bf16.mxu0 %v4957
    %5615 = vmatmul.mubr.bf16.gmra.mrb[0].mxu0 %v4956
    %v5616 = vpop.f32.mrb[0].mxu0
    %v5617 = vadd.f32 %v5065, %v5616
    %v5618 = vpop.f32.mrb[0].mxu0
    %v5619 = vadd.f32 %v5069, %v5618
    %v5620 = vpop.f32.mrb[0].mxu0
    %v5621 = vadd.f32 %v5065, %v5620
    %v5622 = vpop.f32.mrb[0].mxu0
    %v5623 = vadd.f32 %v5069, %v5622
    %5624 = vmatprep.mubr.bf16.mxu0 %v4959
    %5625 = vmatmul.mubr.bf16.gmra.mrb[0].mxu0 %v4958
    %v5626 = vpop.f32.mrb[0].mxu0
    %v5627 = vadd.f32 %v5065, %v5626
    %v5628 = vpop.f32.mrb[0].mxu0
    %v5629 = vadd.f32 %v5069, %v5628
    %v5630 = vpop.f32.mrb[0].mxu0
    %v5631 = vadd.f32 %v5065, %v5630
    %v5632 = vpop.f32.mrb[0].mxu0
    %v5633 = vadd.f32 %v5069, %v5632
    %5634 = vmatprep.mubr.bf16.mxu0 %v4961
    %5635 = vmatmul.mubr.bf16.gmra.mrb[0].mxu0 %v4960
    %v5636 = vpop.f32.mrb[0].mxu0
    %v5637 = vadd.f32 %v5065, %v5636
    %v5638 = vpop.f32.mrb[0].mxu0
    %v5639 = vadd.f32 %v5069, %v5638
    %v5640 = vpop.f32.mrb[0].mxu0
    %v5641 = vadd.f32 %v5065, %v5640
    %v5642 = vpop.f32.mrb[0].mxu0
    %v5643 = vadd.f32 %v5069, %v5642
    %5644 = vdwg.mxu0
    %5645 = vmatprep.subr.bf16.mxu0 %v5383
    %5646 = vmatpush1.bf16.msra.mxu0 %v5382
    %5647 = vmatprep.subr.bf16.mxu0 %v5389
    %5648 = vmatpush1.bf16.msra.mxu0 %v5388
    %5649 = vmatprep.subr.bf16.mxu0 %v5395
    %5650 = vmatpush1.bf16.msra.mxu0 %v5394
    %5651 = vmatprep.subr.bf16.mxu0 %v5401
    %5652 = vmatpush1.bf16.msra.mxu0 %v5400
    %5653 = vmatprep.subr.bf16.mxu0 %v5407
    %5654 = vmatpush1.bf16.msra.mxu0 %v5406
    %5655 = vmatprep.subr.bf16.mxu0 %v5413
    %5656 = vmatpush1.bf16.msra.mxu0 %v5412
    %5657 = vmatprep.subr.bf16.mxu0 %v5419
    %5658 = vmatpush1.bf16.msra.mxu0 %v5418
    %5659 = vmatprep.subr.bf16.mxu0 %v5425
    %5660 = vmatpush1.bf16.msra.mxu0 %v5424
    %5661 = vmatprep.subr.bf16.mxu0 %v5431
    %5662 = vmatpush1.bf16.msra.mxu0 %v5430
    %5663 = vmatprep.subr.bf16.mxu0 %v5437
    %5664 = vmatpush1.bf16.msra.mxu0 %v5436
    %5665 = vmatprep.subr.bf16.mxu0 %v5443
    %5666 = vmatpush1.bf16.msra.mxu0 %v5442
    %5667 = vmatprep.subr.bf16.mxu0 %v5449
    %5668 = vmatpush1.bf16.msra.mxu0 %v5448
    %5669 = vmatprep.subr.bf16.mxu0 %v5455
    %5670 = vmatpush1.bf16.msra.mxu0 %v5454
    %5671 = vmatprep.subr.bf16.mxu0 %v5461
    %5672 = vmatpush1.bf16.msra.mxu0 %v5460
    %5673 = vmatprep.subr.bf16.mxu0 %v5467
    %5674 = vmatpush1.bf16.msra.mxu0 %v5466
    %5675 = vmatprep.subr.bf16.mxu0 %v5473
    %5676 = vmatpush1.bf16.msra.mxu0 %v5472
    %5677 = vmatprep.mubr.bf16.mxu0 %v4955
    %5678 = vmatmul.mubr.bf16.gmra.mrb[0].mxu0 %v4954
    %v5679 = vpop.f32.mrb[0].mxu0
    %v5680 = vadd.f32 %v5073, %v5679
    %v5681 = vpop.f32.mrb[0].mxu0
    %v5682 = vadd.f32 %v5077, %v5681
    %v5683 = vpop.f32.mrb[0].mxu0
    %v5684 = vadd.f32 %v5073, %v5683
    %v5685 = vpop.f32.mrb[0].mxu0
    %v5686 = vadd.f32 %v5077, %v5685
    %5687 = vmatprep.mubr.bf16.mxu0 %v4957
    %5688 = vmatmul.mubr.bf16.gmra.mrb[0].mxu0 %v4956
    %v5689 = vpop.f32.mrb[0].mxu0
    %v5690 = vadd.f32 %v5073, %v5689
    %v5691 = vpop.f32.mrb[0].mxu0
    %v5692 = vadd.f32 %v5077, %v5691
    %v5693 = vpop.f32.mrb[0].mxu0
    %v5694 = vadd.f32 %v5073, %v5693
    %v5695 = vpop.f32.mrb[0].mxu0
    %v5696 = vadd.f32 %v5077, %v5695
    %5697 = vmatprep.mubr.bf16.mxu0 %v4959
    %5698 = vmatmul.mubr.bf16.gmra.mrb[0].mxu0 %v4958
    %v5699 = vpop.f32.mrb[0].mxu0
    %v5700 = vadd.f32 %v5073, %v5699
    %v5701 = vpop.f32.mrb[0].mxu0
    %v5702 = vadd.f32 %v5077, %v5701
    %v5703 = vpop.f32.mrb[0].mxu0
    %v5704 = vadd.f32 %v5073, %v5703
    %v5705 = vpop.f32.mrb[0].mxu0
    %v5706 = vadd.f32 %v5077, %v5705
    %5707 = vmatprep.mubr.bf16.mxu0 %v4961
    %5708 = vmatmul.mubr.bf16.gmra.mrb[0].mxu0 %v4960
    %v5709 = vpop.f32.mrb[0].mxu0
    %v5710 = vadd.f32 %v5073, %v5709
    %v5711 = vpop.f32.mrb[0].mxu0
    %v5712 = vadd.f32 %v5077, %v5711
    %v5713 = vpop.f32.mrb[0].mxu0
    %v5714 = vadd.f32 %v5073, %v5713
    %v5715 = vpop.f32.mrb[0].mxu0
    %v5716 = vadd.f32 %v5077, %v5715
    %5717 = vdwg.mxu0
    %5718 = vmatprep.subr.bf16.mxu0 %v5385
    %5719 = vmatpush1.bf16.msra.mxu0 %v5384
    %5720 = vmatprep.subr.bf16.mxu0 %v5391
    %5721 = vmatpush1.bf16.msra.mxu0 %v5390
    %5722 = vmatprep.subr.bf16.mxu0 %v5397
    %5723 = vmatpush1.bf16.msra.mxu0 %v5396
    %5724 = vmatprep.subr.bf16.mxu0 %v5403
    %5725 = vmatpush1.bf16.msra.mxu0 %v5402
    %5726 = vmatprep.subr.bf16.mxu0 %v5409
    %5727 = vmatpush1.bf16.msra.mxu0 %v5408
    %5728 = vmatprep.subr.bf16.mxu0 %v5415
    %5729 = vmatpush1.bf16.msra.mxu0 %v5414
    %5730 = vmatprep.subr.bf16.mxu0 %v5421
    %5731 = vmatpush1.bf16.msra.mxu0 %v5420
    %5732 = vmatprep.subr.bf16.mxu0 %v5427
    %5733 = vmatpush1.bf16.msra.mxu0 %v5426
    %5734 = vmatprep.subr.bf16.mxu0 %v5433
    %5735 = vmatpush1.bf16.msra.mxu0 %v5432
    %5736 = vmatprep.subr.bf16.mxu0 %v5439
    %5737 = vmatpush1.bf16.msra.mxu0 %v5438
    %5738 = vmatprep.subr.bf16.mxu0 %v5445
    %5739 = vmatpush1.bf16.msra.mxu0 %v5444
    %5740 = vmatprep.subr.bf16.mxu0 %v5451
    %5741 = vmatpush1.bf16.msra.mxu0 %v5450
    %5742 = vmatprep.subr.bf16.mxu0 %v5457
    %5743 = vmatpush1.bf16.msra.mxu0 %v5456
    %5744 = vmatprep.subr.bf16.mxu0 %v5463
    %5745 = vmatpush1.bf16.msra.mxu0 %v5462
    %5746 = vmatprep.subr.bf16.mxu0 %v5469
    %5747 = vmatpush1.bf16.msra.mxu0 %v5468
    %5748 = vmatprep.subr.bf16.mxu0 %v5475
    %5749 = vmatpush1.bf16.msra.mxu0 %v5474
    %5750 = vmatprep.mubr.bf16.mxu0 %v4955
    %5751 = vmatmul.mubr.bf16.gmra.mrb[0].mxu0 %v4954
    %v5752 = vpop.f32.mrb[0].mxu0
    %v5753 = vadd.f32 %v5081, %v5752
    %v5754 = vpop.f32.mrb[0].mxu0
    %v5755 = vadd.f32 %v5085, %v5754
    %v5756 = vpop.f32.mrb[0].mxu0
    %v5757 = vadd.f32 %v5081, %v5756
    %v5758 = vpop.f32.mrb[0].mxu0
    %v5759 = vadd.f32 %v5085, %v5758
    %5760 = vmatprep.mubr.bf16.mxu0 %v4957
    %5761 = vmatmul.mubr.bf16.gmra.mrb[0].mxu0 %v4956
    %v5762 = vpop.f32.mrb[0].mxu0
    %v5763 = vadd.f32 %v5081, %v5762
    %v5764 = vpop.f32.mrb[0].mxu0
    %v5765 = vadd.f32 %v5085, %v5764
    %v5766 = vpop.f32.mrb[0].mxu0
    %v5767 = vadd.f32 %v5081, %v5766
    %v5768 = vpop.f32.mrb[0].mxu0
    %v5769 = vadd.f32 %v5085, %v5768
    %5770 = vmatprep.mubr.bf16.mxu0 %v4959
    %5771 = vmatmul.mubr.bf16.gmra.mrb[0].mxu0 %v4958
    %v5772 = vpop.f32.mrb[0].mxu0
    %v5773 = vadd.f32 %v5081, %v5772
    %v5774 = vpop.f32.mrb[0].mxu0
    %v5775 = vadd.f32 %v5085, %v5774
    %v5776 = vpop.f32.mrb[0].mxu0
    %v5777 = vadd.f32 %v5081, %v5776
    %v5778 = vpop.f32.mrb[0].mxu0
    %v5779 = vadd.f32 %v5085, %v5778
    %5780 = vmatprep.mubr.bf16.mxu0 %v4961
    %5781 = vmatmul.mubr.bf16.gmra.mrb[0].mxu0 %v4960
    %v5782 = vpop.f32.mrb[0].mxu0
    %v5783 = vadd.f32 %v5081, %v5782
    %v5784 = vpop.f32.mrb[0].mxu0
    %v5785 = vadd.f32 %v5085, %v5784
    %v5786 = vpop.f32.mrb[0].mxu0
    %v5787 = vadd.f32 %v5081, %v5786
    %v5788 = vpop.f32.mrb[0].mxu0
    %v5789 = vadd.f32 %v5085, %v5788
    %5790 = vdwg.mxu0
    %v5791 = vpack.c.bf16 %v5611, %v5607
    %v5792 = vpack.c.bf16 %v5621, %v5617
    %v5793 = vpack.c.bf16 %v5631, %v5627
    %v5794 = vpack.c.bf16 %v5641, %v5637
    %v5795 = vpack.c.bf16 %v5684, %v5680
    %v5796 = vpack.c.bf16 %v5694, %v5690
    %v5797 = vpack.c.bf16 %v5704, %v5700
    %v5798 = vpack.c.bf16 %v5714, %v5710
    %v5800 = vsel %vm1366, %v5791, 0
    %v5803 = vsel %vm1366, %v5792, 0
    %v5806 = vsel %vm1366, %v5795, 0
    %v5809 = vsel %vm1366, %v5796, 0
    %5811 = vmatprep.subr.bf16.mxu0 0
    %5812 = vmatpush1.bf16.xpose.msra.mxu0 %v5806
    %5813 = vmatprep.subr.bf16.mxu0 0
    %5814 = vmatpush1.bf16.xpose.msra.mxu0 %v5809
    %5815 = vmatprep.subr.bf16.mxu0 0
    %5816 = vmatpush1.bf16.xpose.msra.mxu0 0
    %5817 = vmatprep.subr.bf16.mxu0 0
    %5818 = vmatpush1.bf16.xpose.msra.mxu0 0
    %5819 = vmatprep.subr.bf16.mxu0 0
    %5820 = vmatpush1.bf16.xpose.msra.mxu0 0
    %5821 = vmatprep.subr.bf16.mxu0 0
    %5822 = vmatpush1.bf16.xpose.msra.mxu0 0
    %5823 = vmatprep.subr.bf16.mxu0 0
    %5824 = vmatpush1.bf16.xpose.msra.mxu0 0
    %5825 = vmatprep.subr.bf16.mxu0 0
    %5826 = vmatpush1.bf16.xpose.msra.mxu0 0
    %5827 = vmatprep.subr.bf16.mxu0 0
    %5828 = vmatpush1.bf16.xpose.msra.mxu0 0
    %5829 = vmatprep.subr.bf16.mxu0 0
    %5830 = vmatpush1.bf16.xpose.msra.mxu0 0
    %5831 = vmatprep.subr.bf16.mxu0 0
    %5832 = vmatpush1.bf16.xpose.msra.mxu0 0
    %5833 = vmatprep.subr.bf16.mxu0 0
    %5834 = vmatpush1.bf16.xpose.msra.mxu0 0
    %5835 = vmatprep.subr.bf16.mxu0 0
    %5836 = vmatpush1.bf16.xpose.msra.mxu0 0
    %5837 = vmatprep.subr.bf16.mxu0 0
    %5838 = vmatpush1.bf16.xpose.msra.mxu0 0
    %5839 = vmatprep.subr.bf16.mxu0 0
    %5840 = vmatpush1.bf16.xpose.msra.mxu0 0
    %5841 = vmatprep.subr.bf16.mxu0 0
    %5842 = vmatpush1.bf16.xpose.msra.mxu0 0
    %5843 = vmatprep.mubr.bf16.mxu0 0
    %5844 = vmatmul.mubr.bf16.gmra.mrb[0].mxu0 %v5800
    %v5845 = vpop.f32.mrb[0].mxu0
    %v5846 = vadd.f32 0.0, %v5845
    %v5847 = vpop.f32.mrb[0].mxu0
    %v5848 = vpop.f32.mrb[0].mxu0
    %v5849 = vadd.f32 0.0, %v5848
    %v5850 = vpop.f32.mrb[0].mxu0
    %5851 = vmatprep.mubr.bf16.mxu0 0
    %5852 = vmatmul.mubr.bf16.gmra.mrb[0].mxu0 %v5803
    %v5853 = vpop.f32.mrb[0].mxu0
    %v5854 = vadd.f32 0.0, %v5853
    %v5855 = vpop.f32.mrb[0].mxu0
    %v5856 = vpop.f32.mrb[0].mxu0
    %v5857 = vadd.f32 0.0, %v5856
    %v5858 = vpop.f32.mrb[0].mxu0
    %5859 = vdwg.mxu0
    %v5861 = vsel %vm1366, %v5793, 0
    %v5864 = vsel %vm1366, %v5794, 0
    %v5867 = vsel %vm1366, %v5797, 0
    %v5870 = vsel %vm1366, %v5798, 0
    %5872 = vmatprep.subr.bf16.mxu0 0
    %5873 = vmatpush1.bf16.xpose.msra.mxu0 %v5867
    %5874 = vmatprep.subr.bf16.mxu0 0
    %5875 = vmatpush1.bf16.xpose.msra.mxu0 %v5870
    %5876 = vmatprep.subr.bf16.mxu0 0
    %5877 = vmatpush1.bf16.xpose.msra.mxu0 0
    %5878 = vmatprep.subr.bf16.mxu0 0
    %5879 = vmatpush1.bf16.xpose.msra.mxu0 0
    %5880 = vmatprep.subr.bf16.mxu0 0
    %5881 = vmatpush1.bf16.xpose.msra.mxu0 0
    %5882 = vmatprep.subr.bf16.mxu0 0
    %5883 = vmatpush1.bf16.xpose.msra.mxu0 0
    %5884 = vmatprep.subr.bf16.mxu0 0
    %5885 = vmatpush1.bf16.xpose.msra.mxu0 0
    %5886 = vmatprep.subr.bf16.mxu0 0
    %5887 = vmatpush1.bf16.xpose.msra.mxu0 0
    %5888 = vmatprep.subr.bf16.mxu0 0
    %5889 = vmatpush1.bf16.xpose.msra.mxu0 0
    %5890 = vmatprep.subr.bf16.mxu0 0
    %5891 = vmatpush1.bf16.xpose.msra.mxu0 0
    %5892 = vmatprep.subr.bf16.mxu0 0
    %5893 = vmatpush1.bf16.xpose.msra.mxu0 0
    %5894 = vmatprep.subr.bf16.mxu0 0
    %5895 = vmatpush1.bf16.xpose.msra.mxu0 0
    %5896 = vmatprep.subr.bf16.mxu0 0
    %5897 = vmatpush1.bf16.xpose.msra.mxu0 0
    %5898 = vmatprep.subr.bf16.mxu0 0
    %5899 = vmatpush1.bf16.xpose.msra.mxu0 0
    %5900 = vmatprep.subr.bf16.mxu0 0
    %5901 = vmatpush1.bf16.xpose.msra.mxu0 0
    %5902 = vmatprep.subr.bf16.mxu0 0
    %5903 = vmatpush1.bf16.xpose.msra.mxu0 0
    %5904 = vmatprep.mubr.bf16.mxu0 0
    %5905 = vmatmul.mubr.bf16.gmra.mrb[0].mxu0 %v5861
    %v5906 = vpop.f32.mrb[0].mxu0
    %v5907 = vadd.f32 0.0, %v5906
    %v5908 = vpop.f32.mrb[0].mxu0
    %v5909 = vpop.f32.mrb[0].mxu0
    %v5910 = vadd.f32 0.0, %v5909
    %v5911 = vpop.f32.mrb[0].mxu0
    %5912 = vmatprep.mubr.bf16.mxu0 0
    %5913 = vmatmul.mubr.bf16.gmra.mrb[0].mxu0 %v5864
    %v5914 = vpop.f32.mrb[0].mxu0
    %v5915 = vadd.f32 0.0, %v5914
    %v5916 = vpop.f32.mrb[0].mxu0
    %v5917 = vpop.f32.mrb[0].mxu0
    %v5918 = vadd.f32 0.0, %v5917
    %v5919 = vpop.f32.mrb[0].mxu0
    %5920 = vdwg.mxu0
    %v5921 = vmul.f32 %v5846, 0.125
    %v5922 = vmul.f32 %v5849, 0.125
    %v5923 = vmul.f32 %v5854, 0.125
    %v5924 = vmul.f32 %v5857, 0.125
    %v5925 = vmul.f32 %v5907, 0.125
    %v5926 = vmul.f32 %v5910, 0.125
    %v5927 = vmul.f32 %v5915, 0.125
    %v5928 = vmul.f32 %v5918, 0.125
    %v5929 = vsel %vm1497, %v5921, -inf
    %5930 = vmax.xlane.f32.xlu0 %v5929
    %v5931 = vpop.xlane.xlu0 %5930
    %v5932 = vsel %vm1497, %v5922, -inf
    %5933 = vmax.xlane.f32.xlu0 %v5932
    %v5934 = vpop.xlane.xlu0 %5933
    %v5935 = vsel %vm1497, %v5923, -inf
    %5936 = vmax.xlane.f32.xlu0 %v5935
    %v5937 = vpop.xlane.xlu0 %5936
    %v5938 = vsel %vm1497, %v5924, -inf
    %5939 = vmax.xlane.f32.xlu0 %v5938
    %v5940 = vpop.xlane.xlu0 %5939
    %v5941 = vsel %vm1497, %v5925, -inf
    %5942 = vmax.xlane.f32.xlu0 %v5941
    %v5943 = vpop.xlane.xlu0 %5942
    %v5944 = vsel %vm1497, %v5926, -inf
    %5945 = vmax.xlane.f32.xlu0 %v5944
    %v5946 = vpop.xlane.xlu0 %5945
    %v5947 = vsel %vm1497, %v5927, -inf
    %5948 = vmax.xlane.f32.xlu0 %v5947
    %v5949 = vpop.xlane.xlu0 %5948
    %v5950 = vsel %vm1497, %v5928, -inf
    %5951 = vmax.xlane.f32.xlu0 %v5950
    %v5952 = vpop.xlane.xlu0 %5951
    %v5953 = vsub.f32 %v5921, %v5931
    %v5954 = vsub.f32 %v5922, %v5934
    %v5955 = vsub.f32 %v5923, %v5937
    %v5956 = vsub.f32 %v5924, %v5940
    %v5957 = vsub.f32 %v5925, %v5943
    %v5958 = vsub.f32 %v5926, %v5946
    %v5959 = vsub.f32 %v5927, %v5949
    %v5960 = vsub.f32 %v5928, %v5952
    %v5961 = vmul.f32 %v5953, 1.442695
    %v5962 = vpow.pop %v5961
    %v5963 = vmul.f32 %v5954, 1.442695
    %v5964 = vpow.pop %v5963
    %v5965 = vmul.f32 %v5955, 1.442695
    %v5966 = vpow.pop %v5965
    %v5967 = vmul.f32 %v5956, 1.442695
    %v5968 = vpow.pop %v5967
    %v5969 = vmul.f32 %v5957, 1.442695
    %v5970 = vpow.pop %v5969
    %v5971 = vmul.f32 %v5958, 1.442695
    %v5972 = vpow.pop %v5971
    %v5973 = vmul.f32 %v5959, 1.442695
    %v5974 = vpow.pop %v5973
    %v5975 = vmul.f32 %v5960, 1.442695
    %v5976 = vpow.pop %v5975
    %v5977 = vsel %vm1497, %v5962, 0.0
    %5978 = vadd.xlane.f32.xlu0 %v5977
    %v5979 = vpop.xlane.xlu0 %5978
    %v5980 = vsel %vm1497, %v5964, 0.0
    %5981 = vadd.xlane.f32.xlu0 %v5980
    %v5982 = vpop.xlane.xlu0 %5981
    %v5983 = vsel %vm1497, %v5966, 0.0
    %5984 = vadd.xlane.f32.xlu0 %v5983
    %v5985 = vpop.xlane.xlu0 %5984
    %v5986 = vsel %vm1497, %v5968, 0.0
    %5987 = vadd.xlane.f32.xlu0 %v5986
    %v5988 = vpop.xlane.xlu0 %5987
    %v5989 = vsel %vm1497, %v5970, 0.0
    %5990 = vadd.xlane.f32.xlu0 %v5989
    %v5991 = vpop.xlane.xlu0 %5990
    %v5992 = vsel %vm1497, %v5972, 0.0
    %5993 = vadd.xlane.f32.xlu0 %v5992
    %v5994 = vpop.xlane.xlu0 %5993
    %v5995 = vsel %vm1497, %v5974, 0.0
    %5996 = vadd.xlane.f32.xlu0 %v5995
    %v5997 = vpop.xlane.xlu0 %5996
    %v5998 = vsel %vm1497, %v5976, 0.0
    %5999 = vadd.xlane.f32.xlu0 %v5998
    %v6000 = vpop.xlane.xlu0 %5999
    %v6001 = vrcp.pop %v5979
    %v6002 = vrcp.pop %v5982
    %v6003 = vrcp.pop %v5985
    %v6004 = vrcp.pop %v5988
    %v6005 = vrcp.pop %v5991
    %v6006 = vrcp.pop %v5994
    %v6007 = vrcp.pop %v5997
    %v6008 = vrcp.pop %v6000
    %v6009 = vmul.f32 %v5962, %v6001
    %v6010 = vmul.f32 %v5964, %v6002
    %v6011 = vmul.f32 %v5966, %v6003
    %v6012 = vmul.f32 %v5968, %v6004
    %v6013 = vmul.f32 %v5970, %v6005
    %v6014 = vmul.f32 %v5972, %v6006
    %v6015 = vmul.f32 %v5974, %v6007
    %v6016 = vmul.f32 %v5976, %v6008
    %v6017 = vpack.c.bf16 %v6010, %v6009
    %v6018 = vpack.c.bf16 %v6012, %v6011
    %v6019 = vpack.c.bf16 %v6014, %v6013
    %v6020 = vpack.c.bf16 %v6016, %v6015
    %v6021 = vpack.c.bf16 %v5757, %v5753
    %v6022 = vpack.c.bf16 %v5767, %v5763
    %v6023 = vpack.c.bf16 %v5777, %v5773
    %v6024 = vpack.c.bf16 %v5787, %v5783
    %v6026 = vsel %vm1497, %v6017, 0
    %v6029 = vsel %vm1497, %v6018, 0
    %6031 = vmatprep.subr.bf16.mxu0 0
    %6032 = vmatpush1.bf16.msra.mxu0 %v6021
    %6033 = vmatprep.subr.bf16.mxu0 0
    %6034 = vmatpush1.bf16.msra.mxu0 %v6022
    %6035 = vmatprep.subr.bf16.mxu0 0
    %6036 = vmatpush1.bf16.msra.mxu0 0
    %6037 = vmatprep.subr.bf16.mxu0 0
    %6038 = vmatpush1.bf16.msra.mxu0 0
    %6039 = vmatprep.subr.bf16.mxu0 0
    %6040 = vmatpush1.bf16.msra.mxu0 0
    %6041 = vmatprep.subr.bf16.mxu0 0
    %6042 = vmatpush1.bf16.msra.mxu0 0
    %6043 = vmatprep.subr.bf16.mxu0 0
    %6044 = vmatpush1.bf16.msra.mxu0 0
    %6045 = vmatprep.subr.bf16.mxu0 0
    %6046 = vmatpush1.bf16.msra.mxu0 0
    %6047 = vmatprep.subr.bf16.mxu0 0
    %6048 = vmatpush1.bf16.msra.mxu0 0
    %6049 = vmatprep.subr.bf16.mxu0 0
    %6050 = vmatpush1.bf16.msra.mxu0 0
    %6051 = vmatprep.subr.bf16.mxu0 0
    %6052 = vmatpush1.bf16.msra.mxu0 0
    %6053 = vmatprep.subr.bf16.mxu0 0
    %6054 = vmatpush1.bf16.msra.mxu0 0
    %6055 = vmatprep.subr.bf16.mxu0 0
    %6056 = vmatpush1.bf16.msra.mxu0 0
    %6057 = vmatprep.subr.bf16.mxu0 0
    %6058 = vmatpush1.bf16.msra.mxu0 0
    %6059 = vmatprep.subr.bf16.mxu0 0
    %6060 = vmatpush1.bf16.msra.mxu0 0
    %6061 = vmatprep.subr.bf16.mxu0 0
    %6062 = vmatpush1.bf16.msra.mxu0 0
    %6063 = vmatprep.mubr.bf16.mxu0 0
    %6064 = vmatmul.mubr.bf16.gmra.mrb[0].mxu0 %v6026
    %v6065 = vpop.f32.mrb[0].mxu0
    %v6066 = vadd.f32 0.0, %v6065
    %v6067 = vpop.f32.mrb[0].mxu0
    %v6068 = vpop.f32.mrb[0].mxu0
    %v6069 = vadd.f32 0.0, %v6068
    %v6070 = vpop.f32.mrb[0].mxu0
    %6071 = vmatprep.mubr.bf16.mxu0 0
    %6072 = vmatmul.mubr.bf16.gmra.mrb[0].mxu0 %v6029
    %v6073 = vpop.f32.mrb[0].mxu0
    %v6074 = vadd.f32 0.0, %v6073
    %v6075 = vpop.f32.mrb[0].mxu0
    %v6076 = vpop.f32.mrb[0].mxu0
    %v6077 = vadd.f32 0.0, %v6076
    %v6078 = vpop.f32.mrb[0].mxu0
    %6079 = vdwg.mxu0
    %v6081 = vsel %vm1497, %v6019, 0
    %v6084 = vsel %vm1497, %v6020, 0
    %6086 = vmatprep.subr.bf16.mxu0 0
    %6087 = vmatpush1.bf16.msra.mxu0 %v6023
    %6088 = vmatprep.subr.bf16.mxu0 0
    %6089 = vmatpush1.bf16.msra.mxu0 %v6024
    %6090 = vmatprep.subr.bf16.mxu0 0
    %6091 = vmatpush1.bf16.msra.mxu0 0
    %6092 = vmatprep.subr.bf16.mxu0 0
    %6093 = vmatpush1.bf16.msra.mxu0 0
    %6094 = vmatprep.subr.bf16.mxu0 0
    %6095 = vmatpush1.bf16.msra.mxu0 0
    %6096 = vmatprep.subr.bf16.mxu0 0
    %6097 = vmatpush1.bf16.msra.mxu0 0
    %6098 = vmatprep.subr.bf16.mxu0 0
    %6099 = vmatpush1.bf16.msra.mxu0 0
    %6100 = vmatprep.subr.bf16.mxu0 0
    %6101 = vmatpush1.bf16.msra.mxu0 0
    %6102 = vmatprep.subr.bf16.mxu0 0
    %6103 = vmatpush1.bf16.msra.mxu0 0
    %6104 = vmatprep.subr.bf16.mxu0 0
    %6105 = vmatpush1.bf16.msra.mxu0 0
    %6106 = vmatprep.subr.bf16.mxu0 0
    %6107 = vmatpush1.bf16.msra.mxu0 0
    %6108 = vmatprep.subr.bf16.mxu0 0
    %6109 = vmatpush1.bf16.msra.mxu0 0
    %6110 = vmatprep.subr.bf16.mxu0 0
    %6111 = vmatpush1.bf16.msra.mxu0 0
    %6112 = vmatprep.subr.bf16.mxu0 0
    %6113 = vmatpush1.bf16.msra.mxu0 0
    %6114 = vmatprep.subr.bf16.mxu0 0
    %6115 = vmatpush1.bf16.msra.mxu0 0
    %6116 = vmatprep.subr.bf16.mxu0 0
    %6117 = vmatpush1.bf16.msra.mxu0 0
    %6118 = vmatprep.mubr.bf16.mxu0 0
    %6119 = vmatmul.mubr.bf16.gmra.mrb[0].mxu0 %v6081
    %v6120 = vpop.f32.mrb[0].mxu0
    %v6121 = vadd.f32 0.0, %v6120
    %v6122 = vpop.f32.mrb[0].mxu0
    %v6123 = vpop.f32.mrb[0].mxu0
    %v6124 = vadd.f32 0.0, %v6123
    %v6125 = vpop.f32.mrb[0].mxu0
    %6126 = vmatprep.mubr.bf16.mxu0 0
    %6127 = vmatmul.mubr.bf16.gmra.mrb[0].mxu0 %v6084
    %v6128 = vpop.f32.mrb[0].mxu0
    %v6129 = vadd.f32 0.0, %v6128
    %v6130 = vpop.f32.mrb[0].mxu0
    %v6131 = vpop.f32.mrb[0].mxu0
    %v6132 = vadd.f32 0.0, %v6131
    %v6133 = vpop.f32.mrb[0].mxu0
    %6134 = vdwg.mxu0
    %v6135 = vpack.c.bf16 %v6069, %v6066
    %v6136 = vpack.c.bf16 %v6077, %v6074
    %v6137 = vpack.c.bf16 %v6124, %v6121
    %v6138 = vpack.c.bf16 %v6132, %v6129
    %s6139 = scalar_lea.vmem [#allocation10], 256
    %v6140 = vld [vmem:[%s6139] sm:$0xff]
    %v6141 = vld [vmem:[%s6139 + $0x8] sm:$0xff]
    %v6142 = vld [vmem:[%s6139 + $0x10] sm:$0xff]
    %v6143 = vld [vmem:[%s6139 + $0x18] sm:$0xff]
    %v6144 = vld [vmem:[%s6139 + $0x20] sm:$0xff]
    %v6145 = vld [vmem:[%s6139 + $0x28] sm:$0xff]
    %v6146 = vld [vmem:[%s6139 + $0x30] sm:$0xff]
    %v6147 = vld [vmem:[%s6139 + $0x38] sm:$0xff]
    %6150 = vrot.lane.b32.xlu0 %v5791, 64
    %v6151 = vpop.permute.xlu0 %6150
    %6152 = vrot.lane.b32.xlu0 %v5792, 64
    %v6153 = vpop.permute.xlu0 %6152
    %6156 = vrot.lane.b32.xlu0 %v5795, 64
    %v6157 = vpop.permute.xlu0 %6156
    %6158 = vrot.lane.b32.xlu0 %v5796, 64
    %v6159 = vpop.permute.xlu0 %6158
    %v6161 = vsel %vm1366, %v6151, 0
    %v6164 = vsel %vm1366, %v6153, 0
    %v6167 = vsel %vm1366, %v6157, 0
    %v6170 = vsel %vm1366, %v6159, 0
    %6172 = vmatprep.subr.bf16.mxu0 0
    %6173 = vmatpush1.bf16.xpose.msra.mxu0 %v6167
    %6174 = vmatprep.subr.bf16.mxu0 0
    %6175 = vmatpush1.bf16.xpose.msra.mxu0 %v6170
    %6176 = vmatprep.subr.bf16.mxu0 0
    %6177 = vmatpush1.bf16.xpose.msra.mxu0 0
    %6178 = vmatprep.subr.bf16.mxu0 0
    %6179 = vmatpush1.bf16.xpose.msra.mxu0 0
    %6180 = vmatprep.subr.bf16.mxu0 0
    %6181 = vmatpush1.bf16.xpose.msra.mxu0 0
    %6182 = vmatprep.subr.bf16.mxu0 0
    %6183 = vmatpush1.bf16.xpose.msra.mxu0 0
    %6184 = vmatprep.subr.bf16.mxu0 0
    %6185 = vmatpush1.bf16.xpose.msra.mxu0 0
    %6186 = vmatprep.subr.bf16.mxu0 0
    %6187 = vmatpush1.bf16.xpose.msra.mxu0 0
    %6188 = vmatprep.subr.bf16.mxu0 0
    %6189 = vmatpush1.bf16.xpose.msra.mxu0 0
    %6190 = vmatprep.subr.bf16.mxu0 0
    %6191 = vmatpush1.bf16.xpose.msra.mxu0 0
    %6192 = vmatprep.subr.bf16.mxu0 0
    %6193 = vmatpush1.bf16.xpose.msra.mxu0 0
    %6194 = vmatprep.subr.bf16.mxu0 0
    %6195 = vmatpush1.bf16.xpose.msra.mxu0 0
    %6196 = vmatprep.subr.bf16.mxu0 0
    %6197 = vmatpush1.bf16.xpose.msra.mxu0 0
    %6198 = vmatprep.subr.bf16.mxu0 0
    %6199 = vmatpush1.bf16.xpose.msra.mxu0 0
    %6200 = vmatprep.subr.bf16.mxu0 0
    %6201 = vmatpush1.bf16.xpose.msra.mxu0 0
    %6202 = vmatprep.subr.bf16.mxu0 0
    %6203 = vmatpush1.bf16.xpose.msra.mxu0 0
    %6204 = vmatprep.mubr.bf16.mxu0 0
    %6205 = vmatmul.mubr.bf16.gmra.mrb[0].mxu0 %v6161
    %v6206 = vpop.f32.mrb[0].mxu0
    %v6207 = vadd.f32 0.0, %v6206
    %v6208 = vpop.f32.mrb[0].mxu0
    %v6209 = vpop.f32.mrb[0].mxu0
    %v6210 = vadd.f32 0.0, %v6209
    %v6211 = vpop.f32.mrb[0].mxu0
    %6212 = vmatprep.mubr.bf16.mxu0 0
    %6213 = vmatmul.mubr.bf16.gmra.mrb[0].mxu0 %v6164
    %v6214 = vpop.f32.mrb[0].mxu0
    %v6215 = vadd.f32 0.0, %v6214
    %v6216 = vpop.f32.mrb[0].mxu0
    %v6217 = vpop.f32.mrb[0].mxu0
    %v6218 = vadd.f32 0.0, %v6217
    %v6219 = vpop.f32.mrb[0].mxu0
    %6220 = vdwg.mxu0
    %6223 = vrot.lane.b32.xlu0 %v5793, 64
    %v6224 = vpop.permute.xlu0 %6223
    %6225 = vrot.lane.b32.xlu0 %v5794, 64
    %v6226 = vpop.permute.xlu0 %6225
    %6229 = vrot.lane.b32.xlu0 %v5797, 64
    %v6230 = vpop.permute.xlu0 %6229
    %6231 = vrot.lane.b32.xlu0 %v5798, 64
    %v6232 = vpop.permute.xlu0 %6231
    %v6234 = vsel %vm1366, %v6224, 0
    %v6237 = vsel %vm1366, %v6226, 0
    %v6240 = vsel %vm1366, %v6230, 0
    %v6243 = vsel %vm1366, %v6232, 0
    %6245 = vmatprep.subr.bf16.mxu0 0
    %6246 = vmatpush1.bf16.xpose.msra.mxu0 %v6240
    %6247 = vmatprep.subr.bf16.mxu0 0
    %6248 = vmatpush1.bf16.xpose.msra.mxu0 %v6243
    %6249 = vmatprep.subr.bf16.mxu0 0
    %6250 = vmatpush1.bf16.xpose.msra.mxu0 0
    %6251 = vmatprep.subr.bf16.mxu0 0
    %6252 = vmatpush1.bf16.xpose.msra.mxu0 0
    %6253 = vmatprep.subr.bf16.mxu0 0
    %6254 = vmatpush1.bf16.xpose.msra.mxu0 0
    %6255 = vmatprep.subr.bf16.mxu0 0
    %6256 = vmatpush1.bf16.xpose.msra.mxu0 0
    %6257 = vmatprep.subr.bf16.mxu0 0
    %6258 = vmatpush1.bf16.xpose.msra.mxu0 0
    %6259 = vmatprep.subr.bf16.mxu0 0
    %6260 = vmatpush1.bf16.xpose.msra.mxu0 0
    %6261 = vmatprep.subr.bf16.mxu0 0
    %6262 = vmatpush1.bf16.xpose.msra.mxu0 0
    %6263 = vmatprep.subr.bf16.mxu0 0
    %6264 = vmatpush1.bf16.xpose.msra.mxu0 0
    %6265 = vmatprep.subr.bf16.mxu0 0
    %6266 = vmatpush1.bf16.xpose.msra.mxu0 0
    %6267 = vmatprep.subr.bf16.mxu0 0
    %6268 = vmatpush1.bf16.xpose.msra.mxu0 0
    %6269 = vmatprep.subr.bf16.mxu0 0
    %6270 = vmatpush1.bf16.xpose.msra.mxu0 0
    %6271 = vmatprep.subr.bf16.mxu0 0
    %6272 = vmatpush1.bf16.xpose.msra.mxu0 0
    %6273 = vmatprep.subr.bf16.mxu0 0
    %6274 = vmatpush1.bf16.xpose.msra.mxu0 0
    %6275 = vmatprep.subr.bf16.mxu0 0
    %6276 = vmatpush1.bf16.xpose.msra.mxu0 0
    %6277 = vmatprep.mubr.bf16.mxu0 0
    %6278 = vmatmul.mubr.bf16.gmra.mrb[0].mxu0 %v6234
    %v6279 = vpop.f32.mrb[0].mxu0
    %v6280 = vadd.f32 0.0, %v6279
    %v6281 = vpop.f32.mrb[0].mxu0
    %v6282 = vpop.f32.mrb[0].mxu0
    %v6283 = vadd.f32 0.0, %v6282
    %v6284 = vpop.f32.mrb[0].mxu0
    %6285 = vmatprep.mubr.bf16.mxu0 0
    %6286 = vmatmul.mubr.bf16.gmra.mrb[0].mxu0 %v6237
    %v6287 = vpop.f32.mrb[0].mxu0
    %v6288 = vadd.f32 0.0, %v6287
    %v6289 = vpop.f32.mrb[0].mxu0
    %v6290 = vpop.f32.mrb[0].mxu0
    %v6291 = vadd.f32 0.0, %v6290
    %v6292 = vpop.f32.mrb[0].mxu0
    %6293 = vdwg.mxu0
    %v6294 = vmul.f32 %v6207, 0.125
    %v6295 = vmul.f32 %v6210, 0.125
    %v6296 = vmul.f32 %v6215, 0.125
    %v6297 = vmul.f32 %v6218, 0.125
    %v6298 = vmul.f32 %v6280, 0.125
    %v6299 = vmul.f32 %v6283, 0.125
    %v6300 = vmul.f32 %v6288, 0.125
    %v6301 = vmul.f32 %v6291, 0.125
    %v6302 = vsel %vm1497, %v6294, -inf
    %6303 = vmax.xlane.f32.xlu0 %v6302
    %v6304 = vpop.xlane.xlu0 %6303
    %v6305 = vsel %vm1497, %v6295, -inf
    %6306 = vmax.xlane.f32.xlu0 %v6305
    %v6307 = vpop.xlane.xlu0 %6306
    %v6308 = vsel %vm1497, %v6296, -inf
    %6309 = vmax.xlane.f32.xlu0 %v6308
    %v6310 = vpop.xlane.xlu0 %6309
    %v6311 = vsel %vm1497, %v6297, -inf
    %6312 = vmax.xlane.f32.xlu0 %v6311
    %v6313 = vpop.xlane.xlu0 %6312
    %v6314 = vsel %vm1497, %v6298, -inf
    %6315 = vmax.xlane.f32.xlu0 %v6314
    %v6316 = vpop.xlane.xlu0 %6315
    %v6317 = vsel %vm1497, %v6299, -inf
    %6318 = vmax.xlane.f32.xlu0 %v6317
    %v6319 = vpop.xlane.xlu0 %6318
    %v6320 = vsel %vm1497, %v6300, -inf
    %6321 = vmax.xlane.f32.xlu0 %v6320
    %v6322 = vpop.xlane.xlu0 %6321
    %v6323 = vsel %vm1497, %v6301, -inf
    %6324 = vmax.xlane.f32.xlu0 %v6323
    %v6325 = vpop.xlane.xlu0 %6324
    %v6326 = vsub.f32 %v6294, %v6304
    %v6327 = vsub.f32 %v6295, %v6307
    %v6328 = vsub.f32 %v6296, %v6310
    %v6329 = vsub.f32 %v6297, %v6313
    %v6330 = vsub.f32 %v6298, %v6316
    %v6331 = vsub.f32 %v6299, %v6319
    %v6332 = vsub.f32 %v6300, %v6322
    %v6333 = vsub.f32 %v6301, %v6325
    %v6334 = vmul.f32 %v6326, 1.442695
    %v6335 = vpow.pop %v6334
    %v6336 = vmul.f32 %v6327, 1.442695
    %v6337 = vpow.pop %v6336
    %v6338 = vmul.f32 %v6328, 1.442695
    %v6339 = vpow.pop %v6338
    %v6340 = vmul.f32 %v6329, 1.442695
    %v6341 = vpow.pop %v6340
    %v6342 = vmul.f32 %v6330, 1.442695
    %v6343 = vpow.pop %v6342
    %v6344 = vmul.f32 %v6331, 1.442695
    %v6345 = vpow.pop %v6344
    %v6346 = vmul.f32 %v6332, 1.442695
    %v6347 = vpow.pop %v6346
    %v6348 = vmul.f32 %v6333, 1.442695
    %v6349 = vpow.pop %v6348
    %v6350 = vsel %vm1497, %v6335, 0.0
    %6351 = vadd.xlane.f32.xlu0 %v6350
    %v6352 = vpop.xlane.xlu0 %6351
    %v6353 = vsel %vm1497, %v6337, 0.0
    %6354 = vadd.xlane.f32.xlu0 %v6353
    %v6355 = vpop.xlane.xlu0 %6354
    %v6356 = vsel %vm1497, %v6339, 0.0
    %6357 = vadd.xlane.f32.xlu0 %v6356
    %v6358 = vpop.xlane.xlu0 %6357
    %v6359 = vsel %vm1497, %v6341, 0.0
    %6360 = vadd.xlane.f32.xlu0 %v6359
    %v6361 = vpop.xlane.xlu0 %6360
    %v6362 = vsel %vm1497, %v6343, 0.0
    %6363 = vadd.xlane.f32.xlu0 %v6362
    %v6364 = vpop.xlane.xlu0 %6363
    %v6365 = vsel %vm1497, %v6345, 0.0
    %6366 = vadd.xlane.f32.xlu0 %v6365
    %v6367 = vpop.xlane.xlu0 %6366
    %v6368 = vsel %vm1497, %v6347, 0.0
    %6369 = vadd.xlane.f32.xlu0 %v6368
    %v6370 = vpop.xlane.xlu0 %6369
    %v6371 = vsel %vm1497, %v6349, 0.0
    %6372 = vadd.xlane.f32.xlu0 %v6371
    %v6373 = vpop.xlane.xlu0 %6372
    %v6374 = vrcp.pop %v6352
    %v6375 = vrcp.pop %v6355
    %v6376 = vrcp.pop %v6358
    %v6377 = vrcp.pop %v6361
    %v6378 = vrcp.pop %v6364
    %v6379 = vrcp.pop %v6367
    %v6380 = vrcp.pop %v6370
    %v6381 = vrcp.pop %v6373
    %v6382 = vmul.f32 %v6335, %v6374
    %v6383 = vmul.f32 %v6337, %v6375
    %v6384 = vmul.f32 %v6339, %v6376
    %v6385 = vmul.f32 %v6341, %v6377
    %v6386 = vmul.f32 %v6343, %v6378
    %v6387 = vmul.f32 %v6345, %v6379
    %v6388 = vmul.f32 %v6347, %v6380
    %v6389 = vmul.f32 %v6349, %v6381
    %v6390 = vpack.c.bf16 %v6383, %v6382
    %v6391 = vpack.c.bf16 %v6385, %v6384
    %v6392 = vpack.c.bf16 %v6387, %v6386
    %v6393 = vpack.c.bf16 %v6389, %v6388
    %6396 = vrot.lane.b32.xlu0 %v6021, 64
    %v6397 = vpop.permute.xlu0 %6396
    %6398 = vrot.lane.b32.xlu0 %v6022, 64
    %v6399 = vpop.permute.xlu0 %6398
    %v6403 = vsel %vm1497, %v6390, 0
    %v6406 = vsel %vm1497, %v6391, 0
    %6408 = vmatprep.subr.bf16.mxu0 0
    %6409 = vmatpush1.bf16.msra.mxu0 %v6397
    %6410 = vmatprep.subr.bf16.mxu0 0
    %6411 = vmatpush1.bf16.msra.mxu0 %v6399
    %6412 = vmatprep.subr.bf16.mxu0 0
    %6413 = vmatpush1.bf16.msra.mxu0 0
    %6414 = vmatprep.subr.bf16.mxu0 0
    %6415 = vmatpush1.bf16.msra.mxu0 0
    %6416 = vmatprep.subr.bf16.mxu0 0
    %6417 = vmatpush1.bf16.msra.mxu0 0
    %6418 = vmatprep.subr.bf16.mxu0 0
    %6419 = vmatpush1.bf16.msra.mxu0 0
    %6420 = vmatprep.subr.bf16.mxu0 0
    %6421 = vmatpush1.bf16.msra.mxu0 0
    %6422 = vmatprep.subr.bf16.mxu0 0
    %6423 = vmatpush1.bf16.msra.mxu0 0
    %6424 = vmatprep.subr.bf16.mxu0 0
    %6425 = vmatpush1.bf16.msra.mxu0 0
    %6426 = vmatprep.subr.bf16.mxu0 0
    %6427 = vmatpush1.bf16.msra.mxu0 0
    %6428 = vmatprep.subr.bf16.mxu0 0
    %6429 = vmatpush1.bf16.msra.mxu0 0
    %6430 = vmatprep.subr.bf16.mxu0 0
    %6431 = vmatpush1.bf16.msra.mxu0 0
    %6432 = vmatprep.subr.bf16.mxu0 0
    %6433 = vmatpush1.bf16.msra.mxu0 0
    %6434 = vmatprep.subr.bf16.mxu0 0
    %6435 = vmatpush1.bf16.msra.mxu0 0
    %6436 = vmatprep.subr.bf16.mxu0 0
    %6437 = vmatpush1.bf16.msra.mxu0 0
    %6438 = vmatprep.subr.bf16.mxu0 0
    %6439 = vmatpush1.bf16.msra.mxu0 0
    %6440 = vmatprep.mubr.bf16.mxu0 0
    %6441 = vmatmul.mubr.bf16.gmra.mrb[0].mxu0 %v6403
    %v6442 = vpop.f32.mrb[0].mxu0
    %v6443 = vadd.f32 0.0, %v6442
    %v6444 = vpop.f32.mrb[0].mxu0
    %v6445 = vpop.f32.mrb[0].mxu0
    %v6446 = vadd.f32 0.0, %v6445
    %v6447 = vpop.f32.mrb[0].mxu0
    %6448 = vmatprep.mubr.bf16.mxu0 0
    %6449 = vmatmul.mubr.bf16.gmra.mrb[0].mxu0 %v6406
    %v6450 = vpop.f32.mrb[0].mxu0
    %v6451 = vadd.f32 0.0, %v6450
    %v6452 = vpop.f32.mrb[0].mxu0
    %v6453 = vpop.f32.mrb[0].mxu0
    %v6454 = vadd.f32 0.0, %v6453
    %v6455 = vpop.f32.mrb[0].mxu0
    %6456 = vdwg.mxu0
    %6459 = vrot.lane.b32.xlu0 %v6023, 64
    %v6460 = vpop.permute.xlu0 %6459
    %6461 = vrot.lane.b32.xlu0 %v6024, 64
    %v6462 = vpop.permute.xlu0 %6461
    %v6466 = vsel %vm1497, %v6392, 0
    %v6469 = vsel %vm1497, %v6393, 0
    %6471 = vmatprep.subr.bf16.mxu0 0
    %6472 = vmatpush1.bf16.msra.mxu0 %v6460
    %6473 = vmatprep.subr.bf16.mxu0 0
    %6474 = vmatpush1.bf16.msra.mxu0 %v6462
    %6475 = vmatprep.subr.bf16.mxu0 0
    %6476 = vmatpush1.bf16.msra.mxu0 0
    %6477 = vmatprep.subr.bf16.mxu0 0
    %6478 = vmatpush1.bf16.msra.mxu0 0
    %6479 = vmatprep.subr.bf16.mxu0 0
    %6480 = vmatpush1.bf16.msra.mxu0 0
    %6481 = vmatprep.subr.bf16.mxu0 0
    %6482 = vmatpush1.bf16.msra.mxu0 0
    %6483 = vmatprep.subr.bf16.mxu0 0
    %6484 = vmatpush1.bf16.msra.mxu0 0
    %6485 = vmatprep.subr.bf16.mxu0 0
    %6486 = vmatpush1.bf16.msra.mxu0 0
    %6487 = vmatprep.subr.bf16.mxu0 0
    %6488 = vmatpush1.bf16.msra.mxu0 0
    %6489 = vmatprep.subr.bf16.mxu0 0
    %6490 = vmatpush1.bf16.msra.mxu0 0
    %6491 = vmatprep.subr.bf16.mxu0 0
    %6492 = vmatpush1.bf16.msra.mxu0 0
    %6493 = vmatprep.subr.bf16.mxu0 0
    %6494 = vmatpush1.bf16.msra.mxu0 0
    %6495 = vmatprep.subr.bf16.mxu0 0
    %6496 = vmatpush1.bf16.msra.mxu0 0
    %6497 = vmatprep.subr.bf16.mxu0 0
    %6498 = vmatpush1.bf16.msra.mxu0 0
    %6499 = vmatprep.subr.bf16.mxu0 0
    %6500 = vmatpush1.bf16.msra.mxu0 0
    %6501 = vmatprep.subr.bf16.mxu0 0
    %6502 = vmatpush1.bf16.msra.mxu0 0
    %6503 = vmatprep.mubr.bf16.mxu0 0
    %6504 = vmatmul.mubr.bf16.gmra.mrb[0].mxu0 %v6466
    %v6505 = vpop.f32.mrb[0].mxu0
    %v6506 = vadd.f32 0.0, %v6505
    %v6507 = vpop.f32.mrb[0].mxu0
    %v6508 = vpop.f32.mrb[0].mxu0
    %v6509 = vadd.f32 0.0, %v6508
    %v6510 = vpop.f32.mrb[0].mxu0
    %6511 = vmatprep.mubr.bf16.mxu0 0
    %6512 = vmatmul.mubr.bf16.gmra.mrb[0].mxu0 %v6469
    %v6513 = vpop.f32.mrb[0].mxu0
    %v6514 = vadd.f32 0.0, %v6513
    %v6515 = vpop.f32.mrb[0].mxu0
    %v6516 = vpop.f32.mrb[0].mxu0
    %v6517 = vadd.f32 0.0, %v6516
    %v6518 = vpop.f32.mrb[0].mxu0
    %6519 = vdwg.mxu0
    %v6520 = vpack.c.bf16 %v6446, %v6443
    %v6521 = vpack.c.bf16 %v6454, %v6451
    %v6522 = vpack.c.bf16 %v6509, %v6506
    %v6523 = vpack.c.bf16 %v6517, %v6514
    %s6524 = scalar_lea.vmem [#allocation10], 320
    %v6525 = vld [vmem:[%s6524] sm:$0xff]
    %v6526 = vld [vmem:[%s6524 + $0x8] sm:$0xff]
    %v6527 = vld [vmem:[%s6524 + $0x10] sm:$0xff]
    %v6528 = vld [vmem:[%s6524 + $0x18] sm:$0xff]
    %v6529 = vld [vmem:[%s6524 + $0x20] sm:$0xff]
    %v6530 = vld [vmem:[%s6524 + $0x28] sm:$0xff]
    %v6531 = vld [vmem:[%s6524 + $0x30] sm:$0xff]
    %v6532 = vld [vmem:[%s6524 + $0x38] sm:$0xff]
    %v6541 = vunpack.c.l.b16 %v6525
    %v6542 = vunpack.c.h.b16 %v6525
    %v6543 = vunpack.c.l.b16 %v6526
    %v6544 = vunpack.c.h.b16 %v6526
    %v6545 = vunpack.c.l.b16 %v6527
    %v6546 = vunpack.c.h.b16 %v6527
    %v6547 = vunpack.c.l.b16 %v6528
    %v6548 = vunpack.c.h.b16 %v6528
    %v6549 = vunpack.c.l.b16 %v6529
    %v6550 = vunpack.c.h.b16 %v6529
    %v6551 = vunpack.c.l.b16 %v6530
    %v6552 = vunpack.c.h.b16 %v6530
    %v6553 = vunpack.c.l.b16 %v6531
    %v6554 = vunpack.c.h.b16 %v6531
    %v6555 = vunpack.c.l.b16 %v6532
    %v6556 = vunpack.c.h.b16 %v6532
    %v6557 = vpack.c.b16 %v6543, %v6541
    %v6558 = vpack.c.b16 %v6544, %v6542
    %v6559 = vpack.c.b16 %v6547, %v6545
    %v6560 = vpack.c.b16 %v6548, %v6546
    %v6561 = vpack.c.b16 %v6551, %v6549
    %v6562 = vpack.c.b16 %v6552, %v6550
    %v6563 = vpack.c.b16 %v6555, %v6553
    %v6564 = vpack.c.b16 %v6556, %v6554
    %v6574 = vsel %vm1366, %v6520, 0
    %v6577 = vsel %vm1366, %v6521, 0
    %v6580 = vsel %vm1366, %v6522, 0
    %v6583 = vsel %vm1366, %v6523, 0
    %6585 = vmatprep.subr.bf16.mxu0 %v6558
    %6586 = vmatpush1.bf16.msra.mxu0 %v6557
    %6587 = vmatprep.subr.bf16.mxu0 %v6560
    %6588 = vmatpush1.bf16.msra.mxu0 %v6559
    %6589 = vmatprep.subr.bf16.mxu0 %v6562
    %6590 = vmatpush1.bf16.msra.mxu0 %v6561
    %6591 = vmatprep.subr.bf16.mxu0 %v6564
    %6592 = vmatpush1.bf16.msra.mxu0 %v6563
    %6593 = vmatprep.subr.bf16.mxu0 0
    %6594 = vmatpush1.bf16.msra.mxu0 0
    %6595 = vmatprep.subr.bf16.mxu0 0
    %6596 = vmatpush1.bf16.msra.mxu0 0
    %6597 = vmatprep.subr.bf16.mxu0 0
    %6598 = vmatpush1.bf16.msra.mxu0 0
    %6599 = vmatprep.subr.bf16.mxu0 0
    %6600 = vmatpush1.bf16.msra.mxu0 0
    %6601 = vmatprep.subr.bf16.mxu0 0
    %6602 = vmatpush1.bf16.msra.mxu0 0
    %6603 = vmatprep.subr.bf16.mxu0 0
    %6604 = vmatpush1.bf16.msra.mxu0 0
    %6605 = vmatprep.subr.bf16.mxu0 0
    %6606 = vmatpush1.bf16.msra.mxu0 0
    %6607 = vmatprep.subr.bf16.mxu0 0
    %6608 = vmatpush1.bf16.msra.mxu0 0
    %6609 = vmatprep.subr.bf16.mxu0 0
    %6610 = vmatpush1.bf16.msra.mxu0 0
    %6611 = vmatprep.subr.bf16.mxu0 0
    %6612 = vmatpush1.bf16.msra.mxu0 0
    %6613 = vmatprep.subr.bf16.mxu0 0
    %6614 = vmatpush1.bf16.msra.mxu0 0
    %6615 = vmatprep.subr.bf16.mxu0 0
    %6616 = vmatpush1.bf16.msra.mxu0 0
    %6617 = vmatprep.mubr.bf16.mxu0 0
    %6618 = vmatmul.mubr.bf16.gmra.mrb[0].mxu0 %v6574
    %v6619 = vpop.f32.mrb[0].mxu0
    %v6620 = vadd.f32 0.0, %v6619
    %v6621 = vpop.f32.mrb[0].mxu0
    %v6622 = vadd.f32 0.0, %v6621
    %v6623 = vpop.f32.mrb[0].mxu0
    %v6624 = vadd.f32 0.0, %v6623
    %v6625 = vpop.f32.mrb[0].mxu0
    %v6626 = vadd.f32 0.0, %v6625
    %6627 = vmatprep.mubr.bf16.mxu0 0
    %6628 = vmatmul.mubr.bf16.gmra.mrb[0].mxu0 %v6577
    %v6629 = vpop.f32.mrb[0].mxu0
    %v6630 = vadd.f32 0.0, %v6629
    %v6631 = vpop.f32.mrb[0].mxu0
    %v6632 = vadd.f32 0.0, %v6631
    %v6633 = vpop.f32.mrb[0].mxu0
    %v6634 = vadd.f32 0.0, %v6633
    %v6635 = vpop.f32.mrb[0].mxu0
    %v6636 = vadd.f32 0.0, %v6635
    %6637 = vmatprep.mubr.bf16.mxu0 0
    %6638 = vmatmul.mubr.bf16.gmra.mrb[0].mxu0 %v6580
    %v6639 = vpop.f32.mrb[0].mxu0
    %v6640 = vadd.f32 0.0, %v6639
    %v6641 = vpop.f32.mrb[0].mxu0
    %v6642 = vadd.f32 0.0, %v6641
    %v6643 = vpop.f32.mrb[0].mxu0
    %v6644 = vadd.f32 0.0, %v6643
    %v6645 = vpop.f32.mrb[0].mxu0
    %v6646 = vadd.f32 0.0, %v6645
    %6647 = vmatprep.mubr.bf16.mxu0 0
    %6648 = vmatmul.mubr.bf16.gmra.mrb[0].mxu0 %v6583
    %v6649 = vpop.f32.mrb[0].mxu0
    %v6650 = vadd.f32 0.0, %v6649
    %v6651 = vpop.f32.mrb[0].mxu0
    %v6652 = vadd.f32 0.0, %v6651
    %v6653 = vpop.f32.mrb[0].mxu0
    %v6654 = vadd.f32 0.0, %v6653
    %v6655 = vpop.f32.mrb[0].mxu0
    %v6656 = vadd.f32 0.0, %v6655
    %6657 = vdwg.mxu0
    %v6666 = vunpack.c.l.b16 %v6140
    %v6667 = vunpack.c.h.b16 %v6140
    %v6668 = vunpack.c.l.b16 %v6141
    %v6669 = vunpack.c.h.b16 %v6141
    %v6670 = vunpack.c.l.b16 %v6142
    %v6671 = vunpack.c.h.b16 %v6142
    %v6672 = vunpack.c.l.b16 %v6143
    %v6673 = vunpack.c.h.b16 %v6143
    %v6674 = vunpack.c.l.b16 %v6144
    %v6675 = vunpack.c.h.b16 %v6144
    %v6676 = vunpack.c.l.b16 %v6145
    %v6677 = vunpack.c.h.b16 %v6145
    %v6678 = vunpack.c.l.b16 %v6146
    %v6679 = vunpack.c.h.b16 %v6146
    %v6680 = vunpack.c.l.b16 %v6147
    %v6681 = vunpack.c.h.b16 %v6147
    %v6682 = vpack.c.b16 %v6668, %v6666
    %v6683 = vpack.c.b16 %v6669, %v6667
    %v6684 = vpack.c.b16 %v6672, %v6670
    %v6685 = vpack.c.b16 %v6673, %v6671
    %v6686 = vpack.c.b16 %v6676, %v6674
    %v6687 = vpack.c.b16 %v6677, %v6675
    %v6688 = vpack.c.b16 %v6680, %v6678
    %v6689 = vpack.c.b16 %v6681, %v6679
    %v6699 = vsel %vm1366, %v6135, 0
    %v6702 = vsel %vm1366, %v6136, 0
    %v6705 = vsel %vm1366, %v6137, 0
    %v6708 = vsel %vm1366, %v6138, 0
    %6710 = vmatprep.subr.bf16.mxu0 %v6683
    %6711 = vmatpush1.bf16.msra.mxu0 %v6682
    %6712 = vmatprep.subr.bf16.mxu0 %v6685
    %6713 = vmatpush1.bf16.msra.mxu0 %v6684
    %6714 = vmatprep.subr.bf16.mxu0 %v6687
    %6715 = vmatpush1.bf16.msra.mxu0 %v6686
    %6716 = vmatprep.subr.bf16.mxu0 %v6689
    %6717 = vmatpush1.bf16.msra.mxu0 %v6688
    %6718 = vmatprep.subr.bf16.mxu0 0
    %6719 = vmatpush1.bf16.msra.mxu0 0
    %6720 = vmatprep.subr.bf16.mxu0 0
    %6721 = vmatpush1.bf16.msra.mxu0 0
    %6722 = vmatprep.subr.bf16.mxu0 0
    %6723 = vmatpush1.bf16.msra.mxu0 0
    %6724 = vmatprep.subr.bf16.mxu0 0
    %6725 = vmatpush1.bf16.msra.mxu0 0
    %6726 = vmatprep.subr.bf16.mxu0 0
    %6727 = vmatpush1.bf16.msra.mxu0 0
    %6728 = vmatprep.subr.bf16.mxu0 0
    %6729 = vmatpush1.bf16.msra.mxu0 0
    %6730 = vmatprep.subr.bf16.mxu0 0
    %6731 = vmatpush1.bf16.msra.mxu0 0
    %6732 = vmatprep.subr.bf16.mxu0 0
    %6733 = vmatpush1.bf16.msra.mxu0 0
    %6734 = vmatprep.subr.bf16.mxu0 0
    %6735 = vmatpush1.bf16.msra.mxu0 0
    %6736 = vmatprep.subr.bf16.mxu0 0
    %6737 = vmatpush1.bf16.msra.mxu0 0
    %6738 = vmatprep.subr.bf16.mxu0 0
    %6739 = vmatpush1.bf16.msra.mxu0 0
    %6740 = vmatprep.subr.bf16.mxu0 0
    %6741 = vmatpush1.bf16.msra.mxu0 0
    %6742 = vmatprep.mubr.bf16.mxu0 0
    %6743 = vmatmul.mubr.bf16.gmra.mrb[0].mxu0 %v6699
    %v6744 = vpop.f32.mrb[0].mxu0
    %v6745 = vadd.f32 %v6620, %v6744
    %v6746 = vpop.f32.mrb[0].mxu0
    %v6747 = vadd.f32 %v6622, %v6746
    %v6748 = vpop.f32.mrb[0].mxu0
    %v6749 = vadd.f32 %v6624, %v6748
    %v6750 = vpop.f32.mrb[0].mxu0
    %v6751 = vadd.f32 %v6626, %v6750
    %6752 = vmatprep.mubr.bf16.mxu0 0
    %6753 = vmatmul.mubr.bf16.gmra.mrb[0].mxu0 %v6702
    %v6754 = vpop.f32.mrb[0].mxu0
    %v6755 = vadd.f32 %v6630, %v6754
    %v6756 = vpop.f32.mrb[0].mxu0
    %v6757 = vadd.f32 %v6632, %v6756
    %v6758 = vpop.f32.mrb[0].mxu0
    %v6759 = vadd.f32 %v6634, %v6758
    %v6760 = vpop.f32.mrb[0].mxu0
    %v6761 = vadd.f32 %v6636, %v6760
    %6762 = vmatprep.mubr.bf16.mxu0 0
    %6763 = vmatmul.mubr.bf16.gmra.mrb[0].mxu0 %v6705
    %v6764 = vpop.f32.mrb[0].mxu0
    %v6765 = vadd.f32 %v6640, %v6764
    %v6766 = vpop.f32.mrb[0].mxu0
    %v6767 = vadd.f32 %v6642, %v6766
    %v6768 = vpop.f32.mrb[0].mxu0
    %v6769 = vadd.f32 %v6644, %v6768
    %v6770 = vpop.f32.mrb[0].mxu0
    %v6771 = vadd.f32 %v6646, %v6770
    %6772 = vmatprep.mubr.bf16.mxu0 0
    %6773 = vmatmul.mubr.bf16.gmra.mrb[0].mxu0 %v6708
    %v6774 = vpop.f32.mrb[0].mxu0
    %v6775 = vadd.f32 %v6650, %v6774
    %v6776 = vpop.f32.mrb[0].mxu0
    %v6777 = vadd.f32 %v6652, %v6776
    %v6778 = vpop.f32.mrb[0].mxu0
    %v6779 = vadd.f32 %v6654, %v6778
    %v6780 = vpop.f32.mrb[0].mxu0
    %v6781 = vadd.f32 %v6656, %v6780
    %6782 = vdwg.mxu0
    %v6783 = vpack.c.bf16 %v5613, %v5609
    %v6784 = vpack.c.bf16 %v5623, %v5619
    %v6785 = vpack.c.bf16 %v5633, %v5629
    %v6786 = vpack.c.bf16 %v5643, %v5639
    %v6787 = vpack.c.bf16 %v5686, %v5682
    %v6788 = vpack.c.bf16 %v5696, %v5692
    %v6789 = vpack.c.bf16 %v5706, %v5702
    %v6790 = vpack.c.bf16 %v5716, %v5712
    %v6792 = vsel %vm1366, %v6783, 0
    %v6795 = vsel %vm1366, %v6784, 0
    %v6798 = vsel %vm1366, %v6787, 0
    %v6801 = vsel %vm1366, %v6788, 0
    %6803 = vmatprep.subr.bf16.mxu0 0
    %6804 = vmatpush1.bf16.xpose.msra.mxu0 %v6798
    %6805 = vmatprep.subr.bf16.mxu0 0
    %6806 = vmatpush1.bf16.xpose.msra.mxu0 %v6801
    %6807 = vmatprep.subr.bf16.mxu0 0
    %6808 = vmatpush1.bf16.xpose.msra.mxu0 0
    %6809 = vmatprep.subr.bf16.mxu0 0
    %6810 = vmatpush1.bf16.xpose.msra.mxu0 0
    %6811 = vmatprep.subr.bf16.mxu0 0
    %6812 = vmatpush1.bf16.xpose.msra.mxu0 0
    %6813 = vmatprep.subr.bf16.mxu0 0
    %6814 = vmatpush1.bf16.xpose.msra.mxu0 0
    %6815 = vmatprep.subr.bf16.mxu0 0
    %6816 = vmatpush1.bf16.xpose.msra.mxu0 0
    %6817 = vmatprep.subr.bf16.mxu0 0
    %6818 = vmatpush1.bf16.xpose.msra.mxu0 0
    %6819 = vmatprep.subr.bf16.mxu0 0
    %6820 = vmatpush1.bf16.xpose.msra.mxu0 0
    %6821 = vmatprep.subr.bf16.mxu0 0
    %6822 = vmatpush1.bf16.xpose.msra.mxu0 0
    %6823 = vmatprep.subr.bf16.mxu0 0
    %6824 = vmatpush1.bf16.xpose.msra.mxu0 0
    %6825 = vmatprep.subr.bf16.mxu0 0
    %6826 = vmatpush1.bf16.xpose.msra.mxu0 0
    %6827 = vmatprep.subr.bf16.mxu0 0
    %6828 = vmatpush1.bf16.xpose.msra.mxu0 0
    %6829 = vmatprep.subr.bf16.mxu0 0
    %6830 = vmatpush1.bf16.xpose.msra.mxu0 0
    %6831 = vmatprep.subr.bf16.mxu0 0
    %6832 = vmatpush1.bf16.xpose.msra.mxu0 0
    %6833 = vmatprep.subr.bf16.mxu0 0
    %6834 = vmatpush1.bf16.xpose.msra.mxu0 0
    %6835 = vmatprep.mubr.bf16.mxu0 0
    %6836 = vmatmul.mubr.bf16.gmra.mrb[0].mxu0 %v6792
    %v6837 = vpop.f32.mrb[0].mxu0
    %v6838 = vadd.f32 0.0, %v6837
    %v6839 = vpop.f32.mrb[0].mxu0
    %v6840 = vpop.f32.mrb[0].mxu0
    %v6841 = vadd.f32 0.0, %v6840
    %v6842 = vpop.f32.mrb[0].mxu0
    %6843 = vmatprep.mubr.bf16.mxu0 0
    %6844 = vmatmul.mubr.bf16.gmra.mrb[0].mxu0 %v6795
    %v6845 = vpop.f32.mrb[0].mxu0
    %v6846 = vadd.f32 0.0, %v6845
    %v6847 = vpop.f32.mrb[0].mxu0
    %v6848 = vpop.f32.mrb[0].mxu0
    %v6849 = vadd.f32 0.0, %v6848
    %v6850 = vpop.f32.mrb[0].mxu0
    %6851 = vdwg.mxu0
    %v6853 = vsel %vm1366, %v6785, 0
    %v6856 = vsel %vm1366, %v6786, 0
    %v6859 = vsel %vm1366, %v6789, 0
    %v6862 = vsel %vm1366, %v6790, 0
    %6864 = vmatprep.subr.bf16.mxu0 0
    %6865 = vmatpush1.bf16.xpose.msra.mxu0 %v6859
    %6866 = vmatprep.subr.bf16.mxu0 0
    %6867 = vmatpush1.bf16.xpose.msra.mxu0 %v6862
    %6868 = vmatprep.subr.bf16.mxu0 0
    %6869 = vmatpush1.bf16.xpose.msra.mxu0 0
    %6870 = vmatprep.subr.bf16.mxu0 0
    %6871 = vmatpush1.bf16.xpose.msra.mxu0 0
    %6872 = vmatprep.subr.bf16.mxu0 0
    %6873 = vmatpush1.bf16.xpose.msra.mxu0 0
    %6874 = vmatprep.subr.bf16.mxu0 0
    %6875 = vmatpush1.bf16.xpose.msra.mxu0 0
    %6876 = vmatprep.subr.bf16.mxu0 0
    %6877 = vmatpush1.bf16.xpose.msra.mxu0 0
    %6878 = vmatprep.subr.bf16.mxu0 0
    %6879 = vmatpush1.bf16.xpose.msra.mxu0 0
    %6880 = vmatprep.subr.bf16.mxu0 0
    %6881 = vmatpush1.bf16.xpose.msra.mxu0 0
    %6882 = vmatprep.subr.bf16.mxu0 0
    %6883 = vmatpush1.bf16.xpose.msra.mxu0 0
    %6884 = vmatprep.subr.bf16.mxu0 0
    %6885 = vmatpush1.bf16.xpose.msra.mxu0 0
    %6886 = vmatprep.subr.bf16.mxu0 0
    %6887 = vmatpush1.bf16.xpose.msra.mxu0 0
    %6888 = vmatprep.subr.bf16.mxu0 0
    %6889 = vmatpush1.bf16.xpose.msra.mxu0 0
    %6890 = vmatprep.subr.bf16.mxu0 0
    %6891 = vmatpush1.bf16.xpose.msra.mxu0 0
    %6892 = vmatprep.subr.bf16.mxu0 0
    %6893 = vmatpush1.bf16.xpose.msra.mxu0 0
    %6894 = vmatprep.subr.bf16.mxu0 0
    %6895 = vmatpush1.bf16.xpose.msra.mxu0 0
    %6896 = vmatprep.mubr.bf16.mxu0 0
    %6897 = vmatmul.mubr.bf16.gmra.mrb[0].mxu0 %v6853
    %v6898 = vpop.f32.mrb[0].mxu0
    %v6899 = vadd.f32 0.0, %v6898
    %v6900 = vpop.f32.mrb[0].mxu0
    %v6901 = vpop.f32.mrb[0].mxu0
    %v6902 = vadd.f32 0.0, %v6901
    %v6903 = vpop.f32.mrb[0].mxu0
    %6904 = vmatprep.mubr.bf16.mxu0 0
    %6905 = vmatmul.mubr.bf16.gmra.mrb[0].mxu0 %v6856
    %v6906 = vpop.f32.mrb[0].mxu0
    %v6907 = vadd.f32 0.0, %v6906
    %v6908 = vpop.f32.mrb[0].mxu0
    %v6909 = vpop.f32.mrb[0].mxu0
    %v6910 = vadd.f32 0.0, %v6909
    %v6911 = vpop.f32.mrb[0].mxu0
    %6912 = vdwg.mxu0
    %v6913 = vmul.f32 %v6838, 0.125
    %v6914 = vmul.f32 %v6841, 0.125
    %v6915 = vmul.f32 %v6846, 0.125
    %v6916 = vmul.f32 %v6849, 0.125
    %v6917 = vmul.f32 %v6899, 0.125
    %v6918 = vmul.f32 %v6902, 0.125
    %v6919 = vmul.f32 %v6907, 0.125
    %v6920 = vmul.f32 %v6910, 0.125
    %v6921 = vsel %vm1497, %v6913, -inf
    %6922 = vmax.xlane.f32.xlu0 %v6921
    %v6923 = vpop.xlane.xlu0 %6922
    %v6924 = vsel %vm1497, %v6914, -inf
    %6925 = vmax.xlane.f32.xlu0 %v6924
    %v6926 = vpop.xlane.xlu0 %6925
    %v6927 = vsel %vm1497, %v6915, -inf
    %6928 = vmax.xlane.f32.xlu0 %v6927
    %v6929 = vpop.xlane.xlu0 %6928
    %v6930 = vsel %vm1497, %v6916, -inf
    %6931 = vmax.xlane.f32.xlu0 %v6930
    %v6932 = vpop.xlane.xlu0 %6931
    %v6933 = vsel %vm1497, %v6917, -inf
    %6934 = vmax.xlane.f32.xlu0 %v6933
    %v6935 = vpop.xlane.xlu0 %6934
    %v6936 = vsel %vm1497, %v6918, -inf
    %6937 = vmax.xlane.f32.xlu0 %v6936
    %v6938 = vpop.xlane.xlu0 %6937
    %v6939 = vsel %vm1497, %v6919, -inf
    %6940 = vmax.xlane.f32.xlu0 %v6939
    %v6941 = vpop.xlane.xlu0 %6940
    %v6942 = vsel %vm1497, %v6920, -inf
    %6943 = vmax.xlane.f32.xlu0 %v6942
    %v6944 = vpop.xlane.xlu0 %6943
    %v6945 = vsub.f32 %v6913, %v6923
    %v6946 = vsub.f32 %v6914, %v6926
    %v6947 = vsub.f32 %v6915, %v6929
    %v6948 = vsub.f32 %v6916, %v6932
    %v6949 = vsub.f32 %v6917, %v6935
    %v6950 = vsub.f32 %v6918, %v6938
    %v6951 = vsub.f32 %v6919, %v6941
    %v6952 = vsub.f32 %v6920, %v6944
    %v6953 = vmul.f32 %v6945, 1.442695
    %v6954 = vpow.pop %v6953
    %v6955 = vmul.f32 %v6946, 1.442695
    %v6956 = vpow.pop %v6955
    %v6957 = vmul.f32 %v6947, 1.442695
    %v6958 = vpow.pop %v6957
    %v6959 = vmul.f32 %v6948, 1.442695
    %v6960 = vpow.pop %v6959
    %v6961 = vmul.f32 %v6949, 1.442695
    %v6962 = vpow.pop %v6961
    %v6963 = vmul.f32 %v6950, 1.442695
    %v6964 = vpow.pop %v6963
    %v6965 = vmul.f32 %v6951, 1.442695
    %v6966 = vpow.pop %v6965
    %v6967 = vmul.f32 %v6952, 1.442695
    %v6968 = vpow.pop %v6967
    %v6969 = vsel %vm1497, %v6954, 0.0
    %6970 = vadd.xlane.f32.xlu0 %v6969
    %v6971 = vpop.xlane.xlu0 %6970
    %v6972 = vsel %vm1497, %v6956, 0.0
    %6973 = vadd.xlane.f32.xlu0 %v6972
    %v6974 = vpop.xlane.xlu0 %6973
    %v6975 = vsel %vm1497, %v6958, 0.0
    %6976 = vadd.xlane.f32.xlu0 %v6975
    %v6977 = vpop.xlane.xlu0 %6976
    %v6978 = vsel %vm1497, %v6960, 0.0
    %6979 = vadd.xlane.f32.xlu0 %v6978
    %v6980 = vpop.xlane.xlu0 %6979
    %v6981 = vsel %vm1497, %v6962, 0.0
    %6982 = vadd.xlane.f32.xlu0 %v6981
    %v6983 = vpop.xlane.xlu0 %6982
    %v6984 = vsel %vm1497, %v6964, 0.0
    %6985 = vadd.xlane.f32.xlu0 %v6984
    %v6986 = vpop.xlane.xlu0 %6985
    %v6987 = vsel %vm1497, %v6966, 0.0
    %6988 = vadd.xlane.f32.xlu0 %v6987
    %v6989 = vpop.xlane.xlu0 %6988
    %v6990 = vsel %vm1497, %v6968, 0.0
    %6991 = vadd.xlane.f32.xlu0 %v6990
    %v6992 = vpop.xlane.xlu0 %6991
    %v6993 = vrcp.pop %v6971
    %v6994 = vrcp.pop %v6974
    %v6995 = vrcp.pop %v6977
    %v6996 = vrcp.pop %v6980
    %v6997 = vrcp.pop %v6983
    %v6998 = vrcp.pop %v6986
    %v6999 = vrcp.pop %v6989
    %v7000 = vrcp.pop %v6992
    %v7001 = vmul.f32 %v6954, %v6993
    %v7002 = vmul.f32 %v6956, %v6994
    %v7003 = vmul.f32 %v6958, %v6995
    %v7004 = vmul.f32 %v6960, %v6996
    %v7005 = vmul.f32 %v6962, %v6997
    %v7006 = vmul.f32 %v6964, %v6998
    %v7007 = vmul.f32 %v6966, %v6999
    %v7008 = vmul.f32 %v6968, %v7000
    %v7009 = vpack.c.bf16 %v7002, %v7001
    %v7010 = vpack.c.bf16 %v7004, %v7003
    %v7011 = vpack.c.bf16 %v7006, %v7005
    %v7012 = vpack.c.bf16 %v7008, %v7007
    %v7013 = vpack.c.bf16 %v5759, %v5755
    %v7014 = vpack.c.bf16 %v5769, %v5765
    %v7015 = vpack.c.bf16 %v5779, %v5775
    %v7016 = vpack.c.bf16 %v5789, %v5785
    %v7018 = vsel %vm1497, %v7009, 0
    %v7021 = vsel %vm1497, %v7010, 0
    %7023 = vmatprep.subr.bf16.mxu0 0
    %7024 = vmatpush1.bf16.msra.mxu0 %v7013
    %7025 = vmatprep.subr.bf16.mxu0 0
    %7026 = vmatpush1.bf16.msra.mxu0 %v7014
    %7027 = vmatprep.subr.bf16.mxu0 0
    %7028 = vmatpush1.bf16.msra.mxu0 0
    %7029 = vmatprep.subr.bf16.mxu0 0
    %7030 = vmatpush1.bf16.msra.mxu0 0
    %7031 = vmatprep.subr.bf16.mxu0 0
    %7032 = vmatpush1.bf16.msra.mxu0 0
    %7033 = vmatprep.subr.bf16.mxu0 0
    %7034 = vmatpush1.bf16.msra.mxu0 0
    %7035 = vmatprep.subr.bf16.mxu0 0
    %7036 = vmatpush1.bf16.msra.mxu0 0
    %7037 = vmatprep.subr.bf16.mxu0 0
    %7038 = vmatpush1.bf16.msra.mxu0 0
    %7039 = vmatprep.subr.bf16.mxu0 0
    %7040 = vmatpush1.bf16.msra.mxu0 0
    %7041 = vmatprep.subr.bf16.mxu0 0
    %7042 = vmatpush1.bf16.msra.mxu0 0
    %7043 = vmatprep.subr.bf16.mxu0 0
    %7044 = vmatpush1.bf16.msra.mxu0 0
    %7045 = vmatprep.subr.bf16.mxu0 0
    %7046 = vmatpush1.bf16.msra.mxu0 0
    %7047 = vmatprep.subr.bf16.mxu0 0
    %7048 = vmatpush1.bf16.msra.mxu0 0
    %7049 = vmatprep.subr.bf16.mxu0 0
    %7050 = vmatpush1.bf16.msra.mxu0 0
    %7051 = vmatprep.subr.bf16.mxu0 0
    %7052 = vmatpush1.bf16.msra.mxu0 0
    %7053 = vmatprep.subr.bf16.mxu0 0
    %7054 = vmatpush1.bf16.msra.mxu0 0
    %7055 = vmatprep.mubr.bf16.mxu0 0
    %7056 = vmatmul.mubr.bf16.gmra.mrb[0].mxu0 %v7018
    %v7057 = vpop.f32.mrb[0].mxu0
    %v7058 = vadd.f32 0.0, %v7057
    %v7059 = vpop.f32.mrb[0].mxu0
    %v7060 = vpop.f32.mrb[0].mxu0
    %v7061 = vadd.f32 0.0, %v7060
    %v7062 = vpop.f32.mrb[0].mxu0
    %7063 = vmatprep.mubr.bf16.mxu0 0
    %7064 = vmatmul.mubr.bf16.gmra.mrb[0].mxu0 %v7021
    %v7065 = vpop.f32.mrb[0].mxu0
    %v7066 = vadd.f32 0.0, %v7065
    %v7067 = vpop.f32.mrb[0].mxu0
    %v7068 = vpop.f32.mrb[0].mxu0
    %v7069 = vadd.f32 0.0, %v7068
    %v7070 = vpop.f32.mrb[0].mxu0
    %7071 = vdwg.mxu0
    %v7073 = vsel %vm1497, %v7011, 0
    %v7076 = vsel %vm1497, %v7012, 0
    %7078 = vmatprep.subr.bf16.mxu0 0
    %7079 = vmatpush1.bf16.msra.mxu0 %v7015
    %7080 = vmatprep.subr.bf16.mxu0 0
    %7081 = vmatpush1.bf16.msra.mxu0 %v7016
    %7082 = vmatprep.subr.bf16.mxu0 0
    %7083 = vmatpush1.bf16.msra.mxu0 0
    %7084 = vmatprep.subr.bf16.mxu0 0
    %7085 = vmatpush1.bf16.msra.mxu0 0
    %7086 = vmatprep.subr.bf16.mxu0 0
    %7087 = vmatpush1.bf16.msra.mxu0 0
    %7088 = vmatprep.subr.bf16.mxu0 0
    %7089 = vmatpush1.bf16.msra.mxu0 0
    %7090 = vmatprep.subr.bf16.mxu0 0
    %7091 = vmatpush1.bf16.msra.mxu0 0
    %7092 = vmatprep.subr.bf16.mxu0 0
    %7093 = vmatpush1.bf16.msra.mxu0 0
    %7094 = vmatprep.subr.bf16.mxu0 0
    %7095 = vmatpush1.bf16.msra.mxu0 0
    %7096 = vmatprep.subr.bf16.mxu0 0
    %7097 = vmatpush1.bf16.msra.mxu0 0
    %7098 = vmatprep.subr.bf16.mxu0 0
    %7099 = vmatpush1.bf16.msra.mxu0 0
    %7100 = vmatprep.subr.bf16.mxu0 0
    %7101 = vmatpush1.bf16.msra.mxu0 0
    %7102 = vmatprep.subr.bf16.mxu0 0
    %7103 = vmatpush1.bf16.msra.mxu0 0
    %7104 = vmatprep.subr.bf16.mxu0 0
    %7105 = vmatpush1.bf16.msra.mxu0 0
    %7106 = vmatprep.subr.bf16.mxu0 0
    %7107 = vmatpush1.bf16.msra.mxu0 0
    %7108 = vmatprep.subr.bf16.mxu0 0
    %7109 = vmatpush1.bf16.msra.mxu0 0
    %7110 = vmatprep.mubr.bf16.mxu0 0
    %7111 = vmatmul.mubr.bf16.gmra.mrb[0].mxu0 %v7073
    %v7112 = vpop.f32.mrb[0].mxu0
    %v7113 = vadd.f32 0.0, %v7112
    %v7114 = vpop.f32.mrb[0].mxu0
    %v7115 = vpop.f32.mrb[0].mxu0
    %v7116 = vadd.f32 0.0, %v7115
    %v7117 = vpop.f32.mrb[0].mxu0
    %7118 = vmatprep.mubr.bf16.mxu0 0
    %7119 = vmatmul.mubr.bf16.gmra.mrb[0].mxu0 %v7076
    %v7120 = vpop.f32.mrb[0].mxu0
    %v7121 = vadd.f32 0.0, %v7120
    %v7122 = vpop.f32.mrb[0].mxu0
    %v7123 = vpop.f32.mrb[0].mxu0
    %v7124 = vadd.f32 0.0, %v7123
    %v7125 = vpop.f32.mrb[0].mxu0
    %7126 = vdwg.mxu0
    %v7127 = vpack.c.bf16 %v7061, %v7058
    %v7128 = vpack.c.bf16 %v7069, %v7066
    %v7129 = vpack.c.bf16 %v7116, %v7113
    %v7130 = vpack.c.bf16 %v7124, %v7121
    %s7131 = scalar_lea.vmem [#allocation10], 384
    %v7132 = vld [vmem:[%s7131] sm:$0xff]
    %v7133 = vld [vmem:[%s7131 + $0x8] sm:$0xff]
    %v7134 = vld [vmem:[%s7131 + $0x10] sm:$0xff]
    %v7135 = vld [vmem:[%s7131 + $0x18] sm:$0xff]
    %v7136 = vld [vmem:[%s7131 + $0x20] sm:$0xff]
    %v7137 = vld [vmem:[%s7131 + $0x28] sm:$0xff]
    %v7138 = vld [vmem:[%s7131 + $0x30] sm:$0xff]
    %v7139 = vld [vmem:[%s7131 + $0x38] sm:$0xff]
    %v7148 = vunpack.c.l.b16 %v7132
    %v7149 = vunpack.c.h.b16 %v7132
    %v7150 = vunpack.c.l.b16 %v7133
    %v7151 = vunpack.c.h.b16 %v7133
    %v7152 = vunpack.c.l.b16 %v7134
    %v7153 = vunpack.c.h.b16 %v7134
    %v7154 = vunpack.c.l.b16 %v7135
    %v7155 = vunpack.c.h.b16 %v7135
    %v7156 = vunpack.c.l.b16 %v7136
    %v7157 = vunpack.c.h.b16 %v7136
    %v7158 = vunpack.c.l.b16 %v7137
    %v7159 = vunpack.c.h.b16 %v7137
    %v7160 = vunpack.c.l.b16 %v7138
    %v7161 = vunpack.c.h.b16 %v7138
    %v7162 = vunpack.c.l.b16 %v7139
    %v7163 = vunpack.c.h.b16 %v7139
    %v7164 = vpack.c.b16 %v7150, %v7148
    %v7165 = vpack.c.b16 %v7151, %v7149
    %v7166 = vpack.c.b16 %v7154, %v7152
    %v7167 = vpack.c.b16 %v7155, %v7153
    %v7168 = vpack.c.b16 %v7158, %v7156
    %v7169 = vpack.c.b16 %v7159, %v7157
    %v7170 = vpack.c.b16 %v7162, %v7160
    %v7171 = vpack.c.b16 %v7163, %v7161
    %v7181 = vsel %vm1366, %v7127, 0
    %v7184 = vsel %vm1366, %v7128, 0
    %v7187 = vsel %vm1366, %v7129, 0
    %v7190 = vsel %vm1366, %v7130, 0
    %7192 = vmatprep.subr.bf16.mxu0 %v7165
    %7193 = vmatpush1.bf16.msra.mxu0 %v7164
    %7194 = vmatprep.subr.bf16.mxu0 %v7167
    %7195 = vmatpush1.bf16.msra.mxu0 %v7166
    %7196 = vmatprep.subr.bf16.mxu0 %v7169
    %7197 = vmatpush1.bf16.msra.mxu0 %v7168
    %7198 = vmatprep.subr.bf16.mxu0 %v7171
    %7199 = vmatpush1.bf16.msra.mxu0 %v7170
    %7200 = vmatprep.subr.bf16.mxu0 0
    %7201 = vmatpush1.bf16.msra.mxu0 0
    %7202 = vmatprep.subr.bf16.mxu0 0
    %7203 = vmatpush1.bf16.msra.mxu0 0
    %7204 = vmatprep.subr.bf16.mxu0 0
    %7205 = vmatpush1.bf16.msra.mxu0 0
    %7206 = vmatprep.subr.bf16.mxu0 0
    %7207 = vmatpush1.bf16.msra.mxu0 0
    %7208 = vmatprep.subr.bf16.mxu0 0
    %7209 = vmatpush1.bf16.msra.mxu0 0
    %7210 = vmatprep.subr.bf16.mxu0 0
    %7211 = vmatpush1.bf16.msra.mxu0 0
    %7212 = vmatprep.subr.bf16.mxu0 0
    %7213 = vmatpush1.bf16.msra.mxu0 0
    %7214 = vmatprep.subr.bf16.mxu0 0
    %7215 = vmatpush1.bf16.msra.mxu0 0
    %7216 = vmatprep.subr.bf16.mxu0 0
    %7217 = vmatpush1.bf16.msra.mxu0 0
    %7218 = vmatprep.subr.bf16.mxu0 0
    %7219 = vmatpush1.bf16.msra.mxu0 0
    %7220 = vmatprep.subr.bf16.mxu0 0
    %7221 = vmatpush1.bf16.msra.mxu0 0
    %7222 = vmatprep.subr.bf16.mxu0 0
    %7223 = vmatpush1.bf16.msra.mxu0 0
    %7224 = vmatprep.mubr.bf16.mxu0 0
    %7225 = vmatmul.mubr.bf16.gmra.mrb[0].mxu0 %v7181
    %v7226 = vpop.f32.mrb[0].mxu0
    %v7227 = vadd.f32 0.0, %v7226
    %v7228 = vpop.f32.mrb[0].mxu0
    %v7229 = vadd.f32 0.0, %v7228
    %v7230 = vpop.f32.mrb[0].mxu0
    %v7231 = vadd.f32 0.0, %v7230
    %v7232 = vpop.f32.mrb[0].mxu0
    %v7233 = vadd.f32 0.0, %v7232
    %7234 = vmatprep.mubr.bf16.mxu0 0
    %7235 = vmatmul.mubr.bf16.gmra.mrb[0].mxu0 %v7184
    %v7236 = vpop.f32.mrb[0].mxu0
    %v7237 = vadd.f32 0.0, %v7236
    %v7238 = vpop.f32.mrb[0].mxu0
    %v7239 = vadd.f32 0.0, %v7238
    %v7240 = vpop.f32.mrb[0].mxu0
    %v7241 = vadd.f32 0.0, %v7240
    %v7242 = vpop.f32.mrb[0].mxu0
    %v7243 = vadd.f32 0.0, %v7242
    %7244 = vmatprep.mubr.bf16.mxu0 0
    %7245 = vmatmul.mubr.bf16.gmra.mrb[0].mxu0 %v7187
    %v7246 = vpop.f32.mrb[0].mxu0
    %v7247 = vadd.f32 0.0, %v7246
    %v7248 = vpop.f32.mrb[0].mxu0
    %v7249 = vadd.f32 0.0, %v7248
    %v7250 = vpop.f32.mrb[0].mxu0
    %v7251 = vadd.f32 0.0, %v7250
    %v7252 = vpop.f32.mrb[0].mxu0
    %v7253 = vadd.f32 0.0, %v7252
    %7254 = vmatprep.mubr.bf16.mxu0 0
    %7255 = vmatmul.mubr.bf16.gmra.mrb[0].mxu0 %v7190
    %v7256 = vpop.f32.mrb[0].mxu0
    %v7257 = vadd.f32 0.0, %v7256
    %v7258 = vpop.f32.mrb[0].mxu0
    %v7259 = vadd.f32 0.0, %v7258
    %v7260 = vpop.f32.mrb[0].mxu0
    %v7261 = vadd.f32 0.0, %v7260
    %v7262 = vpop.f32.mrb[0].mxu0
    %v7263 = vadd.f32 0.0, %v7262
    %7264 = vdwg.mxu0
    %v7265 = vadd.f32 %v6745, %v7227
    %v7266 = vadd.f32 %v6747, %v7229
    %v7267 = vadd.f32 %v6749, %v7231
    %v7268 = vadd.f32 %v6751, %v7233
    %v7269 = vadd.f32 %v6755, %v7237
    %v7270 = vadd.f32 %v6757, %v7239
    %v7271 = vadd.f32 %v6759, %v7241
    %v7272 = vadd.f32 %v6761, %v7243
    %v7273 = vadd.f32 %v6765, %v7247
    %v7274 = vadd.f32 %v6767, %v7249
    %v7275 = vadd.f32 %v6769, %v7251
    %v7276 = vadd.f32 %v6771, %v7253
    %v7277 = vadd.f32 %v6775, %v7257
    %v7278 = vadd.f32 %v6777, %v7259
    %v7279 = vadd.f32 %v6779, %v7261
    %v7280 = vadd.f32 %v6781, %v7263
    %7283 = vrot.lane.b32.xlu0 %v6783, 64
    %v7284 = vpop.permute.xlu0 %7283
    %7285 = vrot.lane.b32.xlu0 %v6784, 64
    %v7286 = vpop.permute.xlu0 %7285
    %7289 = vrot.lane.b32.xlu0 %v6787, 64
    %v7290 = vpop.permute.xlu0 %7289
    %7291 = vrot.lane.b32.xlu0 %v6788, 64
    %v7292 = vpop.permute.xlu0 %7291
    %v7294 = vsel %vm1366, %v7284, 0
    %v7297 = vsel %vm1366, %v7286, 0
    %v7300 = vsel %vm1366, %v7290, 0
    %v7303 = vsel %vm1366, %v7292, 0
    %7305 = vmatprep.subr.bf16.mxu0 0
    %7306 = vmatpush1.bf16.xpose.msra.mxu0 %v7300
    %7307 = vmatprep.subr.bf16.mxu0 0
    %7308 = vmatpush1.bf16.xpose.msra.mxu0 %v7303
    %7309 = vmatprep.subr.bf16.mxu0 0
    %7310 = vmatpush1.bf16.xpose.msra.mxu0 0
    %7311 = vmatprep.subr.bf16.mxu0 0
    %7312 = vmatpush1.bf16.xpose.msra.mxu0 0
    %7313 = vmatprep.subr.bf16.mxu0 0
    %7314 = vmatpush1.bf16.xpose.msra.mxu0 0
    %7315 = vmatprep.subr.bf16.mxu0 0
    %7316 = vmatpush1.bf16.xpose.msra.mxu0 0
    %7317 = vmatprep.subr.bf16.mxu0 0
    %7318 = vmatpush1.bf16.xpose.msra.mxu0 0
    %7319 = vmatprep.subr.bf16.mxu0 0
    %7320 = vmatpush1.bf16.xpose.msra.mxu0 0
    %7321 = vmatprep.subr.bf16.mxu0 0
    %7322 = vmatpush1.bf16.xpose.msra.mxu0 0
    %7323 = vmatprep.subr.bf16.mxu0 0
    %7324 = vmatpush1.bf16.xpose.msra.mxu0 0
    %7325 = vmatprep.subr.bf16.mxu0 0
    %7326 = vmatpush1.bf16.xpose.msra.mxu0 0
    %7327 = vmatprep.subr.bf16.mxu0 0
    %7328 = vmatpush1.bf16.xpose.msra.mxu0 0
    %7329 = vmatprep.subr.bf16.mxu0 0
    %7330 = vmatpush1.bf16.xpose.msra.mxu0 0
    %7331 = vmatprep.subr.bf16.mxu0 0
    %7332 = vmatpush1.bf16.xpose.msra.mxu0 0
    %7333 = vmatprep.subr.bf16.mxu0 0
    %7334 = vmatpush1.bf16.xpose.msra.mxu0 0
    %7335 = vmatprep.subr.bf16.mxu0 0
    %7336 = vmatpush1.bf16.xpose.msra.mxu0 0
    %7337 = vmatprep.mubr.bf16.mxu0 0
    %7338 = vmatmul.mubr.bf16.gmra.mrb[0].mxu0 %v7294
    %v7339 = vpop.f32.mrb[0].mxu0
    %v7340 = vadd.f32 0.0, %v7339
    %v7341 = vpop.f32.mrb[0].mxu0
    %v7342 = vpop.f32.mrb[0].mxu0
    %v7343 = vadd.f32 0.0, %v7342
    %v7344 = vpop.f32.mrb[0].mxu0
    %7345 = vmatprep.mubr.bf16.mxu0 0
    %7346 = vmatmul.mubr.bf16.gmra.mrb[0].mxu0 %v7297
    %v7347 = vpop.f32.mrb[0].mxu0
    %v7348 = vadd.f32 0.0, %v7347
    %v7349 = vpop.f32.mrb[0].mxu0
    %v7350 = vpop.f32.mrb[0].mxu0
    %v7351 = vadd.f32 0.0, %v7350
    %v7352 = vpop.f32.mrb[0].mxu0
    %7353 = vdwg.mxu0
    %7356 = vrot.lane.b32.xlu0 %v6785, 64
    %v7357 = vpop.permute.xlu0 %7356
    %7358 = vrot.lane.b32.xlu0 %v6786, 64
    %v7359 = vpop.permute.xlu0 %7358
    %7362 = vrot.lane.b32.xlu0 %v6789, 64
    %v7363 = vpop.permute.xlu0 %7362
    %7364 = vrot.lane.b32.xlu0 %v6790, 64
    %v7365 = vpop.permute.xlu0 %7364
    %v7367 = vsel %vm1366, %v7357, 0
    %v7370 = vsel %vm1366, %v7359, 0
    %v7373 = vsel %vm1366, %v7363, 0
    %v7376 = vsel %vm1366, %v7365, 0
    %7378 = vmatprep.subr.bf16.mxu0 0
    %7379 = vmatpush1.bf16.xpose.msra.mxu0 %v7373
    %7380 = vmatprep.subr.bf16.mxu0 0
    %7381 = vmatpush1.bf16.xpose.msra.mxu0 %v7376
    %7382 = vmatprep.subr.bf16.mxu0 0
    %7383 = vmatpush1.bf16.xpose.msra.mxu0 0
    %7384 = vmatprep.subr.bf16.mxu0 0
    %7385 = vmatpush1.bf16.xpose.msra.mxu0 0
    %7386 = vmatprep.subr.bf16.mxu0 0
    %7387 = vmatpush1.bf16.xpose.msra.mxu0 0
    %7388 = vmatprep.subr.bf16.mxu0 0
    %7389 = vmatpush1.bf16.xpose.msra.mxu0 0
    %7390 = vmatprep.subr.bf16.mxu0 0
    %7391 = vmatpush1.bf16.xpose.msra.mxu0 0
    %7392 = vmatprep.subr.bf16.mxu0 0
    %7393 = vmatpush1.bf16.xpose.msra.mxu0 0
    %7394 = vmatprep.subr.bf16.mxu0 0
    %7395 = vmatpush1.bf16.xpose.msra.mxu0 0
    %7396 = vmatprep.subr.bf16.mxu0 0
    %7397 = vmatpush1.bf16.xpose.msra.mxu0 0
    %7398 = vmatprep.subr.bf16.mxu0 0
    %7399 = vmatpush1.bf16.xpose.msra.mxu0 0
    %7400 = vmatprep.subr.bf16.mxu0 0
    %7401 = vmatpush1.bf16.xpose.msra.mxu0 0
    %7402 = vmatprep.subr.bf16.mxu0 0
    %7403 = vmatpush1.bf16.xpose.msra.mxu0 0
    %7404 = vmatprep.subr.bf16.mxu0 0
    %7405 = vmatpush1.bf16.xpose.msra.mxu0 0
    %7406 = vmatprep.subr.bf16.mxu0 0
    %7407 = vmatpush1.bf16.xpose.msra.mxu0 0
    %7408 = vmatprep.subr.bf16.mxu0 0
    %7409 = vmatpush1.bf16.xpose.msra.mxu0 0
    %7410 = vmatprep.mubr.bf16.mxu0 0
    %7411 = vmatmul.mubr.bf16.gmra.mrb[0].mxu0 %v7367
    %v7412 = vpop.f32.mrb[0].mxu0
    %v7413 = vadd.f32 0.0, %v7412
    %v7414 = vpop.f32.mrb[0].mxu0
    %v7415 = vpop.f32.mrb[0].mxu0
    %v7416 = vadd.f32 0.0, %v7415
    %v7417 = vpop.f32.mrb[0].mxu0
    %7418 = vmatprep.mubr.bf16.mxu0 0
    %7419 = vmatmul.mubr.bf16.gmra.mrb[0].mxu0 %v7370
    %v7420 = vpop.f32.mrb[0].mxu0
    %v7421 = vadd.f32 0.0, %v7420
    %v7422 = vpop.f32.mrb[0].mxu0
    %v7423 = vpop.f32.mrb[0].mxu0
    %v7424 = vadd.f32 0.0, %v7423
    %v7425 = vpop.f32.mrb[0].mxu0
    %7426 = vdwg.mxu0
    %v7427 = vmul.f32 %v7340, 0.125
    %v7428 = vmul.f32 %v7343, 0.125
    %v7429 = vmul.f32 %v7348, 0.125
    %v7430 = vmul.f32 %v7351, 0.125
    %v7431 = vmul.f32 %v7413, 0.125
    %v7432 = vmul.f32 %v7416, 0.125
    %v7433 = vmul.f32 %v7421, 0.125
    %v7434 = vmul.f32 %v7424, 0.125
    %v7435 = vsel %vm1497, %v7427, -inf
    %7436 = vmax.xlane.f32.xlu0 %v7435
    %v7437 = vpop.xlane.xlu0 %7436
    %v7438 = vsel %vm1497, %v7428, -inf
    %7439 = vmax.xlane.f32.xlu0 %v7438
    %v7440 = vpop.xlane.xlu0 %7439
    %v7441 = vsel %vm1497, %v7429, -inf
    %7442 = vmax.xlane.f32.xlu0 %v7441
    %v7443 = vpop.xlane.xlu0 %7442
    %v7444 = vsel %vm1497, %v7430, -inf
    %7445 = vmax.xlane.f32.xlu0 %v7444
    %v7446 = vpop.xlane.xlu0 %7445
    %v7447 = vsel %vm1497, %v7431, -inf
    %7448 = vmax.xlane.f32.xlu0 %v7447
    %v7449 = vpop.xlane.xlu0 %7448
    %v7450 = vsel %vm1497, %v7432, -inf
    %7451 = vmax.xlane.f32.xlu0 %v7450
    %v7452 = vpop.xlane.xlu0 %7451
    %v7453 = vsel %vm1497, %v7433, -inf
    %7454 = vmax.xlane.f32.xlu0 %v7453
    %v7455 = vpop.xlane.xlu0 %7454
    %v7456 = vsel %vm1497, %v7434, -inf
    %7457 = vmax.xlane.f32.xlu0 %v7456
    %v7458 = vpop.xlane.xlu0 %7457
    %v7459 = vsub.f32 %v7427, %v7437
    %v7460 = vsub.f32 %v7428, %v7440
    %v7461 = vsub.f32 %v7429, %v7443
    %v7462 = vsub.f32 %v7430, %v7446
    %v7463 = vsub.f32 %v7431, %v7449
    %v7464 = vsub.f32 %v7432, %v7452
    %v7465 = vsub.f32 %v7433, %v7455
    %v7466 = vsub.f32 %v7434, %v7458
    %v7467 = vmul.f32 %v7459, 1.442695
    %v7468 = vpow.pop %v7467
    %v7469 = vmul.f32 %v7460, 1.442695
    %v7470 = vpow.pop %v7469
    %v7471 = vmul.f32 %v7461, 1.442695
    %v7472 = vpow.pop %v7471
    %v7473 = vmul.f32 %v7462, 1.442695
    %v7474 = vpow.pop %v7473
    %v7475 = vmul.f32 %v7463, 1.442695
    %v7476 = vpow.pop %v7475
    %v7477 = vmul.f32 %v7464, 1.442695
    %v7478 = vpow.pop %v7477
    %v7479 = vmul.f32 %v7465, 1.442695
    %v7480 = vpow.pop %v7479
    %v7481 = vmul.f32 %v7466, 1.442695
    %v7482 = vpow.pop %v7481
    %v7483 = vsel %vm1497, %v7468, 0.0
    %7484 = vadd.xlane.f32.xlu0 %v7483
    %v7485 = vpop.xlane.xlu0 %7484
    %v7486 = vsel %vm1497, %v7470, 0.0
    %7487 = vadd.xlane.f32.xlu0 %v7486
    %v7488 = vpop.xlane.xlu0 %7487
    %v7489 = vsel %vm1497, %v7472, 0.0
    %7490 = vadd.xlane.f32.xlu0 %v7489
    %v7491 = vpop.xlane.xlu0 %7490
    %v7492 = vsel %vm1497, %v7474, 0.0
    %7493 = vadd.xlane.f32.xlu0 %v7492
    %v7494 = vpop.xlane.xlu0 %7493
    %v7495 = vsel %vm1497, %v7476, 0.0
    %7496 = vadd.xlane.f32.xlu0 %v7495
    %v7497 = vpop.xlane.xlu0 %7496
    %v7498 = vsel %vm1497, %v7478, 0.0
    %7499 = vadd.xlane.f32.xlu0 %v7498
    %v7500 = vpop.xlane.xlu0 %7499
    %v7501 = vsel %vm1497, %v7480, 0.0
    %7502 = vadd.xlane.f32.xlu0 %v7501
    %v7503 = vpop.xlane.xlu0 %7502
    %v7504 = vsel %vm1497, %v7482, 0.0
    %7505 = vadd.xlane.f32.xlu0 %v7504
    %v7506 = vpop.xlane.xlu0 %7505
    %v7507 = vrcp.pop %v7485
    %v7508 = vrcp.pop %v7488
    %v7509 = vrcp.pop %v7491
    %v7510 = vrcp.pop %v7494
    %v7511 = vrcp.pop %v7497
    %v7512 = vrcp.pop %v7500
    %v7513 = vrcp.pop %v7503
    %v7514 = vrcp.pop %v7506
    %v7515 = vmul.f32 %v7468, %v7507
    %v7516 = vmul.f32 %v7470, %v7508
    %v7517 = vmul.f32 %v7472, %v7509
    %v7518 = vmul.f32 %v7474, %v7510
    %v7519 = vmul.f32 %v7476, %v7511
    %v7520 = vmul.f32 %v7478, %v7512
    %v7521 = vmul.f32 %v7480, %v7513
    %v7522 = vmul.f32 %v7482, %v7514
    %v7523 = vpack.c.bf16 %v7516, %v7515
    %v7524 = vpack.c.bf16 %v7518, %v7517
    %v7525 = vpack.c.bf16 %v7520, %v7519
    %v7526 = vpack.c.bf16 %v7522, %v7521
    %7529 = vrot.lane.b32.xlu0 %v7013, 64
    %v7530 = vpop.permute.xlu0 %7529
    %7531 = vrot.lane.b32.xlu0 %v7014, 64
    %v7532 = vpop.permute.xlu0 %7531
    %v7536 = vsel %vm1497, %v7523, 0
    %v7539 = vsel %vm1497, %v7524, 0
    %7541 = vmatprep.subr.bf16.mxu0 0
    %7542 = vmatpush1.bf16.msra.mxu0 %v7530
    %7543 = vmatprep.subr.bf16.mxu0 0
    %7544 = vmatpush1.bf16.msra.mxu0 %v7532
    %7545 = vmatprep.subr.bf16.mxu0 0
    %7546 = vmatpush1.bf16.msra.mxu0 0
    %7547 = vmatprep.subr.bf16.mxu0 0
    %7548 = vmatpush1.bf16.msra.mxu0 0
    %7549 = vmatprep.subr.bf16.mxu0 0
    %7550 = vmatpush1.bf16.msra.mxu0 0
    %7551 = vmatprep.subr.bf16.mxu0 0
    %7552 = vmatpush1.bf16.msra.mxu0 0
    %7553 = vmatprep.subr.bf16.mxu0 0
    %7554 = vmatpush1.bf16.msra.mxu0 0
    %7555 = vmatprep.subr.bf16.mxu0 0
    %7556 = vmatpush1.bf16.msra.mxu0 0
    %7557 = vmatprep.subr.bf16.mxu0 0
    %7558 = vmatpush1.bf16.msra.mxu0 0
    %7559 = vmatprep.subr.bf16.mxu0 0
    %7560 = vmatpush1.bf16.msra.mxu0 0
    %7561 = vmatprep.subr.bf16.mxu0 0
    %7562 = vmatpush1.bf16.msra.mxu0 0
    %7563 = vmatprep.subr.bf16.mxu0 0
    %7564 = vmatpush1.bf16.msra.mxu0 0
    %7565 = vmatprep.subr.bf16.mxu0 0
    %7566 = vmatpush1.bf16.msra.mxu0 0
    %7567 = vmatprep.subr.bf16.mxu0 0
    %7568 = vmatpush1.bf16.msra.mxu0 0
    %7569 = vmatprep.subr.bf16.mxu0 0
    %7570 = vmatpush1.bf16.msra.mxu0 0
    %7571 = vmatprep.subr.bf16.mxu0 0
    %7572 = vmatpush1.bf16.msra.mxu0 0
    %7573 = vmatprep.mubr.bf16.mxu0 0
    %7574 = vmatmul.mubr.bf16.gmra.mrb[0].mxu0 %v7536
    %v7575 = vpop.f32.mrb[0].mxu0
    %v7576 = vadd.f32 0.0, %v7575
    %v7577 = vpop.f32.mrb[0].mxu0
    %v7578 = vpop.f32.mrb[0].mxu0
    %v7579 = vadd.f32 0.0, %v7578
    %v7580 = vpop.f32.mrb[0].mxu0
    %7581 = vmatprep.mubr.bf16.mxu0 0
    %7582 = vmatmul.mubr.bf16.gmra.mrb[0].mxu0 %v7539
    %v7583 = vpop.f32.mrb[0].mxu0
    %v7584 = vadd.f32 0.0, %v7583
    %v7585 = vpop.f32.mrb[0].mxu0
    %v7586 = vpop.f32.mrb[0].mxu0
    %v7587 = vadd.f32 0.0, %v7586
    %v7588 = vpop.f32.mrb[0].mxu0
    %7589 = vdwg.mxu0
    %7592 = vrot.lane.b32.xlu0 %v7015, 64
    %v7593 = vpop.permute.xlu0 %7592
    %7594 = vrot.lane.b32.xlu0 %v7016, 64
    %v7595 = vpop.permute.xlu0 %7594
    %v7599 = vsel %vm1497, %v7525, 0
    %v7602 = vsel %vm1497, %v7526, 0
    %7604 = vmatprep.subr.bf16.mxu0 0
    %7605 = vmatpush1.bf16.msra.mxu0 %v7593
    %7606 = vmatprep.subr.bf16.mxu0 0
    %7607 = vmatpush1.bf16.msra.mxu0 %v7595
    %7608 = vmatprep.subr.bf16.mxu0 0
    %7609 = vmatpush1.bf16.msra.mxu0 0
    %7610 = vmatprep.subr.bf16.mxu0 0
    %7611 = vmatpush1.bf16.msra.mxu0 0
    %7612 = vmatprep.subr.bf16.mxu0 0
    %7613 = vmatpush1.bf16.msra.mxu0 0
    %7614 = vmatprep.subr.bf16.mxu0 0
    %7615 = vmatpush1.bf16.msra.mxu0 0
    %7616 = vmatprep.subr.bf16.mxu0 0
    %7617 = vmatpush1.bf16.msra.mxu0 0
    %7618 = vmatprep.subr.bf16.mxu0 0
    %7619 = vmatpush1.bf16.msra.mxu0 0
    %7620 = vmatprep.subr.bf16.mxu0 0
    %7621 = vmatpush1.bf16.msra.mxu0 0
    %7622 = vmatprep.subr.bf16.mxu0 0
    %7623 = vmatpush1.bf16.msra.mxu0 0
    %7624 = vmatprep.subr.bf16.mxu0 0
    %7625 = vmatpush1.bf16.msra.mxu0 0
    %7626 = vmatprep.subr.bf16.mxu0 0
    %7627 = vmatpush1.bf16.msra.mxu0 0
    %7628 = vmatprep.subr.bf16.mxu0 0
    %7629 = vmatpush1.bf16.msra.mxu0 0
    %7630 = vmatprep.subr.bf16.mxu0 0
    %7631 = vmatpush1.bf16.msra.mxu0 0
    %7632 = vmatprep.subr.bf16.mxu0 0
    %7633 = vmatpush1.bf16.msra.mxu0 0
    %7634 = vmatprep.subr.bf16.mxu0 0
    %7635 = vmatpush1.bf16.msra.mxu0 0
    %7636 = vmatprep.mubr.bf16.mxu0 0
    %7637 = vmatmul.mubr.bf16.gmra.mrb[0].mxu0 %v7599
    %v7638 = vpop.f32.mrb[0].mxu0
    %v7639 = vadd.f32 0.0, %v7638
    %v7640 = vpop.f32.mrb[0].mxu0
    %v7641 = vpop.f32.mrb[0].mxu0
    %v7642 = vadd.f32 0.0, %v7641
    %v7643 = vpop.f32.mrb[0].mxu0
    %7644 = vmatprep.mubr.bf16.mxu0 0
    %7645 = vmatmul.mubr.bf16.gmra.mrb[0].mxu0 %v7602
    %v7646 = vpop.f32.mrb[0].mxu0
    %v7647 = vadd.f32 0.0, %v7646
    %v7648 = vpop.f32.mrb[0].mxu0
    %v7649 = vpop.f32.mrb[0].mxu0
    %v7650 = vadd.f32 0.0, %v7649
    %v7651 = vpop.f32.mrb[0].mxu0
    %7652 = vdwg.mxu0
    %v7653 = vpack.c.bf16 %v7579, %v7576
    %v7654 = vpack.c.bf16 %v7587, %v7584
    %v7655 = vpack.c.bf16 %v7642, %v7639
    %v7656 = vpack.c.bf16 %v7650, %v7647
    %s7657 = scalar_lea.vmem [#allocation10], 448
    %v7658 = vld [vmem:[%s7657] sm:$0xff]
    %v7659 = vld [vmem:[%s7657 + $0x8] sm:$0xff]
    %v7660 = vld [vmem:[%s7657 + $0x10] sm:$0xff]
    %v7661 = vld [vmem:[%s7657 + $0x18] sm:$0xff]
    %v7662 = vld [vmem:[%s7657 + $0x20] sm:$0xff]
    %v7663 = vld [vmem:[%s7657 + $0x28] sm:$0xff]
    %v7664 = vld [vmem:[%s7657 + $0x30] sm:$0xff]
    %v7665 = vld [vmem:[%s7657 + $0x38] sm:$0xff]
    %v7674 = vunpack.c.l.b16 %v7658
    %v7675 = vunpack.c.h.b16 %v7658
    %v7676 = vunpack.c.l.b16 %v7659
    %v7677 = vunpack.c.h.b16 %v7659
    %v7678 = vunpack.c.l.b16 %v7660
    %v7679 = vunpack.c.h.b16 %v7660
    %v7680 = vunpack.c.l.b16 %v7661
    %v7681 = vunpack.c.h.b16 %v7661
    %v7682 = vunpack.c.l.b16 %v7662
    %v7683 = vunpack.c.h.b16 %v7662
    %v7684 = vunpack.c.l.b16 %v7663
    %v7685 = vunpack.c.h.b16 %v7663
    %v7686 = vunpack.c.l.b16 %v7664
    %v7687 = vunpack.c.h.b16 %v7664
    %v7688 = vunpack.c.l.b16 %v7665
    %v7689 = vunpack.c.h.b16 %v7665
    %v7690 = vpack.c.b16 %v7676, %v7674
    %v7691 = vpack.c.b16 %v7677, %v7675
    %v7692 = vpack.c.b16 %v7680, %v7678
    %v7693 = vpack.c.b16 %v7681, %v7679
    %v7694 = vpack.c.b16 %v7684, %v7682
    %v7695 = vpack.c.b16 %v7685, %v7683
    %v7696 = vpack.c.b16 %v7688, %v7686
    %v7697 = vpack.c.b16 %v7689, %v7687
    %v7707 = vsel %vm1366, %v7653, 0
    %v7710 = vsel %vm1366, %v7654, 0
    %v7713 = vsel %vm1366, %v7655, 0
    %v7716 = vsel %vm1366, %v7656, 0
    %7718 = vmatprep.subr.bf16.mxu0 %v7691
    %7719 = vmatpush1.bf16.msra.mxu0 %v7690
    %7720 = vmatprep.subr.bf16.mxu0 %v7693
    %7721 = vmatpush1.bf16.msra.mxu0 %v7692
    %7722 = vmatprep.subr.bf16.mxu0 %v7695
    %7723 = vmatpush1.bf16.msra.mxu0 %v7694
    %7724 = vmatprep.subr.bf16.mxu0 %v7697
    %7725 = vmatpush1.bf16.msra.mxu0 %v7696
    %7726 = vmatprep.subr.bf16.mxu0 0
    %7727 = vmatpush1.bf16.msra.mxu0 0
    %7728 = vmatprep.subr.bf16.mxu0 0
    %7729 = vmatpush1.bf16.msra.mxu0 0
    %7730 = vmatprep.subr.bf16.mxu0 0
    %7731 = vmatpush1.bf16.msra.mxu0 0
    %7732 = vmatprep.subr.bf16.mxu0 0
    %7733 = vmatpush1.bf16.msra.mxu0 0
    %7734 = vmatprep.subr.bf16.mxu0 0
    %7735 = vmatpush1.bf16.msra.mxu0 0
    %7736 = vmatprep.subr.bf16.mxu0 0
    %7737 = vmatpush1.bf16.msra.mxu0 0
    %7738 = vmatprep.subr.bf16.mxu0 0
    %7739 = vmatpush1.bf16.msra.mxu0 0
    %7740 = vmatprep.subr.bf16.mxu0 0
    %7741 = vmatpush1.bf16.msra.mxu0 0
    %7742 = vmatprep.subr.bf16.mxu0 0
    %7743 = vmatpush1.bf16.msra.mxu0 0
    %7744 = vmatprep.subr.bf16.mxu0 0
    %7745 = vmatpush1.bf16.msra.mxu0 0
    %7746 = vmatprep.subr.bf16.mxu0 0
    %7747 = vmatpush1.bf16.msra.mxu0 0
    %7748 = vmatprep.subr.bf16.mxu0 0
    %7749 = vmatpush1.bf16.msra.mxu0 0
    %7750 = vmatprep.mubr.bf16.mxu0 0
    %7751 = vmatmul.mubr.bf16.gmra.mrb[0].mxu0 %v7707
    %v7752 = vpop.f32.mrb[0].mxu0
    %v7753 = vadd.f32 0.0, %v7752
    %v7754 = vpop.f32.mrb[0].mxu0
    %v7755 = vadd.f32 0.0, %v7754
    %v7756 = vpop.f32.mrb[0].mxu0
    %v7757 = vadd.f32 0.0, %v7756
    %v7758 = vpop.f32.mrb[0].mxu0
    %v7759 = vadd.f32 0.0, %v7758
    %7760 = vmatprep.mubr.bf16.mxu0 0
    %7761 = vmatmul.mubr.bf16.gmra.mrb[0].mxu0 %v7710
    %v7762 = vpop.f32.mrb[0].mxu0
    %v7763 = vadd.f32 0.0, %v7762
    %v7764 = vpop.f32.mrb[0].mxu0
    %v7765 = vadd.f32 0.0, %v7764
    %v7766 = vpop.f32.mrb[0].mxu0
    %v7767 = vadd.f32 0.0, %v7766
    %v7768 = vpop.f32.mrb[0].mxu0
    %v7769 = vadd.f32 0.0, %v7768
    %7770 = vmatprep.mubr.bf16.mxu0 0
    %7771 = vmatmul.mubr.bf16.gmra.mrb[0].mxu0 %v7713
    %v7772 = vpop.f32.mrb[0].mxu0
    %v7773 = vadd.f32 0.0, %v7772
    %v7774 = vpop.f32.mrb[0].mxu0
    %v7775 = vadd.f32 0.0, %v7774
    %v7776 = vpop.f32.mrb[0].mxu0
    %v7777 = vadd.f32 0.0, %v7776
    %v7778 = vpop.f32.mrb[0].mxu0
    %v7779 = vadd.f32 0.0, %v7778
    %7780 = vmatprep.mubr.bf16.mxu0 0
    %7781 = vmatmul.mubr.bf16.gmra.mrb[0].mxu0 %v7716
    %v7782 = vpop.f32.mrb[0].mxu0
    %v7783 = vadd.f32 0.0, %v7782
    %v7784 = vpop.f32.mrb[0].mxu0
    %v7785 = vadd.f32 0.0, %v7784
    %v7786 = vpop.f32.mrb[0].mxu0
    %v7787 = vadd.f32 0.0, %v7786
    %v7788 = vpop.f32.mrb[0].mxu0
    %v7789 = vadd.f32 0.0, %v7788
    %7790 = vdwg.mxu0
    %v7791 = vadd.f32 %v7265, %v7753
    %v7792 = vadd.f32 %v7266, %v7755
    %v7793 = vadd.f32 %v7267, %v7757
    %v7794 = vadd.f32 %v7268, %v7759
    %v7795 = vadd.f32 %v7269, %v7763
    %v7796 = vadd.f32 %v7270, %v7765
    %v7797 = vadd.f32 %v7271, %v7767
    %v7798 = vadd.f32 %v7272, %v7769
    %v7799 = vadd.f32 %v7273, %v7773
    %v7800 = vadd.f32 %v7274, %v7775
    %v7801 = vadd.f32 %v7275, %v7777
    %v7802 = vadd.f32 %v7276, %v7779
    %v7803 = vadd.f32 %v7277, %v7783
    %v7804 = vadd.f32 %v7278, %v7785
    %v7805 = vadd.f32 %v7279, %v7787
    %v7806 = vadd.f32 %v7280, %v7789
    %s7807 = scalar_lea.vmem [#allocation11], 2
    %v7808 = vld [vmem:[%s7807] sm:$0x3]
    %v7810 = vlaneseq
    %v7811 = vshrl.u32 %v7810, 7
    %v7812 = vsub.s32 0, %v7811
    %v7813 = vrot.slane %v7808, %v7812
    %v7814 = vlaneseq
    %v7815 = vshrl.u32 %v7814, 7
    %v7816 = vsub.s32 1, %v7815
    %v7817 = vrot.slane %v7808, %v7816
    %v7820 = vadd.f32 %v7791, %v7813
    %v7821 = vadd.f32 %v7792, %v7817
    %v7822 = vadd.f32 %v7793, %v7813
    %v7823 = vadd.f32 %v7794, %v7817
    %v7824 = vadd.f32 %v7795, %v7813
    %v7825 = vadd.f32 %v7796, %v7817
    %v7826 = vadd.f32 %v7797, %v7813
    %v7827 = vadd.f32 %v7798, %v7817
    %v7828 = vadd.f32 %v7799, %v7813
    %v7829 = vadd.f32 %v7800, %v7817
    %v7830 = vadd.f32 %v7801, %v7813
    %v7831 = vadd.f32 %v7802, %v7817
    %v7832 = vadd.f32 %v7803, %v7813
    %v7833 = vadd.f32 %v7804, %v7817
    %v7834 = vadd.f32 %v7805, %v7813
    %v7835 = vadd.f32 %v7806, %v7817
    %v7836 = vadd.f32 %v7820, %v4938
    %v7837 = vadd.f32 %v7821, %v4939
    %v7838 = vadd.f32 %v7822, %v4940
    %v7839 = vadd.f32 %v7823, %v4941
    %v7840 = vadd.f32 %v7824, %v4942
    %v7841 = vadd.f32 %v7825, %v4943
    %v7842 = vadd.f32 %v7826, %v4944
    %v7843 = vadd.f32 %v7827, %v4945
    %v7844 = vadd.f32 %v7828, %v4946
    %v7845 = vadd.f32 %v7829, %v4947
    %v7846 = vadd.f32 %v7830, %v4948
    %v7847 = vadd.f32 %v7831, %v4949
    %v7848 = vadd.f32 %v7832, %v4950
    %v7849 = vadd.f32 %v7833, %v4951
    %v7850 = vadd.f32 %v7834, %v4952
    %v7851 = vadd.f32 %v7835, %v4953
    %s7852 = scalar_lea.vmem [#allocation13], 2
    %v7853 = vld [vmem:[%s7852] sm:$0x3]
    %s7854 = scalar_lea.vmem [#allocation14], 2
    %v7855 = vld [vmem:[%s7854] sm:$0x3]
    %v7856 = vadd.f32 %v7836, %v7837
    %7857 = vadd.xlane.f32.xlu0 %v7856
    %v7858 = vpop.xlane.xlu0 %7857
    %v7859 = vadd.f32 %v7838, %v7839
    %7860 = vadd.xlane.f32.xlu0 %v7859
    %v7861 = vpop.xlane.xlu0 %7860
    %v7862 = vadd.f32 %v7840, %v7841
    %7863 = vadd.xlane.f32.xlu0 %v7862
    %v7864 = vpop.xlane.xlu0 %7863
    %v7865 = vadd.f32 %v7842, %v7843
    %7866 = vadd.xlane.f32.xlu0 %v7865
    %v7867 = vpop.xlane.xlu0 %7866
    %v7868 = vadd.f32 %v7844, %v7845
    %7869 = vadd.xlane.f32.xlu0 %v7868
    %v7870 = vpop.xlane.xlu0 %7869
    %v7871 = vadd.f32 %v7846, %v7847
    %7872 = vadd.xlane.f32.xlu0 %v7871
    %v7873 = vpop.xlane.xlu0 %7872
    %v7874 = vadd.f32 %v7848, %v7849
    %7875 = vadd.xlane.f32.xlu0 %v7874
    %v7876 = vpop.xlane.xlu0 %7875
    %v7877 = vadd.f32 %v7850, %v7851
    %7878 = vadd.xlane.f32.xlu0 %v7877
    %v7879 = vpop.xlane.xlu0 %7878
    %v7880 = vmul.f32 %v7858, %v3445
    %v7881 = vmul.f32 %v7861, %v3445
    %v7882 = vmul.f32 %v7864, %v3445
    %v7883 = vmul.f32 %v7867, %v3445
    %v7884 = vmul.f32 %v7870, %v3445
    %v7885 = vmul.f32 %v7873, %v3445
    %v7886 = vmul.f32 %v7876, %v3445
    %v7887 = vmul.f32 %v7879, %v3445
    %v7888 = vsub.f32 %v7836, %v7880
    %v7889 = vsub.f32 %v7837, %v7880
    %v7890 = vsub.f32 %v7838, %v7881
    %v7891 = vsub.f32 %v7839, %v7881
    %v7892 = vsub.f32 %v7840, %v7882
    %v7893 = vsub.f32 %v7841, %v7882
    %v7894 = vsub.f32 %v7842, %v7883
    %v7895 = vsub.f32 %v7843, %v7883
    %v7896 = vsub.f32 %v7844, %v7884
    %v7897 = vsub.f32 %v7845, %v7884
    %v7898 = vsub.f32 %v7846, %v7885
    %v7899 = vsub.f32 %v7847, %v7885
    %v7900 = vsub.f32 %v7848, %v7886
    %v7901 = vsub.f32 %v7849, %v7886
    %v7902 = vsub.f32 %v7850, %v7887
    %v7903 = vsub.f32 %v7851, %v7887
    %v7904 = vmul.f32 %v7888, %v7888
    %v7905 = vmul.f32 %v7889, %v7889
    %v7906 = vmul.f32 %v7890, %v7890
    %v7907 = vmul.f32 %v7891, %v7891
    %v7908 = vmul.f32 %v7892, %v7892
    %v7909 = vmul.f32 %v7893, %v7893
    %v7910 = vmul.f32 %v7894, %v7894
    %v7911 = vmul.f32 %v7895, %v7895
    %v7912 = vmul.f32 %v7896, %v7896
    %v7913 = vmul.f32 %v7897, %v7897
    %v7914 = vmul.f32 %v7898, %v7898
    %v7915 = vmul.f32 %v7899, %v7899
    %v7916 = vmul.f32 %v7900, %v7900
    %v7917 = vmul.f32 %v7901, %v7901
    %v7918 = vmul.f32 %v7902, %v7902
    %v7919 = vmul.f32 %v7903, %v7903
    %v7920 = vadd.f32 %v7904, %v7905
    %7921 = vadd.xlane.f32.xlu0 %v7920
    %v7922 = vpop.xlane.xlu0 %7921
    %v7923 = vadd.f32 %v7906, %v7907
    %7924 = vadd.xlane.f32.xlu0 %v7923
    %v7925 = vpop.xlane.xlu0 %7924
    %v7926 = vadd.f32 %v7908, %v7909
    %7927 = vadd.xlane.f32.xlu0 %v7926
    %v7928 = vpop.xlane.xlu0 %7927
    %v7929 = vadd.f32 %v7910, %v7911
    %7930 = vadd.xlane.f32.xlu0 %v7929
    %v7931 = vpop.xlane.xlu0 %7930
    %v7932 = vadd.f32 %v7912, %v7913
    %7933 = vadd.xlane.f32.xlu0 %v7932
    %v7934 = vpop.xlane.xlu0 %7933
    %v7935 = vadd.f32 %v7914, %v7915
    %7936 = vadd.xlane.f32.xlu0 %v7935
    %v7937 = vpop.xlane.xlu0 %7936
    %v7938 = vadd.f32 %v7916, %v7917
    %7939 = vadd.xlane.f32.xlu0 %v7938
    %v7940 = vpop.xlane.xlu0 %7939
    %v7941 = vadd.f32 %v7918, %v7919
    %7942 = vadd.xlane.f32.xlu0 %v7941
    %v7943 = vpop.xlane.xlu0 %7942
    %v7944 = vmul.f32 %v7922, %v3445
    %v7945 = vmul.f32 %v7925, %v3445
    %v7946 = vmul.f32 %v7928, %v3445
    %v7947 = vmul.f32 %v7931, %v3445
    %v7948 = vmul.f32 %v7934, %v3445
    %v7949 = vmul.f32 %v7937, %v3445
    %v7950 = vmul.f32 %v7940, %v3445
    %v7951 = vmul.f32 %v7943, %v3445
    %v7952 = vadd.f32 %v7944, 1e-05
    %v7953 = vadd.f32 %v7945, 1e-05
    %v7954 = vadd.f32 %v7946, 1e-05
    %v7955 = vadd.f32 %v7947, 1e-05
    %v7956 = vadd.f32 %v7948, 1e-05
    %v7957 = vadd.f32 %v7949, 1e-05
    %v7958 = vadd.f32 %v7950, 1e-05
    %v7959 = vadd.f32 %v7951, 1e-05
    %v7960 = vrsqrt.pop %v7952
    %v7961 = vrsqrt.pop %v7953
    %v7962 = vrsqrt.pop %v7954
    %v7963 = vrsqrt.pop %v7955
    %v7964 = vrsqrt.pop %v7956
    %v7965 = vrsqrt.pop %v7957
    %v7966 = vrsqrt.pop %v7958
    %v7967 = vrsqrt.pop %v7959
    %v7968 = vmul.f32 %v7888, %v7960
    %v7969 = vmul.f32 %v7889, %v7960
    %v7970 = vmul.f32 %v7890, %v7961
    %v7971 = vmul.f32 %v7891, %v7961
    %v7972 = vmul.f32 %v7892, %v7962
    %v7973 = vmul.f32 %v7893, %v7962
    %v7974 = vmul.f32 %v7894, %v7963
    %v7975 = vmul.f32 %v7895, %v7963
    %v7976 = vmul.f32 %v7896, %v7964
    %v7977 = vmul.f32 %v7897, %v7964
    %v7978 = vmul.f32 %v7898, %v7965
    %v7979 = vmul.f32 %v7899, %v7965
    %v7980 = vmul.f32 %v7900, %v7966
    %v7981 = vmul.f32 %v7901, %v7966
    %v7982 = vmul.f32 %v7902, %v7967
    %v7983 = vmul.f32 %v7903, %v7967
    %v7985 = vlaneseq
    %v7986 = vshrl.u32 %v7985, 7
    %v7987 = vsub.s32 0, %v7986
    %v7988 = vrot.slane %v7853, %v7987
    %v7989 = vlaneseq
    %v7990 = vshrl.u32 %v7989, 7
    %v7991 = vsub.s32 1, %v7990
    %v7992 = vrot.slane %v7853, %v7991
    %v7995 = vmul.f32 %v7968, %v7988
    %v7996 = vmul.f32 %v7969, %v7992
    %v7997 = vmul.f32 %v7970, %v7988
    %v7998 = vmul.f32 %v7971, %v7992
    %v7999 = vmul.f32 %v7972, %v7988
    %v8000 = vmul.f32 %v7973, %v7992
    %v8001 = vmul.f32 %v7974, %v7988
    %v8002 = vmul.f32 %v7975, %v7992
    %v8003 = vmul.f32 %v7976, %v7988
    %v8004 = vmul.f32 %v7977, %v7992
    %v8005 = vmul.f32 %v7978, %v7988
    %v8006 = vmul.f32 %v7979, %v7992
    %v8007 = vmul.f32 %v7980, %v7988
    %v8008 = vmul.f32 %v7981, %v7992
    %v8009 = vmul.f32 %v7982, %v7988
    %v8010 = vmul.f32 %v7983, %v7992
    %v8012 = vlaneseq
    %v8013 = vshrl.u32 %v8012, 7
    %v8014 = vsub.s32 0, %v8013
    %v8015 = vrot.slane %v7855, %v8014
    %v8016 = vlaneseq
    %v8017 = vshrl.u32 %v8016, 7
    %v8018 = vsub.s32 1, %v8017
    %v8019 = vrot.slane %v7855, %v8018
    %v8022 = vadd.f32 %v7995, %v8015
    %v8023 = vadd.f32 %v7996, %v8019
    %v8024 = vadd.f32 %v7997, %v8015
    %v8025 = vadd.f32 %v7998, %v8019
    %v8026 = vadd.f32 %v7999, %v8015
    %v8027 = vadd.f32 %v8000, %v8019
    %v8028 = vadd.f32 %v8001, %v8015
    %v8029 = vadd.f32 %v8002, %v8019
    %v8030 = vadd.f32 %v8003, %v8015
    %v8031 = vadd.f32 %v8004, %v8019
    %v8032 = vadd.f32 %v8005, %v8015
    %v8033 = vadd.f32 %v8006, %v8019
    %v8034 = vadd.f32 %v8007, %v8015
    %v8035 = vadd.f32 %v8008, %v8019
    %v8036 = vadd.f32 %v8009, %v8015
    %v8037 = vadd.f32 %v8010, %v8019
    %v8038 = vpack.c.bf16 %v8024, %v8022
    %v8039 = vpack.c.bf16 %v8025, %v8023
    %v8040 = vpack.c.bf16 %v8028, %v8026
    %v8041 = vpack.c.bf16 %v8029, %v8027
    %v8042 = vpack.c.bf16 %v8032, %v8030
    %v8043 = vpack.c.bf16 %v8033, %v8031
    %v8044 = vpack.c.bf16 %v8036, %v8034
    %v8045 = vpack.c.bf16 %v8037, %v8035
    %s8046 = scalar_lea.vmem [#allocation16], 512
    %v8047 = vld [vmem:[%s8046] sm:$0xff]
    %v8048 = vld [vmem:[%s8046 + $0x8] sm:$0xff]
    %v8049 = vld [vmem:[%s8046 + $0x10] sm:$0xff]
    %v8050 = vld [vmem:[%s8046 + $0x18] sm:$0xff]
    %v8051 = vld [vmem:[%s8046 + $0x20] sm:$0xff]
    %v8052 = vld [vmem:[%s8046 + $0x28] sm:$0xff]
    %v8053 = vld [vmem:[%s8046 + $0x30] sm:$0xff]
    %v8054 = vld [vmem:[%s8046 + $0x38] sm:$0xff]
    %v8055 = vld [vmem:[%s8046 + $0x40] sm:$0xff]
    %v8056 = vld [vmem:[%s8046 + $0x48] sm:$0xff]
    %v8057 = vld [vmem:[%s8046 + $0x50] sm:$0xff]
    %v8058 = vld [vmem:[%s8046 + $0x58] sm:$0xff]
    %v8059 = vld [vmem:[%s8046 + $0x60] sm:$0xff]
    %v8060 = vld [vmem:[%s8046 + $0x68] sm:$0xff]
    %v8061 = vld [vmem:[%s8046 + $0x70] sm:$0xff]
    %v8062 = vld [vmem:[%s8046 + $0x78] sm:$0xff]
    %v8063 = vld [vmem:[%s8046 + $0x80] sm:$0xff]
    %v8064 = vld [vmem:[%s8046 + $0x88] sm:$0xff]
    %v8065 = vld [vmem:[%s8046 + $0x90] sm:$0xff]
    %v8066 = vld [vmem:[%s8046 + $0x98] sm:$0xff]
    %v8067 = vld [vmem:[%s8046 + $0xa0] sm:$0xff]
    %v8068 = vld [vmem:[%s8046 + $0xa8] sm:$0xff]
    %v8069 = vld [vmem:[%s8046 + $0xb0] sm:$0xff]
    %v8070 = vld [vmem:[%s8046 + $0xb8] sm:$0xff]
    %v8071 = vld [vmem:[%s8046 + $0xc0] sm:$0xff]
    %v8072 = vld [vmem:[%s8046 + $0xc8] sm:$0xff]
    %v8073 = vld [vmem:[%s8046 + $0xd0] sm:$0xff]
    %v8074 = vld [vmem:[%s8046 + $0xd8] sm:$0xff]
    %v8075 = vld [vmem:[%s8046 + $0xe0] sm:$0xff]
    %v8076 = vld [vmem:[%s8046 + $0xe8] sm:$0xff]
    %v8077 = vld [vmem:[%s8046 + $0xf0] sm:$0xff]
    %v8078 = vld [vmem:[%s8046 + $0xf8] sm:$0xff]
    %v8079 = vld [vmem:[%s8046 + $0x100] sm:$0xff]
    %v8080 = vld [vmem:[%s8046 + $0x108] sm:$0xff]
    %v8081 = vld [vmem:[%s8046 + $0x110] sm:$0xff]
    %v8082 = vld [vmem:[%s8046 + $0x118] sm:$0xff]
    %v8083 = vld [vmem:[%s8046 + $0x120] sm:$0xff]
    %v8084 = vld [vmem:[%s8046 + $0x128] sm:$0xff]
    %v8085 = vld [vmem:[%s8046 + $0x130] sm:$0xff]
    %v8086 = vld [vmem:[%s8046 + $0x138] sm:$0xff]
    %v8087 = vld [vmem:[%s8046 + $0x140] sm:$0xff]
    %v8088 = vld [vmem:[%s8046 + $0x148] sm:$0xff]
    %v8089 = vld [vmem:[%s8046 + $0x150] sm:$0xff]
    %v8090 = vld [vmem:[%s8046 + $0x158] sm:$0xff]
    %v8091 = vld [vmem:[%s8046 + $0x160] sm:$0xff]
    %v8092 = vld [vmem:[%s8046 + $0x168] sm:$0xff]
    %v8093 = vld [vmem:[%s8046 + $0x170] sm:$0xff]
    %v8094 = vld [vmem:[%s8046 + $0x178] sm:$0xff]
    %v8095 = vld [vmem:[%s8046 + $0x180] sm:$0xff]
    %v8096 = vld [vmem:[%s8046 + $0x188] sm:$0xff]
    %v8097 = vld [vmem:[%s8046 + $0x190] sm:$0xff]
    %v8098 = vld [vmem:[%s8046 + $0x198] sm:$0xff]
    %v8099 = vld [vmem:[%s8046 + $0x1a0] sm:$0xff]
    %v8100 = vld [vmem:[%s8046 + $0x1a8] sm:$0xff]
    %v8101 = vld [vmem:[%s8046 + $0x1b0] sm:$0xff]
    %v8102 = vld [vmem:[%s8046 + $0x1b8] sm:$0xff]
    %v8103 = vld [vmem:[%s8046 + $0x1c0] sm:$0xff]
    %v8104 = vld [vmem:[%s8046 + $0x1c8] sm:$0xff]
    %v8105 = vld [vmem:[%s8046 + $0x1d0] sm:$0xff]
    %v8106 = vld [vmem:[%s8046 + $0x1d8] sm:$0xff]
    %v8107 = vld [vmem:[%s8046 + $0x1e0] sm:$0xff]
    %v8108 = vld [vmem:[%s8046 + $0x1e8] sm:$0xff]
    %v8109 = vld [vmem:[%s8046 + $0x1f0] sm:$0xff]
    %v8110 = vld [vmem:[%s8046 + $0x1f8] sm:$0xff]
    %s8111 = scalar_lea.vmem [#allocation17], 4
    %v8112 = vld [vmem:[%s8111] sm:$0xf]
    %v8114 = vlaneseq
    %v8115 = vshrl.u32 %v8114, 7
    %v8116 = vsub.s32 0, %v8115
    %v8117 = vrot.slane %v8112, %v8116
    %v8118 = vlaneseq
    %v8119 = vshrl.u32 %v8118, 7
    %v8120 = vsub.s32 1, %v8119
    %v8121 = vrot.slane %v8112, %v8120
    %v8122 = vlaneseq
    %v8123 = vshrl.u32 %v8122, 7
    %v8124 = vsub.s32 2, %v8123
    %v8125 = vrot.slane %v8112, %v8124
    %v8126 = vlaneseq
    %v8127 = vshrl.u32 %v8126, 7
    %v8128 = vsub.s32 3, %v8127
    %v8129 = vrot.slane %v8112, %v8128
    %v8198 = vunpack.c.l.b16 %v8047
    %v8199 = vunpack.c.h.b16 %v8047
    %v8200 = vunpack.c.l.b16 %v8048
    %v8201 = vunpack.c.h.b16 %v8048
    %v8202 = vunpack.c.l.b16 %v8049
    %v8203 = vunpack.c.h.b16 %v8049
    %v8204 = vunpack.c.l.b16 %v8050
    %v8205 = vunpack.c.h.b16 %v8050
    %v8206 = vunpack.c.l.b16 %v8051
    %v8207 = vunpack.c.h.b16 %v8051
    %v8208 = vunpack.c.l.b16 %v8052
    %v8209 = vunpack.c.h.b16 %v8052
    %v8210 = vunpack.c.l.b16 %v8053
    %v8211 = vunpack.c.h.b16 %v8053
    %v8212 = vunpack.c.l.b16 %v8054
    %v8213 = vunpack.c.h.b16 %v8054
    %v8214 = vunpack.c.l.b16 %v8055
    %v8215 = vunpack.c.h.b16 %v8055
    %v8216 = vunpack.c.l.b16 %v8056
    %v8217 = vunpack.c.h.b16 %v8056
    %v8218 = vunpack.c.l.b16 %v8057
    %v8219 = vunpack.c.h.b16 %v8057
    %v8220 = vunpack.c.l.b16 %v8058
    %v8221 = vunpack.c.h.b16 %v8058
    %v8222 = vunpack.c.l.b16 %v8059
    %v8223 = vunpack.c.h.b16 %v8059
    %v8224 = vunpack.c.l.b16 %v8060
    %v8225 = vunpack.c.h.b16 %v8060
    %v8226 = vunpack.c.l.b16 %v8061
    %v8227 = vunpack.c.h.b16 %v8061
    %v8228 = vunpack.c.l.b16 %v8062
    %v8229 = vunpack.c.h.b16 %v8062
    %v8230 = vunpack.c.l.b16 %v8063
    %v8231 = vunpack.c.h.b16 %v8063
    %v8232 = vunpack.c.l.b16 %v8064
    %v8233 = vunpack.c.h.b16 %v8064
    %v8234 = vunpack.c.l.b16 %v8065
    %v8235 = vunpack.c.h.b16 %v8065
    %v8236 = vunpack.c.l.b16 %v8066
    %v8237 = vunpack.c.h.b16 %v8066
    %v8238 = vunpack.c.l.b16 %v8067
    %v8239 = vunpack.c.h.b16 %v8067
    %v8240 = vunpack.c.l.b16 %v8068
    %v8241 = vunpack.c.h.b16 %v8068
    %v8242 = vunpack.c.l.b16 %v8069
    %v8243 = vunpack.c.h.b16 %v8069
    %v8244 = vunpack.c.l.b16 %v8070
    %v8245 = vunpack.c.h.b16 %v8070
    %v8246 = vunpack.c.l.b16 %v8071
    %v8247 = vunpack.c.h.b16 %v8071
    %v8248 = vunpack.c.l.b16 %v8072
    %v8249 = vunpack.c.h.b16 %v8072
    %v8250 = vunpack.c.l.b16 %v8073
    %v8251 = vunpack.c.h.b16 %v8073
    %v8252 = vunpack.c.l.b16 %v8074
    %v8253 = vunpack.c.h.b16 %v8074
    %v8254 = vunpack.c.l.b16 %v8075
    %v8255 = vunpack.c.h.b16 %v8075
    %v8256 = vunpack.c.l.b16 %v8076
    %v8257 = vunpack.c.h.b16 %v8076
    %v8258 = vunpack.c.l.b16 %v8077
    %v8259 = vunpack.c.h.b16 %v8077
    %v8260 = vunpack.c.l.b16 %v8078
    %v8261 = vunpack.c.h.b16 %v8078
    %v8262 = vunpack.c.l.b16 %v8079
    %v8263 = vunpack.c.h.b16 %v8079
    %v8264 = vunpack.c.l.b16 %v8080
    %v8265 = vunpack.c.h.b16 %v8080
    %v8266 = vunpack.c.l.b16 %v8081
    %v8267 = vunpack.c.h.b16 %v8081
    %v8268 = vunpack.c.l.b16 %v8082
    %v8269 = vunpack.c.h.b16 %v8082
    %v8270 = vunpack.c.l.b16 %v8083
    %v8271 = vunpack.c.h.b16 %v8083
    %v8272 = vunpack.c.l.b16 %v8084
    %v8273 = vunpack.c.h.b16 %v8084
    %v8274 = vunpack.c.l.b16 %v8085
    %v8275 = vunpack.c.h.b16 %v8085
    %v8276 = vunpack.c.l.b16 %v8086
    %v8277 = vunpack.c.h.b16 %v8086
    %v8278 = vunpack.c.l.b16 %v8087
    %v8279 = vunpack.c.h.b16 %v8087
    %v8280 = vunpack.c.l.b16 %v8088
    %v8281 = vunpack.c.h.b16 %v8088
    %v8282 = vunpack.c.l.b16 %v8089
    %v8283 = vunpack.c.h.b16 %v8089
    %v8284 = vunpack.c.l.b16 %v8090
    %v8285 = vunpack.c.h.b16 %v8090
    %v8286 = vunpack.c.l.b16 %v8091
    %v8287 = vunpack.c.h.b16 %v8091
    %v8288 = vunpack.c.l.b16 %v8092
    %v8289 = vunpack.c.h.b16 %v8092
    %v8290 = vunpack.c.l.b16 %v8093
    %v8291 = vunpack.c.h.b16 %v8093
    %v8292 = vunpack.c.l.b16 %v8094
    %v8293 = vunpack.c.h.b16 %v8094
    %v8294 = vunpack.c.l.b16 %v8095
    %v8295 = vunpack.c.h.b16 %v8095
    %v8296 = vunpack.c.l.b16 %v8096
    %v8297 = vunpack.c.h.b16 %v8096
    %v8298 = vunpack.c.l.b16 %v8097
    %v8299 = vunpack.c.h.b16 %v8097
    %v8300 = vunpack.c.l.b16 %v8098
    %v8301 = vunpack.c.h.b16 %v8098
    %v8302 = vunpack.c.l.b16 %v8099
    %v8303 = vunpack.c.h.b16 %v8099
    %v8304 = vunpack.c.l.b16 %v8100
    %v8305 = vunpack.c.h.b16 %v8100
    %v8306 = vunpack.c.l.b16 %v8101
    %v8307 = vunpack.c.h.b16 %v8101
    %v8308 = vunpack.c.l.b16 %v8102
    %v8309 = vunpack.c.h.b16 %v8102
    %v8310 = vunpack.c.l.b16 %v8103
    %v8311 = vunpack.c.h.b16 %v8103
    %v8312 = vunpack.c.l.b16 %v8104
    %v8313 = vunpack.c.h.b16 %v8104
    %v8314 = vunpack.c.l.b16 %v8105
    %v8315 = vunpack.c.h.b16 %v8105
    %v8316 = vunpack.c.l.b16 %v8106
    %v8317 = vunpack.c.h.b16 %v8106
    %v8318 = vunpack.c.l.b16 %v8107
    %v8319 = vunpack.c.h.b16 %v8107
    %v8320 = vunpack.c.l.b16 %v8108
    %v8321 = vunpack.c.h.b16 %v8108
    %v8322 = vunpack.c.l.b16 %v8109
    %v8323 = vunpack.c.h.b16 %v8109
    %v8324 = vunpack.c.l.b16 %v8110
    %v8325 = vunpack.c.h.b16 %v8110
    %v8326 = vpack.c.b16 %v8202, %v8198
    %v8327 = vpack.c.b16 %v8203, %v8199
    %v8328 = vpack.c.b16 %v8204, %v8200
    %v8329 = vpack.c.b16 %v8205, %v8201
    %v8330 = vpack.c.b16 %v8210, %v8206
    %v8331 = vpack.c.b16 %v8211, %v8207
    %v8332 = vpack.c.b16 %v8212, %v8208
    %v8333 = vpack.c.b16 %v8213, %v8209
    %v8334 = vpack.c.b16 %v8218, %v8214
    %v8335 = vpack.c.b16 %v8219, %v8215
    %v8336 = vpack.c.b16 %v8220, %v8216
    %v8337 = vpack.c.b16 %v8221, %v8217
    %v8338 = vpack.c.b16 %v8226, %v8222
    %v8339 = vpack.c.b16 %v8227, %v8223
    %v8340 = vpack.c.b16 %v8228, %v8224
    %v8341 = vpack.c.b16 %v8229, %v8225
    %v8342 = vpack.c.b16 %v8234, %v8230
    %v8343 = vpack.c.b16 %v8235, %v8231
    %v8344 = vpack.c.b16 %v8236, %v8232
    %v8345 = vpack.c.b16 %v8237, %v8233
    %v8346 = vpack.c.b16 %v8242, %v8238
    %v8347 = vpack.c.b16 %v8243, %v8239
    %v8348 = vpack.c.b16 %v8244, %v8240
    %v8349 = vpack.c.b16 %v8245, %v8241
    %v8350 = vpack.c.b16 %v8250, %v8246
    %v8351 = vpack.c.b16 %v8251, %v8247
    %v8352 = vpack.c.b16 %v8252, %v8248
    %v8353 = vpack.c.b16 %v8253, %v8249
    %v8354 = vpack.c.b16 %v8258, %v8254
    %v8355 = vpack.c.b16 %v8259, %v8255
    %v8356 = vpack.c.b16 %v8260, %v8256
    %v8357 = vpack.c.b16 %v8261, %v8257
    %v8358 = vpack.c.b16 %v8266, %v8262
    %v8359 = vpack.c.b16 %v8267, %v8263
    %v8360 = vpack.c.b16 %v8268, %v8264
    %v8361 = vpack.c.b16 %v8269, %v8265
    %v8362 = vpack.c.b16 %v8274, %v8270
    %v8363 = vpack.c.b16 %v8275, %v8271
    %v8364 = vpack.c.b16 %v8276, %v8272
    %v8365 = vpack.c.b16 %v8277, %v8273
    %v8366 = vpack.c.b16 %v8282, %v8278
    %v8367 = vpack.c.b16 %v8283, %v8279
    %v8368 = vpack.c.b16 %v8284, %v8280
    %v8369 = vpack.c.b16 %v8285, %v8281
    %v8370 = vpack.c.b16 %v8290, %v8286
    %v8371 = vpack.c.b16 %v8291, %v8287
    %v8372 = vpack.c.b16 %v8292, %v8288
    %v8373 = vpack.c.b16 %v8293, %v8289
    %v8374 = vpack.c.b16 %v8298, %v8294
    %v8375 = vpack.c.b16 %v8299, %v8295
    %v8376 = vpack.c.b16 %v8300, %v8296
    %v8377 = vpack.c.b16 %v8301, %v8297
    %v8378 = vpack.c.b16 %v8306, %v8302
    %v8379 = vpack.c.b16 %v8307, %v8303
    %v8380 = vpack.c.b16 %v8308, %v8304
    %v8381 = vpack.c.b16 %v8309, %v8305
    %v8382 = vpack.c.b16 %v8314, %v8310
    %v8383 = vpack.c.b16 %v8315, %v8311
    %v8384 = vpack.c.b16 %v8316, %v8312
    %v8385 = vpack.c.b16 %v8317, %v8313
    %v8386 = vpack.c.b16 %v8322, %v8318
    %v8387 = vpack.c.b16 %v8323, %v8319
    %v8388 = vpack.c.b16 %v8324, %v8320
    %v8389 = vpack.c.b16 %v8325, %v8321
    %8454 = vmatprep.subr.bf16.mxu0 %v8327
    %8455 = vmatpush1.bf16.msra.mxu0 %v8326
    %8456 = vmatprep.subr.bf16.mxu0 %v8331
    %8457 = vmatpush1.bf16.msra.mxu0 %v8330
    %8458 = vmatprep.subr.bf16.mxu0 %v8335
    %8459 = vmatpush1.bf16.msra.mxu0 %v8334
    %8460 = vmatprep.subr.bf16.mxu0 %v8339
    %8461 = vmatpush1.bf16.msra.mxu0 %v8338
    %8462 = vmatprep.subr.bf16.mxu0 %v8343
    %8463 = vmatpush1.bf16.msra.mxu0 %v8342
    %8464 = vmatprep.subr.bf16.mxu0 %v8347
    %8465 = vmatpush1.bf16.msra.mxu0 %v8346
    %8466 = vmatprep.subr.bf16.mxu0 %v8351
    %8467 = vmatpush1.bf16.msra.mxu0 %v8350
    %8468 = vmatprep.subr.bf16.mxu0 %v8355
    %8469 = vmatpush1.bf16.msra.mxu0 %v8354
    %8470 = vmatprep.subr.bf16.mxu0 %v8359
    %8471 = vmatpush1.bf16.msra.mxu0 %v8358
    %8472 = vmatprep.subr.bf16.mxu0 %v8363
    %8473 = vmatpush1.bf16.msra.mxu0 %v8362
    %8474 = vmatprep.subr.bf16.mxu0 %v8367
    %8475 = vmatpush1.bf16.msra.mxu0 %v8366
    %8476 = vmatprep.subr.bf16.mxu0 %v8371
    %8477 = vmatpush1.bf16.msra.mxu0 %v8370
    %8478 = vmatprep.subr.bf16.mxu0 %v8375
    %8479 = vmatpush1.bf16.msra.mxu0 %v8374
    %8480 = vmatprep.subr.bf16.mxu0 %v8379
    %8481 = vmatpush1.bf16.msra.mxu0 %v8378
    %8482 = vmatprep.subr.bf16.mxu0 %v8383
    %8483 = vmatpush1.bf16.msra.mxu0 %v8382
    %8484 = vmatprep.subr.bf16.mxu0 %v8387
    %8485 = vmatpush1.bf16.msra.mxu0 %v8386
    %8486 = vmatprep.mubr.bf16.mxu0 %v8039
    %8487 = vmatmul.mubr.bf16.gmra.mrb[0].mxu0 %v8038
    %v8488 = vpop.f32.mrb[0].mxu0
    %v8489 = vadd.f32 %v8117, %v8488
    %v8490 = vpop.f32.mrb[0].mxu0
    %v8491 = vadd.f32 %v8121, %v8490
    %v8492 = vpop.f32.mrb[0].mxu0
    %v8493 = vadd.f32 %v8117, %v8492
    %v8494 = vpop.f32.mrb[0].mxu0
    %v8495 = vadd.f32 %v8121, %v8494
    %8496 = vmatprep.mubr.bf16.mxu0 %v8041
    %8497 = vmatmul.mubr.bf16.gmra.mrb[0].mxu0 %v8040
    %v8498 = vpop.f32.mrb[0].mxu0
    %v8499 = vadd.f32 %v8117, %v8498
    %v8500 = vpop.f32.mrb[0].mxu0
    %v8501 = vadd.f32 %v8121, %v8500
    %v8502 = vpop.f32.mrb[0].mxu0
    %v8503 = vadd.f32 %v8117, %v8502
    %v8504 = vpop.f32.mrb[0].mxu0
    %v8505 = vadd.f32 %v8121, %v8504
    %8506 = vmatprep.mubr.bf16.mxu0 %v8043
    %8507 = vmatmul.mubr.bf16.gmra.mrb[0].mxu0 %v8042
    %v8508 = vpop.f32.mrb[0].mxu0
    %v8509 = vadd.f32 %v8117, %v8508
    %v8510 = vpop.f32.mrb[0].mxu0
    %v8511 = vadd.f32 %v8121, %v8510
    %v8512 = vpop.f32.mrb[0].mxu0
    %v8513 = vadd.f32 %v8117, %v8512
    %v8514 = vpop.f32.mrb[0].mxu0
    %v8515 = vadd.f32 %v8121, %v8514
    %8516 = vmatprep.mubr.bf16.mxu0 %v8045
    %8517 = vmatmul.mubr.bf16.gmra.mrb[0].mxu0 %v8044
    %v8518 = vpop.f32.mrb[0].mxu0
    %v8519 = vadd.f32 %v8117, %v8518
    %v8520 = vpop.f32.mrb[0].mxu0
    %v8521 = vadd.f32 %v8121, %v8520
    %v8522 = vpop.f32.mrb[0].mxu0
    %v8523 = vadd.f32 %v8117, %v8522
    %v8524 = vpop.f32.mrb[0].mxu0
    %v8525 = vadd.f32 %v8121, %v8524
    %8526 = vdwg.mxu0
    %8527 = vmatprep.subr.bf16.mxu0 %v8329
    %8528 = vmatpush1.bf16.msra.mxu0 %v8328
    %8529 = vmatprep.subr.bf16.mxu0 %v8333
    %8530 = vmatpush1.bf16.msra.mxu0 %v8332
    %8531 = vmatprep.subr.bf16.mxu0 %v8337
    %8532 = vmatpush1.bf16.msra.mxu0 %v8336
    %8533 = vmatprep.subr.bf16.mxu0 %v8341
    %8534 = vmatpush1.bf16.msra.mxu0 %v8340
    %8535 = vmatprep.subr.bf16.mxu0 %v8345
    %8536 = vmatpush1.bf16.msra.mxu0 %v8344
    %8537 = vmatprep.subr.bf16.mxu0 %v8349
    %8538 = vmatpush1.bf16.msra.mxu0 %v8348
    %8539 = vmatprep.subr.bf16.mxu0 %v8353
    %8540 = vmatpush1.bf16.msra.mxu0 %v8352
    %8541 = vmatprep.subr.bf16.mxu0 %v8357
    %8542 = vmatpush1.bf16.msra.mxu0 %v8356
    %8543 = vmatprep.subr.bf16.mxu0 %v8361
    %8544 = vmatpush1.bf16.msra.mxu0 %v8360
    %8545 = vmatprep.subr.bf16.mxu0 %v8365
    %8546 = vmatpush1.bf16.msra.mxu0 %v8364
    %8547 = vmatprep.subr.bf16.mxu0 %v8369
    %8548 = vmatpush1.bf16.msra.mxu0 %v8368
    %8549 = vmatprep.subr.bf16.mxu0 %v8373
    %8550 = vmatpush1.bf16.msra.mxu0 %v8372
    %8551 = vmatprep.subr.bf16.mxu0 %v8377
    %8552 = vmatpush1.bf16.msra.mxu0 %v8376
    %8553 = vmatprep.subr.bf16.mxu0 %v8381
    %8554 = vmatpush1.bf16.msra.mxu0 %v8380
    %8555 = vmatprep.subr.bf16.mxu0 %v8385
    %8556 = vmatpush1.bf16.msra.mxu0 %v8384
    %8557 = vmatprep.subr.bf16.mxu0 %v8389
    %8558 = vmatpush1.bf16.msra.mxu0 %v8388
    %8559 = vmatprep.mubr.bf16.mxu0 %v8039
    %8560 = vmatmul.mubr.bf16.gmra.mrb[0].mxu0 %v8038
    %v8561 = vpop.f32.mrb[0].mxu0
    %v8562 = vadd.f32 %v8125, %v8561
    %v8563 = vpop.f32.mrb[0].mxu0
    %v8564 = vadd.f32 %v8129, %v8563
    %v8565 = vpop.f32.mrb[0].mxu0
    %v8566 = vadd.f32 %v8125, %v8565
    %v8567 = vpop.f32.mrb[0].mxu0
    %v8568 = vadd.f32 %v8129, %v8567
    %8569 = vmatprep.mubr.bf16.mxu0 %v8041
    %8570 = vmatmul.mubr.bf16.gmra.mrb[0].mxu0 %v8040
    %v8571 = vpop.f32.mrb[0].mxu0
    %v8572 = vadd.f32 %v8125, %v8571
    %v8573 = vpop.f32.mrb[0].mxu0
    %v8574 = vadd.f32 %v8129, %v8573
    %v8575 = vpop.f32.mrb[0].mxu0
    %v8576 = vadd.f32 %v8125, %v8575
    %v8577 = vpop.f32.mrb[0].mxu0
    %v8578 = vadd.f32 %v8129, %v8577
    %8579 = vmatprep.mubr.bf16.mxu0 %v8043
    %8580 = vmatmul.mubr.bf16.gmra.mrb[0].mxu0 %v8042
    %v8581 = vpop.f32.mrb[0].mxu0
    %v8582 = vadd.f32 %v8125, %v8581
    %v8583 = vpop.f32.mrb[0].mxu0
    %v8584 = vadd.f32 %v8129, %v8583
    %v8585 = vpop.f32.mrb[0].mxu0
    %v8586 = vadd.f32 %v8125, %v8585
    %v8587 = vpop.f32.mrb[0].mxu0
    %v8588 = vadd.f32 %v8129, %v8587
    %8589 = vmatprep.mubr.bf16.mxu0 %v8045
    %8590 = vmatmul.mubr.bf16.gmra.mrb[0].mxu0 %v8044
    %v8591 = vpop.f32.mrb[0].mxu0
    %v8592 = vadd.f32 %v8125, %v8591
    %v8593 = vpop.f32.mrb[0].mxu0
    %v8594 = vadd.f32 %v8129, %v8593
    %v8595 = vpop.f32.mrb[0].mxu0
    %v8596 = vadd.f32 %v8125, %v8595
    %v8597 = vpop.f32.mrb[0].mxu0
    %v8598 = vadd.f32 %v8129, %v8597
    %8599 = vdwg.mxu0
    %v8600 = vmax.f32 %v8489, 0.0
    %v8601 = vmax.f32 %v8491, 0.0
    %v8602 = vmax.f32 %v8562, 0.0
    %v8603 = vmax.f32 %v8564, 0.0
    %v8604 = vmax.f32 %v8493, 0.0
    %v8605 = vmax.f32 %v8495, 0.0
    %v8606 = vmax.f32 %v8566, 0.0
    %v8607 = vmax.f32 %v8568, 0.0
    %v8608 = vmax.f32 %v8499, 0.0
    %v8609 = vmax.f32 %v8501, 0.0
    %v8610 = vmax.f32 %v8572, 0.0
    %v8611 = vmax.f32 %v8574, 0.0
    %v8612 = vmax.f32 %v8503, 0.0
    %v8613 = vmax.f32 %v8505, 0.0
    %v8614 = vmax.f32 %v8576, 0.0
    %v8615 = vmax.f32 %v8578, 0.0
    %v8616 = vmax.f32 %v8509, 0.0
    %v8617 = vmax.f32 %v8511, 0.0
    %v8618 = vmax.f32 %v8582, 0.0
    %v8619 = vmax.f32 %v8584, 0.0
    %v8620 = vmax.f32 %v8513, 0.0
    %v8621 = vmax.f32 %v8515, 0.0
    %v8622 = vmax.f32 %v8586, 0.0
    %v8623 = vmax.f32 %v8588, 0.0
    %v8624 = vmax.f32 %v8519, 0.0
    %v8625 = vmax.f32 %v8521, 0.0
    %v8626 = vmax.f32 %v8592, 0.0
    %v8627 = vmax.f32 %v8594, 0.0
    %v8628 = vmax.f32 %v8523, 0.0
    %v8629 = vmax.f32 %v8525, 0.0
    %v8630 = vmax.f32 %v8596, 0.0
    %v8631 = vmax.f32 %v8598, 0.0
    %v8632 = vpack.c.bf16 %v8604, %v8600
    %v8633 = vpack.c.bf16 %v8605, %v8601
    %v8634 = vpack.c.bf16 %v8606, %v8602
    %v8635 = vpack.c.bf16 %v8607, %v8603
    %v8636 = vpack.c.bf16 %v8612, %v8608
    %v8637 = vpack.c.bf16 %v8613, %v8609
    %v8638 = vpack.c.bf16 %v8614, %v8610
    %v8639 = vpack.c.bf16 %v8615, %v8611
    %v8640 = vpack.c.bf16 %v8620, %v8616
    %v8641 = vpack.c.bf16 %v8621, %v8617
    %v8642 = vpack.c.bf16 %v8622, %v8618
    %v8643 = vpack.c.bf16 %v8623, %v8619
    %v8644 = vpack.c.bf16 %v8628, %v8624
    %v8645 = vpack.c.bf16 %v8629, %v8625
    %v8646 = vpack.c.bf16 %v8630, %v8626
    %v8647 = vpack.c.bf16 %v8631, %v8627
    %s8648 = scalar_lea.vmem [#allocation19], 512
    %v8649 = vld [vmem:[%s8648] sm:$0xff]
    %v8650 = vld [vmem:[%s8648 + $0x8] sm:$0xff]
    %v8651 = vld [vmem:[%s8648 + $0x10] sm:$0xff]
    %v8652 = vld [vmem:[%s8648 + $0x18] sm:$0xff]
    %v8653 = vld [vmem:[%s8648 + $0x20] sm:$0xff]
    %v8654 = vld [vmem:[%s8648 + $0x28] sm:$0xff]
    %v8655 = vld [vmem:[%s8648 + $0x30] sm:$0xff]
    %v8656 = vld [vmem:[%s8648 + $0x38] sm:$0xff]
    %v8657 = vld [vmem:[%s8648 + $0x40] sm:$0xff]
    %v8658 = vld [vmem:[%s8648 + $0x48] sm:$0xff]
    %v8659 = vld [vmem:[%s8648 + $0x50] sm:$0xff]
    %v8660 = vld [vmem:[%s8648 + $0x58] sm:$0xff]
    %v8661 = vld [vmem:[%s8648 + $0x60] sm:$0xff]
    %v8662 = vld [vmem:[%s8648 + $0x68] sm:$0xff]
    %v8663 = vld [vmem:[%s8648 + $0x70] sm:$0xff]
    %v8664 = vld [vmem:[%s8648 + $0x78] sm:$0xff]
    %v8665 = vld [vmem:[%s8648 + $0x80] sm:$0xff]
    %v8666 = vld [vmem:[%s8648 + $0x88] sm:$0xff]
    %v8667 = vld [vmem:[%s8648 + $0x90] sm:$0xff]
    %v8668 = vld [vmem:[%s8648 + $0x98] sm:$0xff]
    %v8669 = vld [vmem:[%s8648 + $0xa0] sm:$0xff]
    %v8670 = vld [vmem:[%s8648 + $0xa8] sm:$0xff]
    %v8671 = vld [vmem:[%s8648 + $0xb0] sm:$0xff]
    %v8672 = vld [vmem:[%s8648 + $0xb8] sm:$0xff]
    %v8673 = vld [vmem:[%s8648 + $0xc0] sm:$0xff]
    %v8674 = vld [vmem:[%s8648 + $0xc8] sm:$0xff]
    %v8675 = vld [vmem:[%s8648 + $0xd0] sm:$0xff]
    %v8676 = vld [vmem:[%s8648 + $0xd8] sm:$0xff]
    %v8677 = vld [vmem:[%s8648 + $0xe0] sm:$0xff]
    %v8678 = vld [vmem:[%s8648 + $0xe8] sm:$0xff]
    %v8679 = vld [vmem:[%s8648 + $0xf0] sm:$0xff]
    %v8680 = vld [vmem:[%s8648 + $0xf8] sm:$0xff]
    %v8681 = vld [vmem:[%s8648 + $0x100] sm:$0xff]
    %v8682 = vld [vmem:[%s8648 + $0x108] sm:$0xff]
    %v8683 = vld [vmem:[%s8648 + $0x110] sm:$0xff]
    %v8684 = vld [vmem:[%s8648 + $0x118] sm:$0xff]
    %v8685 = vld [vmem:[%s8648 + $0x120] sm:$0xff]
    %v8686 = vld [vmem:[%s8648 + $0x128] sm:$0xff]
    %v8687 = vld [vmem:[%s8648 + $0x130] sm:$0xff]
    %v8688 = vld [vmem:[%s8648 + $0x138] sm:$0xff]
    %v8689 = vld [vmem:[%s8648 + $0x140] sm:$0xff]
    %v8690 = vld [vmem:[%s8648 + $0x148] sm:$0xff]
    %v8691 = vld [vmem:[%s8648 + $0x150] sm:$0xff]
    %v8692 = vld [vmem:[%s8648 + $0x158] sm:$0xff]
    %v8693 = vld [vmem:[%s8648 + $0x160] sm:$0xff]
    %v8694 = vld [vmem:[%s8648 + $0x168] sm:$0xff]
    %v8695 = vld [vmem:[%s8648 + $0x170] sm:$0xff]
    %v8696 = vld [vmem:[%s8648 + $0x178] sm:$0xff]
    %v8697 = vld [vmem:[%s8648 + $0x180] sm:$0xff]
    %v8698 = vld [vmem:[%s8648 + $0x188] sm:$0xff]
    %v8699 = vld [vmem:[%s8648 + $0x190] sm:$0xff]
    %v8700 = vld [vmem:[%s8648 + $0x198] sm:$0xff]
    %v8701 = vld [vmem:[%s8648 + $0x1a0] sm:$0xff]
    %v8702 = vld [vmem:[%s8648 + $0x1a8] sm:$0xff]
    %v8703 = vld [vmem:[%s8648 + $0x1b0] sm:$0xff]
    %v8704 = vld [vmem:[%s8648 + $0x1b8] sm:$0xff]
    %v8705 = vld [vmem:[%s8648 + $0x1c0] sm:$0xff]
    %v8706 = vld [vmem:[%s8648 + $0x1c8] sm:$0xff]
    %v8707 = vld [vmem:[%s8648 + $0x1d0] sm:$0xff]
    %v8708 = vld [vmem:[%s8648 + $0x1d8] sm:$0xff]
    %v8709 = vld [vmem:[%s8648 + $0x1e0] sm:$0xff]
    %v8710 = vld [vmem:[%s8648 + $0x1e8] sm:$0xff]
    %v8711 = vld [vmem:[%s8648 + $0x1f0] sm:$0xff]
    %v8712 = vld [vmem:[%s8648 + $0x1f8] sm:$0xff]
    %s8713 = scalar_lea.vmem [#allocation20], 2
    %v8714 = vld [vmem:[%s8713] sm:$0x3]
    %v8716 = vlaneseq
    %v8717 = vshrl.u32 %v8716, 7
    %v8718 = vsub.s32 0, %v8717
    %v8719 = vrot.slane %v8714, %v8718
    %v8720 = vlaneseq
    %v8721 = vshrl.u32 %v8720, 7
    %v8722 = vsub.s32 1, %v8721
    %v8723 = vrot.slane %v8714, %v8722
    %v8790 = vunpack.c.l.b16 %v8649
    %v8791 = vunpack.c.h.b16 %v8649
    %v8792 = vunpack.c.l.b16 %v8650
    %v8793 = vunpack.c.h.b16 %v8650
    %v8794 = vunpack.c.l.b16 %v8651
    %v8795 = vunpack.c.h.b16 %v8651
    %v8796 = vunpack.c.l.b16 %v8652
    %v8797 = vunpack.c.h.b16 %v8652
    %v8798 = vunpack.c.l.b16 %v8653
    %v8799 = vunpack.c.h.b16 %v8653
    %v8800 = vunpack.c.l.b16 %v8654
    %v8801 = vunpack.c.h.b16 %v8654
    %v8802 = vunpack.c.l.b16 %v8655
    %v8803 = vunpack.c.h.b16 %v8655
    %v8804 = vunpack.c.l.b16 %v8656
    %v8805 = vunpack.c.h.b16 %v8656
    %v8806 = vunpack.c.l.b16 %v8657
    %v8807 = vunpack.c.h.b16 %v8657
    %v8808 = vunpack.c.l.b16 %v8658
    %v8809 = vunpack.c.h.b16 %v8658
    %v8810 = vunpack.c.l.b16 %v8659
    %v8811 = vunpack.c.h.b16 %v8659
    %v8812 = vunpack.c.l.b16 %v8660
    %v8813 = vunpack.c.h.b16 %v8660
    %v8814 = vunpack.c.l.b16 %v8661
    %v8815 = vunpack.c.h.b16 %v8661
    %v8816 = vunpack.c.l.b16 %v8662
    %v8817 = vunpack.c.h.b16 %v8662
    %v8818 = vunpack.c.l.b16 %v8663
    %v8819 = vunpack.c.h.b16 %v8663
    %v8820 = vunpack.c.l.b16 %v8664
    %v8821 = vunpack.c.h.b16 %v8664
    %v8822 = vunpack.c.l.b16 %v8665
    %v8823 = vunpack.c.h.b16 %v8665
    %v8824 = vunpack.c.l.b16 %v8666
    %v8825 = vunpack.c.h.b16 %v8666
    %v8826 = vunpack.c.l.b16 %v8667
    %v8827 = vunpack.c.h.b16 %v8667
    %v8828 = vunpack.c.l.b16 %v8668
    %v8829 = vunpack.c.h.b16 %v8668
    %v8830 = vunpack.c.l.b16 %v8669
    %v8831 = vunpack.c.h.b16 %v8669
    %v8832 = vunpack.c.l.b16 %v8670
    %v8833 = vunpack.c.h.b16 %v8670
    %v8834 = vunpack.c.l.b16 %v8671
    %v8835 = vunpack.c.h.b16 %v8671
    %v8836 = vunpack.c.l.b16 %v8672
    %v8837 = vunpack.c.h.b16 %v8672
    %v8838 = vunpack.c.l.b16 %v8673
    %v8839 = vunpack.c.h.b16 %v8673
    %v8840 = vunpack.c.l.b16 %v8674
    %v8841 = vunpack.c.h.b16 %v8674
    %v8842 = vunpack.c.l.b16 %v8675
    %v8843 = vunpack.c.h.b16 %v8675
    %v8844 = vunpack.c.l.b16 %v8676
    %v8845 = vunpack.c.h.b16 %v8676
    %v8846 = vunpack.c.l.b16 %v8677
    %v8847 = vunpack.c.h.b16 %v8677
    %v8848 = vunpack.c.l.b16 %v8678
    %v8849 = vunpack.c.h.b16 %v8678
    %v8850 = vunpack.c.l.b16 %v8679
    %v8851 = vunpack.c.h.b16 %v8679
    %v8852 = vunpack.c.l.b16 %v8680
    %v8853 = vunpack.c.h.b16 %v8680
    %v8854 = vunpack.c.l.b16 %v8681
    %v8855 = vunpack.c.h.b16 %v8681
    %v8856 = vunpack.c.l.b16 %v8682
    %v8857 = vunpack.c.h.b16 %v8682
    %v8858 = vunpack.c.l.b16 %v8683
    %v8859 = vunpack.c.h.b16 %v8683
    %v8860 = vunpack.c.l.b16 %v8684
    %v8861 = vunpack.c.h.b16 %v8684
    %v8862 = vunpack.c.l.b16 %v8685
    %v8863 = vunpack.c.h.b16 %v8685
    %v8864 = vunpack.c.l.b16 %v8686
    %v8865 = vunpack.c.h.b16 %v8686
    %v8866 = vunpack.c.l.b16 %v8687
    %v8867 = vunpack.c.h.b16 %v8687
    %v8868 = vunpack.c.l.b16 %v8688
    %v8869 = vunpack.c.h.b16 %v8688
    %v8870 = vunpack.c.l.b16 %v8689
    %v8871 = vunpack.c.h.b16 %v8689
    %v8872 = vunpack.c.l.b16 %v8690
    %v8873 = vunpack.c.h.b16 %v8690
    %v8874 = vunpack.c.l.b16 %v8691
    %v8875 = vunpack.c.h.b16 %v8691
    %v8876 = vunpack.c.l.b16 %v8692
    %v8877 = vunpack.c.h.b16 %v8692
    %v8878 = vunpack.c.l.b16 %v8693
    %v8879 = vunpack.c.h.b16 %v8693
    %v8880 = vunpack.c.l.b16 %v8694
    %v8881 = vunpack.c.h.b16 %v8694
    %v8882 = vunpack.c.l.b16 %v8695
    %v8883 = vunpack.c.h.b16 %v8695
    %v8884 = vunpack.c.l.b16 %v8696
    %v8885 = vunpack.c.h.b16 %v8696
    %v8886 = vunpack.c.l.b16 %v8697
    %v8887 = vunpack.c.h.b16 %v8697
    %v8888 = vunpack.c.l.b16 %v8698
    %v8889 = vunpack.c.h.b16 %v8698
    %v8890 = vunpack.c.l.b16 %v8699
    %v8891 = vunpack.c.h.b16 %v8699
    %v8892 = vunpack.c.l.b16 %v8700
    %v8893 = vunpack.c.h.b16 %v8700
    %v8894 = vunpack.c.l.b16 %v8701
    %v8895 = vunpack.c.h.b16 %v8701
    %v8896 = vunpack.c.l.b16 %v8702
    %v8897 = vunpack.c.h.b16 %v8702
    %v8898 = vunpack.c.l.b16 %v8703
    %v8899 = vunpack.c.h.b16 %v8703
    %v8900 = vunpack.c.l.b16 %v8704
    %v8901 = vunpack.c.h.b16 %v8704
    %v8902 = vunpack.c.l.b16 %v8705
    %v8903 = vunpack.c.h.b16 %v8705
    %v8904 = vunpack.c.l.b16 %v8706
    %v8905 = vunpack.c.h.b16 %v8706
    %v8906 = vunpack.c.l.b16 %v8707
    %v8907 = vunpack.c.h.b16 %v8707
    %v8908 = vunpack.c.l.b16 %v8708
    %v8909 = vunpack.c.h.b16 %v8708
    %v8910 = vunpack.c.l.b16 %v8709
    %v8911 = vunpack.c.h.b16 %v8709
    %v8912 = vunpack.c.l.b16 %v8710
    %v8913 = vunpack.c.h.b16 %v8710
    %v8914 = vunpack.c.l.b16 %v8711
    %v8915 = vunpack.c.h.b16 %v8711
    %v8916 = vunpack.c.l.b16 %v8712
    %v8917 = vunpack.c.h.b16 %v8712
    %v8918 = vpack.c.b16 %v8792, %v8790
    %v8919 = vpack.c.b16 %v8793, %v8791
    %v8920 = vpack.c.b16 %v8796, %v8794
    %v8921 = vpack.c.b16 %v8797, %v8795
    %v8922 = vpack.c.b16 %v8800, %v8798
    %v8923 = vpack.c.b16 %v8801, %v8799
    %v8924 = vpack.c.b16 %v8804, %v8802
    %v8925 = vpack.c.b16 %v8805, %v8803
    %v8926 = vpack.c.b16 %v8808, %v8806
    %v8927 = vpack.c.b16 %v8809, %v8807
    %v8928 = vpack.c.b16 %v8812, %v8810
    %v8929 = vpack.c.b16 %v8813, %v8811
    %v8930 = vpack.c.b16 %v8816, %v8814
    %v8931 = vpack.c.b16 %v8817, %v8815
    %v8932 = vpack.c.b16 %v8820, %v8818
    %v8933 = vpack.c.b16 %v8821, %v8819
    %v8934 = vpack.c.b16 %v8824, %v8822
    %v8935 = vpack.c.b16 %v8825, %v8823
    %v8936 = vpack.c.b16 %v8828, %v8826
    %v8937 = vpack.c.b16 %v8829, %v8827
    %v8938 = vpack.c.b16 %v8832, %v8830
    %v8939 = vpack.c.b16 %v8833, %v8831
    %v8940 = vpack.c.b16 %v8836, %v8834
    %v8941 = vpack.c.b16 %v8837, %v8835
    %v8942 = vpack.c.b16 %v8840, %v8838
    %v8943 = vpack.c.b16 %v8841, %v8839
    %v8944 = vpack.c.b16 %v8844, %v8842
    %v8945 = vpack.c.b16 %v8845, %v8843
    %v8946 = vpack.c.b16 %v8848, %v8846
    %v8947 = vpack.c.b16 %v8849, %v8847
    %v8948 = vpack.c.b16 %v8852, %v8850
    %v8949 = vpack.c.b16 %v8853, %v8851
    %v8950 = vpack.c.b16 %v8856, %v8854
    %v8951 = vpack.c.b16 %v8857, %v8855
    %v8952 = vpack.c.b16 %v8860, %v8858
    %v8953 = vpack.c.b16 %v8861, %v8859
    %v8954 = vpack.c.b16 %v8864, %v8862
    %v8955 = vpack.c.b16 %v8865, %v8863
    %v8956 = vpack.c.b16 %v8868, %v8866
    %v8957 = vpack.c.b16 %v8869, %v8867
    %v8958 = vpack.c.b16 %v8872, %v8870
    %v8959 = vpack.c.b16 %v8873, %v8871
    %v8960 = vpack.c.b16 %v8876, %v8874
    %v8961 = vpack.c.b16 %v8877, %v8875
    %v8962 = vpack.c.b16 %v8880, %v8878
    %v8963 = vpack.c.b16 %v8881, %v8879
    %v8964 = vpack.c.b16 %v8884, %v8882
    %v8965 = vpack.c.b16 %v8885, %v8883
    %v8966 = vpack.c.b16 %v8888, %v8886
    %v8967 = vpack.c.b16 %v8889, %v8887
    %v8968 = vpack.c.b16 %v8892, %v8890
    %v8969 = vpack.c.b16 %v8893, %v8891
    %v8970 = vpack.c.b16 %v8896, %v8894
    %v8971 = vpack.c.b16 %v8897, %v8895
    %v8972 = vpack.c.b16 %v8900, %v8898
    %v8973 = vpack.c.b16 %v8901, %v8899
    %v8974 = vpack.c.b16 %v8904, %v8902
    %v8975 = vpack.c.b16 %v8905, %v8903
    %v8976 = vpack.c.b16 %v8908, %v8906
    %v8977 = vpack.c.b16 %v8909, %v8907
    %v8978 = vpack.c.b16 %v8912, %v8910
    %v8979 = vpack.c.b16 %v8913, %v8911
    %v8980 = vpack.c.b16 %v8916, %v8914
    %v8981 = vpack.c.b16 %v8917, %v8915
    %9046 = vmatprep.subr.bf16.mxu0 %v8919
    %9047 = vmatpush1.bf16.msra.mxu0 %v8918
    %9048 = vmatprep.subr.bf16.mxu0 %v8921
    %9049 = vmatpush1.bf16.msra.mxu0 %v8920
    %9050 = vmatprep.subr.bf16.mxu0 %v8923
    %9051 = vmatpush1.bf16.msra.mxu0 %v8922
    %9052 = vmatprep.subr.bf16.mxu0 %v8925
    %9053 = vmatpush1.bf16.msra.mxu0 %v8924
    %9054 = vmatprep.subr.bf16.mxu0 %v8927
    %9055 = vmatpush1.bf16.msra.mxu0 %v8926
    %9056 = vmatprep.subr.bf16.mxu0 %v8929
    %9057 = vmatpush1.bf16.msra.mxu0 %v8928
    %9058 = vmatprep.subr.bf16.mxu0 %v8931
    %9059 = vmatpush1.bf16.msra.mxu0 %v8930
    %9060 = vmatprep.subr.bf16.mxu0 %v8933
    %9061 = vmatpush1.bf16.msra.mxu0 %v8932
    %9062 = vmatprep.subr.bf16.mxu0 %v8935
    %9063 = vmatpush1.bf16.msra.mxu0 %v8934
    %9064 = vmatprep.subr.bf16.mxu0 %v8937
    %9065 = vmatpush1.bf16.msra.mxu0 %v8936
    %9066 = vmatprep.subr.bf16.mxu0 %v8939
    %9067 = vmatpush1.bf16.msra.mxu0 %v8938
    %9068 = vmatprep.subr.bf16.mxu0 %v8941
    %9069 = vmatpush1.bf16.msra.mxu0 %v8940
    %9070 = vmatprep.subr.bf16.mxu0 %v8943
    %9071 = vmatpush1.bf16.msra.mxu0 %v8942
    %9072 = vmatprep.subr.bf16.mxu0 %v8945
    %9073 = vmatpush1.bf16.msra.mxu0 %v8944
    %9074 = vmatprep.subr.bf16.mxu0 %v8947
    %9075 = vmatpush1.bf16.msra.mxu0 %v8946
    %9076 = vmatprep.subr.bf16.mxu0 %v8949
    %9077 = vmatpush1.bf16.msra.mxu0 %v8948
    %9078 = vmatprep.mubr.bf16.mxu0 %v8633
    %9079 = vmatmul.mubr.bf16.gmra.mrb[0].mxu0 %v8632
    %v9080 = vpop.f32.mrb[0].mxu0
    %v9081 = vadd.f32 %v8719, %v9080
    %v9082 = vpop.f32.mrb[0].mxu0
    %v9083 = vadd.f32 %v8723, %v9082
    %v9084 = vpop.f32.mrb[0].mxu0
    %v9085 = vadd.f32 %v8719, %v9084
    %v9086 = vpop.f32.mrb[0].mxu0
    %v9087 = vadd.f32 %v8723, %v9086
    %9088 = vmatprep.mubr.bf16.mxu0 %v8637
    %9089 = vmatmul.mubr.bf16.gmra.mrb[0].mxu0 %v8636
    %v9090 = vpop.f32.mrb[0].mxu0
    %v9091 = vadd.f32 %v8719, %v9090
    %v9092 = vpop.f32.mrb[0].mxu0
    %v9093 = vadd.f32 %v8723, %v9092
    %v9094 = vpop.f32.mrb[0].mxu0
    %v9095 = vadd.f32 %v8719, %v9094
    %v9096 = vpop.f32.mrb[0].mxu0
    %v9097 = vadd.f32 %v8723, %v9096
    %9098 = vmatprep.mubr.bf16.mxu0 %v8641
    %9099 = vmatmul.mubr.bf16.gmra.mrb[0].mxu0 %v8640
    %v9100 = vpop.f32.mrb[0].mxu0
    %v9101 = vadd.f32 %v8719, %v9100
    %v9102 = vpop.f32.mrb[0].mxu0
    %v9103 = vadd.f32 %v8723, %v9102
    %v9104 = vpop.f32.mrb[0].mxu0
    %v9105 = vadd.f32 %v8719, %v9104
    %v9106 = vpop.f32.mrb[0].mxu0
    %v9107 = vadd.f32 %v8723, %v9106
    %9108 = vmatprep.mubr.bf16.mxu0 %v8645
    %9109 = vmatmul.mubr.bf16.gmra.mrb[0].mxu0 %v8644
    %v9110 = vpop.f32.mrb[0].mxu0
    %v9111 = vadd.f32 %v8719, %v9110
    %v9112 = vpop.f32.mrb[0].mxu0
    %v9113 = vadd.f32 %v8723, %v9112
    %v9114 = vpop.f32.mrb[0].mxu0
    %v9115 = vadd.f32 %v8719, %v9114
    %v9116 = vpop.f32.mrb[0].mxu0
    %v9117 = vadd.f32 %v8723, %v9116
    %9118 = vdwg.mxu0
    %9119 = vmatprep.subr.bf16.mxu0 %v8951
    %9120 = vmatpush1.bf16.msra.mxu0 %v8950
    %9121 = vmatprep.subr.bf16.mxu0 %v8953
    %9122 = vmatpush1.bf16.msra.mxu0 %v8952
    %9123 = vmatprep.subr.bf16.mxu0 %v8955
    %9124 = vmatpush1.bf16.msra.mxu0 %v8954
    %9125 = vmatprep.subr.bf16.mxu0 %v8957
    %9126 = vmatpush1.bf16.msra.mxu0 %v8956
    %9127 = vmatprep.subr.bf16.mxu0 %v8959
    %9128 = vmatpush1.bf16.msra.mxu0 %v8958
    %9129 = vmatprep.subr.bf16.mxu0 %v8961
    %9130 = vmatpush1.bf16.msra.mxu0 %v8960
    %9131 = vmatprep.subr.bf16.mxu0 %v8963
    %9132 = vmatpush1.bf16.msra.mxu0 %v8962
    %9133 = vmatprep.subr.bf16.mxu0 %v8965
    %9134 = vmatpush1.bf16.msra.mxu0 %v8964
    %9135 = vmatprep.subr.bf16.mxu0 %v8967
    %9136 = vmatpush1.bf16.msra.mxu0 %v8966
    %9137 = vmatprep.subr.bf16.mxu0 %v8969
    %9138 = vmatpush1.bf16.msra.mxu0 %v8968
    %9139 = vmatprep.subr.bf16.mxu0 %v8971
    %9140 = vmatpush1.bf16.msra.mxu0 %v8970
    %9141 = vmatprep.subr.bf16.mxu0 %v8973
    %9142 = vmatpush1.bf16.msra.mxu0 %v8972
    %9143 = vmatprep.subr.bf16.mxu0 %v8975
    %9144 = vmatpush1.bf16.msra.mxu0 %v8974
    %9145 = vmatprep.subr.bf16.mxu0 %v8977
    %9146 = vmatpush1.bf16.msra.mxu0 %v8976
    %9147 = vmatprep.subr.bf16.mxu0 %v8979
    %9148 = vmatpush1.bf16.msra.mxu0 %v8978
    %9149 = vmatprep.subr.bf16.mxu0 %v8981
    %9150 = vmatpush1.bf16.msra.mxu0 %v8980
    %9151 = vmatprep.mubr.bf16.mxu0 %v8635
    %9152 = vmatmul.mubr.bf16.gmra.mrb[0].mxu0 %v8634
    %v9153 = vpop.f32.mrb[0].mxu0
    %v9154 = vadd.f32 %v9081, %v9153
    %v9155 = vpop.f32.mrb[0].mxu0
    %v9156 = vadd.f32 %v9083, %v9155
    %v9157 = vpop.f32.mrb[0].mxu0
    %v9158 = vadd.f32 %v9085, %v9157
    %v9159 = vpop.f32.mrb[0].mxu0
    %v9160 = vadd.f32 %v9087, %v9159
    %9161 = vmatprep.mubr.bf16.mxu0 %v8639
    %9162 = vmatmul.mubr.bf16.gmra.mrb[0].mxu0 %v8638
    %v9163 = vpop.f32.mrb[0].mxu0
    %v9164 = vadd.f32 %v9091, %v9163
    %v9165 = vpop.f32.mrb[0].mxu0
    %v9166 = vadd.f32 %v9093, %v9165
    %v9167 = vpop.f32.mrb[0].mxu0
    %v9168 = vadd.f32 %v9095, %v9167
    %v9169 = vpop.f32.mrb[0].mxu0
    %v9170 = vadd.f32 %v9097, %v9169
    %9171 = vmatprep.mubr.bf16.mxu0 %v8643
    %9172 = vmatmul.mubr.bf16.gmra.mrb[0].mxu0 %v8642
    %v9173 = vpop.f32.mrb[0].mxu0
    %v9174 = vadd.f32 %v9101, %v9173
    %v9175 = vpop.f32.mrb[0].mxu0
    %v9176 = vadd.f32 %v9103, %v9175
    %v9177 = vpop.f32.mrb[0].mxu0
    %v9178 = vadd.f32 %v9105, %v9177
    %v9179 = vpop.f32.mrb[0].mxu0
    %v9180 = vadd.f32 %v9107, %v9179
    %9181 = vmatprep.mubr.bf16.mxu0 %v8647
    %9182 = vmatmul.mubr.bf16.gmra.mrb[0].mxu0 %v8646
    %v9183 = vpop.f32.mrb[0].mxu0
    %v9184 = vadd.f32 %v9111, %v9183
    %v9185 = vpop.f32.mrb[0].mxu0
    %v9186 = vadd.f32 %v9113, %v9185
    %v9187 = vpop.f32.mrb[0].mxu0
    %v9188 = vadd.f32 %v9115, %v9187
    %v9189 = vpop.f32.mrb[0].mxu0
    %v9190 = vadd.f32 %v9117, %v9189
    %9191 = vdwg.mxu0
    %v9192 = vadd.f32 %v9154, %v8022
    %v9193 = vadd.f32 %v9156, %v8023
    %v9194 = vadd.f32 %v9158, %v8024
    %v9195 = vadd.f32 %v9160, %v8025
    %v9196 = vadd.f32 %v9164, %v8026
    %v9197 = vadd.f32 %v9166, %v8027
    %v9198 = vadd.f32 %v9168, %v8028
    %v9199 = vadd.f32 %v9170, %v8029
    %v9200 = vadd.f32 %v9174, %v8030
    %v9201 = vadd.f32 %v9176, %v8031
    %v9202 = vadd.f32 %v9178, %v8032
    %v9203 = vadd.f32 %v9180, %v8033
    %v9204 = vadd.f32 %v9184, %v8034
    %v9205 = vadd.f32 %v9186, %v8035
    %v9206 = vadd.f32 %v9188, %v8036
    %v9207 = vadd.f32 %v9190, %v8037
    %s9208 = scalar_lea.vmem [#allocation22], 2
    %v9209 = vld [vmem:[%s9208] sm:$0x3]
    %s9210 = scalar_lea.vmem [#allocation23], 2
    %v9211 = vld [vmem:[%s9210] sm:$0x3]
    %v9212 = vadd.f32 %v9192, %v9193
    %9213 = vadd.xlane.f32.xlu0 %v9212
    %v9214 = vpop.xlane.xlu0 %9213
    %v9215 = vadd.f32 %v9194, %v9195
    %9216 = vadd.xlane.f32.xlu0 %v9215
    %v9217 = vpop.xlane.xlu0 %9216
    %v9218 = vadd.f32 %v9196, %v9197
    %9219 = vadd.xlane.f32.xlu0 %v9218
    %v9220 = vpop.xlane.xlu0 %9219
    %v9221 = vadd.f32 %v9198, %v9199
    %9222 = vadd.xlane.f32.xlu0 %v9221
    %v9223 = vpop.xlane.xlu0 %9222
    %v9224 = vadd.f32 %v9200, %v9201
    %9225 = vadd.xlane.f32.xlu0 %v9224
    %v9226 = vpop.xlane.xlu0 %9225
    %v9227 = vadd.f32 %v9202, %v9203
    %9228 = vadd.xlane.f32.xlu0 %v9227
    %v9229 = vpop.xlane.xlu0 %9228
    %v9230 = vadd.f32 %v9204, %v9205
    %9231 = vadd.xlane.f32.xlu0 %v9230
    %v9232 = vpop.xlane.xlu0 %9231
    %v9233 = vadd.f32 %v9206, %v9207
    %9234 = vadd.xlane.f32.xlu0 %v9233
    %v9235 = vpop.xlane.xlu0 %9234
    %v9236 = vmul.f32 %v9214, %v3445
    %v9237 = vmul.f32 %v9217, %v3445
    %v9238 = vmul.f32 %v9220, %v3445
    %v9239 = vmul.f32 %v9223, %v3445
    %v9240 = vmul.f32 %v9226, %v3445
    %v9241 = vmul.f32 %v9229, %v3445
    %v9242 = vmul.f32 %v9232, %v3445
    %v9243 = vmul.f32 %v9235, %v3445
    %v9244 = vsub.f32 %v9192, %v9236
    %v9245 = vsub.f32 %v9193, %v9236
    %v9246 = vsub.f32 %v9194, %v9237
    %v9247 = vsub.f32 %v9195, %v9237
    %v9248 = vsub.f32 %v9196, %v9238
    %v9249 = vsub.f32 %v9197, %v9238
    %v9250 = vsub.f32 %v9198, %v9239
    %v9251 = vsub.f32 %v9199, %v9239
    %v9252 = vsub.f32 %v9200, %v9240
    %v9253 = vsub.f32 %v9201, %v9240
    %v9254 = vsub.f32 %v9202, %v9241
    %v9255 = vsub.f32 %v9203, %v9241
    %v9256 = vsub.f32 %v9204, %v9242
    %v9257 = vsub.f32 %v9205, %v9242
    %v9258 = vsub.f32 %v9206, %v9243
    %v9259 = vsub.f32 %v9207, %v9243
    %v9260 = vmul.f32 %v9244, %v9244
    %v9261 = vmul.f32 %v9245, %v9245
    %v9262 = vmul.f32 %v9246, %v9246
    %v9263 = vmul.f32 %v9247, %v9247
    %v9264 = vmul.f32 %v9248, %v9248
    %v9265 = vmul.f32 %v9249, %v9249
    %v9266 = vmul.f32 %v9250, %v9250
    %v9267 = vmul.f32 %v9251, %v9251
    %v9268 = vmul.f32 %v9252, %v9252
    %v9269 = vmul.f32 %v9253, %v9253
    %v9270 = vmul.f32 %v9254, %v9254
    %v9271 = vmul.f32 %v9255, %v9255
    %v9272 = vmul.f32 %v9256, %v9256
    %v9273 = vmul.f32 %v9257, %v9257
    %v9274 = vmul.f32 %v9258, %v9258
    %v9275 = vmul.f32 %v9259, %v9259
    %v9276 = vadd.f32 %v9260, %v9261
    %9277 = vadd.xlane.f32.xlu0 %v9276
    %v9278 = vpop.xlane.xlu0 %9277
    %v9279 = vadd.f32 %v9262, %v9263
    %9280 = vadd.xlane.f32.xlu0 %v9279
    %v9281 = vpop.xlane.xlu0 %9280
    %v9282 = vadd.f32 %v9264, %v9265
    %9283 = vadd.xlane.f32.xlu0 %v9282
    %v9284 = vpop.xlane.xlu0 %9283
    %v9285 = vadd.f32 %v9266, %v9267
    %9286 = vadd.xlane.f32.xlu0 %v9285
    %v9287 = vpop.xlane.xlu0 %9286
    %v9288 = vadd.f32 %v9268, %v9269
    %9289 = vadd.xlane.f32.xlu0 %v9288
    %v9290 = vpop.xlane.xlu0 %9289
    %v9291 = vadd.f32 %v9270, %v9271
    %9292 = vadd.xlane.f32.xlu0 %v9291
    %v9293 = vpop.xlane.xlu0 %9292
    %v9294 = vadd.f32 %v9272, %v9273
    %9295 = vadd.xlane.f32.xlu0 %v9294
    %v9296 = vpop.xlane.xlu0 %9295
    %v9297 = vadd.f32 %v9274, %v9275
    %9298 = vadd.xlane.f32.xlu0 %v9297
    %v9299 = vpop.xlane.xlu0 %9298
    %v9300 = vmul.f32 %v9278, %v3445
    %v9301 = vmul.f32 %v9281, %v3445
    %v9302 = vmul.f32 %v9284, %v3445
    %v9303 = vmul.f32 %v9287, %v3445
    %v9304 = vmul.f32 %v9290, %v3445
    %v9305 = vmul.f32 %v9293, %v3445
    %v9306 = vmul.f32 %v9296, %v3445
    %v9307 = vmul.f32 %v9299, %v3445
    %v9308 = vadd.f32 %v9300, 1e-05
    %v9309 = vadd.f32 %v9301, 1e-05
    %v9310 = vadd.f32 %v9302, 1e-05
    %v9311 = vadd.f32 %v9303, 1e-05
    %v9312 = vadd.f32 %v9304, 1e-05
    %v9313 = vadd.f32 %v9305, 1e-05
    %v9314 = vadd.f32 %v9306, 1e-05
    %v9315 = vadd.f32 %v9307, 1e-05
    %v9316 = vrsqrt.pop %v9308
    %v9317 = vrsqrt.pop %v9309
    %v9318 = vrsqrt.pop %v9310
    %v9319 = vrsqrt.pop %v9311
    %v9320 = vrsqrt.pop %v9312
    %v9321 = vrsqrt.pop %v9313
    %v9322 = vrsqrt.pop %v9314
    %v9323 = vrsqrt.pop %v9315
    %v9324 = vmul.f32 %v9244, %v9316
    %v9325 = vmul.f32 %v9245, %v9316
    %v9326 = vmul.f32 %v9246, %v9317
    %v9327 = vmul.f32 %v9247, %v9317
    %v9328 = vmul.f32 %v9248, %v9318
    %v9329 = vmul.f32 %v9249, %v9318
    %v9330 = vmul.f32 %v9250, %v9319
    %v9331 = vmul.f32 %v9251, %v9319
    %v9332 = vmul.f32 %v9252, %v9320
    %v9333 = vmul.f32 %v9253, %v9320
    %v9334 = vmul.f32 %v9254, %v9321
    %v9335 = vmul.f32 %v9255, %v9321
    %v9336 = vmul.f32 %v9256, %v9322
    %v9337 = vmul.f32 %v9257, %v9322
    %v9338 = vmul.f32 %v9258, %v9323
    %v9339 = vmul.f32 %v9259, %v9323
    %v9341 = vlaneseq
    %v9342 = vshrl.u32 %v9341, 7
    %v9343 = vsub.s32 0, %v9342
    %v9344 = vrot.slane %v9209, %v9343
    %v9345 = vlaneseq
    %v9346 = vshrl.u32 %v9345, 7
    %v9347 = vsub.s32 1, %v9346
    %v9348 = vrot.slane %v9209, %v9347
    %v9351 = vmul.f32 %v9324, %v9344
    %v9352 = vmul.f32 %v9325, %v9348
    %v9353 = vmul.f32 %v9326, %v9344
    %v9354 = vmul.f32 %v9327, %v9348
    %v9355 = vmul.f32 %v9328, %v9344
    %v9356 = vmul.f32 %v9329, %v9348
    %v9357 = vmul.f32 %v9330, %v9344
    %v9358 = vmul.f32 %v9331, %v9348
    %v9359 = vmul.f32 %v9332, %v9344
    %v9360 = vmul.f32 %v9333, %v9348
    %v9361 = vmul.f32 %v9334, %v9344
    %v9362 = vmul.f32 %v9335, %v9348
    %v9363 = vmul.f32 %v9336, %v9344
    %v9364 = vmul.f32 %v9337, %v9348
    %v9365 = vmul.f32 %v9338, %v9344
    %v9366 = vmul.f32 %v9339, %v9348
    %v9368 = vlaneseq
    %v9369 = vshrl.u32 %v9368, 7
    %v9370 = vsub.s32 0, %v9369
    %v9371 = vrot.slane %v9211, %v9370
    %v9372 = vlaneseq
    %v9373 = vshrl.u32 %v9372, 7
    %v9374 = vsub.s32 1, %v9373
    %v9375 = vrot.slane %v9211, %v9374
    %v9378 = vadd.f32 %v9351, %v9371
    %v9379 = vadd.f32 %v9352, %v9375
    %v9380 = vadd.f32 %v9353, %v9371
    %v9381 = vadd.f32 %v9354, %v9375
    %v9382 = vadd.f32 %v9355, %v9371
    %v9383 = vadd.f32 %v9356, %v9375
    %v9384 = vadd.f32 %v9357, %v9371
    %v9385 = vadd.f32 %v9358, %v9375
    %v9386 = vadd.f32 %v9359, %v9371
    %v9387 = vadd.f32 %v9360, %v9375
    %v9388 = vadd.f32 %v9361, %v9371
    %v9389 = vadd.f32 %v9362, %v9375
    %v9390 = vadd.f32 %v9363, %v9371
    %v9391 = vadd.f32 %v9364, %v9375
    %v9392 = vadd.f32 %v9365, %v9371
    %v9393 = vadd.f32 %v9366, %v9375
    %v9394 = vld [vmem:[%s17] sm:$0xff]
    %v9395 = vld [vmem:[%s17 + $0x8] sm:$0xff]
    %v9396 = vld [vmem:[%s17 + $0x10] sm:$0xff]
    %v9397 = vld [vmem:[%s17 + $0x18] sm:$0xff]
    %v9398 = vld [vmem:[%s17 + $0x20] sm:$0xff]
    %v9399 = vld [vmem:[%s17 + $0x28] sm:$0xff]
    %v9400 = vld [vmem:[%s17 + $0x30] sm:$0xff]
    %v9401 = vld [vmem:[%s17 + $0x38] sm:$0xff]
    %v9402 = vld [vmem:[%s17 + $0x40] sm:$0xff]
    %v9403 = vld [vmem:[%s17 + $0x48] sm:$0xff]
    %v9404 = vld [vmem:[%s17 + $0x50] sm:$0xff]
    %v9405 = vld [vmem:[%s17 + $0x58] sm:$0xff]
    %v9406 = vld [vmem:[%s17 + $0x60] sm:$0xff]
    %v9407 = vld [vmem:[%s17 + $0x68] sm:$0xff]
    %v9408 = vld [vmem:[%s17 + $0x70] sm:$0xff]
    %v9409 = vld [vmem:[%s17 + $0x78] sm:$0xff]
    %v9410 = vld [vmem:[%s17 + $0x80] sm:$0xff]
    %v9411 = vld [vmem:[%s17 + $0x88] sm:$0xff]
    %v9412 = vld [vmem:[%s17 + $0x90] sm:$0xff]
    %v9413 = vld [vmem:[%s17 + $0x98] sm:$0xff]
    %v9414 = vld [vmem:[%s17 + $0xa0] sm:$0xff]
    %v9415 = vld [vmem:[%s17 + $0xa8] sm:$0xff]
    %v9416 = vld [vmem:[%s17 + $0xb0] sm:$0xff]
    %v9417 = vld [vmem:[%s17 + $0xb8] sm:$0xff]
    %v9418 = vld [vmem:[%s17 + $0xc0] sm:$0xff]
    %v9419 = vld [vmem:[%s17 + $0xc8] sm:$0xff]
    %v9420 = vld [vmem:[%s17 + $0xd0] sm:$0xff]
    %v9421 = vld [vmem:[%s17 + $0xd8] sm:$0xff]
    %v9422 = vld [vmem:[%s17 + $0xe0] sm:$0xff]
    %v9423 = vld [vmem:[%s17 + $0xe8] sm:$0xff]
    %v9424 = vld [vmem:[%s17 + $0xf0] sm:$0xff]
    %v9425 = vld [vmem:[%s17 + $0xf8] sm:$0xff]
    %v9426 = vld [vmem:[#allocation2] sm:$0x1]
    %v9428 = vlaneseq
    %v9429 = vshrl.u32 %v9428, 7
    %v9430 = vsub.s32 0, %v9429
    %v9431 = vrot.slane %v9426, %v9430
    %9433 = vmatprep.subr.mxu0 0.0
    %9434 = vmatpush1.msra.mxu0 %v9394
    %9435 = vmatprep.subr.mxu0 0.0
    %9436 = vmatpush1.msra.mxu0 %v9395
    %9437 = vmatprep.subr.mxu0 0.0
    %9438 = vmatpush1.msra.mxu0 %v9396
    %9439 = vmatprep.subr.mxu0 0.0
    %9440 = vmatpush1.msra.mxu0 %v9397
    %9441 = vmatprep.subr.mxu0 0.0
    %9442 = vmatpush1.msra.mxu0 %v9398
    %9443 = vmatprep.subr.mxu0 0.0
    %9444 = vmatpush1.msra.mxu0 %v9399
    %9445 = vmatprep.subr.mxu0 0.0
    %9446 = vmatpush1.msra.mxu0 %v9400
    %9447 = vmatprep.subr.mxu0 0.0
    %9448 = vmatpush1.msra.mxu0 %v9401
    %9449 = vmatprep.subr.mxu0 0.0
    %9450 = vmatpush1.msra.mxu0 %v9402
    %9451 = vmatprep.subr.mxu0 0.0
    %9452 = vmatpush1.msra.mxu0 %v9403
    %9453 = vmatprep.subr.mxu0 0.0
    %9454 = vmatpush1.msra.mxu0 %v9404
    %9455 = vmatprep.subr.mxu0 0.0
    %9456 = vmatpush1.msra.mxu0 %v9405
    %9457 = vmatprep.subr.mxu0 0.0
    %9458 = vmatpush1.msra.mxu0 %v9406
    %9459 = vmatprep.subr.mxu0 0.0
    %9460 = vmatpush1.msra.mxu0 %v9407
    %9461 = vmatprep.subr.mxu0 0.0
    %9462 = vmatpush1.msra.mxu0 %v9408
    %9463 = vmatprep.subr.mxu0 0.0
    %9464 = vmatpush1.msra.mxu0 %v9409
    %9465 = vmatprep.subr.mxu0 0.0
    %9466 = vmatpush1.msra.mxu0 %v9410
    %9467 = vmatprep.subr.mxu0 0.0
    %9468 = vmatpush1.msra.mxu0 %v9411
    %9469 = vmatprep.subr.mxu0 0.0
    %9470 = vmatpush1.msra.mxu0 %v9412
    %9471 = vmatprep.subr.mxu0 0.0
    %9472 = vmatpush1.msra.mxu0 %v9413
    %9473 = vmatprep.subr.mxu0 0.0
    %9474 = vmatpush1.msra.mxu0 %v9414
    %9475 = vmatprep.subr.mxu0 0.0
    %9476 = vmatpush1.msra.mxu0 %v9415
    %9477 = vmatprep.subr.mxu0 0.0
    %9478 = vmatpush1.msra.mxu0 %v9416
    %9479 = vmatprep.subr.mxu0 0.0
    %9480 = vmatpush1.msra.mxu0 %v9417
    %9481 = vmatprep.subr.mxu0 0.0
    %9482 = vmatpush1.msra.mxu0 %v9418
    %9483 = vmatprep.subr.mxu0 0.0
    %9484 = vmatpush1.msra.mxu0 %v9419
    %9485 = vmatprep.subr.mxu0 0.0
    %9486 = vmatpush1.msra.mxu0 %v9420
    %9487 = vmatprep.subr.mxu0 0.0
    %9488 = vmatpush1.msra.mxu0 %v9421
    %9489 = vmatprep.subr.mxu0 0.0
    %9490 = vmatpush1.msra.mxu0 %v9422
    %9491 = vmatprep.subr.mxu0 0.0
    %9492 = vmatpush1.msra.mxu0 %v9423
    %9493 = vmatprep.subr.mxu0 0.0
    %9494 = vmatpush1.msra.mxu0 %v9424
    %9495 = vmatprep.subr.mxu0 0.0
    %9496 = vmatpush1.msra.mxu0 %v9425
    %9497 = vmatprep.mubr.f32.mxu0 %v9379
    %9498 = vmatmul.mubr.f32.gmra.mrb[0].mxu0 %v9378
    %v9499 = vpop.f32.mrb[0].mxu0
    %v9500 = vadd.f32 %v9431, %v9499
    %v9501 = vpop.f32.mrb[0].mxu0
    %9502 = vmatprep.mubr.f32.mxu0 %v9381
    %9503 = vmatmul.mubr.f32.gmra.mrb[0].mxu0 %v9380
    %v9504 = vpop.f32.mrb[0].mxu0
    %v9505 = vadd.f32 %v9431, %v9504
    %v9506 = vpop.f32.mrb[0].mxu0
    %9507 = vmatprep.mubr.f32.mxu0 %v9383
    %9508 = vmatmul.mubr.f32.gmra.mrb[0].mxu0 %v9382
    %v9509 = vpop.f32.mrb[0].mxu0
    %v9510 = vadd.f32 %v9431, %v9509
    %v9511 = vpop.f32.mrb[0].mxu0
    %9512 = vmatprep.mubr.f32.mxu0 %v9385
    %9513 = vmatmul.mubr.f32.gmra.mrb[0].mxu0 %v9384
    %v9514 = vpop.f32.mrb[0].mxu0
    %v9515 = vadd.f32 %v9431, %v9514
    %v9516 = vpop.f32.mrb[0].mxu0
    %9517 = vmatprep.mubr.f32.mxu0 %v9387
    %9518 = vmatmul.mubr.f32.gmra.mrb[0].mxu0 %v9386
    %v9519 = vpop.f32.mrb[0].mxu0
    %v9520 = vadd.f32 %v9431, %v9519
    %v9521 = vpop.f32.mrb[0].mxu0
    %9522 = vmatprep.mubr.f32.mxu0 %v9389
    %9523 = vmatmul.mubr.f32.gmra.mrb[0].mxu0 %v9388
    %v9524 = vpop.f32.mrb[0].mxu0
    %v9525 = vadd.f32 %v9431, %v9524
    %v9526 = vpop.f32.mrb[0].mxu0
    %9527 = vmatprep.mubr.f32.mxu0 %v9391
    %9528 = vmatmul.mubr.f32.gmra.mrb[0].mxu0 %v9390
    %v9529 = vpop.f32.mrb[0].mxu0
    %v9530 = vadd.f32 %v9431, %v9529
    %v9531 = vpop.f32.mrb[0].mxu0
    %9532 = vmatprep.mubr.f32.mxu0 %v9393
    %9533 = vmatmul.mubr.f32.gmra.mrb[0].mxu0 %v9392
    %v9534 = vpop.f32.mrb[0].mxu0
    %v9535 = vadd.f32 %v9431, %v9534
    %v9536 = vpop.f32.mrb[0].mxu0
    %9537 = vdwg.mxu0
    %vm9538 = vcmask 7168
    %v9539 = vsel %vm9538, %v9500, -inf
    %v9540 = vsel %vm9538, %v9505, -inf
    %v9541 = vsel %vm9538, %v9510, -inf
    %v9542 = vmax.f32 %v9539, %v9541
    %v9543 = vsel %vm9538, %v9515, -inf
    %v9544 = vmax.f32 %v9540, %v9543
    %v9545 = vmax.f32 %v9542, %v9544
    %v9546 = vrot.slane %v9545, 4
    %v9547 = vmax.f32 %v9545, %v9546
    %v9548 = vrot.slane %v9547, 2
    %v9549 = vmax.f32 %v9547, %v9548
    %v9550 = vrot.slane %v9549, 1
    %v9551 = vmax.f32 %v9549, %v9550
    %v9552 = vsel %vm9538, %v9520, -inf
    %v9553 = vsel %vm9538, %v9525, -inf
    %v9554 = vsel %vm9538, %v9530, -inf
    %v9555 = vmax.f32 %v9552, %v9554
    %v9556 = vsel %vm9538, %v9535, -inf
    %v9557 = vmax.f32 %v9553, %v9556
    %v9558 = vmax.f32 %v9555, %v9557
    %v9559 = vrot.slane %v9558, 4
    %v9560 = vmax.f32 %v9558, %v9559
    %v9561 = vrot.slane %v9560, 2
    %v9562 = vmax.f32 %v9560, %v9561
    %v9563 = vrot.slane %v9562, 1
    %v9564 = vmax.f32 %v9562, %v9563
    %v9565 = vsub.f32 %v9500, %v9551
    %v9566 = vsub.f32 %v9505, %v9551
    %v9567 = vsub.f32 %v9510, %v9551
    %v9568 = vsub.f32 %v9515, %v9551
    %v9569 = vsub.f32 %v9520, %v9564
    %v9570 = vsub.f32 %v9525, %v9564
    %v9571 = vsub.f32 %v9530, %v9564
    %v9572 = vsub.f32 %v9535, %v9564
    %v9573 = vmul.f32 %v9565, 1.442695
    %v9574 = vpow.pop %v9573
    %v9575 = vmul.f32 %v9566, 1.442695
    %v9576 = vpow.pop %v9575
    %v9577 = vmul.f32 %v9567, 1.442695
    %v9578 = vpow.pop %v9577
    %v9579 = vmul.f32 %v9568, 1.442695
    %v9580 = vpow.pop %v9579
    %v9581 = vmul.f32 %v9569, 1.442695
    %v9582 = vpow.pop %v9581
    %v9583 = vmul.f32 %v9570, 1.442695
    %v9584 = vpow.pop %v9583
    %v9585 = vmul.f32 %v9571, 1.442695
    %v9586 = vpow.pop %v9585
    %v9587 = vmul.f32 %v9572, 1.442695
    %v9588 = vpow.pop %v9587
    %v9589 = vsel %vm9538, %v9574, 0.0
    %v9590 = vsel %vm9538, %v9576, 0.0
    %v9591 = vadd.f32 %v9589, %v9590
    %v9592 = vsel %vm9538, %v9578, 0.0
    %v9593 = vadd.f32 %v9591, %v9592
    %v9594 = vsel %vm9538, %v9580, 0.0
    %v9595 = vadd.f32 %v9593, %v9594
    %v9596 = vrot.slane %v9595, 4
    %v9597 = vadd.f32 %v9595, %v9596
    %v9598 = vrot.slane %v9597, 2
    %v9599 = vadd.f32 %v9597, %v9598
    %v9600 = vrot.slane %v9599, 1
    %v9601 = vadd.f32 %v9599, %v9600
    %v9602 = vsel %vm9538, %v9582, 0.0
    %v9603 = vsel %vm9538, %v9584, 0.0
    %v9604 = vadd.f32 %v9602, %v9603
    %v9605 = vsel %vm9538, %v9586, 0.0
    %v9606 = vadd.f32 %v9604, %v9605
    %v9607 = vsel %vm9538, %v9588, 0.0
    %v9608 = vadd.f32 %v9606, %v9607
    %v9609 = vrot.slane %v9608, 4
    %v9610 = vadd.f32 %v9608, %v9609
    %v9611 = vrot.slane %v9610, 2
    %v9612 = vadd.f32 %v9610, %v9611
    %v9613 = vrot.slane %v9612, 1
    %v9614 = vadd.f32 %v9612, %v9613
    %v9615 = vrcp.pop %v9601
    %v9616 = vrcp.pop %v9614
    %v9617 = vmul.f32 %v9574, %v9615
    %v9618 = vmul.f32 %v9576, %v9615
    %v9619 = vmul.f32 %v9578, %v9615
    %v9620 = vmul.f32 %v9580, %v9615
    %v9621 = vmul.f32 %v9582, %v9616
    %v9622 = vmul.f32 %v9584, %v9616
    %v9623 = vmul.f32 %v9586, %v9616
    %v9624 = vmul.f32 %v9588, %v9616
    %9626 = vset.pattern.permute.xlu0 0
    %9627 = vperm.xlu0 %9626, %v9617
    %v9628 = vpop.permute.xlu0 %9627
    %9631 = vset.pattern.permute.xlu0 0
    %9632 = vperm.xlu0 %9631, %v9618
    %v9633 = vpop.permute.xlu0 %9632
    %9636 = vset.pattern.permute.xlu0 0
    %9637 = vperm.xlu0 %9636, %v9619
    %v9638 = vpop.permute.xlu0 %9637
    %9641 = vset.pattern.permute.xlu0 0
    %9642 = vperm.xlu0 %9641, %v9620
    %v9643 = vpop.permute.xlu0 %9642
    %9646 = vset.pattern.permute.xlu0 0
    %9647 = vperm.xlu0 %9646, %v9621
    %v9648 = vpop.permute.xlu0 %9647
    %9651 = vset.pattern.permute.xlu0 0
    %9652 = vperm.xlu0 %9651, %v9622
    %v9653 = vpop.permute.xlu0 %9652
    %9656 = vset.pattern.permute.xlu0 0
    %9657 = vperm.xlu0 %9656, %v9623
    %v9658 = vpop.permute.xlu0 %9657
    %9661 = vset.pattern.permute.xlu0 0
    %9662 = vperm.xlu0 %9661, %v9624
    %v9663 = vpop.permute.xlu0 %9662
    %v9665 = vmul.f32 %v9378, %v9628
    %v9666 = vmul.f32 %v9379, %v9628
    %v9667 = vmul.f32 %v9380, %v9633
    %v9668 = vmul.f32 %v9381, %v9633
    %v9669 = vmul.f32 %v9382, %v9638
    %v9670 = vmul.f32 %v9383, %v9638
    %v9671 = vmul.f32 %v9384, %v9643
    %v9672 = vmul.f32 %v9385, %v9643
    %v9673 = vmul.f32 %v9386, %v9648
    %v9674 = vmul.f32 %v9387, %v9648
    %v9675 = vmul.f32 %v9388, %v9653
    %v9676 = vmul.f32 %v9389, %v9653
    %v9677 = vmul.f32 %v9390, %v9658
    %v9678 = vmul.f32 %v9391, %v9658
    %v9679 = vmul.f32 %v9392, %v9663
    %v9680 = vmul.f32 %v9393, %v9663
    %v9681 = vadd.f32 %v9665, %v9667
    %v9682 = vadd.f32 %v9681, %v9669
    %v9683 = vadd.f32 %v9682, %v9671
    %v9684 = vrot.slane %v9683, 4
    %v9685 = vadd.f32 %v9683, %v9684
    %v9686 = vrot.slane %v9685, 2
    %v9687 = vadd.f32 %v9685, %v9686
    %v9688 = vrot.slane %v9687, 1
    %v9689 = vadd.f32 %v9687, %v9688
    %v9690 = vadd.f32 %v9666, %v9668
    %v9691 = vadd.f32 %v9690, %v9670
    %v9692 = vadd.f32 %v9691, %v9672
    %v9693 = vrot.slane %v9692, 4
    %v9694 = vadd.f32 %v9692, %v9693
    %v9695 = vrot.slane %v9694, 2
    %v9696 = vadd.f32 %v9694, %v9695
    %v9697 = vrot.slane %v9696, 1
    %v9698 = vadd.f32 %v9696, %v9697
    %v9699 = vadd.f32 %v9673, %v9675
    %v9700 = vadd.f32 %v9699, %v9677
    %v9701 = vadd.f32 %v9700, %v9679
    %v9702 = vrot.slane %v9701, 4
    %v9703 = vadd.f32 %v9701, %v9702
    %v9704 = vrot.slane %v9703, 2
    %v9705 = vadd.f32 %v9703, %v9704
    %v9706 = vrot.slane %v9705, 1
    %v9707 = vadd.f32 %v9705, %v9706
    %v9708 = vadd.f32 %v9674, %v9676
    %v9709 = vadd.f32 %v9708, %v9678
    %v9710 = vadd.f32 %v9709, %v9680
    %v9711 = vrot.slane %v9710, 4
    %v9712 = vadd.f32 %v9710, %v9711
    %v9713 = vrot.slane %v9712, 2
    %v9714 = vadd.f32 %v9712, %v9713
    %v9715 = vrot.slane %v9714, 1
    %v9716 = vadd.f32 %v9714, %v9715
    %v9717 = vld [vmem:[%s2] sm:$0x3]
    %v9718 = vsub.f32 %v9717, 60.0
    %v9719 = vmul.f32 %v9718, 0.0055555557
    %v9720 = vpack.c.bf16 %v9689, %v9689
    %v9721 = vpack.c.bf16 %v9698, %v9698
    %v9722 = vpack.c.bf16 %v9707, %v9707
    %v9723 = vpack.c.bf16 %v9716, %v9716
    %v9724 = vld [vmem:[#allocation25] sm:$0xff]
    %v9725 = vld [vmem:[#allocation25 + $0x8] sm:$0xff]
    %v9726 = vld [vmem:[#allocation25 + $0x10] sm:$0xff]
    %v9727 = vld [vmem:[#allocation25 + $0x18] sm:$0xff]
    %v9728 = vld [vmem:[#allocation25 + $0x20] sm:$0xff]
    %v9729 = vld [vmem:[#allocation25 + $0x28] sm:$0xff]
    %v9730 = vld [vmem:[#allocation25 + $0x30] sm:$0xff]
    %v9731 = vld [vmem:[#allocation25 + $0x38] sm:$0xff]
    %v9732 = vld [vmem:[#allocation25 + $0x40] sm:$0xff]
    %v9733 = vld [vmem:[#allocation25 + $0x48] sm:$0xff]
    %v9734 = vld [vmem:[#allocation25 + $0x50] sm:$0xff]
    %v9735 = vld [vmem:[#allocation25 + $0x58] sm:$0xff]
    %v9736 = vld [vmem:[#allocation25 + $0x60] sm:$0xff]
    %v9737 = vld [vmem:[#allocation25 + $0x68] sm:$0xff]
    %v9738 = vld [vmem:[#allocation25 + $0x70] sm:$0xff]
    %v9739 = vld [vmem:[#allocation25 + $0x78] sm:$0xff]
    %v9740 = vld [vmem:[#allocation25 + $0x80] sm:$0xff]
    %v9741 = vld [vmem:[#allocation25 + $0x88] sm:$0xff]
    %v9742 = vld [vmem:[#allocation25 + $0x90] sm:$0xff]
    %v9743 = vld [vmem:[#allocation25 + $0x98] sm:$0xff]
    %v9744 = vld [vmem:[#allocation25 + $0xa0] sm:$0xff]
    %v9745 = vld [vmem:[#allocation25 + $0xa8] sm:$0xff]
    %v9746 = vld [vmem:[#allocation25 + $0xb0] sm:$0xff]
    %v9747 = vld [vmem:[#allocation25 + $0xb8] sm:$0xff]
    %v9748 = vld [vmem:[#allocation25 + $0xc0] sm:$0xff]
    %v9749 = vld [vmem:[#allocation25 + $0xc8] sm:$0xff]
    %v9750 = vld [vmem:[#allocation25 + $0xd0] sm:$0xff]
    %v9751 = vld [vmem:[#allocation25 + $0xd8] sm:$0xff]
    %v9752 = vld [vmem:[#allocation25 + $0xe0] sm:$0xff]
    %v9753 = vld [vmem:[#allocation25 + $0xe8] sm:$0xff]
    %v9754 = vld [vmem:[#allocation25 + $0xf0] sm:$0xff]
    %v9755 = vld [vmem:[#allocation25 + $0xf8] sm:$0xff]
    %v9756 = vld [vmem:[#allocation26] sm:$0x3]
    %9758 = vset.pattern.permute.xlu0 0
    %9759 = vperm.xlu0 %9758, %v9719
    %v9760 = vpop.permute.xlu0 %9759
    %v9763 = vlaneseq
    %v9764 = vshrl.u32 %v9763, 7
    %v9765 = vsub.s32 0, %v9764
    %v9766 = vrot.slane %v9756, %v9765
    %v9767 = vlaneseq
    %v9768 = vshrl.u32 %v9767, 7
    %v9769 = vsub.s32 1, %v9768
    %v9770 = vrot.slane %v9756, %v9769
    %v9773 = vmul.f32 %v9760, %v9766
    %v9774 = vmul.f32 %v9760, %v9770
    %v9779 = vunpack.c.l.b16 %v9720
    %v9780 = vunpack.c.l.b16 %v9721
    %v9781 = vunpack.c.l.b16 %v9722
    %v9782 = vunpack.c.l.b16 %v9723
    %vm9783 = vcmask 1041409
    %v9784 = vsel %vm9783, %v9781, %v9779
    %v9785 = vsel %vm9783, %v9782, %v9780
    %v9786 = vpack.c.b16 %v9784, %v9784
    %v9787 = vpack.c.b16 %v9785, %v9785
    %v9822 = vunpack.c.l.b16 %v9724
    %v9823 = vunpack.c.h.b16 %v9724
    %v9824 = vunpack.c.l.b16 %v9725
    %v9825 = vunpack.c.h.b16 %v9725
    %v9826 = vunpack.c.l.b16 %v9726
    %v9827 = vunpack.c.h.b16 %v9726
    %v9828 = vunpack.c.l.b16 %v9727
    %v9829 = vunpack.c.h.b16 %v9727
    %v9830 = vunpack.c.l.b16 %v9728
    %v9831 = vunpack.c.h.b16 %v9728
    %v9832 = vunpack.c.l.b16 %v9729
    %v9833 = vunpack.c.h.b16 %v9729
    %v9834 = vunpack.c.l.b16 %v9730
    %v9835 = vunpack.c.h.b16 %v9730
    %v9836 = vunpack.c.l.b16 %v9731
    %v9837 = vunpack.c.h.b16 %v9731
    %v9838 = vunpack.c.l.b16 %v9732
    %v9839 = vunpack.c.h.b16 %v9732
    %v9840 = vunpack.c.l.b16 %v9733
    %v9841 = vunpack.c.h.b16 %v9733
    %v9842 = vunpack.c.l.b16 %v9734
    %v9843 = vunpack.c.h.b16 %v9734
    %v9844 = vunpack.c.l.b16 %v9735
    %v9845 = vunpack.c.h.b16 %v9735
    %v9846 = vunpack.c.l.b16 %v9736
    %v9847 = vunpack.c.h.b16 %v9736
    %v9848 = vunpack.c.l.b16 %v9737
    %v9849 = vunpack.c.h.b16 %v9737
    %v9850 = vunpack.c.l.b16 %v9738
    %v9851 = vunpack.c.h.b16 %v9738
    %v9852 = vunpack.c.l.b16 %v9739
    %v9853 = vunpack.c.h.b16 %v9739
    %v9854 = vunpack.c.l.b16 %v9740
    %v9855 = vunpack.c.h.b16 %v9740
    %v9856 = vunpack.c.l.b16 %v9741
    %v9857 = vunpack.c.h.b16 %v9741
    %v9858 = vunpack.c.l.b16 %v9742
    %v9859 = vunpack.c.h.b16 %v9742
    %v9860 = vunpack.c.l.b16 %v9743
    %v9861 = vunpack.c.h.b16 %v9743
    %v9862 = vunpack.c.l.b16 %v9744
    %v9863 = vunpack.c.h.b16 %v9744
    %v9864 = vunpack.c.l.b16 %v9745
    %v9865 = vunpack.c.h.b16 %v9745
    %v9866 = vunpack.c.l.b16 %v9746
    %v9867 = vunpack.c.h.b16 %v9746
    %v9868 = vunpack.c.l.b16 %v9747
    %v9869 = vunpack.c.h.b16 %v9747
    %v9870 = vunpack.c.l.b16 %v9748
    %v9871 = vunpack.c.h.b16 %v9748
    %v9872 = vunpack.c.l.b16 %v9749
    %v9873 = vunpack.c.h.b16 %v9749
    %v9874 = vunpack.c.l.b16 %v9750
    %v9875 = vunpack.c.h.b16 %v9750
    %v9876 = vunpack.c.l.b16 %v9751
    %v9877 = vunpack.c.h.b16 %v9751
    %v9878 = vunpack.c.l.b16 %v9752
    %v9879 = vunpack.c.h.b16 %v9752
    %v9880 = vunpack.c.l.b16 %v9753
    %v9881 = vunpack.c.h.b16 %v9753
    %v9882 = vunpack.c.l.b16 %v9754
    %v9883 = vunpack.c.h.b16 %v9754
    %v9884 = vunpack.c.l.b16 %v9755
    %v9885 = vunpack.c.h.b16 %v9755
    %v9886 = vpack.c.b16 %v9824, %v9822
    %v9887 = vpack.c.b16 %v9825, %v9823
    %v9888 = vpack.c.b16 %v9828, %v9826
    %v9889 = vpack.c.b16 %v9829, %v9827
    %v9890 = vpack.c.b16 %v9832, %v9830
    %v9891 = vpack.c.b16 %v9833, %v9831
    %v9892 = vpack.c.b16 %v9836, %v9834
    %v9893 = vpack.c.b16 %v9837, %v9835
    %v9894 = vpack.c.b16 %v9840, %v9838
    %v9895 = vpack.c.b16 %v9841, %v9839
    %v9896 = vpack.c.b16 %v9844, %v9842
    %v9897 = vpack.c.b16 %v9845, %v9843
    %v9898 = vpack.c.b16 %v9848, %v9846
    %v9899 = vpack.c.b16 %v9849, %v9847
    %v9900 = vpack.c.b16 %v9852, %v9850
    %v9901 = vpack.c.b16 %v9853, %v9851
    %v9902 = vpack.c.b16 %v9856, %v9854
    %v9903 = vpack.c.b16 %v9857, %v9855
    %v9904 = vpack.c.b16 %v9860, %v9858
    %v9905 = vpack.c.b16 %v9861, %v9859
    %v9906 = vpack.c.b16 %v9864, %v9862
    %v9907 = vpack.c.b16 %v9865, %v9863
    %v9908 = vpack.c.b16 %v9868, %v9866
    %v9909 = vpack.c.b16 %v9869, %v9867
    %v9910 = vpack.c.b16 %v9872, %v9870
    %v9911 = vpack.c.b16 %v9873, %v9871
    %v9912 = vpack.c.b16 %v9876, %v9874
    %v9913 = vpack.c.b16 %v9877, %v9875
    %v9914 = vpack.c.b16 %v9880, %v9878
    %v9915 = vpack.c.b16 %v9881, %v9879
    %v9916 = vpack.c.b16 %v9884, %v9882
    %v9917 = vpack.c.b16 %v9885, %v9883
    %9950 = vmatprep.subr.bf16.mxu0 %v9887
    %9951 = vmatpush1.bf16.msra.mxu0 %v9886
    %9952 = vmatprep.subr.bf16.mxu0 %v9889
    %9953 = vmatpush1.bf16.msra.mxu0 %v9888
    %9954 = vmatprep.subr.bf16.mxu0 %v9891
    %9955 = vmatpush1.bf16.msra.mxu0 %v9890
    %9956 = vmatprep.subr.bf16.mxu0 %v9893
    %9957 = vmatpush1.bf16.msra.mxu0 %v9892
    %9958 = vmatprep.subr.bf16.mxu0 %v9895
    %9959 = vmatpush1.bf16.msra.mxu0 %v9894
    %9960 = vmatprep.subr.bf16.mxu0 %v9897
    %9961 = vmatpush1.bf16.msra.mxu0 %v9896
    %9962 = vmatprep.subr.bf16.mxu0 %v9899
    %9963 = vmatpush1.bf16.msra.mxu0 %v9898
    %9964 = vmatprep.subr.bf16.mxu0 %v9901
    %9965 = vmatpush1.bf16.msra.mxu0 %v9900
    %9966 = vmatprep.subr.bf16.mxu0 %v9903
    %9967 = vmatpush1.bf16.msra.mxu0 %v9902
    %9968 = vmatprep.subr.bf16.mxu0 %v9905
    %9969 = vmatpush1.bf16.msra.mxu0 %v9904
    %9970 = vmatprep.subr.bf16.mxu0 %v9907
    %9971 = vmatpush1.bf16.msra.mxu0 %v9906
    %9972 = vmatprep.subr.bf16.mxu0 %v9909
    %9973 = vmatpush1.bf16.msra.mxu0 %v9908
    %9974 = vmatprep.subr.bf16.mxu0 %v9911
    %9975 = vmatpush1.bf16.msra.mxu0 %v9910
    %9976 = vmatprep.subr.bf16.mxu0 %v9913
    %9977 = vmatpush1.bf16.msra.mxu0 %v9912
    %9978 = vmatprep.subr.bf16.mxu0 %v9915
    %9979 = vmatpush1.bf16.msra.mxu0 %v9914
    %9980 = vmatprep.subr.bf16.mxu0 %v9917
    %9981 = vmatpush1.bf16.msra.mxu0 %v9916
    %9982 = vmatprep.mubr.bf16.mxu0 %v9787
    %9983 = vmatmul.mubr.bf16.gmra.mrb[0].mxu0 %v9786
    %v9984 = vpop.f32.mrb[0].mxu0
    %v9985 = vadd.f32 %v9773, %v9984
    %v9986 = vpop.f32.mrb[0].mxu0
    %v9987 = vadd.f32 %v9774, %v9986
    %v9988 = vpop.f32.mrb[0].mxu0
    %v9989 = vpop.f32.mrb[0].mxu0
    %9990 = vdwg.mxu0
    %v9991 = vld [vmem:[#allocation28] sm:$0x3]
    %v9993 = vlaneseq
    %v9994 = vshrl.u32 %v9993, 7
    %v9995 = vsub.s32 0, %v9994
    %v9996 = vrot.slane %v9991, %v9995
    %v9997 = vlaneseq
    %v9998 = vshrl.u32 %v9997, 7
    %v9999 = vsub.s32 1, %v9998
    %v10000 = vrot.slane %v9991, %v9999
    %v10003 = vadd.f32 %v9985, %v9996
    %v10004 = vadd.f32 %v9987, %v10000
    %v10005 = vmax.f32 %v10003, 0.0
    %v10006 = vmax.f32 %v10004, 0.0
    %v10007 = vpack.c.bf16 %v10005, %v10005
    %v10008 = vpack.c.bf16 %v10006, %v10006
    %v10009 = vld [vmem:[#allocation29] sm:$0xf]
    %v10010 = vld [vmem:[#allocation29 + $0x4] sm:$0xf]
    %v10011 = vld [vmem:[#allocation29 + $0x8] sm:$0xf]
    %v10012 = vld [vmem:[#allocation29 + $0xc] sm:$0xf]
    %v10013 = vld [vmem:[#allocation29 + $0x10] sm:$0xf]
    %v10014 = vld [vmem:[#allocation29 + $0x14] sm:$0xf]
    %v10015 = vld [vmem:[#allocation29 + $0x18] sm:$0xf]
    %v10016 = vld [vmem:[#allocation29 + $0x1c] sm:$0xf]
    %v10017 = vld [vmem:[#allocation29 + $0x20] sm:$0xf]
    %v10018 = vld [vmem:[#allocation29 + $0x24] sm:$0xf]
    %v10019 = vld [vmem:[#allocation29 + $0x28] sm:$0xf]
    %v10020 = vld [vmem:[#allocation29 + $0x2c] sm:$0xf]
    %v10021 = vld [vmem:[#allocation29 + $0x30] sm:$0xf]
    %v10022 = vld [vmem:[#allocation29 + $0x34] sm:$0xf]
    %v10023 = vld [vmem:[#allocation29 + $0x38] sm:$0xf]
    %v10024 = vld [vmem:[#allocation29 + $0x3c] sm:$0xf]
    %v10025 = vld [vmem:[#allocation29 + $0x40] sm:$0xf]
    %v10026 = vld [vmem:[#allocation29 + $0x44] sm:$0xf]
    %v10027 = vld [vmem:[#allocation29 + $0x48] sm:$0xf]
    %v10028 = vld [vmem:[#allocation29 + $0x4c] sm:$0xf]
    %v10029 = vld [vmem:[#allocation29 + $0x50] sm:$0xf]
    %v10030 = vld [vmem:[#allocation29 + $0x54] sm:$0xf]
    %v10031 = vld [vmem:[#allocation29 + $0x58] sm:$0xf]
    %v10032 = vld [vmem:[#allocation29 + $0x5c] sm:$0xf]
    %v10033 = vld [vmem:[#allocation29 + $0x60] sm:$0xf]
    %v10034 = vld [vmem:[#allocation29 + $0x64] sm:$0xf]
    %v10035 = vld [vmem:[#allocation29 + $0x68] sm:$0xf]
    %v10036 = vld [vmem:[#allocation29 + $0x6c] sm:$0xf]
    %v10037 = vld [vmem:[#allocation29 + $0x70] sm:$0xf]
    %v10038 = vld [vmem:[#allocation29 + $0x74] sm:$0xf]
    %v10039 = vld [vmem:[#allocation29 + $0x78] sm:$0xf]
    %v10040 = vld [vmem:[#allocation29 + $0x7c] sm:$0xf]
    %v10041 = vld [vmem:[#allocation31] sm:$0x1]
    %v10043 = vlaneseq
    %v10044 = vshrl.u32 %v10043, 7
    %v10045 = vsub.s32 0, %v10044
    %v10046 = vrot.slane %v10041, %v10045
    %v10080 = vunpack.c.l.b16 %v10009
    %v10081 = vunpack.c.l.b16 %v10010
    %v10082 = vunpack.c.l.b16 %v10011
    %v10083 = vunpack.c.l.b16 %v10012
    %v10084 = vunpack.c.l.b16 %v10013
    %v10085 = vunpack.c.l.b16 %v10014
    %v10086 = vunpack.c.l.b16 %v10015
    %v10087 = vunpack.c.l.b16 %v10016
    %v10088 = vunpack.c.l.b16 %v10017
    %v10089 = vunpack.c.l.b16 %v10018
    %v10090 = vunpack.c.l.b16 %v10019
    %v10091 = vunpack.c.l.b16 %v10020
    %v10092 = vunpack.c.l.b16 %v10021
    %v10093 = vunpack.c.l.b16 %v10022
    %v10094 = vunpack.c.l.b16 %v10023
    %v10095 = vunpack.c.l.b16 %v10024
    %v10096 = vunpack.c.l.b16 %v10025
    %v10097 = vunpack.c.l.b16 %v10026
    %v10098 = vunpack.c.l.b16 %v10027
    %v10099 = vunpack.c.l.b16 %v10028
    %v10100 = vunpack.c.l.b16 %v10029
    %v10101 = vunpack.c.l.b16 %v10030
    %v10102 = vunpack.c.l.b16 %v10031
    %v10103 = vunpack.c.l.b16 %v10032
    %v10104 = vunpack.c.l.b16 %v10033
    %v10105 = vunpack.c.l.b16 %v10034
    %v10106 = vunpack.c.l.b16 %v10035
    %v10107 = vunpack.c.l.b16 %v10036
    %v10108 = vunpack.c.l.b16 %v10037
    %v10109 = vunpack.c.l.b16 %v10038
    %v10110 = vunpack.c.l.b16 %v10039
    %v10111 = vunpack.c.l.b16 %v10040
    %v10112 = vpack.c.b16 %v10081, %v10080
    %v10113 = vpack.c.b16 %v10083, %v10082
    %v10114 = vpack.c.b16 %v10085, %v10084
    %v10115 = vpack.c.b16 %v10087, %v10086
    %v10116 = vpack.c.b16 %v10089, %v10088
    %v10117 = vpack.c.b16 %v10091, %v10090
    %v10118 = vpack.c.b16 %v10093, %v10092
    %v10119 = vpack.c.b16 %v10095, %v10094
    %v10120 = vpack.c.b16 %v10097, %v10096
    %v10121 = vpack.c.b16 %v10099, %v10098
    %v10122 = vpack.c.b16 %v10101, %v10100
    %v10123 = vpack.c.b16 %v10103, %v10102
    %v10124 = vpack.c.b16 %v10105, %v10104
    %v10125 = vpack.c.b16 %v10107, %v10106
    %v10126 = vpack.c.b16 %v10109, %v10108
    %v10127 = vpack.c.b16 %v10111, %v10110
    %10144 = vmatprep.subr.bf16.mxu0 0
    %10145 = vmatpush1.bf16.msra.mxu0 %v10112
    %10146 = vmatprep.subr.bf16.mxu0 0
    %10147 = vmatpush1.bf16.msra.mxu0 %v10113
    %10148 = vmatprep.subr.bf16.mxu0 0
    %10149 = vmatpush1.bf16.msra.mxu0 %v10114
    %10150 = vmatprep.subr.bf16.mxu0 0
    %10151 = vmatpush1.bf16.msra.mxu0 %v10115
    %10152 = vmatprep.subr.bf16.mxu0 0
    %10153 = vmatpush1.bf16.msra.mxu0 %v10116
    %10154 = vmatprep.subr.bf16.mxu0 0
    %10155 = vmatpush1.bf16.msra.mxu0 %v10117
    %10156 = vmatprep.subr.bf16.mxu0 0
    %10157 = vmatpush1.bf16.msra.mxu0 %v10118
    %10158 = vmatprep.subr.bf16.mxu0 0
    %10159 = vmatpush1.bf16.msra.mxu0 %v10119
    %10160 = vmatprep.subr.bf16.mxu0 0
    %10161 = vmatpush1.bf16.msra.mxu0 %v10120
    %10162 = vmatprep.subr.bf16.mxu0 0
    %10163 = vmatpush1.bf16.msra.mxu0 %v10121
    %10164 = vmatprep.subr.bf16.mxu0 0
    %10165 = vmatpush1.bf16.msra.mxu0 %v10122
    %10166 = vmatprep.subr.bf16.mxu0 0
    %10167 = vmatpush1.bf16.msra.mxu0 %v10123
    %10168 = vmatprep.subr.bf16.mxu0 0
    %10169 = vmatpush1.bf16.msra.mxu0 %v10124
    %10170 = vmatprep.subr.bf16.mxu0 0
    %10171 = vmatpush1.bf16.msra.mxu0 %v10125
    %10172 = vmatprep.subr.bf16.mxu0 0
    %10173 = vmatpush1.bf16.msra.mxu0 %v10126
    %10174 = vmatprep.subr.bf16.mxu0 0
    %10175 = vmatpush1.bf16.msra.mxu0 %v10127
    %10176 = vmatprep.mubr.bf16.mxu0 %v10008
    %10177 = vmatmul.mubr.bf16.gmra.mrb[0].mxu0 %v10007
    %v10178 = vpop.f32.mrb[0].mxu0
    %v10179 = vadd.f32 %v10046, %v10178
    %v10180 = vpop.f32.mrb[0].mxu0
    %v10181 = vpop.f32.mrb[0].mxu0
    %v10182 = vpop.f32.mrb[0].mxu0
    %10183 = vdwg.mxu0
    %10184 = vst [vmem:[%s24] sm:$0x3] %v10179
    // Predicated region
    $region174: #{transformer_with_bpm_forward.1} parent=1 // pred_check
      _
    $region175: #{transformer_with_bpm_forward.1} parent=1 // pred_check_branch
      %10186 = sbr.rel (0) target = $region177
    $region176: #{transformer_with_bpm_forward.1} parent=1 // pred_region
      _
    $region177: #{transformer_with_bpm_forward.1} parent=1 // pred_fallthru
      _
    // Predicated region
    $region178: #{transformer_with_bpm_forward.1} parent=1 // pred_check
      _
    $region179: #{transformer_with_bpm_forward.1} parent=1 // pred_check_branch
      %10188 = sbr.rel (0) target = $region181
    $region180: #{transformer_with_bpm_forward.1} parent=1 // pred_region
      _
    $region181: #{transformer_with_bpm_forward.1} parent=1 // pred_fallthru
      _
    %10189 = vsyncpa [#allocation4], 1
    %10190 = vsyncpa [#allocation6], 1
    %10191 = vsyncpa [#allocation9], 1
    %10192 = vsyncpa [#allocation12], 1
    %10193 = vsyncpa [#allocation15], 1
    %10194 = vsyncpa [#allocation18], 1
    %10195 = vsyncpa [#allocation21], 1
    %10196 = vsyncpa [#allocation24], 1
    %10197 = vsyncpa [#allocation27], 1
    %10198 = vsyncpa [#allocation30], 1

</llo_original>
